<compile_context>
chip_gen: v5e
topology: v5e:2x2
jax: 0.10.0
libtpu: 0.0.40
codegen_flags: <defaults>
</compile_context>

<pallas_src>
import functools

import jax
import jax.numpy as jnp
from jax.experimental import pallas as pl
from jax.experimental.pallas import tpu as pltpu


_FEATS = (64, 128, 256, 512)          # out-channels of the 4 discriminator blocks
_BN_EPS = 1e-5
_VMEM_LIMIT = 32 * 1024 * 1024


def _round_up(x, m):
    return (x + m - 1) // m * m


# ----------------------------- Pallas kernels ------------------------------ #

def _conv_block_kernel(*refs, leaky, bn, m_real, m_block):
    """Fused im2col-conv block: (TM, K)bf16 @ (K, C)bf16 -> f32, + bias,
    optional BatchNorm (batch stats over the M rows), optional LeakyReLU(0.2)."""
    if bn:
        x_ref, w_ref, b_ref, g_ref, beta_ref, o_ref = refs
    else:
        x_ref, w_ref, b_ref, o_ref = refs
        g_ref = beta_ref = None

    acc = jnp.dot(x_ref[...], w_ref[...], preferred_element_type=jnp.float32)
    acc = acc + b_ref[...]

    if bn:
        if m_block > m_real:
            # Mask zero-padded rows out of the batch statistics.
            rows = jax.lax.broadcasted_iota(jnp.int32, acc.shape, 0)
            valid = (rows < m_real).astype(jnp.float32)
            inv_n = 1.0 / float(m_real)
            mean = jnp.sum(acc * valid, axis=0, keepdims=True) * inv_n
            cen = (acc - mean) * valid
            var = jnp.sum(cen * cen, axis=0, keepdims=True) * inv_n
        else:
            mean = jnp.mean(acc, axis=0, keepdims=True)
            cen = acc - mean
            var = jnp.mean(cen * cen, axis=0, keepdims=True)   # biased variance
        scale = g_ref[...] * jax.lax.rsqrt(var + _BN_EPS)
        acc = (acc - mean) * scale + beta_ref[...]

    if leaky:
        acc = jnp.where(acc >= 0, acc, 0.2 * acc)

    o_ref[...] = acc


def _final_conv_kernel(x_ref, w_ref, b_ref, o_ref):
    """Cout=1 conv as a VPU multiply + lane-reduce: (M, K) * (1, K) -> (M, 1)."""
    x = x_ref[...].astype(jnp.float32)
    w = w_ref[...].astype(jnp.float32)
    o_ref[...] = jnp.sum(x * w, axis=-1, keepdims=True) + b_ref[...]


# ------------------------------ Pallas wrappers ----------------------------- #

def conv_block(patches, wq, bq, gq=None, betaq=None, *, cout, leaky, bn):
    """patches: (M, K) f32; wq: (Kp, Cp) bf16 (pre-padded); bq/gq/betaq: (1, Cp) f32."""
    M, K = patches.shape
    Kp, Cp = wq.shape
    Mp8 = _round_up(M, 8)

    if bn:
        # BN needs the full M extent resident in one block.
        TM = Mp8
    else:
        # Two tiles for conv0 so v7x's two TensorCores both get work; still
        # only 2 serial grid steps on single-TC v5e/v6e.
        TM = Mp8 if Mp8 <= 256 else 256
    Mp = _round_up(M, TM)

    if (M, K) == (Mp, Kp):
        xq = patches.astype(jnp.bfloat16)
    else:
        xq = jnp.zeros((Mp, Kp), jnp.bfloat16).at[:M, :K].set(
            patches.astype(jnp.bfloat16))

    in_specs = [
        pl.BlockSpec((TM, Kp), lambda i: (i, 0)),
        pl.BlockSpec((Kp, Cp), lambda i: (0, 0)),
        pl.BlockSpec((1, Cp), lambda i: (0, 0)),
    ]
    inputs = [xq, wq, bq]
    if bn:
        in_specs += [
            pl.BlockSpec((1, Cp), lambda i: (0, 0)),
            pl.BlockSpec((1, Cp), lambda i: (0, 0)),
        ]
        inputs += [gq, betaq]

    out = pl.pallas_call(
        functools.partial(_conv_block_kernel, leaky=leaky, bn=bn,
                          m_real=M, m_block=TM),
        out_shape=jax.ShapeDtypeStruct((Mp, Cp), jnp.float32),
        grid=(Mp // TM,),
        in_specs=in_specs,
        out_specs=pl.BlockSpec((TM, Cp), lambda i: (i, 0)),
        compiler_params=pltpu.CompilerParams(
            dimension_semantics=("parallel",),
            vmem_limit_bytes=_VMEM_LIMIT),
    )(*inputs)

    if (Mp, Cp) == (M, cout):
        return out
    return out[:M, :cout]


def final_conv(patches, w_row, b11):
    """patches: (M, K) f32; w_row: (1, Kp) bf16; b11: (1, 1) f32 -> (M, 1) f32."""
    M, K = patches.shape
    Kp = w_row.shape[1]
    Mp8 = _round_up(M, 8)

    if (M, K) == (Mp8, Kp):
        xq = patches.astype(jnp.bfloat16)
    else:
        xq = jnp.zeros((Mp8, Kp), jnp.bfloat16).at[:M, :K].set(
            patches.astype(jnp.bfloat16))

    out = pl.pallas_call(
        _final_conv_kernel,
        out_shape=jax.ShapeDtypeStruct((Mp8, 1), jnp.float32),
        grid=(1,),
        in_specs=[
            pl.BlockSpec((Mp8, Kp), lambda i: (0, 0)),
            pl.BlockSpec((1, Kp), lambda i: (0, 0)),
            pl.BlockSpec((1, 1), lambda i: (0, 0)),
        ],
        out_specs=pl.BlockSpec((Mp8, 1), lambda i: (0, 0)),
        compiler_params=pltpu.CompilerParams(
            dimension_semantics=("arbitrary",),
            vmem_limit_bytes=_VMEM_LIMIT),
    )(xq, w_row, b11)
    return out if Mp8 == M else out[:M, :]


# --------------------------------- JAX glue --------------------------------- #

def im2col(x_nhwc, k, stride, pad):
    """pad = (top, bottom, left, right). Returns ((N*OH*OW, k*k*C), OH, OW)."""
    N, H, W, C = x_nhwc.shape
    pt, pb, plft, prt = pad
    xp = jnp.pad(x_nhwc, ((0, 0), (pt, pb), (plft, prt), (0, 0)))
    Hp, Wp = H + pt + pb, W + plft + prt
    OH = (Hp - k) // stride + 1
    OW = (Wp - k) // stride + 1
    cols = []
    for kh in range(k):
        for kw in range(k):
            cols.append(xp[:, kh:kh + stride * OH:stride,
                           kw:kw + stride * OW:stride, :])
    patches = jnp.stack(cols, axis=3)               # (N, OH, OW, k*k, C)
    return patches.reshape(N * OH * OW, k * k * C), OH, OW


def _w_to_2d(w):
    """(Cout, Cin, KH, KW) torch-layout -> (KH*KW*Cin, Cout), matching im2col order."""
    cout, cin, kh, kw = w.shape
    return jnp.transpose(w, (2, 3, 1, 0)).reshape(kh * kw * cin, cout)


def init_params(key, channels):
    chans = [channels] + list(_FEATS)
    params = {}
    for i in range(4):
        key, k1, k2 = jax.random.split(key, 3)
        params[f"conv{i}_w"] = 0.05 * jax.random.normal(
            k1, (chans[i + 1], chans[i], 4, 4), jnp.float32)
        params[f"conv{i}_b"] = 0.05 * jax.random.normal(
            k2, (chans[i + 1],), jnp.float32)
        if i > 0:  # blocks 2..4 have BatchNorm
            params[f"bn{i}_gamma"] = jnp.ones((chans[i + 1],), jnp.float32)
            params[f"bn{i}_beta"] = jnp.zeros((chans[i + 1],), jnp.float32)
    key, k1, k2 = jax.random.split(key, 3)
    params["conv_final_w"] = 0.05 * jax.random.normal(k1, (1, 512, 4, 4), jnp.float32)
    params["conv_final_b"] = 0.05 * jax.random.normal(k2, (1,), jnp.float32)
    return params


def prepare_params(params):
    """One-time (outside the jitted forward): transpose, zero-pad and cast
    weights to bf16, pad biases / BN params to lane-aligned (1, Cp) f32."""
    prep = {}
    for i in range(4):
        w = params[f"conv{i}_w"]                     # (Cout, Cin, 4, 4)
        b = params[f"conv{i}_b"]
        cout = w.shape[0]
        w2d = _w_to_2d(w)                            # (K, Cout)
        K = w2d.shape[0]
        Kp = _round_up(K, 128)
        Cp = _round_up(cout, 128)
        prep[f"conv{i}_w"] = jnp.zeros((Kp, Cp), jnp.bfloat16).at[:K, :cout].set(
            w2d.astype(jnp.bfloat16))
        prep[f"conv{i}_b"] = jnp.zeros((1, Cp), jnp.float32).at[0, :cout].set(b)
        if i > 0:
            prep[f"bn{i}_gamma"] = jnp.zeros((1, Cp), jnp.float32).at[0, :cout].set(
                params[f"bn{i}_gamma"])
            prep[f"bn{i}_beta"] = jnp.zeros((1, Cp), jnp.float32).at[0, :cout].set(
                params[f"bn{i}_beta"])
    # Final conv (Cout = 1): keep the weight as a single bf16 row for the VPU kernel.
    w2d = _w_to_2d(params["conv_final_w"])           # (K, 1)
    K = w2d.shape[0]
    Kp = _round_up(K, 128)
    prep["final_w"] = jnp.zeros((1, Kp), jnp.bfloat16).at[0, :K].set(
        w2d[:, 0].astype(jnp.bfloat16))
    prep["final_b"] = params["conv_final_b"].reshape(1, 1).astype(jnp.float32)
    return prep


def discriminator_forward(img_nchw, prep):
    x = jnp.transpose(img_nchw, (0, 2, 3, 1)).astype(jnp.float32)   # -> NHWC

    for i, normalize in enumerate((False, True, True, True)):
        N = x.shape[0]
        patches, OH, OW = im2col(x, 4, 2, (1, 1, 1, 1))              # k=4 s=2 p=1
        if normalize:
            y = conv_block(patches, prep[f"conv{i}_w"], prep[f"conv{i}_b"],
                           prep[f"bn{i}_gamma"], prep[f"bn{i}_beta"],
                           cout=_FEATS[i], leaky=True, bn=True)
        else:
            y = conv_block(patches, prep[f"conv{i}_w"], prep[f"conv{i}_b"],
                           cout=_FEATS[i], leaky=True, bn=False)
        x = y.reshape(N, OH, OW, _FEATS[i])

    # ZeroPad2d((1,0,1,0)) + Conv2d(512,1,4,padding=1) => pad (t,b,l,r)=(2,1,2,1), stride 1
    N = x.shape[0]
    patches, OH, OW = im2col(x, 4, 1, (2, 1, 2, 1))
    y = final_conv(patches, prep["final_w"], prep["final_b"])
    y = y.reshape(N, OH, OW, 1)
    return jnp.transpose(y, (0, 3, 1, 2))                            # -> NCHW


# ----------------------------------- main ----------------------------------- #

if __name__ == "__main__":
    key = jax.random.PRNGKey(0)
    k_img, k_par = jax.random.split(key)

    # input_shape = (channels=3, height=32, width=32); batch=2
    batch, channels, height, width = 2, 3, 32, 32
    img = jax.random.normal(k_img, (batch, channels, height, width), jnp.float32)
    params = init_params(k_par, channels)
    prep = prepare_params(params)                    # one-time weight prep (not jitted)

    fwd = jax.jit(discriminator_forward)
    out = fwd(img, prep)
    out = jax.block_until_ready(out)

    expected_shape = (batch, 1, height // 2 ** 4, width // 2 ** 4)   # (2, 1, 2, 2)
    assert out.shape == expected_shape, (out.shape, expected_shape)
    assert bool(jnp.all(jnp.isfinite(out)))
    print("KERNEL_OK")
</pallas_src>

<mosaic_0001>
module attributes {stable_mosaic.version = 11 : i64} {
  func.func @_conv_block_kernel(%arg0: i32, %arg1: memref<256x128xbf16, #tpu.memory_space<vmem>>, %arg2: memref<128x128xbf16, #tpu.memory_space<vmem>>, %arg3: memref<1x128xf32, #tpu.memory_space<vmem>>, %arg4: memref<256x128xf32, #tpu.memory_space<vmem>>) attributes {dimension_semantics = [#tpu.dimension_semantics<parallel>], iteration_bounds = array<i64: 2>, scalar_prefetch = 0 : i64, scratch_operands = 0 : i64, tpu.core_type = #tpu.core_type<tc>, window_params = [{transform_indices = @transform_0, window_bounds = array<i64: 256, 128>}, {pipeline_mode = #tpu.pipeline_mode<synchronous>, transform_indices = @transform_1, window_bounds = array<i64: 128, 128>}, {pipeline_mode = #tpu.pipeline_mode<synchronous>, transform_indices = @transform_2, window_bounds = array<i64: 1, 128>}, {transform_indices = @transform_3, window_bounds = array<i64: 256, 128>}]} {
    %c0 = arith.constant 0 : index
    %c0_0 = arith.constant 0 : index
    %0 = vector.load %arg1[%c0, %c0_0] : memref<256x128xbf16, #tpu.memory_space<vmem>>, vector<256x128xbf16>
    %c0_1 = arith.constant 0 : index
    %c0_2 = arith.constant 0 : index
    %1 = vector.load %arg2[%c0_1, %c0_2] : memref<128x128xbf16, #tpu.memory_space<vmem>>, vector<128x128xbf16>
    %cst = arith.constant dense<0.000000e+00> : vector<256x128xf32>
    %2 = tpu.matmul %0, %1, %cst {dimension_numbers = #tpu.dot_dimension_numbers<[1], [0], [0], [1], [0, 0, 1, 1], [], []>} : vector<256x128xbf16>, vector<128x128xbf16>, vector<256x128xf32> -> vector<256x128xf32>
    %c0_3 = arith.constant 0 : index
    %c0_4 = arith.constant 0 : index
    %3 = vector.load %arg3[%c0_3, %c0_4] : memref<1x128xf32, #tpu.memory_space<vmem>>, vector<1x128xf32>
    %4 = vector.broadcast %3 : vector<1x128xf32> to vector<256x128xf32>
    %5 = arith.addf %2, %4 : vector<256x128xf32>
    %cst_5 = arith.constant 0.000000e+00 : f32
    %6 = vector.broadcast %cst_5 : f32 to vector<256x128xf32>
    %7 = arith.cmpf oge, %5, %6 : vector<256x128xf32>
    %cst_6 = arith.constant 2.000000e-01 : f32
    %8 = vector.broadcast %cst_6 : f32 to vector<256x128xf32>
    %9 = arith.mulf %8, %5 : vector<256x128xf32>
    %10 = arith.select %7, %5, %9 : vector<256x128xi1>, vector<256x128xf32>
    %c0_7 = arith.constant 0 : index
    %c0_8 = arith.constant 0 : index
    %11 = vector.load %arg4[%c0_7, %c0_8] : memref<256x128xf32, #tpu.memory_space<vmem>>, vector<256x128xf32>
    tpu.vector_store %arg4[%c0_7, %c0_8], %10 {strides = array<i32>} : memref<256x128xf32, #tpu.memory_space<vmem>>, vector<256x128xf32>,
    return
  }
  func.func @transform_0(%arg0: i32) -> (i32, i32) {
    %c0_i32 = arith.constant 0 : i32
    %c0_i32_0 = arith.constant 0 : i32
    return %arg0, %c0_i32 : i32, i32
  }
  func.func @transform_1(%arg0: i32) -> (i32, i32) {
    %c0_i32 = arith.constant 0 : i32
    %c0_i32_0 = arith.constant 0 : i32
    %c0_i32_1 = arith.constant 0 : i32
    return %c0_i32, %c0_i32_0 : i32, i32
  }
  func.func @transform_2(%arg0: i32) -> (i32, i32) {
    %c0_i32 = arith.constant 0 : i32
    %c0_i32_0 = arith.constant 0 : i32
    %c0_i32_1 = arith.constant 0 : i32
    return %c0_i32, %c0_i32_0 : i32, i32
  }
  func.func @transform_3(%arg0: i32) -> (i32, i32) {
    %c0_i32 = arith.constant 0 : i32
    %c0_i32_0 = arith.constant 0 : i32
    return %arg0, %c0_i32 : i32, i32
  }
}

module attributes {stable_mosaic.version = 11 : i64} {
  func.func @_conv_block_kernel(%arg0: i32, %arg1: memref<128x1024xbf16, #tpu.memory_space<vmem>>, %arg2: memref<1024x128xbf16, #tpu.memory_space<vmem>>, %arg3: memref<1x128xf32, #tpu.memory_space<vmem>>, %arg4: memref<1x128xf32, #tpu.memory_space<vmem>>, %arg5: memref<1x128xf32, #tpu.memory_space<vmem>>, %arg6: memref<128x128xf32, #tpu.memory_space<vmem>>) attributes {dimension_semantics = [#tpu.dimension_semantics<parallel>], iteration_bounds = array<i64: 1>, scalar_prefetch = 0 : i64, scratch_operands = 0 : i64, tpu.core_type = #tpu.core_type<tc>, window_params = [{transform_indices = @transform_0, window_bounds = array<i64: 128, 1024>}, {pipeline_mode = #tpu.pipeline_mode<synchronous>, transform_indices = @transform_1, window_bounds = array<i64: 1024, 128>}, {pipeline_mode = #tpu.pipeline_mode<synchronous>, transform_indices = @transform_2, window_bounds = array<i64: 1, 128>}, {pipeline_mode = #tpu.pipeline_mode<synchronous>, transform_indices = @transform_3, window_bounds = array<i64: 1, 128>}, {pipeline_mode = #tpu.pipeline_mode<synchronous>, transform_indices = @transform_4, window_bounds = array<i64: 1, 128>}, {transform_indices = @transform_5, window_bounds = array<i64: 128, 128>}]} {
    %c0 = arith.constant 0 : index
    %c0_0 = arith.constant 0 : index
    %0 = vector.load %arg1[%c0, %c0_0] : memref<128x1024xbf16, #tpu.memory_space<vmem>>, vector<128x1024xbf16>
    %c0_1 = arith.constant 0 : index
    %c0_2 = arith.constant 0 : index
    %1 = vector.load %arg2[%c0_1, %c0_2] : memref<1024x128xbf16, #tpu.memory_space<vmem>>, vector<1024x128xbf16>
    %cst = arith.constant dense<0.000000e+00> : vector<128x128xf32>
    %2 = tpu.matmul %0, %1, %cst {dimension_numbers = #tpu.dot_dimension_numbers<[1], [0], [0], [1], [0, 0, 1, 1], [], []>} : vector<128x1024xbf16>, vector<1024x128xbf16>, vector<128x128xf32> -> vector<128x128xf32>
    %c0_3 = arith.constant 0 : index
    %c0_4 = arith.constant 0 : index
    %3 = vector.load %arg3[%c0_3, %c0_4] : memref<1x128xf32, #tpu.memory_space<vmem>>, vector<1x128xf32>
    %4 = vector.broadcast %3 : vector<1x128xf32> to vector<128x128xf32>
    %5 = arith.addf %2, %4 : vector<128x128xf32>
    %cst_5 = arith.constant dense<0.000000e+00> : vector<128xf32>
    %6 = vector.multi_reduction <add>, %5, %cst_5 [0] : vector<128x128xf32> to vector<128xf32>
    %7 = vector.shape_cast %6 : vector<128xf32> to vector<1x128xf32>
    %cst_6 = arith.constant 1.280000e+02 : f32
    %8 = vector.broadcast %cst_6 : f32 to vector<1x128xf32>
    %9 = arith.divf %7, %8 : vector<1x128xf32>
    %10 = vector.broadcast %9 : vector<1x128xf32> to vector<128x128xf32>
    %11 = arith.subf %5, %10 : vector<128x128xf32>
    %12 = arith.mulf %11, %11 : vector<128x128xf32>
    %cst_7 = arith.constant dense<0.000000e+00> : vector<128xf32>
    %13 = vector.multi_reduction <add>, %12, %cst_7 [0] : vector<128x128xf32> to vector<128xf32>
    %14 = vector.shape_cast %13 : vector<128xf32> to vector<1x128xf32>
    %cst_8 = arith.constant 1.280000e+02 : f32
    %15 = vector.broadcast %cst_8 : f32 to vector<1x128xf32>
    %16 = arith.divf %14, %15 : vector<1x128xf32>
    %c0_9 = arith.constant 0 : index
    %c0_10 = arith.constant 0 : index
    %17 = vector.load %arg4[%c0_9, %c0_10] : memref<1x128xf32, #tpu.memory_space<vmem>>, vector<1x128xf32>
    %cst_11 = arith.constant 9.99999974E-6 : f32
    %18 = vector.broadcast %cst_11 : f32 to vector<1x128xf32>
    %19 = arith.addf %16, %18 : vector<1x128xf32>
    %20 = math.rsqrt %19 : vector<1x128xf32>
    %21 = arith.mulf %17, %20 : vector<1x128xf32>
    %22 = vector.broadcast %9 : vector<1x128xf32> to vector<128x128xf32>
    %23 = arith.subf %5, %22 : vector<128x128xf32>
    %24 = vector.broadcast %21 : vector<1x128xf32> to vector<128x128xf32>
    %25 = arith.mulf %23, %24 : vector<128x128xf32>
    %c0_12 = arith.constant 0 : index
    %c0_13 = arith.constant 0 : index
    %26 = vector.load %arg5[%c0_12, %c0_13] : memref<1x128xf32, #tpu.memory_space<vmem>>, vector<1x128xf32>
    %27 = vector.broadcast %26 : vector<1x128xf32> to vector<128x128xf32>
    %28 = arith.addf %25, %27 : vector<128x128xf32>
    %cst_14 = arith.constant 0.000000e+00 : f32
    %29 = vector.broadcast %cst_14 : f32 to vector<128x128xf32>
    %30 = arith.cmpf oge, %28, %29 : vector<128x128xf32>
    %cst_15 = arith.constant 2.000000e-01 : f32
    %31 = vector.broadcast %cst_15 : f32 to vector<128x128xf32>
    %32 = arith.mulf %31, %28 : vector<128x128xf32>
    %33 = arith.select %30, %28, %32 : vector<128x128xi1>, vector<128x128xf32>
    %c0_16 = arith.constant 0 : index
    %c0_17 = arith.constant 0 : index
    %34 = vector.load %arg6[%c0_16, %c0_17] : memref<128x128xf32, #tpu.memory_space<vmem>>, vector<128x128xf32>
    tpu.vector_store %arg6[%c0_16, %c0_17], %33 {strides = array<i32>} : memref<128x128xf32, #tpu.memory_space<vmem>>, vector<128x128xf32>,
    return
  }
  func.func @transform_0(%arg0: i32) -> (i32, i32) {
    %c0_i32 = arith.constant 0 : i32
    %c0_i32_0 = arith.constant 0 : i32
    return %arg0, %c0_i32 : i32, i32
  }
  func.func @transform_1(%arg0: i32) -> (i32, i32) {
    %c0_i32 = arith.constant 0 : i32
    %c0_i32_0 = arith.constant 0 : i32
    %c0_i32_1 = arith.constant 0 : i32
    return %c0_i32, %c0_i32_0 : i32, i32
  }
  func.func @transform_2(%arg0: i32) -> (i32, i32) {
    %c0_i32 = arith.constant 0 : i32
    %c0_i32_0 = arith.constant 0 : i32
    %c0_i32_1 = arith.constant 0 : i32
    return %c0_i32, %c0_i32_0 : i32, i32
  }
  func.func @transform_3(%arg0: i32) -> (i32, i32) {
    %c0_i32 = arith.constant 0 : i32
    %c0_i32_0 = arith.constant 0 : i32
    %c0_i32_1 = arith.constant 0 : i32
    return %c0_i32, %c0_i32_0 : i32, i32
  }
  func.func @transform_4(%arg0: i32) -> (i32, i32) {
    %c0_i32 = arith.constant 0 : i32
    %c0_i32_0 = arith.constant 0 : i32
    %c0_i32_1 = arith.constant 0 : i32
    return %c0_i32, %c0_i32_0 : i32, i32
  }
  func.func @transform_5(%arg0: i32) -> (i32, i32) {
    %c0_i32 = arith.constant 0 : i32
    %c0_i32_0 = arith.constant 0 : i32
    return %arg0, %c0_i32 : i32, i32
  }
}

module attributes {stable_mosaic.version = 11 : i64} {
  func.func @_conv_block_kernel(%arg0: i32, %arg1: memref<32x2048xbf16, #tpu.memory_space<vmem>>, %arg2: memref<2048x256xbf16, #tpu.memory_space<vmem>>, %arg3: memref<1x256xf32, #tpu.memory_space<vmem>>, %arg4: memref<1x256xf32, #tpu.memory_space<vmem>>, %arg5: memref<1x256xf32, #tpu.memory_space<vmem>>, %arg6: memref<32x256xf32, #tpu.memory_space<vmem>>) attributes {dimension_semantics = [#tpu.dimension_semantics<parallel>], iteration_bounds = array<i64: 1>, scalar_prefetch = 0 : i64, scratch_operands = 0 : i64, tpu.core_type = #tpu.core_type<tc>, window_params = [{transform_indices = @transform_0, window_bounds = array<i64: 32, 2048>}, {pipeline_mode = #tpu.pipeline_mode<synchronous>, transform_indices = @transform_1, window_bounds = array<i64: 2048, 256>}, {pipeline_mode = #tpu.pipeline_mode<synchronous>, transform_indices = @transform_2, window_bounds = array<i64: 1, 256>}, {pipeline_mode = #tpu.pipeline_mode<synchronous>, transform_indices = @transform_3, window_bounds = array<i64: 1, 256>}, {pipeline_mode = #tpu.pipeline_mode<synchronous>, transform_indices = @transform_4, window_bounds = array<i64: 1, 256>}, {transform_indices = @transform_5, window_bounds = array<i64: 32, 256>}]} {
    %c0 = arith.constant 0 : index
    %c0_0 = arith.constant 0 : index
    %0 = vector.load %arg1[%c0, %c0_0] : memref<32x2048xbf16, #tpu.memory_space<vmem>>, vector<32x2048xbf16>
    %c0_1 = arith.constant 0 : index
    %c0_2 = arith.constant 0 : index
    %1 = vector.load %arg2[%c0_1, %c0_2] : memref<2048x256xbf16, #tpu.memory_space<vmem>>, vector<2048x256xbf16>
    %cst = arith.constant dense<0.000000e+00> : vector<32x256xf32>
    %2 = tpu.matmul %0, %1, %cst {dimension_numbers = #tpu.dot_dimension_numbers<[1], [0], [0], [1], [0, 0, 1, 1], [], []>} : vector<32x2048xbf16>, vector<2048x256xbf16>, vector<32x256xf32> -> vector<32x256xf32>
    %c0_3 = arith.constant 0 : index
    %c0_4 = arith.constant 0 : index
    %3 = vector.load %arg3[%c0_3, %c0_4] : memref<1x256xf32, #tpu.memory_space<vmem>>, vector<1x256xf32>
    %4 = vector.broadcast %3 : vector<1x256xf32> to vector<32x256xf32>
    %5 = arith.addf %2, %4 : vector<32x256xf32>
    %cst_5 = arith.constant dense<0.000000e+00> : vector<256xf32>
    %6 = vector.multi_reduction <add>, %5, %cst_5 [0] : vector<32x256xf32> to vector<256xf32>
    %7 = vector.shape_cast %6 : vector<256xf32> to vector<1x256xf32>
    %cst_6 = arith.constant 3.200000e+01 : f32
    %8 = vector.broadcast %cst_6 : f32 to vector<1x256xf32>
    %9 = arith.divf %7, %8 : vector<1x256xf32>
    %10 = vector.broadcast %9 : vector<1x256xf32> to vector<32x256xf32>
    %11 = arith.subf %5, %10 : vector<32x256xf32>
    %12 = arith.mulf %11, %11 : vector<32x256xf32>
    %cst_7 = arith.constant dense<0.000000e+00> : vector<256xf32>
    %13 = vector.multi_reduction <add>, %12, %cst_7 [0] : vector<32x256xf32> to vector<256xf32>
    %14 = vector.shape_cast %13 : vector<256xf32> to vector<1x256xf32>
    %cst_8 = arith.constant 3.200000e+01 : f32
    %15 = vector.broadcast %cst_8 : f32 to vector<1x256xf32>
    %16 = arith.divf %14, %15 : vector<1x256xf32>
    %c0_9 = arith.constant 0 : index
    %c0_10 = arith.constant 0 : index
    %17 = vector.load %arg4[%c0_9, %c0_10] : memref<1x256xf32, #tpu.memory_space<vmem>>, vector<1x256xf32>
    %cst_11 = arith.constant 9.99999974E-6 : f32
    %18 = vector.broadcast %cst_11 : f32 to vector<1x256xf32>
    %19 = arith.addf %16, %18 : vector<1x256xf32>
    %20 = math.rsqrt %19 : vector<1x256xf32>
    %21 = arith.mulf %17, %20 : vector<1x256xf32>
    %22 = vector.broadcast %9 : vector<1x256xf32> to vector<32x256xf32>
    %23 = arith.subf %5, %22 : vector<32x256xf32>
    %24 = vector.broadcast %21 : vector<1x256xf32> to vector<32x256xf32>
    %25 = arith.mulf %23, %24 : vector<32x256xf32>
    %c0_12 = arith.constant 0 : index
    %c0_13 = arith.constant 0 : index
    %26 = vector.load %arg5[%c0_12, %c0_13] : memref<1x256xf32, #tpu.memory_space<vmem>>, vector<1x256xf32>
    %27 = vector.broadcast %26 : vector<1x256xf32> to vector<32x256xf32>
    %28 = arith.addf %25, %27 : vector<32x256xf32>
    %cst_14 = arith.constant 0.000000e+00 : f32
    %29 = vector.broadcast %cst_14 : f32 to vector<32x256xf32>
    %30 = arith.cmpf oge, %28, %29 : vector<32x256xf32>
    %cst_15 = arith.constant 2.000000e-01 : f32
    %31 = vector.broadcast %cst_15 : f32 to vector<32x256xf32>
    %32 = arith.mulf %31, %28 : vector<32x256xf32>
    %33 = arith.select %30, %28, %32 : vector<32x256xi1>, vector<32x256xf32>
    %c0_16 = arith.constant 0 : index
    %c0_17 = arith.constant 0 : index
    %34 = vector.load %arg6[%c0_16, %c0_17] : memref<32x256xf32, #tpu.memory_space<vmem>>, vector<32x256xf32>
    tpu.vector_store %arg6[%c0_16, %c0_17], %33 {strides = array<i32>} : memref<32x256xf32, #tpu.memory_space<vmem>>, vector<32x256xf32>,
    return
  }
  func.func @transform_0(%arg0: i32) -> (i32, i32) {
    %c0_i32 = arith.constant 0 : i32
    %c0_i32_0 = arith.constant 0 : i32
    return %arg0, %c0_i32 : i32, i32
  }
  func.func @transform_1(%arg0: i32) -> (i32, i32) {
    %c0_i32 = arith.constant 0 : i32
    %c0_i32_0 = arith.constant 0 : i32
    %c0_i32_1 = arith.constant 0 : i32
    return %c0_i32, %c0_i32_0 : i32, i32
  }
  func.func @transform_2(%arg0: i32) -> (i32, i32) {
    %c0_i32 = arith.constant 0 : i32
    %c0_i32_0 = arith.constant 0 : i32
    %c0_i32_1 = arith.constant 0 : i32
    return %c0_i32, %c0_i32_0 : i32, i32
  }
  func.func @transform_3(%arg0: i32) -> (i32, i32) {
    %c0_i32 = arith.constant 0 : i32
    %c0_i32_0 = arith.constant 0 : i32
    %c0_i32_1 = arith.constant 0 : i32
    return %c0_i32, %c0_i32_0 : i32, i32
  }
  func.func @transform_4(%arg0: i32) -> (i32, i32) {
    %c0_i32 = arith.constant 0 : i32
    %c0_i32_0 = arith.constant 0 : i32
    %c0_i32_1 = arith.constant 0 : i32
    return %c0_i32, %c0_i32_0 : i32, i32
  }
  func.func @transform_5(%arg0: i32) -> (i32, i32) {
    %c0_i32 = arith.constant 0 : i32
    %c0_i32_0 = arith.constant 0 : i32
    return %arg0, %c0_i32 : i32, i32
  }
}

module attributes {stable_mosaic.version = 11 : i64} {
  func.func @_conv_block_kernel(%arg0: i32, %arg1: memref<8x4096xbf16, #tpu.memory_space<vmem>>, %arg2: memref<4096x512xbf16, #tpu.memory_space<vmem>>, %arg3: memref<1x512xf32, #tpu.memory_space<vmem>>, %arg4: memref<1x512xf32, #tpu.memory_space<vmem>>, %arg5: memref<1x512xf32, #tpu.memory_space<vmem>>, %arg6: memref<8x512xf32, #tpu.memory_space<vmem>>) attributes {dimension_semantics = [#tpu.dimension_semantics<parallel>], iteration_bounds = array<i64: 1>, scalar_prefetch = 0 : i64, scratch_operands = 0 : i64, tpu.core_type = #tpu.core_type<tc>, window_params = [{transform_indices = @transform_0, window_bounds = array<i64: 8, 4096>}, {pipeline_mode = #tpu.pipeline_mode<synchronous>, transform_indices = @transform_1, window_bounds = array<i64: 4096, 512>}, {pipeline_mode = #tpu.pipeline_mode<synchronous>, transform_indices = @transform_2, window_bounds = array<i64: 1, 512>}, {pipeline_mode = #tpu.pipeline_mode<synchronous>, transform_indices = @transform_3, window_bounds = array<i64: 1, 512>}, {pipeline_mode = #tpu.pipeline_mode<synchronous>, transform_indices = @transform_4, window_bounds = array<i64: 1, 512>}, {transform_indices = @transform_5, window_bounds = array<i64: 8, 512>}]} {
    %c0 = arith.constant 0 : index
    %c0_0 = arith.constant 0 : index
    %0 = vector.load %arg1[%c0, %c0_0] : memref<8x4096xbf16, #tpu.memory_space<vmem>>, vector<8x4096xbf16>
    %c0_1 = arith.constant 0 : index
    %c0_2 = arith.constant 0 : index
    %1 = vector.load %arg2[%c0_1, %c0_2] : memref<4096x512xbf16, #tpu.memory_space<vmem>>, vector<4096x512xbf16>
    %cst = arith.constant dense<0.000000e+00> : vector<8x512xf32>
    %2 = tpu.matmul %0, %1, %cst {dimension_numbers = #tpu.dot_dimension_numbers<[1], [0], [0], [1], [0, 0, 1, 1], [], []>} : vector<8x4096xbf16>, vector<4096x512xbf16>, vector<8x512xf32> -> vector<8x512xf32>
    %c0_3 = arith.constant 0 : index
    %c0_4 = arith.constant 0 : index
    %3 = vector.load %arg3[%c0_3, %c0_4] : memref<1x512xf32, #tpu.memory_space<vmem>>, vector<1x512xf32>
    %4 = vector.broadcast %3 : vector<1x512xf32> to vector<8x512xf32>
    %5 = arith.addf %2, %4 : vector<8x512xf32>
    %cst_5 = arith.constant dense<0.000000e+00> : vector<512xf32>
    %6 = vector.multi_reduction <add>, %5, %cst_5 [0] : vector<8x512xf32> to vector<512xf32>
    %7 = vector.shape_cast %6 : vector<512xf32> to vector<1x512xf32>
    %cst_6 = arith.constant 8.000000e+00 : f32
    %8 = vector.broadcast %cst_6 : f32 to vector<1x512xf32>
    %9 = arith.divf %7, %8 : vector<1x512xf32>
    %10 = vector.broadcast %9 : vector<1x512xf32> to vector<8x512xf32>
    %11 = arith.subf %5, %10 : vector<8x512xf32>
    %12 = arith.mulf %11, %11 : vector<8x512xf32>
    %cst_7 = arith.constant dense<0.000000e+00> : vector<512xf32>
    %13 = vector.multi_reduction <add>, %12, %cst_7 [0] : vector<8x512xf32> to vector<512xf32>
    %14 = vector.shape_cast %13 : vector<512xf32> to vector<1x512xf32>
    %cst_8 = arith.constant 8.000000e+00 : f32
    %15 = vector.broadcast %cst_8 : f32 to vector<1x512xf32>
    %16 = arith.divf %14, %15 : vector<1x512xf32>
    %c0_9 = arith.constant 0 : index
    %c0_10 = arith.constant 0 : index
    %17 = vector.load %arg4[%c0_9, %c0_10] : memref<1x512xf32, #tpu.memory_space<vmem>>, vector<1x512xf32>
    %cst_11 = arith.constant 9.99999974E-6 : f32
    %18 = vector.broadcast %cst_11 : f32 to vector<1x512xf32>
    %19 = arith.addf %16, %18 : vector<1x512xf32>
    %20 = math.rsqrt %19 : vector<1x512xf32>
    %21 = arith.mulf %17, %20 : vector<1x512xf32>
    %22 = vector.broadcast %9 : vector<1x512xf32> to vector<8x512xf32>
    %23 = arith.subf %5, %22 : vector<8x512xf32>
    %24 = vector.broadcast %21 : vector<1x512xf32> to vector<8x512xf32>
    %25 = arith.mulf %23, %24 : vector<8x512xf32>
    %c0_12 = arith.constant 0 : index
    %c0_13 = arith.constant 0 : index
    %26 = vector.load %arg5[%c0_12, %c0_13] : memref<1x512xf32, #tpu.memory_space<vmem>>, vector<1x512xf32>
    %27 = vector.broadcast %26 : vector<1x512xf32> to vector<8x512xf32>
    %28 = arith.addf %25, %27 : vector<8x512xf32>
    %cst_14 = arith.constant 0.000000e+00 : f32
    %29 = vector.broadcast %cst_14 : f32 to vector<8x512xf32>
    %30 = arith.cmpf oge, %28, %29 : vector<8x512xf32>
    %cst_15 = arith.constant 2.000000e-01 : f32
    %31 = vector.broadcast %cst_15 : f32 to vector<8x512xf32>
    %32 = arith.mulf %31, %28 : vector<8x512xf32>
    %33 = arith.select %30, %28, %32 : vector<8x512xi1>, vector<8x512xf32>
    %c0_16 = arith.constant 0 : index
    %c0_17 = arith.constant 0 : index
    %34 = vector.load %arg6[%c0_16, %c0_17] : memref<8x512xf32, #tpu.memory_space<vmem>>, vector<8x512xf32>
    tpu.vector_store %arg6[%c0_16, %c0_17], %33 {strides = array<i32>} : memref<8x512xf32, #tpu.memory_space<vmem>>, vector<8x512xf32>,
    return
  }
  func.func @transform_0(%arg0: i32) -> (i32, i32) {
    %c0_i32 = arith.constant 0 : i32
    %c0_i32_0 = arith.constant 0 : i32
    return %arg0, %c0_i32 : i32, i32
  }
  func.func @transform_1(%arg0: i32) -> (i32, i32) {
    %c0_i32 = arith.constant 0 : i32
    %c0_i32_0 = arith.constant 0 : i32
    %c0_i32_1 = arith.constant 0 : i32
    return %c0_i32, %c0_i32_0 : i32, i32
  }
  func.func @transform_2(%arg0: i32) -> (i32, i32) {
    %c0_i32 = arith.constant 0 : i32
    %c0_i32_0 = arith.constant 0 : i32
    %c0_i32_1 = arith.constant 0 : i32
    return %c0_i32, %c0_i32_0 : i32, i32
  }
  func.func @transform_3(%arg0: i32) -> (i32, i32) {
    %c0_i32 = arith.constant 0 : i32
    %c0_i32_0 = arith.constant 0 : i32
    %c0_i32_1 = arith.constant 0 : i32
    return %c0_i32, %c0_i32_0 : i32, i32
  }
  func.func @transform_4(%arg0: i32) -> (i32, i32) {
    %c0_i32 = arith.constant 0 : i32
    %c0_i32_0 = arith.constant 0 : i32
    %c0_i32_1 = arith.constant 0 : i32
    return %c0_i32, %c0_i32_0 : i32, i32
  }
  func.func @transform_5(%arg0: i32) -> (i32, i32) {
    %c0_i32 = arith.constant 0 : i32
    %c0_i32_0 = arith.constant 0 : i32
    return %arg0, %c0_i32 : i32, i32
  }
}

module attributes {stable_mosaic.version = 11 : i64} {
  func.func @_final_conv_kernel(%arg0: i32, %arg1: memref<8x8192xbf16, #tpu.memory_space<vmem>>, %arg2: memref<1x8192xbf16, #tpu.memory_space<vmem>>, %arg3: memref<1x1xf32, #tpu.memory_space<vmem>>, %arg4: memref<8x1xf32, #tpu.memory_space<vmem>>) attributes {dimension_semantics = [#tpu.dimension_semantics<arbitrary>], iteration_bounds = array<i64: 1>, scalar_prefetch = 0 : i64, scratch_operands = 0 : i64, tpu.core_type = #tpu.core_type<tc>, window_params = [{pipeline_mode = #tpu.pipeline_mode<synchronous>, transform_indices = @transform_0, window_bounds = array<i64: 8, 8192>}, {pipeline_mode = #tpu.pipeline_mode<synchronous>, transform_indices = @transform_1, window_bounds = array<i64: 1, 8192>}, {pipeline_mode = #tpu.pipeline_mode<synchronous>, transform_indices = @transform_2, window_bounds = array<i64: 1, 1>}, {pipeline_mode = #tpu.pipeline_mode<synchronous>, transform_indices = @transform_3, window_bounds = array<i64: 8, 1>}]} {
    %c0 = arith.constant 0 : index
    %c0_0 = arith.constant 0 : index
    %0 = vector.load %arg1[%c0, %c0_0] : memref<8x8192xbf16, #tpu.memory_space<vmem>>, vector<8x8192xbf16>
    %1 = arith.extf %0 : vector<8x8192xbf16> to vector<8x8192xf32>
    %c0_1 = arith.constant 0 : index
    %c0_2 = arith.constant 0 : index
    %2 = vector.load %arg2[%c0_1, %c0_2] : memref<1x8192xbf16, #tpu.memory_space<vmem>>, vector<1x8192xbf16>
    %3 = arith.extf %2 : vector<1x8192xbf16> to vector<1x8192xf32>
    %4 = vector.broadcast %3 : vector<1x8192xf32> to vector<8x8192xf32>
    %5 = arith.mulf %1, %4 : vector<8x8192xf32>
    %cst = arith.constant dense<0.000000e+00> : vector<8xf32>
    %6 = vector.multi_reduction <add>, %5, %cst [1] : vector<8x8192xf32> to vector<8xf32>
    %7 = vector.shape_cast %6 : vector<8xf32> to vector<8x1xf32>
    %c0_3 = arith.constant 0 : index
    %c0_4 = arith.constant 0 : index
    %8 = vector.load %arg3[%c0_3, %c0_4] : memref<1x1xf32, #tpu.memory_space<vmem>>, vector<1x1xf32>
    %9 = vector.broadcast %8 : vector<1x1xf32> to vector<8x1xf32>
    %10 = arith.addf %7, %9 : vector<8x1xf32>
    %c0_5 = arith.constant 0 : index
    %c0_6 = arith.constant 0 : index
    %11 = vector.load %arg4[%c0_5, %c0_6] : memref<8x1xf32, #tpu.memory_space<vmem>>, vector<8x1xf32>
    tpu.vector_store %arg4[%c0_5, %c0_6], %10 {strides = array<i32>} : memref<8x1xf32, #tpu.memory_space<vmem>>, vector<8x1xf32>,
    return
  }
  func.func @transform_0(%arg0: i32) -> (i32, i32) {
    %c0_i32 = arith.constant 0 : i32
    %c0_i32_0 = arith.constant 0 : i32
    %c0_i32_1 = arith.constant 0 : i32
    return %c0_i32, %c0_i32_0 : i32, i32
  }
  func.func @transform_1(%arg0: i32) -> (i32, i32) {
    %c0_i32 = arith.constant 0 : i32
    %c0_i32_0 = arith.constant 0 : i32
    %c0_i32_1 = arith.constant 0 : i32
    return %c0_i32, %c0_i32_0 : i32, i32
  }
  func.func @transform_2(%arg0: i32) -> (i32, i32) {
    %c0_i32 = arith.constant 0 : i32
    %c0_i32_0 = arith.constant 0 : i32
    %c0_i32_1 = arith.constant 0 : i32
    return %c0_i32, %c0_i32_0 : i32, i32
  }
  func.func @transform_3(%arg0: i32) -> (i32, i32) {
    %c0_i32 = arith.constant 0 : i32
    %c0_i32_0 = arith.constant 0 : i32
    %c0_i32_1 = arith.constant 0 : i32
    return %c0_i32, %c0_i32_0 : i32, i32
  }
}

</mosaic_0001>

<llo_original>
// kernel: discriminator_forward.5
$region0: #{discriminator_forward.5}
  #allocation0 [shape = 'u32[]', space=smem, size = 0x4, offset = 0x4, fixed_abs, tag = 'smem constant byte address 0x4 - core index']
  #allocation1 [shape = 'u32[72,128]{1,0:T(1,128)}', space=vmem, size = 0x9000, scoped, tag = 'internal scratch']
  %s0 = inlined_call_operand.vmem [shape: bf16[512,128], index: 0, kind: input, shape index: {}]
  %s1 = inlined_call_operand.vmem [shape: bf16[128,128], index: 1, kind: input, shape index: {}]
  %s2 = inlined_call_operand.vmem [shape: f32[1,128], index: 2, kind: input, shape index: {}]
  %s3 = inlined_call_operand.vmem [shape: f32[512,128], index: 3, kind: output, shape index: {}]
  %s4 = sld [smem:[#allocation0]]
  $region45: #{discriminator_forward.5} parent=0
    _
  %s6 = ssub.s32 1, %s4
  %s7 = scalar_select 0, %s6, %s4
  loop: start=0, step=1, limit=4
  $region2: #{discriminator_forward.5} parent=0 // loop_pre_header
    _
  $region3: #{discriminator_forward.5} parent=0 // loop_header
    %s9 = sphi 0, %s13
    %p10 = scmp.ge.s32.totalorder %s9, 4
    %s19 = sphi 0, %s21
    %s22 = sphi 0, %s19
    %s23 = sphi 0, %s22
    %s39 = sphi 0, %s23
    %s43 = sphi 0, %s43
    %s45 = sphi 0, %s43
    %s46 = sphi 0, %s45
    %s60 = sphi 0, %s46
    %s64 = sphi 0, %s64
    %s66 = sphi 0, %s64
    %s67 = sphi 0, %s66
    %s81 = sphi 0, %s67
    %s87 = sphi 0, %s89
    %s90 = sphi 0, %s87
    %s91 = sphi 0, %s90
    %s107 = sphi 0, %s91
  $region4: #{discriminator_forward.5} parent=0 // loop_header_branch
    %12 = sbr.rel (%p10) target = $region8
  $region5: #{discriminator_forward.5} parent=0 // loop_body
    %s14 = ssub.s32 %s9, 1
    %s15 = ssub.s32 %s9, 2
    %s16 = sadd.s32 %s9, 1
    %s17 = ssub.s32 %s9, %s16
    %p18 = scmp.eq.s32.totalorder %s17, 0
    %s20 = sadd.s32 %s19, 1
    %s21 = scalar_select %p18, %s19, %s20
    %p24 = pneg %p18
    %p25 = scmp.eq.s32.totalorder %s9, 1
    %p26 = por %p24, %p25
    %p27 = scmp.ne.s32.totalorder %s19, %s22
    %p28 = scmp.eq.s32.totalorder %s9, 0
    %p29 = por %p27, %p28
    %p30 = scmp.ne.s32.totalorder %s19, %s22
    %p31 = scmp.eq.s32.totalorder %s14, 1
    %p32 = por %p30, %p31
    %p33 = scmp.ne.s32.totalorder %s22, %s23
    %p34 = scmp.eq.s32.totalorder %s14, 0
    %p35 = por %p33, %p34
    %p36 = scmp.ne.s32.totalorder %s22, %s23
    %p37 = scmp.eq.s32.totalorder %s15, 1
    %p38 = por %p36, %p37
    %p40 = scmp.ne.s32.totalorder %s23, %s39
    %p41 = scmp.eq.s32.totalorder %s15, 0
    %p42 = por %p40, %p41
    %s44 = sadd.s32 %s43, 1
    %p47 = scmp.eq.s32.totalorder %s9, 1
    %p48 = scmp.ne.s32.totalorder %s43, %s45
    %p49 = scmp.eq.s32.totalorder %s9, 0
    %p50 = por %p48, %p49
    %p51 = scmp.ne.s32.totalorder %s43, %s45
    %p52 = scmp.eq.s32.totalorder %s14, 1
    %p53 = por %p51, %p52
    %p54 = scmp.ne.s32.totalorder %s45, %s46
    %p55 = scmp.eq.s32.totalorder %s14, 0
    %p56 = por %p54, %p55
    %p57 = scmp.ne.s32.totalorder %s45, %s46
    %p58 = scmp.eq.s32.totalorder %s15, 1
    %p59 = por %p57, %p58
    %p61 = scmp.ne.s32.totalorder %s46, %s60
    %p62 = scmp.eq.s32.totalorder %s15, 0
    %p63 = por %p61, %p62
    %s65 = sadd.s32 %s64, 1
    %p68 = scmp.eq.s32.totalorder %s9, 1
    %p69 = scmp.ne.s32.totalorder %s64, %s66
    %p70 = scmp.eq.s32.totalorder %s9, 0
    %p71 = por %p69, %p70
    %p72 = scmp.ne.s32.totalorder %s64, %s66
    %p73 = scmp.eq.s32.totalorder %s14, 1
    %p74 = por %p72, %p73
    %p75 = scmp.ne.s32.totalorder %s66, %s67
    %p76 = scmp.eq.s32.totalorder %s14, 0
    %p77 = por %p75, %p76
    %p78 = scmp.ne.s32.totalorder %s66, %s67
    %p79 = scmp.eq.s32.totalorder %s15, 1
    %p80 = por %p78, %p79
    %p82 = scmp.ne.s32.totalorder %s67, %s81
    %p83 = scmp.eq.s32.totalorder %s15, 0
    %p84 = por %p82, %p83
    %s85 = ssub.s32 %s9, %s16
    %p86 = scmp.eq.s32.totalorder %s85, 0
    %s88 = sadd.s32 %s87, 1
    %s89 = scalar_select %p86, %s87, %s88
    %p92 = pneg %p86
    %p93 = scmp.eq.s32.totalorder %s9, 1
    %p94 = por %p92, %p93
    %p95 = scmp.ne.s32.totalorder %s87, %s90
    %p96 = scmp.eq.s32.totalorder %s9, 0
    %p97 = por %p95, %p96
    %p98 = scmp.ne.s32.totalorder %s87, %s90
    %p99 = scmp.eq.s32.totalorder %s14, 1
    %p100 = por %p98, %p99
    %p101 = scmp.ne.s32.totalorder %s90, %s91
    %p102 = scmp.eq.s32.totalorder %s14, 0
    %p103 = por %p101, %p102
    %p104 = scmp.ne.s32.totalorder %s90, %s91
    %p105 = scmp.eq.s32.totalorder %s15, 1
    %p106 = por %p104, %p105
    %p108 = scmp.ne.s32.totalorder %s91, %s107
    %p109 = scmp.eq.s32.totalorder %s15, 0
    %p110 = por %p108, %p109
    %p111 = scmp.le.s32.totalorder 1, %s9
    %p112 = scmp.lt.s32.totalorder %s9, 3
    %p113 = pnand %p111, %p112
    %p114 = pneg %p113
    // Predicated region
    $region9: #{discriminator_forward.5} parent=5 // pred_check
      _
    $region10: #{discriminator_forward.5} parent=5 // pred_check_branch
      %116 = sbr.rel (%p113) target = $region12
    $region11: #{discriminator_forward.5} parent=5 // pred_region
      %s117 = ssub.s32 %s9, 1
      // Predicated region
      $region13: #{discriminator_forward.5} parent=11 // pred_check
        %p118 = pneg %p56
      $region14: #{discriminator_forward.5} parent=11 // pred_check_branch
        %120 = sbr.rel (%p118) target = $region16
      $region15: #{discriminator_forward.5} parent=11 // pred_region
        _
      $region16: #{discriminator_forward.5} parent=11 // pred_fallthru
        _
      // Predicated region
      $region17: #{discriminator_forward.5} parent=11 // pred_check
        %p121 = pneg %p77
      $region18: #{discriminator_forward.5} parent=11 // pred_check_branch
        %123 = sbr.rel (%p121) target = $region20
      $region19: #{discriminator_forward.5} parent=11 // pred_region
        _
      $region20: #{discriminator_forward.5} parent=11 // pred_fallthru
        _
    $region12: #{discriminator_forward.5} parent=5 // pred_fallthru
      _
    %p124 = scmp.lt.s32.totalorder %s9, 2
    // Predicated region
    $region21: #{discriminator_forward.5} parent=5 // pred_check
      %p125 = pneg %p124
    $region22: #{discriminator_forward.5} parent=5 // pred_check_branch
      %127 = sbr.rel (%p125) target = $region24
    $region23: #{discriminator_forward.5} parent=5 // pred_region
      // Predicated region
      $region25: #{discriminator_forward.5} parent=23 // pred_check
        %p128 = pneg %p29
      $region26: #{discriminator_forward.5} parent=23 // pred_check_branch
        %130 = sbr.rel (%p128) target = $region28
      $region27: #{discriminator_forward.5} parent=23 // pred_region
        %s131 = smul.u32 32, %s9
        %p132 = scmp.lt.s32.totalorder %s131, 63
        %s133 = scalar_select %p132, %s131, 63
        %s134 = smul.addr %s133, 4
        %s135 = scalar_lea.vmem %s0, %s134
        %s136 = smul.u32 32, %s9
      $region28: #{discriminator_forward.5} parent=23 // pred_fallthru
        _
    $region24: #{discriminator_forward.5} parent=5 // pred_fallthru
      _
    %p137 = scmp.le.s32.totalorder 1, %s9
    %p138 = scmp.lt.s32.totalorder %s9, 3
    %p139 = pnand %p137, %p138
    %p140 = pneg %p139
    // Predicated region
    $region29: #{discriminator_forward.5} parent=5 // pred_check
      _
    $region30: #{discriminator_forward.5} parent=5 // pred_check_branch
      %142 = sbr.rel (%p139) target = $region32
    $region31: #{discriminator_forward.5} parent=5 // pred_region
      %s143 = ssub.s32 %s9, 1
      %s144 = smul.u32 32, %s14
      %p145 = scmp.lt.s32.totalorder %s144, 63
      %s146 = scalar_select %p145, %s144, 63
      %s147 = smul.addr %s146, 4
      %s148 = scalar_lea.vmem %s0, %s147
      %p149 = pneg %p35
      %p150 = pneg %p32
      %p151 = pneg %p56
      %p152 = pneg %p53
      %p153 = pneg %p77
      %p154 = pneg %p74
      %p155 = pneg %p103
      %p156 = pneg %p100
      %s157 = smul.u32 32, %s14
      %p158 = scmp.lt.s32.totalorder %s157, 63
      %s159 = scalar_select %p158, %s157, 63
      %s160 = smul.addr %s159, 8
      %s161 = scalar_lea.vmem %s3, %s160
      %s162 = smul.u32 32, %s14
      %p163 = scmp.lt.s32.totalorder %s162, 63
      %s164 = scalar_select %p163, %s162, 63
      %s165 = smul.addr %s164, 4
      %s166 = scalar_lea.vmem %s0, %s165
      %s167 = smul.u32 32, %s14
      %s168 = smul.u32 32, %s14
      %p169 = scmp.lt.s32.totalorder %s168, 63
      %s170 = scalar_select %p169, %s168, 63
      %s171 = smul.addr %s170, 8
      %s172 = scalar_lea.vmem %s3, %s171
      %s173 = smul.u32 32, %s14
      %v174 = vld [vmem:[%s166] sm:$0xf]
      %v175 = vld [vmem:[%s166 + $0x4] sm:$0xf]
      %v176 = vld [vmem:[%s166 + $0x8] sm:$0xf]
      %v177 = vld [vmem:[%s166 + $0xc] sm:$0xf]
      %v178 = vld [vmem:[%s166 + $0x10] sm:$0xf]
      %v179 = vld [vmem:[%s166 + $0x14] sm:$0xf]
      %v180 = vld [vmem:[%s166 + $0x18] sm:$0xf]
      %v181 = vld [vmem:[%s166 + $0x1c] sm:$0xf]
      %v182 = vld [vmem:[%s166 + $0x20] sm:$0xf]
      %v183 = vld [vmem:[%s166 + $0x24] sm:$0xf]
      %v184 = vld [vmem:[%s166 + $0x28] sm:$0xf]
      %v185 = vld [vmem:[%s166 + $0x2c] sm:$0xf]
      %v186 = vld [vmem:[%s166 + $0x30] sm:$0xf]
      %v187 = vld [vmem:[%s166 + $0x34] sm:$0xf]
      %v188 = vld [vmem:[%s166 + $0x38] sm:$0xf]
      %v189 = vld [vmem:[%s166 + $0x3c] sm:$0xf]
      %v190 = vld [vmem:[%s166 + $0x40] sm:$0xf]
      %v191 = vld [vmem:[%s166 + $0x44] sm:$0xf]
      %v192 = vld [vmem:[%s166 + $0x48] sm:$0xf]
      %v193 = vld [vmem:[%s166 + $0x4c] sm:$0xf]
      %v194 = vld [vmem:[%s166 + $0x50] sm:$0xf]
      %v195 = vld [vmem:[%s166 + $0x54] sm:$0xf]
      %v196 = vld [vmem:[%s166 + $0x58] sm:$0xf]
      %v197 = vld [vmem:[%s166 + $0x5c] sm:$0xf]
      %v198 = vld [vmem:[%s166 + $0x60] sm:$0xf]
      %v199 = vld [vmem:[%s166 + $0x64] sm:$0xf]
      %v200 = vld [vmem:[%s166 + $0x68] sm:$0xf]
      %v201 = vld [vmem:[%s166 + $0x6c] sm:$0xf]
      %v202 = vld [vmem:[%s166 + $0x70] sm:$0xf]
      %v203 = vld [vmem:[%s166 + $0x74] sm:$0xf]
      %v204 = vld [vmem:[%s166 + $0x78] sm:$0xf]
      %v205 = vld [vmem:[%s166 + $0x7c] sm:$0xf]
      %v206 = vld [vmem:[%s1] sm:$0xf]
      %v207 = vld [vmem:[%s1 + $0x4] sm:$0xf]
      %v208 = vld [vmem:[%s1 + $0x8] sm:$0xf]
      %v209 = vld [vmem:[%s1 + $0xc] sm:$0xf]
      %v210 = vld [vmem:[%s1 + $0x10] sm:$0xf]
      %v211 = vld [vmem:[%s1 + $0x14] sm:$0xf]
      %v212 = vld [vmem:[%s1 + $0x18] sm:$0xf]
      %v213 = vld [vmem:[%s1 + $0x1c] sm:$0xf]
      %v214 = vld [vmem:[%s1 + $0x20] sm:$0xf]
      %v215 = vld [vmem:[%s1 + $0x24] sm:$0xf]
      %v216 = vld [vmem:[%s1 + $0x28] sm:$0xf]
      %v217 = vld [vmem:[%s1 + $0x2c] sm:$0xf]
      %v218 = vld [vmem:[%s1 + $0x30] sm:$0xf]
      %v219 = vld [vmem:[%s1 + $0x34] sm:$0xf]
      %v220 = vld [vmem:[%s1 + $0x38] sm:$0xf]
      %v221 = vld [vmem:[%s1 + $0x3c] sm:$0xf]
      %v222 = vld [vmem:[%s2] sm:$0x1]
      %v224 = vperm.slane %v222, 0
      %v258 = vunpack.c.l.b16 %v174
      %v259 = vunpack.c.l.b16 %v175
      %v260 = vunpack.c.l.b16 %v176
      %v261 = vunpack.c.l.b16 %v177
      %v262 = vunpack.c.l.b16 %v178
      %v263 = vunpack.c.l.b16 %v179
      %v264 = vunpack.c.l.b16 %v180
      %v265 = vunpack.c.l.b16 %v181
      %v266 = vunpack.c.l.b16 %v182
      %v267 = vunpack.c.l.b16 %v183
      %v268 = vunpack.c.l.b16 %v184
      %v269 = vunpack.c.l.b16 %v185
      %v270 = vunpack.c.l.b16 %v186
      %v271 = vunpack.c.l.b16 %v187
      %v272 = vunpack.c.l.b16 %v188
      %v273 = vunpack.c.l.b16 %v189
      %v274 = vunpack.c.l.b16 %v190
      %v275 = vunpack.c.l.b16 %v191
      %v276 = vunpack.c.l.b16 %v192
      %v277 = vunpack.c.l.b16 %v193
      %v278 = vunpack.c.l.b16 %v194
      %v279 = vunpack.c.l.b16 %v195
      %v280 = vunpack.c.l.b16 %v196
      %v281 = vunpack.c.l.b16 %v197
      %v282 = vunpack.c.l.b16 %v198
      %v283 = vunpack.c.l.b16 %v199
      %v284 = vunpack.c.l.b16 %v200
      %v285 = vunpack.c.l.b16 %v201
      %v286 = vunpack.c.l.b16 %v202
      %v287 = vunpack.c.l.b16 %v203
      %v288 = vunpack.c.l.b16 %v204
      %v289 = vunpack.c.l.b16 %v205
      %v290 = vpack.c.b16 %v259, %v258
      %v291 = vpack.c.b16 %v261, %v260
      %v292 = vpack.c.b16 %v263, %v262
      %v293 = vpack.c.b16 %v265, %v264
      %v294 = vpack.c.b16 %v267, %v266
      %v295 = vpack.c.b16 %v269, %v268
      %v296 = vpack.c.b16 %v271, %v270
      %v297 = vpack.c.b16 %v273, %v272
      %v298 = vpack.c.b16 %v275, %v274
      %v299 = vpack.c.b16 %v277, %v276
      %v300 = vpack.c.b16 %v279, %v278
      %v301 = vpack.c.b16 %v281, %v280
      %v302 = vpack.c.b16 %v283, %v282
      %v303 = vpack.c.b16 %v285, %v284
      %v304 = vpack.c.b16 %v287, %v286
      %v305 = vpack.c.b16 %v289, %v288
      %v338 = vunpack.c.l.b16 %v206
      %v339 = vunpack.c.l.b16 %v207
      %v340 = vunpack.c.l.b16 %v208
      %v341 = vunpack.c.l.b16 %v209
      %v342 = vunpack.c.l.b16 %v210
      %v343 = vunpack.c.l.b16 %v211
      %v344 = vunpack.c.l.b16 %v212
      %v345 = vunpack.c.l.b16 %v213
      %v346 = vunpack.c.l.b16 %v214
      %v347 = vunpack.c.l.b16 %v215
      %v348 = vunpack.c.l.b16 %v216
      %v349 = vunpack.c.l.b16 %v217
      %v350 = vunpack.c.l.b16 %v218
      %v351 = vunpack.c.l.b16 %v219
      %v352 = vunpack.c.l.b16 %v220
      %v353 = vunpack.c.l.b16 %v221
      %v354 = vpack.c.b16 %v339, %v338
      %v355 = vpack.c.b16 %v341, %v340
      %v356 = vpack.c.b16 %v343, %v342
      %v357 = vpack.c.b16 %v345, %v344
      %v358 = vpack.c.b16 %v347, %v346
      %v359 = vpack.c.b16 %v349, %v348
      %v360 = vpack.c.b16 %v351, %v350
      %v361 = vpack.c.b16 %v353, %v352
      %370 = vmatpush.bf16.msra.mxu0 %v361
      %371 = vmatpush.bf16.msra.mxu0 %v360
      %372 = vmatpush.bf16.msra.mxu0 %v359
      %373 = vmatpush.bf16.msra.mxu0 %v358
      %374 = vmatpush.bf16.msra.mxu0 %v357
      %375 = vmatpush.bf16.msra.mxu0 %v356
      %376 = vmatpush.bf16.msra.mxu0 %v355
      %377 = vmatpush.bf16.msra.mxu0 %v354
      %378 = vmatmul.bf16.gmra.mxu0 %v290
      %v379 = vpop.f32.mrf.mxu0
      %v380 = vadd.f32 %v224, %v379
      %v381 = vpop.f32.mrf.mxu0
      %v382 = vadd.f32 %v224, %v381
      %383 = vmatmul.bf16.gmra.mxu0 %v291
      %v384 = vpop.f32.mrf.mxu0
      %v385 = vadd.f32 %v224, %v384
      %v386 = vpop.f32.mrf.mxu0
      %v387 = vadd.f32 %v224, %v386
      %388 = vmatmul.bf16.gmra.mxu0 %v292
      %v389 = vpop.f32.mrf.mxu0
      %v390 = vadd.f32 %v224, %v389
      %v391 = vpop.f32.mrf.mxu0
      %v392 = vadd.f32 %v224, %v391
      %393 = vmatmul.bf16.gmra.mxu0 %v293
      %v394 = vpop.f32.mrf.mxu0
      %v395 = vadd.f32 %v224, %v394
      %v396 = vpop.f32.mrf.mxu0
      %v397 = vadd.f32 %v224, %v396
      %398 = vmatmul.bf16.gmra.mxu0 %v294
      %v399 = vpop.f32.mrf.mxu0
      %v400 = vadd.f32 %v224, %v399
      %v401 = vpop.f32.mrf.mxu0
      %v402 = vadd.f32 %v224, %v401
      %403 = vmatmul.bf16.gmra.mxu0 %v295
      %v404 = vpop.f32.mrf.mxu0
      %v405 = vadd.f32 %v224, %v404
      %v406 = vpop.f32.mrf.mxu0
      %v407 = vadd.f32 %v224, %v406
      %408 = vmatmul.bf16.gmra.mxu0 %v296
      %v409 = vpop.f32.mrf.mxu0
      %v410 = vadd.f32 %v224, %v409
      %v411 = vpop.f32.mrf.mxu0
      %v412 = vadd.f32 %v224, %v411
      %413 = vmatmul.bf16.gmra.mxu0 %v297
      %v414 = vpop.f32.mrf.mxu0
      %v415 = vadd.f32 %v224, %v414
      %v416 = vpop.f32.mrf.mxu0
      %v417 = vadd.f32 %v224, %v416
      %418 = vmatmul.bf16.gmra.mxu0 %v298
      %v419 = vpop.f32.mrf.mxu0
      %v420 = vadd.f32 %v224, %v419
      %v421 = vpop.f32.mrf.mxu0
      %v422 = vadd.f32 %v224, %v421
      %423 = vmatmul.bf16.gmra.mxu0 %v299
      %v424 = vpop.f32.mrf.mxu0
      %v425 = vadd.f32 %v224, %v424
      %v426 = vpop.f32.mrf.mxu0
      %v427 = vadd.f32 %v224, %v426
      %428 = vmatmul.bf16.gmra.mxu0 %v300
      %v429 = vpop.f32.mrf.mxu0
      %v430 = vadd.f32 %v224, %v429
      %v431 = vpop.f32.mrf.mxu0
      %v432 = vadd.f32 %v224, %v431
      %433 = vmatmul.bf16.gmra.mxu0 %v301
      %v434 = vpop.f32.mrf.mxu0
      %v435 = vadd.f32 %v224, %v434
      %v436 = vpop.f32.mrf.mxu0
      %v437 = vadd.f32 %v224, %v436
      %438 = vmatmul.bf16.gmra.mxu0 %v302
      %v439 = vpop.f32.mrf.mxu0
      %v440 = vadd.f32 %v224, %v439
      %v441 = vpop.f32.mrf.mxu0
      %v442 = vadd.f32 %v224, %v441
      %443 = vmatmul.bf16.gmra.mxu0 %v303
      %v444 = vpop.f32.mrf.mxu0
      %v445 = vadd.f32 %v224, %v444
      %v446 = vpop.f32.mrf.mxu0
      %v447 = vadd.f32 %v224, %v446
      %448 = vmatmul.bf16.gmra.mxu0 %v304
      %v449 = vpop.f32.mrf.mxu0
      %v450 = vadd.f32 %v224, %v449
      %v451 = vpop.f32.mrf.mxu0
      %v452 = vadd.f32 %v224, %v451
      %453 = vmatmul.bf16.gmra.mxu0 %v305
      %v454 = vpop.f32.mrf.mxu0
      %v455 = vadd.f32 %v224, %v454
      %v456 = vpop.f32.mrf.mxu0
      %v457 = vadd.f32 %v224, %v456
      %458 = vdwg.mxu0
      %vm459 = vcmp.ge.f32.partialorder %v380, 0.0
      %vm460 = vcmp.ge.f32.partialorder %v382, 0.0
      %vm461 = vcmp.ge.f32.partialorder %v385, 0.0
      %vm462 = vcmp.ge.f32.partialorder %v387, 0.0
      %vm463 = vcmp.ge.f32.partialorder %v390, 0.0
      %vm464 = vcmp.ge.f32.partialorder %v392, 0.0
      %vm465 = vcmp.ge.f32.partialorder %v395, 0.0
      %vm466 = vcmp.ge.f32.partialorder %v397, 0.0
      %vm467 = vcmp.ge.f32.partialorder %v400, 0.0
      %vm468 = vcmp.ge.f32.partialorder %v402, 0.0
      %vm469 = vcmp.ge.f32.partialorder %v405, 0.0
      %vm470 = vcmp.ge.f32.partialorder %v407, 0.0
      %vm471 = vcmp.ge.f32.partialorder %v410, 0.0
      %vm472 = vcmp.ge.f32.partialorder %v412, 0.0
      %vm473 = vcmp.ge.f32.partialorder %v415, 0.0
      %vm474 = vcmp.ge.f32.partialorder %v417, 0.0
      %vm475 = vcmp.ge.f32.partialorder %v420, 0.0
      %vm476 = vcmp.ge.f32.partialorder %v422, 0.0
      %vm477 = vcmp.ge.f32.partialorder %v425, 0.0
      %vm478 = vcmp.ge.f32.partialorder %v427, 0.0
      %vm479 = vcmp.ge.f32.partialorder %v430, 0.0
      %vm480 = vcmp.ge.f32.partialorder %v432, 0.0
      %vm481 = vcmp.ge.f32.partialorder %v435, 0.0
      %vm482 = vcmp.ge.f32.partialorder %v437, 0.0
      %vm483 = vcmp.ge.f32.partialorder %v440, 0.0
      %vm484 = vcmp.ge.f32.partialorder %v442, 0.0
      %vm485 = vcmp.ge.f32.partialorder %v445, 0.0
      %vm486 = vcmp.ge.f32.partialorder %v447, 0.0
      %vm487 = vcmp.ge.f32.partialorder %v450, 0.0
      %vm488 = vcmp.ge.f32.partialorder %v452, 0.0
      %vm489 = vcmp.ge.f32.partialorder %v455, 0.0
      %vm490 = vcmp.ge.f32.partialorder %v457, 0.0
      %v491 = vmul.f32 %v380, 0.2
      %v492 = vmul.f32 %v382, 0.2
      %v493 = vmul.f32 %v385, 0.2
      %v494 = vmul.f32 %v387, 0.2
      %v495 = vmul.f32 %v390, 0.2
      %v496 = vmul.f32 %v392, 0.2
      %v497 = vmul.f32 %v395, 0.2
      %v498 = vmul.f32 %v397, 0.2
      %v499 = vmul.f32 %v400, 0.2
      %v500 = vmul.f32 %v402, 0.2
      %v501 = vmul.f32 %v405, 0.2
      %v502 = vmul.f32 %v407, 0.2
      %v503 = vmul.f32 %v410, 0.2
      %v504 = vmul.f32 %v412, 0.2
      %v505 = vmul.f32 %v415, 0.2
      %v506 = vmul.f32 %v417, 0.2
      %v507 = vmul.f32 %v420, 0.2
      %v508 = vmul.f32 %v422, 0.2
      %v509 = vmul.f32 %v425, 0.2
      %v510 = vmul.f32 %v427, 0.2
      %v511 = vmul.f32 %v430, 0.2
      %v512 = vmul.f32 %v432, 0.2
      %v513 = vmul.f32 %v435, 0.2
      %v514 = vmul.f32 %v437, 0.2
      %v515 = vmul.f32 %v440, 0.2
      %v516 = vmul.f32 %v442, 0.2
      %v517 = vmul.f32 %v445, 0.2
      %v518 = vmul.f32 %v447, 0.2
      %v519 = vmul.f32 %v450, 0.2
      %v520 = vmul.f32 %v452, 0.2
      %v521 = vmul.f32 %v455, 0.2
      %v522 = vmul.f32 %v457, 0.2
      %v523 = vsel %vm459, %v380, %v491
      %v524 = vsel %vm460, %v382, %v492
      %v525 = vsel %vm461, %v385, %v493
      %v526 = vsel %vm462, %v387, %v494
      %v527 = vsel %vm463, %v390, %v495
      %v528 = vsel %vm464, %v392, %v496
      %v529 = vsel %vm465, %v395, %v497
      %v530 = vsel %vm466, %v397, %v498
      %v531 = vsel %vm467, %v400, %v499
      %v532 = vsel %vm468, %v402, %v500
      %v533 = vsel %vm469, %v405, %v501
      %v534 = vsel %vm470, %v407, %v502
      %v535 = vsel %vm471, %v410, %v503
      %v536 = vsel %vm472, %v412, %v504
      %v537 = vsel %vm473, %v415, %v505
      %v538 = vsel %vm474, %v417, %v506
      %v539 = vsel %vm475, %v420, %v507
      %v540 = vsel %vm476, %v422, %v508
      %v541 = vsel %vm477, %v425, %v509
      %v542 = vsel %vm478, %v427, %v510
      %v543 = vsel %vm479, %v430, %v511
      %v544 = vsel %vm480, %v432, %v512
      %v545 = vsel %vm481, %v435, %v513
      %v546 = vsel %vm482, %v437, %v514
      %v547 = vsel %vm483, %v440, %v515
      %v548 = vsel %vm484, %v442, %v516
      %v549 = vsel %vm485, %v445, %v517
      %v550 = vsel %vm486, %v447, %v518
      %v551 = vsel %vm487, %v450, %v519
      %v552 = vsel %vm488, %v452, %v520
      %v553 = vsel %vm489, %v455, %v521
      %v554 = vsel %vm490, %v457, %v522
      %555 = vst [vmem:[%s172] sm:$0xff] %v523
      %556 = vst [vmem:[%s172 + $0x8] sm:$0xff] %v524
      %557 = vst [vmem:[%s172 + $0x10] sm:$0xff] %v525
      %558 = vst [vmem:[%s172 + $0x18] sm:$0xff] %v526
      %559 = vst [vmem:[%s172 + $0x20] sm:$0xff] %v527
      %560 = vst [vmem:[%s172 + $0x28] sm:$0xff] %v528
      %561 = vst [vmem:[%s172 + $0x30] sm:$0xff] %v529
      %562 = vst [vmem:[%s172 + $0x38] sm:$0xff] %v530
      %563 = vst [vmem:[%s172 + $0x40] sm:$0xff] %v531
      %564 = vst [vmem:[%s172 + $0x48] sm:$0xff] %v532
      %565 = vst [vmem:[%s172 + $0x50] sm:$0xff] %v533
      %566 = vst [vmem:[%s172 + $0x58] sm:$0xff] %v534
      %567 = vst [vmem:[%s172 + $0x60] sm:$0xff] %v535
      %568 = vst [vmem:[%s172 + $0x68] sm:$0xff] %v536
      %569 = vst [vmem:[%s172 + $0x70] sm:$0xff] %v537
      %570 = vst [vmem:[%s172 + $0x78] sm:$0xff] %v538
      %571 = vst [vmem:[%s172 + $0x80] sm:$0xff] %v539
      %572 = vst [vmem:[%s172 + $0x88] sm:$0xff] %v540
      %573 = vst [vmem:[%s172 + $0x90] sm:$0xff] %v541
      %574 = vst [vmem:[%s172 + $0x98] sm:$0xff] %v542
      %575 = vst [vmem:[%s172 + $0xa0] sm:$0xff] %v543
      %576 = vst [vmem:[%s172 + $0xa8] sm:$0xff] %v544
      %577 = vst [vmem:[%s172 + $0xb0] sm:$0xff] %v545
      %578 = vst [vmem:[%s172 + $0xb8] sm:$0xff] %v546
      %579 = vst [vmem:[%s172 + $0xc0] sm:$0xff] %v547
      %580 = vst [vmem:[%s172 + $0xc8] sm:$0xff] %v548
      %581 = vst [vmem:[%s172 + $0xd0] sm:$0xff] %v549
      %582 = vst [vmem:[%s172 + $0xd8] sm:$0xff] %v550
      %583 = vst [vmem:[%s172 + $0xe0] sm:$0xff] %v551
      %584 = vst [vmem:[%s172 + $0xe8] sm:$0xff] %v552
      %585 = vst [vmem:[%s172 + $0xf0] sm:$0xff] %v553
      %586 = vst [vmem:[%s172 + $0xf8] sm:$0xff] %v554
      %s587 = smul.u32 32, %s14
      %p588 = scmp.lt.s32.totalorder %s587, 63
      %s589 = scalar_select %p588, %s587, 63
      %s590 = smul.addr %s589, 8
      %s591 = scalar_lea.vmem %s3, %s590
      // Predicated region
      $region33: #{discriminator_forward.5} parent=31 // pred_check
        %p592 = pneg %p100
      $region34: #{discriminator_forward.5} parent=31 // pred_check_branch
        %594 = sbr.rel (%p592) target = $region36
      $region35: #{discriminator_forward.5} parent=31 // pred_region
        %s595 = smul.u32 32, %s14
      $region36: #{discriminator_forward.5} parent=31 // pred_fallthru
        _
    $region32: #{discriminator_forward.5} parent=5 // pred_fallthru
      _
    %p596 = scmp.le.s32.totalorder 2, %s9
    // Predicated region
    $region37: #{discriminator_forward.5} parent=5 // pred_check
      %p597 = pneg %p596
    $region38: #{discriminator_forward.5} parent=5 // pred_check_branch
      %599 = sbr.rel (%p597) target = $region40
    $region39: #{discriminator_forward.5} parent=5 // pred_region
      %s600 = ssub.s32 %s9, 2
      // Predicated region
      $region41: #{discriminator_forward.5} parent=39 // pred_check
        %p601 = pneg %p106
      $region42: #{discriminator_forward.5} parent=39 // pred_check_branch
        %603 = sbr.rel (%p601) target = $region44
      $region43: #{discriminator_forward.5} parent=39 // pred_region
        %s604 = smul.u32 32, %s15
        %p605 = scmp.lt.s32.totalorder %s604, 63
        %s606 = scalar_select %p605, %s604, 63
        %s607 = smul.addr %s606, 8
        %s608 = scalar_lea.vmem %s3, %s607
      $region44: #{discriminator_forward.5} parent=39 // pred_fallthru
        _
    $region40: #{discriminator_forward.5} parent=5 // pred_fallthru
      _
  $region6: #{discriminator_forward.5} parent=0 // loop_footer
    %s13 = sadd.s32 1, %s9
  $region7: #{discriminator_forward.5} parent=0 // loop_footer_branch
    %8 = sbr.rel target = $region3
  $region8: #{discriminator_forward.5} parent=0 // loop_exit
    _

// kernel: discriminator_forward.6
$region0: #{discriminator_forward.6}
  #allocation0 [shape = 'u32[]', space=smem, size = 0x4, offset = 0x4, fixed_abs, tag = 'smem constant byte address 0x4 - core index']
  #allocation1 [shape = 'u32[72,128]{1,0:T(1,128)}', space=vmem, size = 0x9000, scoped, tag = 'internal scratch']
  %s0 = inlined_call_operand.vmem [shape: bf16[128,1024], index: 0, kind: input, shape index: {}]
  %s1 = inlined_call_operand.vmem [shape: bf16[1024,128], index: 1, kind: input, shape index: {}]
  %s2 = inlined_call_operand.vmem [shape: f32[1,128], index: 2, kind: input, shape index: {}]
  %s3 = inlined_call_operand.vmem [shape: f32[1,128], index: 3, kind: input, shape index: {}]
  %s4 = inlined_call_operand.vmem [shape: f32[1,128], index: 4, kind: input, shape index: {}]
  %s5 = inlined_call_operand.vmem [shape: f32[128,128], index: 5, kind: output, shape index: {}]
  %s6 = sld [smem:[#allocation0]]
  $region30: #{discriminator_forward.6} parent=0
    _
  %s8 = ssub.s32 1, %s6
  %s9 = scalar_select 0, %s8, %s6
  // Predicated region
  $region2: #{discriminator_forward.6} parent=0 // pred_check
    _
  $region3: #{discriminator_forward.6} parent=0 // pred_check_branch
    %11 = sbr.rel (0) target = $region5
  $region4: #{discriminator_forward.6} parent=0 // pred_region
    _
  $region5: #{discriminator_forward.6} parent=0 // pred_fallthru
    _
  // Predicated region
  $region6: #{discriminator_forward.6} parent=0 // pred_check
    _
  $region7: #{discriminator_forward.6} parent=0 // pred_check_branch
    %13 = sbr.rel (0) target = $region9
  $region8: #{discriminator_forward.6} parent=0 // pred_region
    _
  $region9: #{discriminator_forward.6} parent=0 // pred_fallthru
    _
  // Predicated region
  $region10: #{discriminator_forward.6} parent=0 // pred_check
    _
  $region11: #{discriminator_forward.6} parent=0 // pred_check_branch
    %15 = sbr.rel (0) target = $region13
  $region12: #{discriminator_forward.6} parent=0 // pred_region
    _
  $region13: #{discriminator_forward.6} parent=0 // pred_fallthru
    _
  // Predicated region
  $region14: #{discriminator_forward.6} parent=0 // pred_check
    _
  $region15: #{discriminator_forward.6} parent=0 // pred_check_branch
    %17 = sbr.rel (0) target = $region17
  $region16: #{discriminator_forward.6} parent=0 // pred_region
    _
  $region17: #{discriminator_forward.6} parent=0 // pred_fallthru
    _
  // Predicated region
  $region18: #{discriminator_forward.6} parent=0 // pred_check
    _
  $region19: #{discriminator_forward.6} parent=0 // pred_check_branch
    %19 = sbr.rel (0) target = $region21
  $region20: #{discriminator_forward.6} parent=0 // pred_region
    _
  $region21: #{discriminator_forward.6} parent=0 // pred_fallthru
    _
  %v20 = vld [vmem:[%s0] sm:$0xff]
  %v21 = vld [vmem:[%s0 + $0x8] sm:$0xff]
  %v22 = vld [vmem:[%s0 + $0x10] sm:$0xff]
  %v23 = vld [vmem:[%s0 + $0x18] sm:$0xff]
  %v24 = vld [vmem:[%s0 + $0x20] sm:$0xff]
  %v25 = vld [vmem:[%s0 + $0x28] sm:$0xff]
  %v26 = vld [vmem:[%s0 + $0x30] sm:$0xff]
  %v27 = vld [vmem:[%s0 + $0x38] sm:$0xff]
  %v28 = vld [vmem:[%s0 + $0x40] sm:$0xff]
  %v29 = vld [vmem:[%s0 + $0x48] sm:$0xff]
  %v30 = vld [vmem:[%s0 + $0x50] sm:$0xff]
  %v31 = vld [vmem:[%s0 + $0x58] sm:$0xff]
  %v32 = vld [vmem:[%s0 + $0x60] sm:$0xff]
  %v33 = vld [vmem:[%s0 + $0x68] sm:$0xff]
  %v34 = vld [vmem:[%s0 + $0x70] sm:$0xff]
  %v35 = vld [vmem:[%s0 + $0x78] sm:$0xff]
  %v36 = vld [vmem:[%s0 + $0x80] sm:$0xff]
  %v37 = vld [vmem:[%s0 + $0x88] sm:$0xff]
  %v38 = vld [vmem:[%s0 + $0x90] sm:$0xff]
  %v39 = vld [vmem:[%s0 + $0x98] sm:$0xff]
  %v40 = vld [vmem:[%s0 + $0xa0] sm:$0xff]
  %v41 = vld [vmem:[%s0 + $0xa8] sm:$0xff]
  %v42 = vld [vmem:[%s0 + $0xb0] sm:$0xff]
  %v43 = vld [vmem:[%s0 + $0xb8] sm:$0xff]
  %v44 = vld [vmem:[%s0 + $0xc0] sm:$0xff]
  %v45 = vld [vmem:[%s0 + $0xc8] sm:$0xff]
  %v46 = vld [vmem:[%s0 + $0xd0] sm:$0xff]
  %v47 = vld [vmem:[%s0 + $0xd8] sm:$0xff]
  %v48 = vld [vmem:[%s0 + $0xe0] sm:$0xff]
  %v49 = vld [vmem:[%s0 + $0xe8] sm:$0xff]
  %v50 = vld [vmem:[%s0 + $0xf0] sm:$0xff]
  %v51 = vld [vmem:[%s0 + $0xf8] sm:$0xff]
  %v52 = vld [vmem:[%s0 + $0x100] sm:$0xff]
  %v53 = vld [vmem:[%s0 + $0x108] sm:$0xff]
  %v54 = vld [vmem:[%s0 + $0x110] sm:$0xff]
  %v55 = vld [vmem:[%s0 + $0x118] sm:$0xff]
  %v56 = vld [vmem:[%s0 + $0x120] sm:$0xff]
  %v57 = vld [vmem:[%s0 + $0x128] sm:$0xff]
  %v58 = vld [vmem:[%s0 + $0x130] sm:$0xff]
  %v59 = vld [vmem:[%s0 + $0x138] sm:$0xff]
  %v60 = vld [vmem:[%s0 + $0x140] sm:$0xff]
  %v61 = vld [vmem:[%s0 + $0x148] sm:$0xff]
  %v62 = vld [vmem:[%s0 + $0x150] sm:$0xff]
  %v63 = vld [vmem:[%s0 + $0x158] sm:$0xff]
  %v64 = vld [vmem:[%s0 + $0x160] sm:$0xff]
  %v65 = vld [vmem:[%s0 + $0x168] sm:$0xff]
  %v66 = vld [vmem:[%s0 + $0x170] sm:$0xff]
  %v67 = vld [vmem:[%s0 + $0x178] sm:$0xff]
  %v68 = vld [vmem:[%s0 + $0x180] sm:$0xff]
  %v69 = vld [vmem:[%s0 + $0x188] sm:$0xff]
  %v70 = vld [vmem:[%s0 + $0x190] sm:$0xff]
  %v71 = vld [vmem:[%s0 + $0x198] sm:$0xff]
  %v72 = vld [vmem:[%s0 + $0x1a0] sm:$0xff]
  %v73 = vld [vmem:[%s0 + $0x1a8] sm:$0xff]
  %v74 = vld [vmem:[%s0 + $0x1b0] sm:$0xff]
  %v75 = vld [vmem:[%s0 + $0x1b8] sm:$0xff]
  %v76 = vld [vmem:[%s0 + $0x1c0] sm:$0xff]
  %v77 = vld [vmem:[%s0 + $0x1c8] sm:$0xff]
  %v78 = vld [vmem:[%s0 + $0x1d0] sm:$0xff]
  %v79 = vld [vmem:[%s0 + $0x1d8] sm:$0xff]
  %v80 = vld [vmem:[%s0 + $0x1e0] sm:$0xff]
  %v81 = vld [vmem:[%s0 + $0x1e8] sm:$0xff]
  %v82 = vld [vmem:[%s0 + $0x1f0] sm:$0xff]
  %v83 = vld [vmem:[%s0 + $0x1f8] sm:$0xff]
  %v84 = vld [vmem:[%s1] sm:$0xf]
  %v85 = vld [vmem:[%s1 + $0x4] sm:$0xf]
  %v86 = vld [vmem:[%s1 + $0x8] sm:$0xf]
  %v87 = vld [vmem:[%s1 + $0xc] sm:$0xf]
  %v88 = vld [vmem:[%s1 + $0x10] sm:$0xf]
  %v89 = vld [vmem:[%s1 + $0x14] sm:$0xf]
  %v90 = vld [vmem:[%s1 + $0x18] sm:$0xf]
  %v91 = vld [vmem:[%s1 + $0x1c] sm:$0xf]
  %v92 = vld [vmem:[%s1 + $0x20] sm:$0xf]
  %v93 = vld [vmem:[%s1 + $0x24] sm:$0xf]
  %v94 = vld [vmem:[%s1 + $0x28] sm:$0xf]
  %v95 = vld [vmem:[%s1 + $0x2c] sm:$0xf]
  %v96 = vld [vmem:[%s1 + $0x30] sm:$0xf]
  %v97 = vld [vmem:[%s1 + $0x34] sm:$0xf]
  %v98 = vld [vmem:[%s1 + $0x38] sm:$0xf]
  %v99 = vld [vmem:[%s1 + $0x3c] sm:$0xf]
  %v100 = vld [vmem:[%s1 + $0x40] sm:$0xf]
  %v101 = vld [vmem:[%s1 + $0x44] sm:$0xf]
  %v102 = vld [vmem:[%s1 + $0x48] sm:$0xf]
  %v103 = vld [vmem:[%s1 + $0x4c] sm:$0xf]
  %v104 = vld [vmem:[%s1 + $0x50] sm:$0xf]
  %v105 = vld [vmem:[%s1 + $0x54] sm:$0xf]
  %v106 = vld [vmem:[%s1 + $0x58] sm:$0xf]
  %v107 = vld [vmem:[%s1 + $0x5c] sm:$0xf]
  %v108 = vld [vmem:[%s1 + $0x60] sm:$0xf]
  %v109 = vld [vmem:[%s1 + $0x64] sm:$0xf]
  %v110 = vld [vmem:[%s1 + $0x68] sm:$0xf]
  %v111 = vld [vmem:[%s1 + $0x6c] sm:$0xf]
  %v112 = vld [vmem:[%s1 + $0x70] sm:$0xf]
  %v113 = vld [vmem:[%s1 + $0x74] sm:$0xf]
  %v114 = vld [vmem:[%s1 + $0x78] sm:$0xf]
  %v115 = vld [vmem:[%s1 + $0x7c] sm:$0xf]
  %v116 = vld [vmem:[%s1 + $0x80] sm:$0xf]
  %v117 = vld [vmem:[%s1 + $0x84] sm:$0xf]
  %v118 = vld [vmem:[%s1 + $0x88] sm:$0xf]
  %v119 = vld [vmem:[%s1 + $0x8c] sm:$0xf]
  %v120 = vld [vmem:[%s1 + $0x90] sm:$0xf]
  %v121 = vld [vmem:[%s1 + $0x94] sm:$0xf]
  %v122 = vld [vmem:[%s1 + $0x98] sm:$0xf]
  %v123 = vld [vmem:[%s1 + $0x9c] sm:$0xf]
  %v124 = vld [vmem:[%s1 + $0xa0] sm:$0xf]
  %v125 = vld [vmem:[%s1 + $0xa4] sm:$0xf]
  %v126 = vld [vmem:[%s1 + $0xa8] sm:$0xf]
  %v127 = vld [vmem:[%s1 + $0xac] sm:$0xf]
  %v128 = vld [vmem:[%s1 + $0xb0] sm:$0xf]
  %v129 = vld [vmem:[%s1 + $0xb4] sm:$0xf]
  %v130 = vld [vmem:[%s1 + $0xb8] sm:$0xf]
  %v131 = vld [vmem:[%s1 + $0xbc] sm:$0xf]
  %v132 = vld [vmem:[%s1 + $0xc0] sm:$0xf]
  %v133 = vld [vmem:[%s1 + $0xc4] sm:$0xf]
  %v134 = vld [vmem:[%s1 + $0xc8] sm:$0xf]
  %v135 = vld [vmem:[%s1 + $0xcc] sm:$0xf]
  %v136 = vld [vmem:[%s1 + $0xd0] sm:$0xf]
  %v137 = vld [vmem:[%s1 + $0xd4] sm:$0xf]
  %v138 = vld [vmem:[%s1 + $0xd8] sm:$0xf]
  %v139 = vld [vmem:[%s1 + $0xdc] sm:$0xf]
  %v140 = vld [vmem:[%s1 + $0xe0] sm:$0xf]
  %v141 = vld [vmem:[%s1 + $0xe4] sm:$0xf]
  %v142 = vld [vmem:[%s1 + $0xe8] sm:$0xf]
  %v143 = vld [vmem:[%s1 + $0xec] sm:$0xf]
  %v144 = vld [vmem:[%s1 + $0xf0] sm:$0xf]
  %v145 = vld [vmem:[%s1 + $0xf4] sm:$0xf]
  %v146 = vld [vmem:[%s1 + $0xf8] sm:$0xf]
  %v147 = vld [vmem:[%s1 + $0xfc] sm:$0xf]
  %v148 = vld [vmem:[%s1 + $0x100] sm:$0xf]
  %v149 = vld [vmem:[%s1 + $0x104] sm:$0xf]
  %v150 = vld [vmem:[%s1 + $0x108] sm:$0xf]
  %v151 = vld [vmem:[%s1 + $0x10c] sm:$0xf]
  %v152 = vld [vmem:[%s1 + $0x110] sm:$0xf]
  %v153 = vld [vmem:[%s1 + $0x114] sm:$0xf]
  %v154 = vld [vmem:[%s1 + $0x118] sm:$0xf]
  %v155 = vld [vmem:[%s1 + $0x11c] sm:$0xf]
  %v156 = vld [vmem:[%s1 + $0x120] sm:$0xf]
  %v157 = vld [vmem:[%s1 + $0x124] sm:$0xf]
  %v158 = vld [vmem:[%s1 + $0x128] sm:$0xf]
  %v159 = vld [vmem:[%s1 + $0x12c] sm:$0xf]
  %v160 = vld [vmem:[%s1 + $0x130] sm:$0xf]
  %v161 = vld [vmem:[%s1 + $0x134] sm:$0xf]
  %v162 = vld [vmem:[%s1 + $0x138] sm:$0xf]
  %v163 = vld [vmem:[%s1 + $0x13c] sm:$0xf]
  %v164 = vld [vmem:[%s1 + $0x140] sm:$0xf]
  %v165 = vld [vmem:[%s1 + $0x144] sm:$0xf]
  %v166 = vld [vmem:[%s1 + $0x148] sm:$0xf]
  %v167 = vld [vmem:[%s1 + $0x14c] sm:$0xf]
  %v168 = vld [vmem:[%s1 + $0x150] sm:$0xf]
  %v169 = vld [vmem:[%s1 + $0x154] sm:$0xf]
  %v170 = vld [vmem:[%s1 + $0x158] sm:$0xf]
  %v171 = vld [vmem:[%s1 + $0x15c] sm:$0xf]
  %v172 = vld [vmem:[%s1 + $0x160] sm:$0xf]
  %v173 = vld [vmem:[%s1 + $0x164] sm:$0xf]
  %v174 = vld [vmem:[%s1 + $0x168] sm:$0xf]
  %v175 = vld [vmem:[%s1 + $0x16c] sm:$0xf]
  %v176 = vld [vmem:[%s1 + $0x170] sm:$0xf]
  %v177 = vld [vmem:[%s1 + $0x174] sm:$0xf]
  %v178 = vld [vmem:[%s1 + $0x178] sm:$0xf]
  %v179 = vld [vmem:[%s1 + $0x17c] sm:$0xf]
  %v180 = vld [vmem:[%s1 + $0x180] sm:$0xf]
  %v181 = vld [vmem:[%s1 + $0x184] sm:$0xf]
  %v182 = vld [vmem:[%s1 + $0x188] sm:$0xf]
  %v183 = vld [vmem:[%s1 + $0x18c] sm:$0xf]
  %v184 = vld [vmem:[%s1 + $0x190] sm:$0xf]
  %v185 = vld [vmem:[%s1 + $0x194] sm:$0xf]
  %v186 = vld [vmem:[%s1 + $0x198] sm:$0xf]
  %v187 = vld [vmem:[%s1 + $0x19c] sm:$0xf]
  %v188 = vld [vmem:[%s1 + $0x1a0] sm:$0xf]
  %v189 = vld [vmem:[%s1 + $0x1a4] sm:$0xf]
  %v190 = vld [vmem:[%s1 + $0x1a8] sm:$0xf]
  %v191 = vld [vmem:[%s1 + $0x1ac] sm:$0xf]
  %v192 = vld [vmem:[%s1 + $0x1b0] sm:$0xf]
  %v193 = vld [vmem:[%s1 + $0x1b4] sm:$0xf]
  %v194 = vld [vmem:[%s1 + $0x1b8] sm:$0xf]
  %v195 = vld [vmem:[%s1 + $0x1bc] sm:$0xf]
  %v196 = vld [vmem:[%s1 + $0x1c0] sm:$0xf]
  %v197 = vld [vmem:[%s1 + $0x1c4] sm:$0xf]
  %v198 = vld [vmem:[%s1 + $0x1c8] sm:$0xf]
  %v199 = vld [vmem:[%s1 + $0x1cc] sm:$0xf]
  %v200 = vld [vmem:[%s1 + $0x1d0] sm:$0xf]
  %v201 = vld [vmem:[%s1 + $0x1d4] sm:$0xf]
  %v202 = vld [vmem:[%s1 + $0x1d8] sm:$0xf]
  %v203 = vld [vmem:[%s1 + $0x1dc] sm:$0xf]
  %v204 = vld [vmem:[%s1 + $0x1e0] sm:$0xf]
  %v205 = vld [vmem:[%s1 + $0x1e4] sm:$0xf]
  %v206 = vld [vmem:[%s1 + $0x1e8] sm:$0xf]
  %v207 = vld [vmem:[%s1 + $0x1ec] sm:$0xf]
  %v208 = vld [vmem:[%s1 + $0x1f0] sm:$0xf]
  %v209 = vld [vmem:[%s1 + $0x1f4] sm:$0xf]
  %v210 = vld [vmem:[%s1 + $0x1f8] sm:$0xf]
  %v211 = vld [vmem:[%s1 + $0x1fc] sm:$0xf]
  %v212 = vld [vmem:[%s2] sm:$0x1]
  %v214 = vperm.slane %v212, 0
  %v280 = vunpack.c.l.b16 %v20
  %v281 = vunpack.c.h.b16 %v20
  %v282 = vunpack.c.l.b16 %v21
  %v283 = vunpack.c.h.b16 %v21
  %v284 = vunpack.c.l.b16 %v22
  %v285 = vunpack.c.h.b16 %v22
  %v286 = vunpack.c.l.b16 %v23
  %v287 = vunpack.c.h.b16 %v23
  %v288 = vunpack.c.l.b16 %v24
  %v289 = vunpack.c.h.b16 %v24
  %v290 = vunpack.c.l.b16 %v25
  %v291 = vunpack.c.h.b16 %v25
  %v292 = vunpack.c.l.b16 %v26
  %v293 = vunpack.c.h.b16 %v26
  %v294 = vunpack.c.l.b16 %v27
  %v295 = vunpack.c.h.b16 %v27
  %v296 = vunpack.c.l.b16 %v28
  %v297 = vunpack.c.h.b16 %v28
  %v298 = vunpack.c.l.b16 %v29
  %v299 = vunpack.c.h.b16 %v29
  %v300 = vunpack.c.l.b16 %v30
  %v301 = vunpack.c.h.b16 %v30
  %v302 = vunpack.c.l.b16 %v31
  %v303 = vunpack.c.h.b16 %v31
  %v304 = vunpack.c.l.b16 %v32
  %v305 = vunpack.c.h.b16 %v32
  %v306 = vunpack.c.l.b16 %v33
  %v307 = vunpack.c.h.b16 %v33
  %v308 = vunpack.c.l.b16 %v34
  %v309 = vunpack.c.h.b16 %v34
  %v310 = vunpack.c.l.b16 %v35
  %v311 = vunpack.c.h.b16 %v35
  %v312 = vunpack.c.l.b16 %v36
  %v313 = vunpack.c.h.b16 %v36
  %v314 = vunpack.c.l.b16 %v37
  %v315 = vunpack.c.h.b16 %v37
  %v316 = vunpack.c.l.b16 %v38
  %v317 = vunpack.c.h.b16 %v38
  %v318 = vunpack.c.l.b16 %v39
  %v319 = vunpack.c.h.b16 %v39
  %v320 = vunpack.c.l.b16 %v40
  %v321 = vunpack.c.h.b16 %v40
  %v322 = vunpack.c.l.b16 %v41
  %v323 = vunpack.c.h.b16 %v41
  %v324 = vunpack.c.l.b16 %v42
  %v325 = vunpack.c.h.b16 %v42
  %v326 = vunpack.c.l.b16 %v43
  %v327 = vunpack.c.h.b16 %v43
  %v328 = vunpack.c.l.b16 %v44
  %v329 = vunpack.c.h.b16 %v44
  %v330 = vunpack.c.l.b16 %v45
  %v331 = vunpack.c.h.b16 %v45
  %v332 = vunpack.c.l.b16 %v46
  %v333 = vunpack.c.h.b16 %v46
  %v334 = vunpack.c.l.b16 %v47
  %v335 = vunpack.c.h.b16 %v47
  %v336 = vunpack.c.l.b16 %v48
  %v337 = vunpack.c.h.b16 %v48
  %v338 = vunpack.c.l.b16 %v49
  %v339 = vunpack.c.h.b16 %v49
  %v340 = vunpack.c.l.b16 %v50
  %v341 = vunpack.c.h.b16 %v50
  %v342 = vunpack.c.l.b16 %v51
  %v343 = vunpack.c.h.b16 %v51
  %v344 = vunpack.c.l.b16 %v52
  %v345 = vunpack.c.h.b16 %v52
  %v346 = vunpack.c.l.b16 %v53
  %v347 = vunpack.c.h.b16 %v53
  %v348 = vunpack.c.l.b16 %v54
  %v349 = vunpack.c.h.b16 %v54
  %v350 = vunpack.c.l.b16 %v55
  %v351 = vunpack.c.h.b16 %v55
  %v352 = vunpack.c.l.b16 %v56
  %v353 = vunpack.c.h.b16 %v56
  %v354 = vunpack.c.l.b16 %v57
  %v355 = vunpack.c.h.b16 %v57
  %v356 = vunpack.c.l.b16 %v58
  %v357 = vunpack.c.h.b16 %v58
  %v358 = vunpack.c.l.b16 %v59
  %v359 = vunpack.c.h.b16 %v59
  %v360 = vunpack.c.l.b16 %v60
  %v361 = vunpack.c.h.b16 %v60
  %v362 = vunpack.c.l.b16 %v61
  %v363 = vunpack.c.h.b16 %v61
  %v364 = vunpack.c.l.b16 %v62
  %v365 = vunpack.c.h.b16 %v62
  %v366 = vunpack.c.l.b16 %v63
  %v367 = vunpack.c.h.b16 %v63
  %v368 = vunpack.c.l.b16 %v64
  %v369 = vunpack.c.h.b16 %v64
  %v370 = vunpack.c.l.b16 %v65
  %v371 = vunpack.c.h.b16 %v65
  %v372 = vunpack.c.l.b16 %v66
  %v373 = vunpack.c.h.b16 %v66
  %v374 = vunpack.c.l.b16 %v67
  %v375 = vunpack.c.h.b16 %v67
  %v376 = vunpack.c.l.b16 %v68
  %v377 = vunpack.c.h.b16 %v68
  %v378 = vunpack.c.l.b16 %v69
  %v379 = vunpack.c.h.b16 %v69
  %v380 = vunpack.c.l.b16 %v70
  %v381 = vunpack.c.h.b16 %v70
  %v382 = vunpack.c.l.b16 %v71
  %v383 = vunpack.c.h.b16 %v71
  %v384 = vunpack.c.l.b16 %v72
  %v385 = vunpack.c.h.b16 %v72
  %v386 = vunpack.c.l.b16 %v73
  %v387 = vunpack.c.h.b16 %v73
  %v388 = vunpack.c.l.b16 %v74
  %v389 = vunpack.c.h.b16 %v74
  %v390 = vunpack.c.l.b16 %v75
  %v391 = vunpack.c.h.b16 %v75
  %v392 = vunpack.c.l.b16 %v76
  %v393 = vunpack.c.h.b16 %v76
  %v394 = vunpack.c.l.b16 %v77
  %v395 = vunpack.c.h.b16 %v77
  %v396 = vunpack.c.l.b16 %v78
  %v397 = vunpack.c.h.b16 %v78
  %v398 = vunpack.c.l.b16 %v79
  %v399 = vunpack.c.h.b16 %v79
  %v400 = vunpack.c.l.b16 %v80
  %v401 = vunpack.c.h.b16 %v80
  %v402 = vunpack.c.l.b16 %v81
  %v403 = vunpack.c.h.b16 %v81
  %v404 = vunpack.c.l.b16 %v82
  %v405 = vunpack.c.h.b16 %v82
  %v406 = vunpack.c.l.b16 %v83
  %v407 = vunpack.c.h.b16 %v83
  %v408 = vpack.c.b16 %v288, %v280
  %v409 = vpack.c.b16 %v289, %v281
  %v410 = vpack.c.b16 %v290, %v282
  %v411 = vpack.c.b16 %v291, %v283
  %v412 = vpack.c.b16 %v292, %v284
  %v413 = vpack.c.b16 %v293, %v285
  %v414 = vpack.c.b16 %v294, %v286
  %v415 = vpack.c.b16 %v295, %v287
  %v416 = vpack.c.b16 %v304, %v296
  %v417 = vpack.c.b16 %v305, %v297
  %v418 = vpack.c.b16 %v306, %v298
  %v419 = vpack.c.b16 %v307, %v299
  %v420 = vpack.c.b16 %v308, %v300
  %v421 = vpack.c.b16 %v309, %v301
  %v422 = vpack.c.b16 %v310, %v302
  %v423 = vpack.c.b16 %v311, %v303
  %v424 = vpack.c.b16 %v320, %v312
  %v425 = vpack.c.b16 %v321, %v313
  %v426 = vpack.c.b16 %v322, %v314
  %v427 = vpack.c.b16 %v323, %v315
  %v428 = vpack.c.b16 %v324, %v316
  %v429 = vpack.c.b16 %v325, %v317
  %v430 = vpack.c.b16 %v326, %v318
  %v431 = vpack.c.b16 %v327, %v319
  %v432 = vpack.c.b16 %v336, %v328
  %v433 = vpack.c.b16 %v337, %v329
  %v434 = vpack.c.b16 %v338, %v330
  %v435 = vpack.c.b16 %v339, %v331
  %v436 = vpack.c.b16 %v340, %v332
  %v437 = vpack.c.b16 %v341, %v333
  %v438 = vpack.c.b16 %v342, %v334
  %v439 = vpack.c.b16 %v343, %v335
  %v440 = vpack.c.b16 %v352, %v344
  %v441 = vpack.c.b16 %v353, %v345
  %v442 = vpack.c.b16 %v354, %v346
  %v443 = vpack.c.b16 %v355, %v347
  %v444 = vpack.c.b16 %v356, %v348
  %v445 = vpack.c.b16 %v357, %v349
  %v446 = vpack.c.b16 %v358, %v350
  %v447 = vpack.c.b16 %v359, %v351
  %v448 = vpack.c.b16 %v368, %v360
  %v449 = vpack.c.b16 %v369, %v361
  %v450 = vpack.c.b16 %v370, %v362
  %v451 = vpack.c.b16 %v371, %v363
  %v452 = vpack.c.b16 %v372, %v364
  %v453 = vpack.c.b16 %v373, %v365
  %v454 = vpack.c.b16 %v374, %v366
  %v455 = vpack.c.b16 %v375, %v367
  %v456 = vpack.c.b16 %v384, %v376
  %v457 = vpack.c.b16 %v385, %v377
  %v458 = vpack.c.b16 %v386, %v378
  %v459 = vpack.c.b16 %v387, %v379
  %v460 = vpack.c.b16 %v388, %v380
  %v461 = vpack.c.b16 %v389, %v381
  %v462 = vpack.c.b16 %v390, %v382
  %v463 = vpack.c.b16 %v391, %v383
  %v464 = vpack.c.b16 %v400, %v392
  %v465 = vpack.c.b16 %v401, %v393
  %v466 = vpack.c.b16 %v402, %v394
  %v467 = vpack.c.b16 %v403, %v395
  %v468 = vpack.c.b16 %v404, %v396
  %v469 = vpack.c.b16 %v405, %v397
  %v470 = vpack.c.b16 %v406, %v398
  %v471 = vpack.c.b16 %v407, %v399
  %v664 = vunpack.c.l.b16 %v84
  %v665 = vunpack.c.l.b16 %v85
  %v666 = vunpack.c.l.b16 %v86
  %v667 = vunpack.c.l.b16 %v87
  %v668 = vunpack.c.l.b16 %v88
  %v669 = vunpack.c.l.b16 %v89
  %v670 = vunpack.c.l.b16 %v90
  %v671 = vunpack.c.l.b16 %v91
  %v672 = vunpack.c.l.b16 %v92
  %v673 = vunpack.c.l.b16 %v93
  %v674 = vunpack.c.l.b16 %v94
  %v675 = vunpack.c.l.b16 %v95
  %v676 = vunpack.c.l.b16 %v96
  %v677 = vunpack.c.l.b16 %v97
  %v678 = vunpack.c.l.b16 %v98
  %v679 = vunpack.c.l.b16 %v99
  %v680 = vunpack.c.l.b16 %v100
  %v681 = vunpack.c.l.b16 %v101
  %v682 = vunpack.c.l.b16 %v102
  %v683 = vunpack.c.l.b16 %v103
  %v684 = vunpack.c.l.b16 %v104
  %v685 = vunpack.c.l.b16 %v105
  %v686 = vunpack.c.l.b16 %v106
  %v687 = vunpack.c.l.b16 %v107
  %v688 = vunpack.c.l.b16 %v108
  %v689 = vunpack.c.l.b16 %v109
  %v690 = vunpack.c.l.b16 %v110
  %v691 = vunpack.c.l.b16 %v111
  %v692 = vunpack.c.l.b16 %v112
  %v693 = vunpack.c.l.b16 %v113
  %v694 = vunpack.c.l.b16 %v114
  %v695 = vunpack.c.l.b16 %v115
  %v696 = vunpack.c.l.b16 %v116
  %v697 = vunpack.c.l.b16 %v117
  %v698 = vunpack.c.l.b16 %v118
  %v699 = vunpack.c.l.b16 %v119
  %v700 = vunpack.c.l.b16 %v120
  %v701 = vunpack.c.l.b16 %v121
  %v702 = vunpack.c.l.b16 %v122
  %v703 = vunpack.c.l.b16 %v123
  %v704 = vunpack.c.l.b16 %v124
  %v705 = vunpack.c.l.b16 %v125
  %v706 = vunpack.c.l.b16 %v126
  %v707 = vunpack.c.l.b16 %v127
  %v708 = vunpack.c.l.b16 %v128
  %v709 = vunpack.c.l.b16 %v129
  %v710 = vunpack.c.l.b16 %v130
  %v711 = vunpack.c.l.b16 %v131
  %v712 = vunpack.c.l.b16 %v132
  %v713 = vunpack.c.l.b16 %v133
  %v714 = vunpack.c.l.b16 %v134
  %v715 = vunpack.c.l.b16 %v135
  %v716 = vunpack.c.l.b16 %v136
  %v717 = vunpack.c.l.b16 %v137
  %v718 = vunpack.c.l.b16 %v138
  %v719 = vunpack.c.l.b16 %v139
  %v720 = vunpack.c.l.b16 %v140
  %v721 = vunpack.c.l.b16 %v141
  %v722 = vunpack.c.l.b16 %v142
  %v723 = vunpack.c.l.b16 %v143
  %v724 = vunpack.c.l.b16 %v144
  %v725 = vunpack.c.l.b16 %v145
  %v726 = vunpack.c.l.b16 %v146
  %v727 = vunpack.c.l.b16 %v147
  %v728 = vunpack.c.l.b16 %v148
  %v729 = vunpack.c.l.b16 %v149
  %v730 = vunpack.c.l.b16 %v150
  %v731 = vunpack.c.l.b16 %v151
  %v732 = vunpack.c.l.b16 %v152
  %v733 = vunpack.c.l.b16 %v153
  %v734 = vunpack.c.l.b16 %v154
  %v735 = vunpack.c.l.b16 %v155
  %v736 = vunpack.c.l.b16 %v156
  %v737 = vunpack.c.l.b16 %v157
  %v738 = vunpack.c.l.b16 %v158
  %v739 = vunpack.c.l.b16 %v159
  %v740 = vunpack.c.l.b16 %v160
  %v741 = vunpack.c.l.b16 %v161
  %v742 = vunpack.c.l.b16 %v162
  %v743 = vunpack.c.l.b16 %v163
  %v744 = vunpack.c.l.b16 %v164
  %v745 = vunpack.c.l.b16 %v165
  %v746 = vunpack.c.l.b16 %v166
  %v747 = vunpack.c.l.b16 %v167
  %v748 = vunpack.c.l.b16 %v168
  %v749 = vunpack.c.l.b16 %v169
  %v750 = vunpack.c.l.b16 %v170
  %v751 = vunpack.c.l.b16 %v171
  %v752 = vunpack.c.l.b16 %v172
  %v753 = vunpack.c.l.b16 %v173
  %v754 = vunpack.c.l.b16 %v174
  %v755 = vunpack.c.l.b16 %v175
  %v756 = vunpack.c.l.b16 %v176
  %v757 = vunpack.c.l.b16 %v177
  %v758 = vunpack.c.l.b16 %v178
  %v759 = vunpack.c.l.b16 %v179
  %v760 = vunpack.c.l.b16 %v180
  %v761 = vunpack.c.l.b16 %v181
  %v762 = vunpack.c.l.b16 %v182
  %v763 = vunpack.c.l.b16 %v183
  %v764 = vunpack.c.l.b16 %v184
  %v765 = vunpack.c.l.b16 %v185
  %v766 = vunpack.c.l.b16 %v186
  %v767 = vunpack.c.l.b16 %v187
  %v768 = vunpack.c.l.b16 %v188
  %v769 = vunpack.c.l.b16 %v189
  %v770 = vunpack.c.l.b16 %v190
  %v771 = vunpack.c.l.b16 %v191
  %v772 = vunpack.c.l.b16 %v192
  %v773 = vunpack.c.l.b16 %v193
  %v774 = vunpack.c.l.b16 %v194
  %v775 = vunpack.c.l.b16 %v195
  %v776 = vunpack.c.l.b16 %v196
  %v777 = vunpack.c.l.b16 %v197
  %v778 = vunpack.c.l.b16 %v198
  %v779 = vunpack.c.l.b16 %v199
  %v780 = vunpack.c.l.b16 %v200
  %v781 = vunpack.c.l.b16 %v201
  %v782 = vunpack.c.l.b16 %v202
  %v783 = vunpack.c.l.b16 %v203
  %v784 = vunpack.c.l.b16 %v204
  %v785 = vunpack.c.l.b16 %v205
  %v786 = vunpack.c.l.b16 %v206
  %v787 = vunpack.c.l.b16 %v207
  %v788 = vunpack.c.l.b16 %v208
  %v789 = vunpack.c.l.b16 %v209
  %v790 = vunpack.c.l.b16 %v210
  %v791 = vunpack.c.l.b16 %v211
  %v792 = vpack.c.b16 %v665, %v664
  %v793 = vpack.c.b16 %v667, %v666
  %v794 = vpack.c.b16 %v669, %v668
  %v795 = vpack.c.b16 %v671, %v670
  %v796 = vpack.c.b16 %v673, %v672
  %v797 = vpack.c.b16 %v675, %v674
  %v798 = vpack.c.b16 %v677, %v676
  %v799 = vpack.c.b16 %v679, %v678
  %v800 = vpack.c.b16 %v681, %v680
  %v801 = vpack.c.b16 %v683, %v682
  %v802 = vpack.c.b16 %v685, %v684
  %v803 = vpack.c.b16 %v687, %v686
  %v804 = vpack.c.b16 %v689, %v688
  %v805 = vpack.c.b16 %v691, %v690
  %v806 = vpack.c.b16 %v693, %v692
  %v807 = vpack.c.b16 %v695, %v694
  %v808 = vpack.c.b16 %v697, %v696
  %v809 = vpack.c.b16 %v699, %v698
  %v810 = vpack.c.b16 %v701, %v700
  %v811 = vpack.c.b16 %v703, %v702
  %v812 = vpack.c.b16 %v705, %v704
  %v813 = vpack.c.b16 %v707, %v706
  %v814 = vpack.c.b16 %v709, %v708
  %v815 = vpack.c.b16 %v711, %v710
  %v816 = vpack.c.b16 %v713, %v712
  %v817 = vpack.c.b16 %v715, %v714
  %v818 = vpack.c.b16 %v717, %v716
  %v819 = vpack.c.b16 %v719, %v718
  %v820 = vpack.c.b16 %v721, %v720
  %v821 = vpack.c.b16 %v723, %v722
  %v822 = vpack.c.b16 %v725, %v724
  %v823 = vpack.c.b16 %v727, %v726
  %v824 = vpack.c.b16 %v729, %v728
  %v825 = vpack.c.b16 %v731, %v730
  %v826 = vpack.c.b16 %v733, %v732
  %v827 = vpack.c.b16 %v735, %v734
  %v828 = vpack.c.b16 %v737, %v736
  %v829 = vpack.c.b16 %v739, %v738
  %v830 = vpack.c.b16 %v741, %v740
  %v831 = vpack.c.b16 %v743, %v742
  %v832 = vpack.c.b16 %v745, %v744
  %v833 = vpack.c.b16 %v747, %v746
  %v834 = vpack.c.b16 %v749, %v748
  %v835 = vpack.c.b16 %v751, %v750
  %v836 = vpack.c.b16 %v753, %v752
  %v837 = vpack.c.b16 %v755, %v754
  %v838 = vpack.c.b16 %v757, %v756
  %v839 = vpack.c.b16 %v759, %v758
  %v840 = vpack.c.b16 %v761, %v760
  %v841 = vpack.c.b16 %v763, %v762
  %v842 = vpack.c.b16 %v765, %v764
  %v843 = vpack.c.b16 %v767, %v766
  %v844 = vpack.c.b16 %v769, %v768
  %v845 = vpack.c.b16 %v771, %v770
  %v846 = vpack.c.b16 %v773, %v772
  %v847 = vpack.c.b16 %v775, %v774
  %v848 = vpack.c.b16 %v777, %v776
  %v849 = vpack.c.b16 %v779, %v778
  %v850 = vpack.c.b16 %v781, %v780
  %v851 = vpack.c.b16 %v783, %v782
  %v852 = vpack.c.b16 %v785, %v784
  %v853 = vpack.c.b16 %v787, %v786
  %v854 = vpack.c.b16 %v789, %v788
  %v855 = vpack.c.b16 %v791, %v790
  %920 = vmatpush.bf16.msra.mxu0 %v799
  %921 = vmatpush.bf16.msra.mxu0 %v798
  %922 = vmatpush.bf16.msra.mxu0 %v797
  %923 = vmatpush.bf16.msra.mxu0 %v796
  %924 = vmatpush.bf16.msra.mxu0 %v795
  %925 = vmatpush.bf16.msra.mxu0 %v794
  %926 = vmatpush.bf16.msra.mxu0 %v793
  %927 = vmatpush.bf16.msra.mxu0 %v792
  %928 = vmatmul.bf16.gmra.mxu0 %v408
  %v929 = vpop.f32.mrf.mxu0
  %v930 = vadd.f32 %v214, %v929
  %v931 = vpop.f32.mrf.mxu0
  %v932 = vadd.f32 %v214, %v931
  %933 = vmatmul.bf16.gmra.mxu0 %v416
  %v934 = vpop.f32.mrf.mxu0
  %v935 = vadd.f32 %v214, %v934
  %v936 = vpop.f32.mrf.mxu0
  %v937 = vadd.f32 %v214, %v936
  %938 = vmatmul.bf16.gmra.mxu0 %v424
  %v939 = vpop.f32.mrf.mxu0
  %v940 = vadd.f32 %v214, %v939
  %v941 = vpop.f32.mrf.mxu0
  %v942 = vadd.f32 %v214, %v941
  %943 = vmatmul.bf16.gmra.mxu0 %v432
  %v944 = vpop.f32.mrf.mxu0
  %v945 = vadd.f32 %v214, %v944
  %v946 = vpop.f32.mrf.mxu0
  %v947 = vadd.f32 %v214, %v946
  %948 = vmatmul.bf16.gmra.mxu0 %v440
  %v949 = vpop.f32.mrf.mxu0
  %v950 = vadd.f32 %v214, %v949
  %v951 = vpop.f32.mrf.mxu0
  %v952 = vadd.f32 %v214, %v951
  %953 = vmatmul.bf16.gmra.mxu0 %v448
  %v954 = vpop.f32.mrf.mxu0
  %v955 = vadd.f32 %v214, %v954
  %v956 = vpop.f32.mrf.mxu0
  %v957 = vadd.f32 %v214, %v956
  %958 = vmatmul.bf16.gmra.mxu0 %v456
  %v959 = vpop.f32.mrf.mxu0
  %v960 = vadd.f32 %v214, %v959
  %v961 = vpop.f32.mrf.mxu0
  %v962 = vadd.f32 %v214, %v961
  %963 = vmatmul.bf16.gmra.mxu0 %v464
  %v964 = vpop.f32.mrf.mxu0
  %v965 = vadd.f32 %v214, %v964
  %v966 = vpop.f32.mrf.mxu0
  %v967 = vadd.f32 %v214, %v966
  %968 = vdwg.mxu0
  %969 = vmatpush.bf16.msra.mxu0 %v807
  %970 = vmatpush.bf16.msra.mxu0 %v806
  %971 = vmatpush.bf16.msra.mxu0 %v805
  %972 = vmatpush.bf16.msra.mxu0 %v804
  %973 = vmatpush.bf16.msra.mxu0 %v803
  %974 = vmatpush.bf16.msra.mxu0 %v802
  %975 = vmatpush.bf16.msra.mxu0 %v801
  %976 = vmatpush.bf16.msra.mxu0 %v800
  %977 = vmatmul.bf16.gmra.mxu0 %v409
  %v978 = vpop.f32.mrf.mxu0
  %v979 = vadd.f32 %v930, %v978
  %v980 = vpop.f32.mrf.mxu0
  %v981 = vadd.f32 %v932, %v980
  %982 = vmatmul.bf16.gmra.mxu0 %v417
  %v983 = vpop.f32.mrf.mxu0
  %v984 = vadd.f32 %v935, %v983
  %v985 = vpop.f32.mrf.mxu0
  %v986 = vadd.f32 %v937, %v985
  %987 = vmatmul.bf16.gmra.mxu0 %v425
  %v988 = vpop.f32.mrf.mxu0
  %v989 = vadd.f32 %v940, %v988
  %v990 = vpop.f32.mrf.mxu0
  %v991 = vadd.f32 %v942, %v990
  %992 = vmatmul.bf16.gmra.mxu0 %v433
  %v993 = vpop.f32.mrf.mxu0
  %v994 = vadd.f32 %v945, %v993
  %v995 = vpop.f32.mrf.mxu0
  %v996 = vadd.f32 %v947, %v995
  %997 = vmatmul.bf16.gmra.mxu0 %v441
  %v998 = vpop.f32.mrf.mxu0
  %v999 = vadd.f32 %v950, %v998
  %v1000 = vpop.f32.mrf.mxu0
  %v1001 = vadd.f32 %v952, %v1000
  %1002 = vmatmul.bf16.gmra.mxu0 %v449
  %v1003 = vpop.f32.mrf.mxu0
  %v1004 = vadd.f32 %v955, %v1003
  %v1005 = vpop.f32.mrf.mxu0
  %v1006 = vadd.f32 %v957, %v1005
  %1007 = vmatmul.bf16.gmra.mxu0 %v457
  %v1008 = vpop.f32.mrf.mxu0
  %v1009 = vadd.f32 %v960, %v1008
  %v1010 = vpop.f32.mrf.mxu0
  %v1011 = vadd.f32 %v962, %v1010
  %1012 = vmatmul.bf16.gmra.mxu0 %v465
  %v1013 = vpop.f32.mrf.mxu0
  %v1014 = vadd.f32 %v965, %v1013
  %v1015 = vpop.f32.mrf.mxu0
  %v1016 = vadd.f32 %v967, %v1015
  %1017 = vdwg.mxu0
  %1018 = vmatpush.bf16.msra.mxu0 %v815
  %1019 = vmatpush.bf16.msra.mxu0 %v814
  %1020 = vmatpush.bf16.msra.mxu0 %v813
  %1021 = vmatpush.bf16.msra.mxu0 %v812
  %1022 = vmatpush.bf16.msra.mxu0 %v811
  %1023 = vmatpush.bf16.msra.mxu0 %v810
  %1024 = vmatpush.bf16.msra.mxu0 %v809
  %1025 = vmatpush.bf16.msra.mxu0 %v808
  %1026 = vmatmul.bf16.gmra.mxu0 %v410
  %v1027 = vpop.f32.mrf.mxu0
  %v1028 = vadd.f32 %v979, %v1027
  %v1029 = vpop.f32.mrf.mxu0
  %v1030 = vadd.f32 %v981, %v1029
  %1031 = vmatmul.bf16.gmra.mxu0 %v418
  %v1032 = vpop.f32.mrf.mxu0
  %v1033 = vadd.f32 %v984, %v1032
  %v1034 = vpop.f32.mrf.mxu0
  %v1035 = vadd.f32 %v986, %v1034
  %1036 = vmatmul.bf16.gmra.mxu0 %v426
  %v1037 = vpop.f32.mrf.mxu0
  %v1038 = vadd.f32 %v989, %v1037
  %v1039 = vpop.f32.mrf.mxu0
  %v1040 = vadd.f32 %v991, %v1039
  %1041 = vmatmul.bf16.gmra.mxu0 %v434
  %v1042 = vpop.f32.mrf.mxu0
  %v1043 = vadd.f32 %v994, %v1042
  %v1044 = vpop.f32.mrf.mxu0
  %v1045 = vadd.f32 %v996, %v1044
  %1046 = vmatmul.bf16.gmra.mxu0 %v442
  %v1047 = vpop.f32.mrf.mxu0
  %v1048 = vadd.f32 %v999, %v1047
  %v1049 = vpop.f32.mrf.mxu0
  %v1050 = vadd.f32 %v1001, %v1049
  %1051 = vmatmul.bf16.gmra.mxu0 %v450
  %v1052 = vpop.f32.mrf.mxu0
  %v1053 = vadd.f32 %v1004, %v1052
  %v1054 = vpop.f32.mrf.mxu0
  %v1055 = vadd.f32 %v1006, %v1054
  %1056 = vmatmul.bf16.gmra.mxu0 %v458
  %v1057 = vpop.f32.mrf.mxu0
  %v1058 = vadd.f32 %v1009, %v1057
  %v1059 = vpop.f32.mrf.mxu0
  %v1060 = vadd.f32 %v1011, %v1059
  %1061 = vmatmul.bf16.gmra.mxu0 %v466
  %v1062 = vpop.f32.mrf.mxu0
  %v1063 = vadd.f32 %v1014, %v1062
  %v1064 = vpop.f32.mrf.mxu0
  %v1065 = vadd.f32 %v1016, %v1064
  %1066 = vdwg.mxu0
  %1067 = vmatpush.bf16.msra.mxu0 %v823
  %1068 = vmatpush.bf16.msra.mxu0 %v822
  %1069 = vmatpush.bf16.msra.mxu0 %v821
  %1070 = vmatpush.bf16.msra.mxu0 %v820
  %1071 = vmatpush.bf16.msra.mxu0 %v819
  %1072 = vmatpush.bf16.msra.mxu0 %v818
  %1073 = vmatpush.bf16.msra.mxu0 %v817
  %1074 = vmatpush.bf16.msra.mxu0 %v816
  %1075 = vmatmul.bf16.gmra.mxu0 %v411
  %v1076 = vpop.f32.mrf.mxu0
  %v1077 = vadd.f32 %v1028, %v1076
  %v1078 = vpop.f32.mrf.mxu0
  %v1079 = vadd.f32 %v1030, %v1078
  %1080 = vmatmul.bf16.gmra.mxu0 %v419
  %v1081 = vpop.f32.mrf.mxu0
  %v1082 = vadd.f32 %v1033, %v1081
  %v1083 = vpop.f32.mrf.mxu0
  %v1084 = vadd.f32 %v1035, %v1083
  %1085 = vmatmul.bf16.gmra.mxu0 %v427
  %v1086 = vpop.f32.mrf.mxu0
  %v1087 = vadd.f32 %v1038, %v1086
  %v1088 = vpop.f32.mrf.mxu0
  %v1089 = vadd.f32 %v1040, %v1088
  %1090 = vmatmul.bf16.gmra.mxu0 %v435
  %v1091 = vpop.f32.mrf.mxu0
  %v1092 = vadd.f32 %v1043, %v1091
  %v1093 = vpop.f32.mrf.mxu0
  %v1094 = vadd.f32 %v1045, %v1093
  %1095 = vmatmul.bf16.gmra.mxu0 %v443
  %v1096 = vpop.f32.mrf.mxu0
  %v1097 = vadd.f32 %v1048, %v1096
  %v1098 = vpop.f32.mrf.mxu0
  %v1099 = vadd.f32 %v1050, %v1098
  %1100 = vmatmul.bf16.gmra.mxu0 %v451
  %v1101 = vpop.f32.mrf.mxu0
  %v1102 = vadd.f32 %v1053, %v1101
  %v1103 = vpop.f32.mrf.mxu0
  %v1104 = vadd.f32 %v1055, %v1103
  %1105 = vmatmul.bf16.gmra.mxu0 %v459
  %v1106 = vpop.f32.mrf.mxu0
  %v1107 = vadd.f32 %v1058, %v1106
  %v1108 = vpop.f32.mrf.mxu0
  %v1109 = vadd.f32 %v1060, %v1108
  %1110 = vmatmul.bf16.gmra.mxu0 %v467
  %v1111 = vpop.f32.mrf.mxu0
  %v1112 = vadd.f32 %v1063, %v1111
  %v1113 = vpop.f32.mrf.mxu0
  %v1114 = vadd.f32 %v1065, %v1113
  %1115 = vdwg.mxu0
  %1116 = vmatpush.bf16.msra.mxu0 %v831
  %1117 = vmatpush.bf16.msra.mxu0 %v830
  %1118 = vmatpush.bf16.msra.mxu0 %v829
  %1119 = vmatpush.bf16.msra.mxu0 %v828
  %1120 = vmatpush.bf16.msra.mxu0 %v827
  %1121 = vmatpush.bf16.msra.mxu0 %v826
  %1122 = vmatpush.bf16.msra.mxu0 %v825
  %1123 = vmatpush.bf16.msra.mxu0 %v824
  %1124 = vmatmul.bf16.gmra.mxu0 %v412
  %v1125 = vpop.f32.mrf.mxu0
  %v1126 = vadd.f32 %v1077, %v1125
  %v1127 = vpop.f32.mrf.mxu0
  %v1128 = vadd.f32 %v1079, %v1127
  %1129 = vmatmul.bf16.gmra.mxu0 %v420
  %v1130 = vpop.f32.mrf.mxu0
  %v1131 = vadd.f32 %v1082, %v1130
  %v1132 = vpop.f32.mrf.mxu0
  %v1133 = vadd.f32 %v1084, %v1132
  %1134 = vmatmul.bf16.gmra.mxu0 %v428
  %v1135 = vpop.f32.mrf.mxu0
  %v1136 = vadd.f32 %v1087, %v1135
  %v1137 = vpop.f32.mrf.mxu0
  %v1138 = vadd.f32 %v1089, %v1137
  %1139 = vmatmul.bf16.gmra.mxu0 %v436
  %v1140 = vpop.f32.mrf.mxu0
  %v1141 = vadd.f32 %v1092, %v1140
  %v1142 = vpop.f32.mrf.mxu0
  %v1143 = vadd.f32 %v1094, %v1142
  %1144 = vmatmul.bf16.gmra.mxu0 %v444
  %v1145 = vpop.f32.mrf.mxu0
  %v1146 = vadd.f32 %v1097, %v1145
  %v1147 = vpop.f32.mrf.mxu0
  %v1148 = vadd.f32 %v1099, %v1147
  %1149 = vmatmul.bf16.gmra.mxu0 %v452
  %v1150 = vpop.f32.mrf.mxu0
  %v1151 = vadd.f32 %v1102, %v1150
  %v1152 = vpop.f32.mrf.mxu0
  %v1153 = vadd.f32 %v1104, %v1152
  %1154 = vmatmul.bf16.gmra.mxu0 %v460
  %v1155 = vpop.f32.mrf.mxu0
  %v1156 = vadd.f32 %v1107, %v1155
  %v1157 = vpop.f32.mrf.mxu0
  %v1158 = vadd.f32 %v1109, %v1157
  %1159 = vmatmul.bf16.gmra.mxu0 %v468
  %v1160 = vpop.f32.mrf.mxu0
  %v1161 = vadd.f32 %v1112, %v1160
  %v1162 = vpop.f32.mrf.mxu0
  %v1163 = vadd.f32 %v1114, %v1162
  %1164 = vdwg.mxu0
  %1165 = vmatpush.bf16.msra.mxu0 %v839
  %1166 = vmatpush.bf16.msra.mxu0 %v838
  %1167 = vmatpush.bf16.msra.mxu0 %v837
  %1168 = vmatpush.bf16.msra.mxu0 %v836
  %1169 = vmatpush.bf16.msra.mxu0 %v835
  %1170 = vmatpush.bf16.msra.mxu0 %v834
  %1171 = vmatpush.bf16.msra.mxu0 %v833
  %1172 = vmatpush.bf16.msra.mxu0 %v832
  %1173 = vmatmul.bf16.gmra.mxu0 %v413
  %v1174 = vpop.f32.mrf.mxu0
  %v1175 = vadd.f32 %v1126, %v1174
  %v1176 = vpop.f32.mrf.mxu0
  %v1177 = vadd.f32 %v1128, %v1176
  %1178 = vmatmul.bf16.gmra.mxu0 %v421
  %v1179 = vpop.f32.mrf.mxu0
  %v1180 = vadd.f32 %v1131, %v1179
  %v1181 = vpop.f32.mrf.mxu0
  %v1182 = vadd.f32 %v1133, %v1181
  %1183 = vmatmul.bf16.gmra.mxu0 %v429
  %v1184 = vpop.f32.mrf.mxu0
  %v1185 = vadd.f32 %v1136, %v1184
  %v1186 = vpop.f32.mrf.mxu0
  %v1187 = vadd.f32 %v1138, %v1186
  %1188 = vmatmul.bf16.gmra.mxu0 %v437
  %v1189 = vpop.f32.mrf.mxu0
  %v1190 = vadd.f32 %v1141, %v1189
  %v1191 = vpop.f32.mrf.mxu0
  %v1192 = vadd.f32 %v1143, %v1191
  %1193 = vmatmul.bf16.gmra.mxu0 %v445
  %v1194 = vpop.f32.mrf.mxu0
  %v1195 = vadd.f32 %v1146, %v1194
  %v1196 = vpop.f32.mrf.mxu0
  %v1197 = vadd.f32 %v1148, %v1196
  %1198 = vmatmul.bf16.gmra.mxu0 %v453
  %v1199 = vpop.f32.mrf.mxu0
  %v1200 = vadd.f32 %v1151, %v1199
  %v1201 = vpop.f32.mrf.mxu0
  %v1202 = vadd.f32 %v1153, %v1201
  %1203 = vmatmul.bf16.gmra.mxu0 %v461
  %v1204 = vpop.f32.mrf.mxu0
  %v1205 = vadd.f32 %v1156, %v1204
  %v1206 = vpop.f32.mrf.mxu0
  %v1207 = vadd.f32 %v1158, %v1206
  %1208 = vmatmul.bf16.gmra.mxu0 %v469
  %v1209 = vpop.f32.mrf.mxu0
  %v1210 = vadd.f32 %v1161, %v1209
  %v1211 = vpop.f32.mrf.mxu0
  %v1212 = vadd.f32 %v1163, %v1211
  %1213 = vdwg.mxu0
  %1214 = vmatpush.bf16.msra.mxu0 %v847
  %1215 = vmatpush.bf16.msra.mxu0 %v846
  %1216 = vmatpush.bf16.msra.mxu0 %v845
  %1217 = vmatpush.bf16.msra.mxu0 %v844
  %1218 = vmatpush.bf16.msra.mxu0 %v843
  %1219 = vmatpush.bf16.msra.mxu0 %v842
  %1220 = vmatpush.bf16.msra.mxu0 %v841
  %1221 = vmatpush.bf16.msra.mxu0 %v840
  %1222 = vmatmul.bf16.gmra.mxu0 %v414
  %v1223 = vpop.f32.mrf.mxu0
  %v1224 = vadd.f32 %v1175, %v1223
  %v1225 = vpop.f32.mrf.mxu0
  %v1226 = vadd.f32 %v1177, %v1225
  %1227 = vmatmul.bf16.gmra.mxu0 %v422
  %v1228 = vpop.f32.mrf.mxu0
  %v1229 = vadd.f32 %v1180, %v1228
  %v1230 = vpop.f32.mrf.mxu0
  %v1231 = vadd.f32 %v1182, %v1230
  %1232 = vmatmul.bf16.gmra.mxu0 %v430
  %v1233 = vpop.f32.mrf.mxu0
  %v1234 = vadd.f32 %v1185, %v1233
  %v1235 = vpop.f32.mrf.mxu0
  %v1236 = vadd.f32 %v1187, %v1235
  %1237 = vmatmul.bf16.gmra.mxu0 %v438
  %v1238 = vpop.f32.mrf.mxu0
  %v1239 = vadd.f32 %v1190, %v1238
  %v1240 = vpop.f32.mrf.mxu0
  %v1241 = vadd.f32 %v1192, %v1240
  %1242 = vmatmul.bf16.gmra.mxu0 %v446
  %v1243 = vpop.f32.mrf.mxu0
  %v1244 = vadd.f32 %v1195, %v1243
  %v1245 = vpop.f32.mrf.mxu0
  %v1246 = vadd.f32 %v1197, %v1245
  %1247 = vmatmul.bf16.gmra.mxu0 %v454
  %v1248 = vpop.f32.mrf.mxu0
  %v1249 = vadd.f32 %v1200, %v1248
  %v1250 = vpop.f32.mrf.mxu0
  %v1251 = vadd.f32 %v1202, %v1250
  %1252 = vmatmul.bf16.gmra.mxu0 %v462
  %v1253 = vpop.f32.mrf.mxu0
  %v1254 = vadd.f32 %v1205, %v1253
  %v1255 = vpop.f32.mrf.mxu0
  %v1256 = vadd.f32 %v1207, %v1255
  %1257 = vmatmul.bf16.gmra.mxu0 %v470
  %v1258 = vpop.f32.mrf.mxu0
  %v1259 = vadd.f32 %v1210, %v1258
  %v1260 = vpop.f32.mrf.mxu0
  %v1261 = vadd.f32 %v1212, %v1260
  %1262 = vdwg.mxu0
  %1263 = vmatpush.bf16.msra.mxu0 %v855
  %1264 = vmatpush.bf16.msra.mxu0 %v854
  %1265 = vmatpush.bf16.msra.mxu0 %v853
  %1266 = vmatpush.bf16.msra.mxu0 %v852
  %1267 = vmatpush.bf16.msra.mxu0 %v851
  %1268 = vmatpush.bf16.msra.mxu0 %v850
  %1269 = vmatpush.bf16.msra.mxu0 %v849
  %1270 = vmatpush.bf16.msra.mxu0 %v848
  %1271 = vmatmul.bf16.gmra.mxu0 %v415
  %v1272 = vpop.f32.mrf.mxu0
  %v1273 = vadd.f32 %v1224, %v1272
  %v1274 = vpop.f32.mrf.mxu0
  %v1275 = vadd.f32 %v1226, %v1274
  %1276 = vmatmul.bf16.gmra.mxu0 %v423
  %v1277 = vpop.f32.mrf.mxu0
  %v1278 = vadd.f32 %v1229, %v1277
  %v1279 = vpop.f32.mrf.mxu0
  %v1280 = vadd.f32 %v1231, %v1279
  %1281 = vmatmul.bf16.gmra.mxu0 %v431
  %v1282 = vpop.f32.mrf.mxu0
  %v1283 = vadd.f32 %v1234, %v1282
  %v1284 = vpop.f32.mrf.mxu0
  %v1285 = vadd.f32 %v1236, %v1284
  %1286 = vmatmul.bf16.gmra.mxu0 %v439
  %v1287 = vpop.f32.mrf.mxu0
  %v1288 = vadd.f32 %v1239, %v1287
  %v1289 = vpop.f32.mrf.mxu0
  %v1290 = vadd.f32 %v1241, %v1289
  %1291 = vmatmul.bf16.gmra.mxu0 %v447
  %v1292 = vpop.f32.mrf.mxu0
  %v1293 = vadd.f32 %v1244, %v1292
  %v1294 = vpop.f32.mrf.mxu0
  %v1295 = vadd.f32 %v1246, %v1294
  %1296 = vmatmul.bf16.gmra.mxu0 %v455
  %v1297 = vpop.f32.mrf.mxu0
  %v1298 = vadd.f32 %v1249, %v1297
  %v1299 = vpop.f32.mrf.mxu0
  %v1300 = vadd.f32 %v1251, %v1299
  %1301 = vmatmul.bf16.gmra.mxu0 %v463
  %v1302 = vpop.f32.mrf.mxu0
  %v1303 = vadd.f32 %v1254, %v1302
  %v1304 = vpop.f32.mrf.mxu0
  %v1305 = vadd.f32 %v1256, %v1304
  %1306 = vmatmul.bf16.gmra.mxu0 %v471
  %v1307 = vpop.f32.mrf.mxu0
  %v1308 = vadd.f32 %v1259, %v1307
  %v1309 = vpop.f32.mrf.mxu0
  %v1310 = vadd.f32 %v1261, %v1309
  %1311 = vdwg.mxu0
  %v1312 = vadd.f32 %v1273, %v1275
  %v1313 = vadd.f32 %v1312, %v1278
  %v1314 = vadd.f32 %v1313, %v1280
  %v1315 = vadd.f32 %v1314, %v1283
  %v1316 = vadd.f32 %v1315, %v1285
  %v1317 = vadd.f32 %v1316, %v1288
  %v1318 = vadd.f32 %v1317, %v1290
  %v1319 = vadd.f32 %v1318, %v1293
  %v1320 = vadd.f32 %v1319, %v1295
  %v1321 = vadd.f32 %v1320, %v1298
  %v1322 = vadd.f32 %v1321, %v1300
  %v1323 = vadd.f32 %v1322, %v1303
  %v1324 = vadd.f32 %v1323, %v1305
  %v1325 = vadd.f32 %v1324, %v1308
  %v1326 = vadd.f32 %v1325, %v1310
  %v1327 = vrot.slane %v1326, 4
  %v1328 = vadd.f32 %v1326, %v1327
  %v1329 = vrot.slane %v1328, 2
  %v1330 = vadd.f32 %v1328, %v1329
  %v1331 = vrot.slane %v1330, 1
  %v1332 = vadd.f32 %v1330, %v1331
  %v1333 = vrcp.pop 128.0
  %v1334 = vmul.f32 128.0, %v1333
  %v1335 = vsub.f32 1.0, %v1334
  %v1336 = vmul.f32 %v1333, %v1335
  %v1337 = vadd.f32 %v1333, %v1336
  %vm1338 = vweird.f32 %v1333
  %v1339 = vsel %vm1338, %v1333, %v1337
  %v1340 = vmul.f32 %v1332, %v1339
  %v1341 = vsub.f32 %v1273, %v1340
  %v1342 = vsub.f32 %v1275, %v1340
  %v1343 = vsub.f32 %v1278, %v1340
  %v1344 = vsub.f32 %v1280, %v1340
  %v1345 = vsub.f32 %v1283, %v1340
  %v1346 = vsub.f32 %v1285, %v1340
  %v1347 = vsub.f32 %v1288, %v1340
  %v1348 = vsub.f32 %v1290, %v1340
  %v1349 = vsub.f32 %v1293, %v1340
  %v1350 = vsub.f32 %v1295, %v1340
  %v1351 = vsub.f32 %v1298, %v1340
  %v1352 = vsub.f32 %v1300, %v1340
  %v1353 = vsub.f32 %v1303, %v1340
  %v1354 = vsub.f32 %v1305, %v1340
  %v1355 = vsub.f32 %v1308, %v1340
  %v1356 = vsub.f32 %v1310, %v1340
  %v1357 = vmul.f32 %v1341, %v1341
  %v1358 = vmul.f32 %v1342, %v1342
  %v1359 = vmul.f32 %v1343, %v1343
  %v1360 = vmul.f32 %v1344, %v1344
  %v1361 = vmul.f32 %v1345, %v1345
  %v1362 = vmul.f32 %v1346, %v1346
  %v1363 = vmul.f32 %v1347, %v1347
  %v1364 = vmul.f32 %v1348, %v1348
  %v1365 = vmul.f32 %v1349, %v1349
  %v1366 = vmul.f32 %v1350, %v1350
  %v1367 = vmul.f32 %v1351, %v1351
  %v1368 = vmul.f32 %v1352, %v1352
  %v1369 = vmul.f32 %v1353, %v1353
  %v1370 = vmul.f32 %v1354, %v1354
  %v1371 = vmul.f32 %v1355, %v1355
  %v1372 = vmul.f32 %v1356, %v1356
  %v1373 = vadd.f32 %v1357, %v1358
  %v1374 = vadd.f32 %v1373, %v1359
  %v1375 = vadd.f32 %v1374, %v1360
  %v1376 = vadd.f32 %v1375, %v1361
  %v1377 = vadd.f32 %v1376, %v1362
  %v1378 = vadd.f32 %v1377, %v1363
  %v1379 = vadd.f32 %v1378, %v1364
  %v1380 = vadd.f32 %v1379, %v1365
  %v1381 = vadd.f32 %v1380, %v1366
  %v1382 = vadd.f32 %v1381, %v1367
  %v1383 = vadd.f32 %v1382, %v1368
  %v1384 = vadd.f32 %v1383, %v1369
  %v1385 = vadd.f32 %v1384, %v1370
  %v1386 = vadd.f32 %v1385, %v1371
  %v1387 = vadd.f32 %v1386, %v1372
  %v1388 = vrot.slane %v1387, 4
  %v1389 = vadd.f32 %v1387, %v1388
  %v1390 = vrot.slane %v1389, 2
  %v1391 = vadd.f32 %v1389, %v1390
  %v1392 = vrot.slane %v1391, 1
  %v1393 = vadd.f32 %v1391, %v1392
  %v1394 = vmul.f32 %v1393, %v1339
  %v1395 = vld [vmem:[%s3] sm:$0x1]
  %v1396 = vadd.f32 %v1394, 1e-05
  %v1397 = vrsqrt.pop %v1396
  %v1398 = vmul.f32 %v1397, %v1396
  %v1399 = vmul.f32 %v1398, %v1397
  %v1400 = vmul.f32 0.5, %v1399
  %v1401 = vsub.f32 1.5, %v1400
  %v1402 = vmul.f32 %v1397, %v1401
  %vm1403 = vweird.f32 %v1396
  %vm1404 = vweird.f32 %v1397
  %vm1405 = vmor %vm1403, %vm1404
  %v1406 = vsel %vm1405, %v1397, %v1402
  %v1407 = vmul.f32 %v1395, %v1406
  %v1409 = vperm.slane %v1407, 0
  %v1411 = vmul.f32 %v1341, %v1409
  %v1412 = vmul.f32 %v1342, %v1409
  %v1413 = vmul.f32 %v1343, %v1409
  %v1414 = vmul.f32 %v1344, %v1409
  %v1415 = vmul.f32 %v1345, %v1409
  %v1416 = vmul.f32 %v1346, %v1409
  %v1417 = vmul.f32 %v1347, %v1409
  %v1418 = vmul.f32 %v1348, %v1409
  %v1419 = vmul.f32 %v1349, %v1409
  %v1420 = vmul.f32 %v1350, %v1409
  %v1421 = vmul.f32 %v1351, %v1409
  %v1422 = vmul.f32 %v1352, %v1409
  %v1423 = vmul.f32 %v1353, %v1409
  %v1424 = vmul.f32 %v1354, %v1409
  %v1425 = vmul.f32 %v1355, %v1409
  %v1426 = vmul.f32 %v1356, %v1409
  %v1427 = vld [vmem:[%s4] sm:$0x1]
  %v1429 = vperm.slane %v1427, 0
  %v1431 = vadd.f32 %v1411, %v1429
  %v1432 = vadd.f32 %v1412, %v1429
  %v1433 = vadd.f32 %v1413, %v1429
  %v1434 = vadd.f32 %v1414, %v1429
  %v1435 = vadd.f32 %v1415, %v1429
  %v1436 = vadd.f32 %v1416, %v1429
  %v1437 = vadd.f32 %v1417, %v1429
  %v1438 = vadd.f32 %v1418, %v1429
  %v1439 = vadd.f32 %v1419, %v1429
  %v1440 = vadd.f32 %v1420, %v1429
  %v1441 = vadd.f32 %v1421, %v1429
  %v1442 = vadd.f32 %v1422, %v1429
  %v1443 = vadd.f32 %v1423, %v1429
  %v1444 = vadd.f32 %v1424, %v1429
  %v1445 = vadd.f32 %v1425, %v1429
  %v1446 = vadd.f32 %v1426, %v1429
  %vm1447 = vcmp.ge.f32.partialorder %v1431, 0.0
  %vm1448 = vcmp.ge.f32.partialorder %v1432, 0.0
  %vm1449 = vcmp.ge.f32.partialorder %v1433, 0.0
  %vm1450 = vcmp.ge.f32.partialorder %v1434, 0.0
  %vm1451 = vcmp.ge.f32.partialorder %v1435, 0.0
  %vm1452 = vcmp.ge.f32.partialorder %v1436, 0.0
  %vm1453 = vcmp.ge.f32.partialorder %v1437, 0.0
  %vm1454 = vcmp.ge.f32.partialorder %v1438, 0.0
  %vm1455 = vcmp.ge.f32.partialorder %v1439, 0.0
  %vm1456 = vcmp.ge.f32.partialorder %v1440, 0.0
  %vm1457 = vcmp.ge.f32.partialorder %v1441, 0.0
  %vm1458 = vcmp.ge.f32.partialorder %v1442, 0.0
  %vm1459 = vcmp.ge.f32.partialorder %v1443, 0.0
  %vm1460 = vcmp.ge.f32.partialorder %v1444, 0.0
  %vm1461 = vcmp.ge.f32.partialorder %v1445, 0.0
  %vm1462 = vcmp.ge.f32.partialorder %v1446, 0.0
  %v1463 = vmul.f32 %v1431, 0.2
  %v1464 = vmul.f32 %v1432, 0.2
  %v1465 = vmul.f32 %v1433, 0.2
  %v1466 = vmul.f32 %v1434, 0.2
  %v1467 = vmul.f32 %v1435, 0.2
  %v1468 = vmul.f32 %v1436, 0.2
  %v1469 = vmul.f32 %v1437, 0.2
  %v1470 = vmul.f32 %v1438, 0.2
  %v1471 = vmul.f32 %v1439, 0.2
  %v1472 = vmul.f32 %v1440, 0.2
  %v1473 = vmul.f32 %v1441, 0.2
  %v1474 = vmul.f32 %v1442, 0.2
  %v1475 = vmul.f32 %v1443, 0.2
  %v1476 = vmul.f32 %v1444, 0.2
  %v1477 = vmul.f32 %v1445, 0.2
  %v1478 = vmul.f32 %v1446, 0.2
  %v1479 = vsel %vm1447, %v1431, %v1463
  %v1480 = vsel %vm1448, %v1432, %v1464
  %v1481 = vsel %vm1449, %v1433, %v1465
  %v1482 = vsel %vm1450, %v1434, %v1466
  %v1483 = vsel %vm1451, %v1435, %v1467
  %v1484 = vsel %vm1452, %v1436, %v1468
  %v1485 = vsel %vm1453, %v1437, %v1469
  %v1486 = vsel %vm1454, %v1438, %v1470
  %v1487 = vsel %vm1455, %v1439, %v1471
  %v1488 = vsel %vm1456, %v1440, %v1472
  %v1489 = vsel %vm1457, %v1441, %v1473
  %v1490 = vsel %vm1458, %v1442, %v1474
  %v1491 = vsel %vm1459, %v1443, %v1475
  %v1492 = vsel %vm1460, %v1444, %v1476
  %v1493 = vsel %vm1461, %v1445, %v1477
  %v1494 = vsel %vm1462, %v1446, %v1478
  %1495 = vst [vmem:[%s5] sm:$0xff] %v1479
  %1496 = vst [vmem:[%s5 + $0x8] sm:$0xff] %v1480
  %1497 = vst [vmem:[%s5 + $0x10] sm:$0xff] %v1481
  %1498 = vst [vmem:[%s5 + $0x18] sm:$0xff] %v1482
  %1499 = vst [vmem:[%s5 + $0x20] sm:$0xff] %v1483
  %1500 = vst [vmem:[%s5 + $0x28] sm:$0xff] %v1484
  %1501 = vst [vmem:[%s5 + $0x30] sm:$0xff] %v1485
  %1502 = vst [vmem:[%s5 + $0x38] sm:$0xff] %v1486
  %1503 = vst [vmem:[%s5 + $0x40] sm:$0xff] %v1487
  %1504 = vst [vmem:[%s5 + $0x48] sm:$0xff] %v1488
  %1505 = vst [vmem:[%s5 + $0x50] sm:$0xff] %v1489
  %1506 = vst [vmem:[%s5 + $0x58] sm:$0xff] %v1490
  %1507 = vst [vmem:[%s5 + $0x60] sm:$0xff] %v1491
  %1508 = vst [vmem:[%s5 + $0x68] sm:$0xff] %v1492
  %1509 = vst [vmem:[%s5 + $0x70] sm:$0xff] %v1493
  %1510 = vst [vmem:[%s5 + $0x78] sm:$0xff] %v1494
  // Predicated region
  $region22: #{discriminator_forward.6} parent=0 // pred_check
    _
  $region23: #{discriminator_forward.6} parent=0 // pred_check_branch
    %1512 = sbr.rel (0) target = $region25
  $region24: #{discriminator_forward.6} parent=0 // pred_region
    _
  $region25: #{discriminator_forward.6} parent=0 // pred_fallthru
    _
  // Predicated region
  $region26: #{discriminator_forward.6} parent=0 // pred_check
    _
  $region27: #{discriminator_forward.6} parent=0 // pred_check_branch
    %1514 = sbr.rel (0) target = $region29
  $region28: #{discriminator_forward.6} parent=0 // pred_region
    _
  $region29: #{discriminator_forward.6} parent=0 // pred_fallthru
    _

// kernel: discriminator_forward.7
$region0: #{discriminator_forward.7}
  #allocation0 [shape = 'u32[]', space=smem, size = 0x4, offset = 0x4, fixed_abs, tag = 'smem constant byte address 0x4 - core index']
  #allocation1 [shape = 'u32[72,128]{1,0:T(1,128)}', space=vmem, size = 0x9000, scoped, tag = 'internal scratch']
  %s0 = inlined_call_operand.vmem [shape: bf16[32,2048], index: 0, kind: input, shape index: {}]
  %s1 = inlined_call_operand.vmem [shape: bf16[2048,256], index: 1, kind: input, shape index: {}]
  %s2 = inlined_call_operand.vmem [shape: f32[1,256], index: 2, kind: input, shape index: {}]
  %s3 = inlined_call_operand.vmem [shape: f32[1,256], index: 3, kind: input, shape index: {}]
  %s4 = inlined_call_operand.vmem [shape: f32[1,256], index: 4, kind: input, shape index: {}]
  %s5 = inlined_call_operand.vmem [shape: f32[32,256], index: 5, kind: output, shape index: {}]
  %s6 = sld [smem:[#allocation0]]
  $region30: #{discriminator_forward.7} parent=0
    _
  %s8 = ssub.s32 1, %s6
  %s9 = scalar_select 0, %s8, %s6
  // Predicated region
  $region2: #{discriminator_forward.7} parent=0 // pred_check
    _
  $region3: #{discriminator_forward.7} parent=0 // pred_check_branch
    %11 = sbr.rel (0) target = $region5
  $region4: #{discriminator_forward.7} parent=0 // pred_region
    _
  $region5: #{discriminator_forward.7} parent=0 // pred_fallthru
    _
  // Predicated region
  $region6: #{discriminator_forward.7} parent=0 // pred_check
    _
  $region7: #{discriminator_forward.7} parent=0 // pred_check_branch
    %13 = sbr.rel (0) target = $region9
  $region8: #{discriminator_forward.7} parent=0 // pred_region
    _
  $region9: #{discriminator_forward.7} parent=0 // pred_fallthru
    _
  // Predicated region
  $region10: #{discriminator_forward.7} parent=0 // pred_check
    _
  $region11: #{discriminator_forward.7} parent=0 // pred_check_branch
    %15 = sbr.rel (0) target = $region13
  $region12: #{discriminator_forward.7} parent=0 // pred_region
    _
  $region13: #{discriminator_forward.7} parent=0 // pred_fallthru
    _
  // Predicated region
  $region14: #{discriminator_forward.7} parent=0 // pred_check
    _
  $region15: #{discriminator_forward.7} parent=0 // pred_check_branch
    %17 = sbr.rel (0) target = $region17
  $region16: #{discriminator_forward.7} parent=0 // pred_region
    _
  $region17: #{discriminator_forward.7} parent=0 // pred_fallthru
    _
  // Predicated region
  $region18: #{discriminator_forward.7} parent=0 // pred_check
    _
  $region19: #{discriminator_forward.7} parent=0 // pred_check_branch
    %19 = sbr.rel (0) target = $region21
  $region20: #{discriminator_forward.7} parent=0 // pred_region
    _
  $region21: #{discriminator_forward.7} parent=0 // pred_fallthru
    _
  %v20 = vld [vmem:[%s0] sm:$0xff]
  %v21 = vld [vmem:[%s0 + $0x8] sm:$0xff]
  %v22 = vld [vmem:[%s0 + $0x10] sm:$0xff]
  %v23 = vld [vmem:[%s0 + $0x18] sm:$0xff]
  %v24 = vld [vmem:[%s0 + $0x20] sm:$0xff]
  %v25 = vld [vmem:[%s0 + $0x28] sm:$0xff]
  %v26 = vld [vmem:[%s0 + $0x30] sm:$0xff]
  %v27 = vld [vmem:[%s0 + $0x38] sm:$0xff]
  %v28 = vld [vmem:[%s0 + $0x40] sm:$0xff]
  %v29 = vld [vmem:[%s0 + $0x48] sm:$0xff]
  %v30 = vld [vmem:[%s0 + $0x50] sm:$0xff]
  %v31 = vld [vmem:[%s0 + $0x58] sm:$0xff]
  %v32 = vld [vmem:[%s0 + $0x60] sm:$0xff]
  %v33 = vld [vmem:[%s0 + $0x68] sm:$0xff]
  %v34 = vld [vmem:[%s0 + $0x70] sm:$0xff]
  %v35 = vld [vmem:[%s0 + $0x78] sm:$0xff]
  %v36 = vld [vmem:[%s0 + $0x80] sm:$0xff]
  %v37 = vld [vmem:[%s0 + $0x88] sm:$0xff]
  %v38 = vld [vmem:[%s0 + $0x90] sm:$0xff]
  %v39 = vld [vmem:[%s0 + $0x98] sm:$0xff]
  %v40 = vld [vmem:[%s0 + $0xa0] sm:$0xff]
  %v41 = vld [vmem:[%s0 + $0xa8] sm:$0xff]
  %v42 = vld [vmem:[%s0 + $0xb0] sm:$0xff]
  %v43 = vld [vmem:[%s0 + $0xb8] sm:$0xff]
  %v44 = vld [vmem:[%s0 + $0xc0] sm:$0xff]
  %v45 = vld [vmem:[%s0 + $0xc8] sm:$0xff]
  %v46 = vld [vmem:[%s0 + $0xd0] sm:$0xff]
  %v47 = vld [vmem:[%s0 + $0xd8] sm:$0xff]
  %v48 = vld [vmem:[%s0 + $0xe0] sm:$0xff]
  %v49 = vld [vmem:[%s0 + $0xe8] sm:$0xff]
  %v50 = vld [vmem:[%s0 + $0xf0] sm:$0xff]
  %v51 = vld [vmem:[%s0 + $0xf8] sm:$0xff]
  %v52 = vld [vmem:[%s1] sm:$0xff]
  %v53 = vld [vmem:[%s1 + $0x8] sm:$0xff]
  %v54 = vld [vmem:[%s1 + $0x10] sm:$0xff]
  %v55 = vld [vmem:[%s1 + $0x18] sm:$0xff]
  %v56 = vld [vmem:[%s1 + $0x20] sm:$0xff]
  %v57 = vld [vmem:[%s1 + $0x28] sm:$0xff]
  %v58 = vld [vmem:[%s1 + $0x30] sm:$0xff]
  %v59 = vld [vmem:[%s1 + $0x38] sm:$0xff]
  %v60 = vld [vmem:[%s1 + $0x40] sm:$0xff]
  %v61 = vld [vmem:[%s1 + $0x48] sm:$0xff]
  %v62 = vld [vmem:[%s1 + $0x50] sm:$0xff]
  %v63 = vld [vmem:[%s1 + $0x58] sm:$0xff]
  %v64 = vld [vmem:[%s1 + $0x60] sm:$0xff]
  %v65 = vld [vmem:[%s1 + $0x68] sm:$0xff]
  %v66 = vld [vmem:[%s1 + $0x70] sm:$0xff]
  %v67 = vld [vmem:[%s1 + $0x78] sm:$0xff]
  %v68 = vld [vmem:[%s1 + $0x80] sm:$0xff]
  %v69 = vld [vmem:[%s1 + $0x88] sm:$0xff]
  %v70 = vld [vmem:[%s1 + $0x90] sm:$0xff]
  %v71 = vld [vmem:[%s1 + $0x98] sm:$0xff]
  %v72 = vld [vmem:[%s1 + $0xa0] sm:$0xff]
  %v73 = vld [vmem:[%s1 + $0xa8] sm:$0xff]
  %v74 = vld [vmem:[%s1 + $0xb0] sm:$0xff]
  %v75 = vld [vmem:[%s1 + $0xb8] sm:$0xff]
  %v76 = vld [vmem:[%s1 + $0xc0] sm:$0xff]
  %v77 = vld [vmem:[%s1 + $0xc8] sm:$0xff]
  %v78 = vld [vmem:[%s1 + $0xd0] sm:$0xff]
  %v79 = vld [vmem:[%s1 + $0xd8] sm:$0xff]
  %v80 = vld [vmem:[%s1 + $0xe0] sm:$0xff]
  %v81 = vld [vmem:[%s1 + $0xe8] sm:$0xff]
  %v82 = vld [vmem:[%s1 + $0xf0] sm:$0xff]
  %v83 = vld [vmem:[%s1 + $0xf8] sm:$0xff]
  %v84 = vld [vmem:[%s1 + $0x100] sm:$0xff]
  %v85 = vld [vmem:[%s1 + $0x108] sm:$0xff]
  %v86 = vld [vmem:[%s1 + $0x110] sm:$0xff]
  %v87 = vld [vmem:[%s1 + $0x118] sm:$0xff]
  %v88 = vld [vmem:[%s1 + $0x120] sm:$0xff]
  %v89 = vld [vmem:[%s1 + $0x128] sm:$0xff]
  %v90 = vld [vmem:[%s1 + $0x130] sm:$0xff]
  %v91 = vld [vmem:[%s1 + $0x138] sm:$0xff]
  %v92 = vld [vmem:[%s1 + $0x140] sm:$0xff]
  %v93 = vld [vmem:[%s1 + $0x148] sm:$0xff]
  %v94 = vld [vmem:[%s1 + $0x150] sm:$0xff]
  %v95 = vld [vmem:[%s1 + $0x158] sm:$0xff]
  %v96 = vld [vmem:[%s1 + $0x160] sm:$0xff]
  %v97 = vld [vmem:[%s1 + $0x168] sm:$0xff]
  %v98 = vld [vmem:[%s1 + $0x170] sm:$0xff]
  %v99 = vld [vmem:[%s1 + $0x178] sm:$0xff]
  %v100 = vld [vmem:[%s1 + $0x180] sm:$0xff]
  %v101 = vld [vmem:[%s1 + $0x188] sm:$0xff]
  %v102 = vld [vmem:[%s1 + $0x190] sm:$0xff]
  %v103 = vld [vmem:[%s1 + $0x198] sm:$0xff]
  %v104 = vld [vmem:[%s1 + $0x1a0] sm:$0xff]
  %v105 = vld [vmem:[%s1 + $0x1a8] sm:$0xff]
  %v106 = vld [vmem:[%s1 + $0x1b0] sm:$0xff]
  %v107 = vld [vmem:[%s1 + $0x1b8] sm:$0xff]
  %v108 = vld [vmem:[%s1 + $0x1c0] sm:$0xff]
  %v109 = vld [vmem:[%s1 + $0x1c8] sm:$0xff]
  %v110 = vld [vmem:[%s1 + $0x1d0] sm:$0xff]
  %v111 = vld [vmem:[%s1 + $0x1d8] sm:$0xff]
  %v112 = vld [vmem:[%s1 + $0x1e0] sm:$0xff]
  %v113 = vld [vmem:[%s1 + $0x1e8] sm:$0xff]
  %v114 = vld [vmem:[%s1 + $0x1f0] sm:$0xff]
  %v115 = vld [vmem:[%s1 + $0x1f8] sm:$0xff]
  %v116 = vld [vmem:[%s1 + $0x200] sm:$0xff]
  %v117 = vld [vmem:[%s1 + $0x208] sm:$0xff]
  %v118 = vld [vmem:[%s1 + $0x210] sm:$0xff]
  %v119 = vld [vmem:[%s1 + $0x218] sm:$0xff]
  %v120 = vld [vmem:[%s1 + $0x220] sm:$0xff]
  %v121 = vld [vmem:[%s1 + $0x228] sm:$0xff]
  %v122 = vld [vmem:[%s1 + $0x230] sm:$0xff]
  %v123 = vld [vmem:[%s1 + $0x238] sm:$0xff]
  %v124 = vld [vmem:[%s1 + $0x240] sm:$0xff]
  %v125 = vld [vmem:[%s1 + $0x248] sm:$0xff]
  %v126 = vld [vmem:[%s1 + $0x250] sm:$0xff]
  %v127 = vld [vmem:[%s1 + $0x258] sm:$0xff]
  %v128 = vld [vmem:[%s1 + $0x260] sm:$0xff]
  %v129 = vld [vmem:[%s1 + $0x268] sm:$0xff]
  %v130 = vld [vmem:[%s1 + $0x270] sm:$0xff]
  %v131 = vld [vmem:[%s1 + $0x278] sm:$0xff]
  %v132 = vld [vmem:[%s1 + $0x280] sm:$0xff]
  %v133 = vld [vmem:[%s1 + $0x288] sm:$0xff]
  %v134 = vld [vmem:[%s1 + $0x290] sm:$0xff]
  %v135 = vld [vmem:[%s1 + $0x298] sm:$0xff]
  %v136 = vld [vmem:[%s1 + $0x2a0] sm:$0xff]
  %v137 = vld [vmem:[%s1 + $0x2a8] sm:$0xff]
  %v138 = vld [vmem:[%s1 + $0x2b0] sm:$0xff]
  %v139 = vld [vmem:[%s1 + $0x2b8] sm:$0xff]
  %v140 = vld [vmem:[%s1 + $0x2c0] sm:$0xff]
  %v141 = vld [vmem:[%s1 + $0x2c8] sm:$0xff]
  %v142 = vld [vmem:[%s1 + $0x2d0] sm:$0xff]
  %v143 = vld [vmem:[%s1 + $0x2d8] sm:$0xff]
  %v144 = vld [vmem:[%s1 + $0x2e0] sm:$0xff]
  %v145 = vld [vmem:[%s1 + $0x2e8] sm:$0xff]
  %v146 = vld [vmem:[%s1 + $0x2f0] sm:$0xff]
  %v147 = vld [vmem:[%s1 + $0x2f8] sm:$0xff]
  %v148 = vld [vmem:[%s1 + $0x300] sm:$0xff]
  %v149 = vld [vmem:[%s1 + $0x308] sm:$0xff]
  %v150 = vld [vmem:[%s1 + $0x310] sm:$0xff]
  %v151 = vld [vmem:[%s1 + $0x318] sm:$0xff]
  %v152 = vld [vmem:[%s1 + $0x320] sm:$0xff]
  %v153 = vld [vmem:[%s1 + $0x328] sm:$0xff]
  %v154 = vld [vmem:[%s1 + $0x330] sm:$0xff]
  %v155 = vld [vmem:[%s1 + $0x338] sm:$0xff]
  %v156 = vld [vmem:[%s1 + $0x340] sm:$0xff]
  %v157 = vld [vmem:[%s1 + $0x348] sm:$0xff]
  %v158 = vld [vmem:[%s1 + $0x350] sm:$0xff]
  %v159 = vld [vmem:[%s1 + $0x358] sm:$0xff]
  %v160 = vld [vmem:[%s1 + $0x360] sm:$0xff]
  %v161 = vld [vmem:[%s1 + $0x368] sm:$0xff]
  %v162 = vld [vmem:[%s1 + $0x370] sm:$0xff]
  %v163 = vld [vmem:[%s1 + $0x378] sm:$0xff]
  %v164 = vld [vmem:[%s1 + $0x380] sm:$0xff]
  %v165 = vld [vmem:[%s1 + $0x388] sm:$0xff]
  %v166 = vld [vmem:[%s1 + $0x390] sm:$0xff]
  %v167 = vld [vmem:[%s1 + $0x398] sm:$0xff]
  %v168 = vld [vmem:[%s1 + $0x3a0] sm:$0xff]
  %v169 = vld [vmem:[%s1 + $0x3a8] sm:$0xff]
  %v170 = vld [vmem:[%s1 + $0x3b0] sm:$0xff]
  %v171 = vld [vmem:[%s1 + $0x3b8] sm:$0xff]
  %v172 = vld [vmem:[%s1 + $0x3c0] sm:$0xff]
  %v173 = vld [vmem:[%s1 + $0x3c8] sm:$0xff]
  %v174 = vld [vmem:[%s1 + $0x3d0] sm:$0xff]
  %v175 = vld [vmem:[%s1 + $0x3d8] sm:$0xff]
  %v176 = vld [vmem:[%s1 + $0x3e0] sm:$0xff]
  %v177 = vld [vmem:[%s1 + $0x3e8] sm:$0xff]
  %v178 = vld [vmem:[%s1 + $0x3f0] sm:$0xff]
  %v179 = vld [vmem:[%s1 + $0x3f8] sm:$0xff]
  %v180 = vld [vmem:[%s1 + $0x400] sm:$0xff]
  %v181 = vld [vmem:[%s1 + $0x408] sm:$0xff]
  %v182 = vld [vmem:[%s1 + $0x410] sm:$0xff]
  %v183 = vld [vmem:[%s1 + $0x418] sm:$0xff]
  %v184 = vld [vmem:[%s1 + $0x420] sm:$0xff]
  %v185 = vld [vmem:[%s1 + $0x428] sm:$0xff]
  %v186 = vld [vmem:[%s1 + $0x430] sm:$0xff]
  %v187 = vld [vmem:[%s1 + $0x438] sm:$0xff]
  %v188 = vld [vmem:[%s1 + $0x440] sm:$0xff]
  %v189 = vld [vmem:[%s1 + $0x448] sm:$0xff]
  %v190 = vld [vmem:[%s1 + $0x450] sm:$0xff]
  %v191 = vld [vmem:[%s1 + $0x458] sm:$0xff]
  %v192 = vld [vmem:[%s1 + $0x460] sm:$0xff]
  %v193 = vld [vmem:[%s1 + $0x468] sm:$0xff]
  %v194 = vld [vmem:[%s1 + $0x470] sm:$0xff]
  %v195 = vld [vmem:[%s1 + $0x478] sm:$0xff]
  %v196 = vld [vmem:[%s1 + $0x480] sm:$0xff]
  %v197 = vld [vmem:[%s1 + $0x488] sm:$0xff]
  %v198 = vld [vmem:[%s1 + $0x490] sm:$0xff]
  %v199 = vld [vmem:[%s1 + $0x498] sm:$0xff]
  %v200 = vld [vmem:[%s1 + $0x4a0] sm:$0xff]
  %v201 = vld [vmem:[%s1 + $0x4a8] sm:$0xff]
  %v202 = vld [vmem:[%s1 + $0x4b0] sm:$0xff]
  %v203 = vld [vmem:[%s1 + $0x4b8] sm:$0xff]
  %v204 = vld [vmem:[%s1 + $0x4c0] sm:$0xff]
  %v205 = vld [vmem:[%s1 + $0x4c8] sm:$0xff]
  %v206 = vld [vmem:[%s1 + $0x4d0] sm:$0xff]
  %v207 = vld [vmem:[%s1 + $0x4d8] sm:$0xff]
  %v208 = vld [vmem:[%s1 + $0x4e0] sm:$0xff]
  %v209 = vld [vmem:[%s1 + $0x4e8] sm:$0xff]
  %v210 = vld [vmem:[%s1 + $0x4f0] sm:$0xff]
  %v211 = vld [vmem:[%s1 + $0x4f8] sm:$0xff]
  %v212 = vld [vmem:[%s1 + $0x500] sm:$0xff]
  %v213 = vld [vmem:[%s1 + $0x508] sm:$0xff]
  %v214 = vld [vmem:[%s1 + $0x510] sm:$0xff]
  %v215 = vld [vmem:[%s1 + $0x518] sm:$0xff]
  %v216 = vld [vmem:[%s1 + $0x520] sm:$0xff]
  %v217 = vld [vmem:[%s1 + $0x528] sm:$0xff]
  %v218 = vld [vmem:[%s1 + $0x530] sm:$0xff]
  %v219 = vld [vmem:[%s1 + $0x538] sm:$0xff]
  %v220 = vld [vmem:[%s1 + $0x540] sm:$0xff]
  %v221 = vld [vmem:[%s1 + $0x548] sm:$0xff]
  %v222 = vld [vmem:[%s1 + $0x550] sm:$0xff]
  %v223 = vld [vmem:[%s1 + $0x558] sm:$0xff]
  %v224 = vld [vmem:[%s1 + $0x560] sm:$0xff]
  %v225 = vld [vmem:[%s1 + $0x568] sm:$0xff]
  %v226 = vld [vmem:[%s1 + $0x570] sm:$0xff]
  %v227 = vld [vmem:[%s1 + $0x578] sm:$0xff]
  %v228 = vld [vmem:[%s1 + $0x580] sm:$0xff]
  %v229 = vld [vmem:[%s1 + $0x588] sm:$0xff]
  %v230 = vld [vmem:[%s1 + $0x590] sm:$0xff]
  %v231 = vld [vmem:[%s1 + $0x598] sm:$0xff]
  %v232 = vld [vmem:[%s1 + $0x5a0] sm:$0xff]
  %v233 = vld [vmem:[%s1 + $0x5a8] sm:$0xff]
  %v234 = vld [vmem:[%s1 + $0x5b0] sm:$0xff]
  %v235 = vld [vmem:[%s1 + $0x5b8] sm:$0xff]
  %v236 = vld [vmem:[%s1 + $0x5c0] sm:$0xff]
  %v237 = vld [vmem:[%s1 + $0x5c8] sm:$0xff]
  %v238 = vld [vmem:[%s1 + $0x5d0] sm:$0xff]
  %v239 = vld [vmem:[%s1 + $0x5d8] sm:$0xff]
  %v240 = vld [vmem:[%s1 + $0x5e0] sm:$0xff]
  %v241 = vld [vmem:[%s1 + $0x5e8] sm:$0xff]
  %v242 = vld [vmem:[%s1 + $0x5f0] sm:$0xff]
  %v243 = vld [vmem:[%s1 + $0x5f8] sm:$0xff]
  %v244 = vld [vmem:[%s1 + $0x600] sm:$0xff]
  %v245 = vld [vmem:[%s1 + $0x608] sm:$0xff]
  %v246 = vld [vmem:[%s1 + $0x610] sm:$0xff]
  %v247 = vld [vmem:[%s1 + $0x618] sm:$0xff]
  %v248 = vld [vmem:[%s1 + $0x620] sm:$0xff]
  %v249 = vld [vmem:[%s1 + $0x628] sm:$0xff]
  %v250 = vld [vmem:[%s1 + $0x630] sm:$0xff]
  %v251 = vld [vmem:[%s1 + $0x638] sm:$0xff]
  %v252 = vld [vmem:[%s1 + $0x640] sm:$0xff]
  %v253 = vld [vmem:[%s1 + $0x648] sm:$0xff]
  %v254 = vld [vmem:[%s1 + $0x650] sm:$0xff]
  %v255 = vld [vmem:[%s1 + $0x658] sm:$0xff]
  %v256 = vld [vmem:[%s1 + $0x660] sm:$0xff]
  %v257 = vld [vmem:[%s1 + $0x668] sm:$0xff]
  %v258 = vld [vmem:[%s1 + $0x670] sm:$0xff]
  %v259 = vld [vmem:[%s1 + $0x678] sm:$0xff]
  %v260 = vld [vmem:[%s1 + $0x680] sm:$0xff]
  %v261 = vld [vmem:[%s1 + $0x688] sm:$0xff]
  %v262 = vld [vmem:[%s1 + $0x690] sm:$0xff]
  %v263 = vld [vmem:[%s1 + $0x698] sm:$0xff]
  %v264 = vld [vmem:[%s1 + $0x6a0] sm:$0xff]
  %v265 = vld [vmem:[%s1 + $0x6a8] sm:$0xff]
  %v266 = vld [vmem:[%s1 + $0x6b0] sm:$0xff]
  %v267 = vld [vmem:[%s1 + $0x6b8] sm:$0xff]
  %v268 = vld [vmem:[%s1 + $0x6c0] sm:$0xff]
  %v269 = vld [vmem:[%s1 + $0x6c8] sm:$0xff]
  %v270 = vld [vmem:[%s1 + $0x6d0] sm:$0xff]
  %v271 = vld [vmem:[%s1 + $0x6d8] sm:$0xff]
  %v272 = vld [vmem:[%s1 + $0x6e0] sm:$0xff]
  %v273 = vld [vmem:[%s1 + $0x6e8] sm:$0xff]
  %v274 = vld [vmem:[%s1 + $0x6f0] sm:$0xff]
  %v275 = vld [vmem:[%s1 + $0x6f8] sm:$0xff]
  %v276 = vld [vmem:[%s1 + $0x700] sm:$0xff]
  %v277 = vld [vmem:[%s1 + $0x708] sm:$0xff]
  %v278 = vld [vmem:[%s1 + $0x710] sm:$0xff]
  %v279 = vld [vmem:[%s1 + $0x718] sm:$0xff]
  %v280 = vld [vmem:[%s1 + $0x720] sm:$0xff]
  %v281 = vld [vmem:[%s1 + $0x728] sm:$0xff]
  %v282 = vld [vmem:[%s1 + $0x730] sm:$0xff]
  %v283 = vld [vmem:[%s1 + $0x738] sm:$0xff]
  %v284 = vld [vmem:[%s1 + $0x740] sm:$0xff]
  %v285 = vld [vmem:[%s1 + $0x748] sm:$0xff]
  %v286 = vld [vmem:[%s1 + $0x750] sm:$0xff]
  %v287 = vld [vmem:[%s1 + $0x758] sm:$0xff]
  %v288 = vld [vmem:[%s1 + $0x760] sm:$0xff]
  %v289 = vld [vmem:[%s1 + $0x768] sm:$0xff]
  %v290 = vld [vmem:[%s1 + $0x770] sm:$0xff]
  %v291 = vld [vmem:[%s1 + $0x778] sm:$0xff]
  %v292 = vld [vmem:[%s1 + $0x780] sm:$0xff]
  %v293 = vld [vmem:[%s1 + $0x788] sm:$0xff]
  %v294 = vld [vmem:[%s1 + $0x790] sm:$0xff]
  %v295 = vld [vmem:[%s1 + $0x798] sm:$0xff]
  %v296 = vld [vmem:[%s1 + $0x7a0] sm:$0xff]
  %v297 = vld [vmem:[%s1 + $0x7a8] sm:$0xff]
  %v298 = vld [vmem:[%s1 + $0x7b0] sm:$0xff]
  %v299 = vld [vmem:[%s1 + $0x7b8] sm:$0xff]
  %v300 = vld [vmem:[%s1 + $0x7c0] sm:$0xff]
  %v301 = vld [vmem:[%s1 + $0x7c8] sm:$0xff]
  %v302 = vld [vmem:[%s1 + $0x7d0] sm:$0xff]
  %v303 = vld [vmem:[%s1 + $0x7d8] sm:$0xff]
  %v304 = vld [vmem:[%s1 + $0x7e0] sm:$0xff]
  %v305 = vld [vmem:[%s1 + $0x7e8] sm:$0xff]
  %v306 = vld [vmem:[%s1 + $0x7f0] sm:$0xff]
  %v307 = vld [vmem:[%s1 + $0x7f8] sm:$0xff]
  %v308 = vld [vmem:[%s2] sm:$0x3]
  %v310 = vperm.slane %v308, 0
  %v311 = vperm.slane %v308, 1
  %v346 = vunpack.c.l.b16 %v20
  %v347 = vunpack.c.h.b16 %v20
  %v348 = vunpack.c.l.b16 %v21
  %v349 = vunpack.c.h.b16 %v21
  %v350 = vunpack.c.l.b16 %v22
  %v351 = vunpack.c.h.b16 %v22
  %v352 = vunpack.c.l.b16 %v23
  %v353 = vunpack.c.h.b16 %v23
  %v354 = vunpack.c.l.b16 %v24
  %v355 = vunpack.c.h.b16 %v24
  %v356 = vunpack.c.l.b16 %v25
  %v357 = vunpack.c.h.b16 %v25
  %v358 = vunpack.c.l.b16 %v26
  %v359 = vunpack.c.h.b16 %v26
  %v360 = vunpack.c.l.b16 %v27
  %v361 = vunpack.c.h.b16 %v27
  %v362 = vunpack.c.l.b16 %v28
  %v363 = vunpack.c.h.b16 %v28
  %v364 = vunpack.c.l.b16 %v29
  %v365 = vunpack.c.h.b16 %v29
  %v366 = vunpack.c.l.b16 %v30
  %v367 = vunpack.c.h.b16 %v30
  %v368 = vunpack.c.l.b16 %v31
  %v369 = vunpack.c.h.b16 %v31
  %v370 = vunpack.c.l.b16 %v32
  %v371 = vunpack.c.h.b16 %v32
  %v372 = vunpack.c.l.b16 %v33
  %v373 = vunpack.c.h.b16 %v33
  %v374 = vunpack.c.l.b16 %v34
  %v375 = vunpack.c.h.b16 %v34
  %v376 = vunpack.c.l.b16 %v35
  %v377 = vunpack.c.h.b16 %v35
  %v378 = vunpack.c.l.b16 %v36
  %v379 = vunpack.c.h.b16 %v36
  %v380 = vunpack.c.l.b16 %v37
  %v381 = vunpack.c.h.b16 %v37
  %v382 = vunpack.c.l.b16 %v38
  %v383 = vunpack.c.h.b16 %v38
  %v384 = vunpack.c.l.b16 %v39
  %v385 = vunpack.c.h.b16 %v39
  %v386 = vunpack.c.l.b16 %v40
  %v387 = vunpack.c.h.b16 %v40
  %v388 = vunpack.c.l.b16 %v41
  %v389 = vunpack.c.h.b16 %v41
  %v390 = vunpack.c.l.b16 %v42
  %v391 = vunpack.c.h.b16 %v42
  %v392 = vunpack.c.l.b16 %v43
  %v393 = vunpack.c.h.b16 %v43
  %v394 = vunpack.c.l.b16 %v44
  %v395 = vunpack.c.h.b16 %v44
  %v396 = vunpack.c.l.b16 %v45
  %v397 = vunpack.c.h.b16 %v45
  %v398 = vunpack.c.l.b16 %v46
  %v399 = vunpack.c.h.b16 %v46
  %v400 = vunpack.c.l.b16 %v47
  %v401 = vunpack.c.h.b16 %v47
  %v402 = vunpack.c.l.b16 %v48
  %v403 = vunpack.c.h.b16 %v48
  %v404 = vunpack.c.l.b16 %v49
  %v405 = vunpack.c.h.b16 %v49
  %v406 = vunpack.c.l.b16 %v50
  %v407 = vunpack.c.h.b16 %v50
  %v408 = vunpack.c.l.b16 %v51
  %v409 = vunpack.c.h.b16 %v51
  %v410 = vpack.c.b16 %v362, %v346
  %v411 = vpack.c.b16 %v363, %v347
  %v412 = vpack.c.b16 %v364, %v348
  %v413 = vpack.c.b16 %v365, %v349
  %v414 = vpack.c.b16 %v366, %v350
  %v415 = vpack.c.b16 %v367, %v351
  %v416 = vpack.c.b16 %v368, %v352
  %v417 = vpack.c.b16 %v369, %v353
  %v418 = vpack.c.b16 %v370, %v354
  %v419 = vpack.c.b16 %v371, %v355
  %v420 = vpack.c.b16 %v372, %v356
  %v421 = vpack.c.b16 %v373, %v357
  %v422 = vpack.c.b16 %v374, %v358
  %v423 = vpack.c.b16 %v375, %v359
  %v424 = vpack.c.b16 %v376, %v360
  %v425 = vpack.c.b16 %v377, %v361
  %v426 = vpack.c.b16 %v394, %v378
  %v427 = vpack.c.b16 %v395, %v379
  %v428 = vpack.c.b16 %v396, %v380
  %v429 = vpack.c.b16 %v397, %v381
  %v430 = vpack.c.b16 %v398, %v382
  %v431 = vpack.c.b16 %v399, %v383
  %v432 = vpack.c.b16 %v400, %v384
  %v433 = vpack.c.b16 %v401, %v385
  %v434 = vpack.c.b16 %v402, %v386
  %v435 = vpack.c.b16 %v403, %v387
  %v436 = vpack.c.b16 %v404, %v388
  %v437 = vpack.c.b16 %v405, %v389
  %v438 = vpack.c.b16 %v406, %v390
  %v439 = vpack.c.b16 %v407, %v391
  %v440 = vpack.c.b16 %v408, %v392
  %v441 = vpack.c.b16 %v409, %v393
  %v730 = vunpack.c.l.b16 %v52
  %v731 = vunpack.c.h.b16 %v52
  %v732 = vunpack.c.l.b16 %v53
  %v733 = vunpack.c.h.b16 %v53
  %v734 = vunpack.c.l.b16 %v54
  %v735 = vunpack.c.h.b16 %v54
  %v736 = vunpack.c.l.b16 %v55
  %v737 = vunpack.c.h.b16 %v55
  %v738 = vunpack.c.l.b16 %v56
  %v739 = vunpack.c.h.b16 %v56
  %v740 = vunpack.c.l.b16 %v57
  %v741 = vunpack.c.h.b16 %v57
  %v742 = vunpack.c.l.b16 %v58
  %v743 = vunpack.c.h.b16 %v58
  %v744 = vunpack.c.l.b16 %v59
  %v745 = vunpack.c.h.b16 %v59
  %v746 = vunpack.c.l.b16 %v60
  %v747 = vunpack.c.h.b16 %v60
  %v748 = vunpack.c.l.b16 %v61
  %v749 = vunpack.c.h.b16 %v61
  %v750 = vunpack.c.l.b16 %v62
  %v751 = vunpack.c.h.b16 %v62
  %v752 = vunpack.c.l.b16 %v63
  %v753 = vunpack.c.h.b16 %v63
  %v754 = vunpack.c.l.b16 %v64
  %v755 = vunpack.c.h.b16 %v64
  %v756 = vunpack.c.l.b16 %v65
  %v757 = vunpack.c.h.b16 %v65
  %v758 = vunpack.c.l.b16 %v66
  %v759 = vunpack.c.h.b16 %v66
  %v760 = vunpack.c.l.b16 %v67
  %v761 = vunpack.c.h.b16 %v67
  %v762 = vunpack.c.l.b16 %v68
  %v763 = vunpack.c.h.b16 %v68
  %v764 = vunpack.c.l.b16 %v69
  %v765 = vunpack.c.h.b16 %v69
  %v766 = vunpack.c.l.b16 %v70
  %v767 = vunpack.c.h.b16 %v70
  %v768 = vunpack.c.l.b16 %v71
  %v769 = vunpack.c.h.b16 %v71
  %v770 = vunpack.c.l.b16 %v72
  %v771 = vunpack.c.h.b16 %v72
  %v772 = vunpack.c.l.b16 %v73
  %v773 = vunpack.c.h.b16 %v73
  %v774 = vunpack.c.l.b16 %v74
  %v775 = vunpack.c.h.b16 %v74
  %v776 = vunpack.c.l.b16 %v75
  %v777 = vunpack.c.h.b16 %v75
  %v778 = vunpack.c.l.b16 %v76
  %v779 = vunpack.c.h.b16 %v76
  %v780 = vunpack.c.l.b16 %v77
  %v781 = vunpack.c.h.b16 %v77
  %v782 = vunpack.c.l.b16 %v78
  %v783 = vunpack.c.h.b16 %v78
  %v784 = vunpack.c.l.b16 %v79
  %v785 = vunpack.c.h.b16 %v79
  %v786 = vunpack.c.l.b16 %v80
  %v787 = vunpack.c.h.b16 %v80
  %v788 = vunpack.c.l.b16 %v81
  %v789 = vunpack.c.h.b16 %v81
  %v790 = vunpack.c.l.b16 %v82
  %v791 = vunpack.c.h.b16 %v82
  %v792 = vunpack.c.l.b16 %v83
  %v793 = vunpack.c.h.b16 %v83
  %v794 = vunpack.c.l.b16 %v84
  %v795 = vunpack.c.h.b16 %v84
  %v796 = vunpack.c.l.b16 %v85
  %v797 = vunpack.c.h.b16 %v85
  %v798 = vunpack.c.l.b16 %v86
  %v799 = vunpack.c.h.b16 %v86
  %v800 = vunpack.c.l.b16 %v87
  %v801 = vunpack.c.h.b16 %v87
  %v802 = vunpack.c.l.b16 %v88
  %v803 = vunpack.c.h.b16 %v88
  %v804 = vunpack.c.l.b16 %v89
  %v805 = vunpack.c.h.b16 %v89
  %v806 = vunpack.c.l.b16 %v90
  %v807 = vunpack.c.h.b16 %v90
  %v808 = vunpack.c.l.b16 %v91
  %v809 = vunpack.c.h.b16 %v91
  %v810 = vunpack.c.l.b16 %v92
  %v811 = vunpack.c.h.b16 %v92
  %v812 = vunpack.c.l.b16 %v93
  %v813 = vunpack.c.h.b16 %v93
  %v814 = vunpack.c.l.b16 %v94
  %v815 = vunpack.c.h.b16 %v94
  %v816 = vunpack.c.l.b16 %v95
  %v817 = vunpack.c.h.b16 %v95
  %v818 = vunpack.c.l.b16 %v96
  %v819 = vunpack.c.h.b16 %v96
  %v820 = vunpack.c.l.b16 %v97
  %v821 = vunpack.c.h.b16 %v97
  %v822 = vunpack.c.l.b16 %v98
  %v823 = vunpack.c.h.b16 %v98
  %v824 = vunpack.c.l.b16 %v99
  %v825 = vunpack.c.h.b16 %v99
  %v826 = vunpack.c.l.b16 %v100
  %v827 = vunpack.c.h.b16 %v100
  %v828 = vunpack.c.l.b16 %v101
  %v829 = vunpack.c.h.b16 %v101
  %v830 = vunpack.c.l.b16 %v102
  %v831 = vunpack.c.h.b16 %v102
  %v832 = vunpack.c.l.b16 %v103
  %v833 = vunpack.c.h.b16 %v103
  %v834 = vunpack.c.l.b16 %v104
  %v835 = vunpack.c.h.b16 %v104
  %v836 = vunpack.c.l.b16 %v105
  %v837 = vunpack.c.h.b16 %v105
  %v838 = vunpack.c.l.b16 %v106
  %v839 = vunpack.c.h.b16 %v106
  %v840 = vunpack.c.l.b16 %v107
  %v841 = vunpack.c.h.b16 %v107
  %v842 = vunpack.c.l.b16 %v108
  %v843 = vunpack.c.h.b16 %v108
  %v844 = vunpack.c.l.b16 %v109
  %v845 = vunpack.c.h.b16 %v109
  %v846 = vunpack.c.l.b16 %v110
  %v847 = vunpack.c.h.b16 %v110
  %v848 = vunpack.c.l.b16 %v111
  %v849 = vunpack.c.h.b16 %v111
  %v850 = vunpack.c.l.b16 %v112
  %v851 = vunpack.c.h.b16 %v112
  %v852 = vunpack.c.l.b16 %v113
  %v853 = vunpack.c.h.b16 %v113
  %v854 = vunpack.c.l.b16 %v114
  %v855 = vunpack.c.h.b16 %v114
  %v856 = vunpack.c.l.b16 %v115
  %v857 = vunpack.c.h.b16 %v115
  %v858 = vunpack.c.l.b16 %v116
  %v859 = vunpack.c.h.b16 %v116
  %v860 = vunpack.c.l.b16 %v117
  %v861 = vunpack.c.h.b16 %v117
  %v862 = vunpack.c.l.b16 %v118
  %v863 = vunpack.c.h.b16 %v118
  %v864 = vunpack.c.l.b16 %v119
  %v865 = vunpack.c.h.b16 %v119
  %v866 = vunpack.c.l.b16 %v120
  %v867 = vunpack.c.h.b16 %v120
  %v868 = vunpack.c.l.b16 %v121
  %v869 = vunpack.c.h.b16 %v121
  %v870 = vunpack.c.l.b16 %v122
  %v871 = vunpack.c.h.b16 %v122
  %v872 = vunpack.c.l.b16 %v123
  %v873 = vunpack.c.h.b16 %v123
  %v874 = vunpack.c.l.b16 %v124
  %v875 = vunpack.c.h.b16 %v124
  %v876 = vunpack.c.l.b16 %v125
  %v877 = vunpack.c.h.b16 %v125
  %v878 = vunpack.c.l.b16 %v126
  %v879 = vunpack.c.h.b16 %v126
  %v880 = vunpack.c.l.b16 %v127
  %v881 = vunpack.c.h.b16 %v127
  %v882 = vunpack.c.l.b16 %v128
  %v883 = vunpack.c.h.b16 %v128
  %v884 = vunpack.c.l.b16 %v129
  %v885 = vunpack.c.h.b16 %v129
  %v886 = vunpack.c.l.b16 %v130
  %v887 = vunpack.c.h.b16 %v130
  %v888 = vunpack.c.l.b16 %v131
  %v889 = vunpack.c.h.b16 %v131
  %v890 = vunpack.c.l.b16 %v132
  %v891 = vunpack.c.h.b16 %v132
  %v892 = vunpack.c.l.b16 %v133
  %v893 = vunpack.c.h.b16 %v133
  %v894 = vunpack.c.l.b16 %v134
  %v895 = vunpack.c.h.b16 %v134
  %v896 = vunpack.c.l.b16 %v135
  %v897 = vunpack.c.h.b16 %v135
  %v898 = vunpack.c.l.b16 %v136
  %v899 = vunpack.c.h.b16 %v136
  %v900 = vunpack.c.l.b16 %v137
  %v901 = vunpack.c.h.b16 %v137
  %v902 = vunpack.c.l.b16 %v138
  %v903 = vunpack.c.h.b16 %v138
  %v904 = vunpack.c.l.b16 %v139
  %v905 = vunpack.c.h.b16 %v139
  %v906 = vunpack.c.l.b16 %v140
  %v907 = vunpack.c.h.b16 %v140
  %v908 = vunpack.c.l.b16 %v141
  %v909 = vunpack.c.h.b16 %v141
  %v910 = vunpack.c.l.b16 %v142
  %v911 = vunpack.c.h.b16 %v142
  %v912 = vunpack.c.l.b16 %v143
  %v913 = vunpack.c.h.b16 %v143
  %v914 = vunpack.c.l.b16 %v144
  %v915 = vunpack.c.h.b16 %v144
  %v916 = vunpack.c.l.b16 %v145
  %v917 = vunpack.c.h.b16 %v145
  %v918 = vunpack.c.l.b16 %v146
  %v919 = vunpack.c.h.b16 %v146
  %v920 = vunpack.c.l.b16 %v147
  %v921 = vunpack.c.h.b16 %v147
  %v922 = vunpack.c.l.b16 %v148
  %v923 = vunpack.c.h.b16 %v148
  %v924 = vunpack.c.l.b16 %v149
  %v925 = vunpack.c.h.b16 %v149
  %v926 = vunpack.c.l.b16 %v150
  %v927 = vunpack.c.h.b16 %v150
  %v928 = vunpack.c.l.b16 %v151
  %v929 = vunpack.c.h.b16 %v151
  %v930 = vunpack.c.l.b16 %v152
  %v931 = vunpack.c.h.b16 %v152
  %v932 = vunpack.c.l.b16 %v153
  %v933 = vunpack.c.h.b16 %v153
  %v934 = vunpack.c.l.b16 %v154
  %v935 = vunpack.c.h.b16 %v154
  %v936 = vunpack.c.l.b16 %v155
  %v937 = vunpack.c.h.b16 %v155
  %v938 = vunpack.c.l.b16 %v156
  %v939 = vunpack.c.h.b16 %v156
  %v940 = vunpack.c.l.b16 %v157
  %v941 = vunpack.c.h.b16 %v157
  %v942 = vunpack.c.l.b16 %v158
  %v943 = vunpack.c.h.b16 %v158
  %v944 = vunpack.c.l.b16 %v159
  %v945 = vunpack.c.h.b16 %v159
  %v946 = vunpack.c.l.b16 %v160
  %v947 = vunpack.c.h.b16 %v160
  %v948 = vunpack.c.l.b16 %v161
  %v949 = vunpack.c.h.b16 %v161
  %v950 = vunpack.c.l.b16 %v162
  %v951 = vunpack.c.h.b16 %v162
  %v952 = vunpack.c.l.b16 %v163
  %v953 = vunpack.c.h.b16 %v163
  %v954 = vunpack.c.l.b16 %v164
  %v955 = vunpack.c.h.b16 %v164
  %v956 = vunpack.c.l.b16 %v165
  %v957 = vunpack.c.h.b16 %v165
  %v958 = vunpack.c.l.b16 %v166
  %v959 = vunpack.c.h.b16 %v166
  %v960 = vunpack.c.l.b16 %v167
  %v961 = vunpack.c.h.b16 %v167
  %v962 = vunpack.c.l.b16 %v168
  %v963 = vunpack.c.h.b16 %v168
  %v964 = vunpack.c.l.b16 %v169
  %v965 = vunpack.c.h.b16 %v169
  %v966 = vunpack.c.l.b16 %v170
  %v967 = vunpack.c.h.b16 %v170
  %v968 = vunpack.c.l.b16 %v171
  %v969 = vunpack.c.h.b16 %v171
  %v970 = vunpack.c.l.b16 %v172
  %v971 = vunpack.c.h.b16 %v172
  %v972 = vunpack.c.l.b16 %v173
  %v973 = vunpack.c.h.b16 %v173
  %v974 = vunpack.c.l.b16 %v174
  %v975 = vunpack.c.h.b16 %v174
  %v976 = vunpack.c.l.b16 %v175
  %v977 = vunpack.c.h.b16 %v175
  %v978 = vunpack.c.l.b16 %v176
  %v979 = vunpack.c.h.b16 %v176
  %v980 = vunpack.c.l.b16 %v177
  %v981 = vunpack.c.h.b16 %v177
  %v982 = vunpack.c.l.b16 %v178
  %v983 = vunpack.c.h.b16 %v178
  %v984 = vunpack.c.l.b16 %v179
  %v985 = vunpack.c.h.b16 %v179
  %v986 = vunpack.c.l.b16 %v180
  %v987 = vunpack.c.h.b16 %v180
  %v988 = vunpack.c.l.b16 %v181
  %v989 = vunpack.c.h.b16 %v181
  %v990 = vunpack.c.l.b16 %v182
  %v991 = vunpack.c.h.b16 %v182
  %v992 = vunpack.c.l.b16 %v183
  %v993 = vunpack.c.h.b16 %v183
  %v994 = vunpack.c.l.b16 %v184
  %v995 = vunpack.c.h.b16 %v184
  %v996 = vunpack.c.l.b16 %v185
  %v997 = vunpack.c.h.b16 %v185
  %v998 = vunpack.c.l.b16 %v186
  %v999 = vunpack.c.h.b16 %v186
  %v1000 = vunpack.c.l.b16 %v187
  %v1001 = vunpack.c.h.b16 %v187
  %v1002 = vunpack.c.l.b16 %v188
  %v1003 = vunpack.c.h.b16 %v188
  %v1004 = vunpack.c.l.b16 %v189
  %v1005 = vunpack.c.h.b16 %v189
  %v1006 = vunpack.c.l.b16 %v190
  %v1007 = vunpack.c.h.b16 %v190
  %v1008 = vunpack.c.l.b16 %v191
  %v1009 = vunpack.c.h.b16 %v191
  %v1010 = vunpack.c.l.b16 %v192
  %v1011 = vunpack.c.h.b16 %v192
  %v1012 = vunpack.c.l.b16 %v193
  %v1013 = vunpack.c.h.b16 %v193
  %v1014 = vunpack.c.l.b16 %v194
  %v1015 = vunpack.c.h.b16 %v194
  %v1016 = vunpack.c.l.b16 %v195
  %v1017 = vunpack.c.h.b16 %v195
  %v1018 = vunpack.c.l.b16 %v196
  %v1019 = vunpack.c.h.b16 %v196
  %v1020 = vunpack.c.l.b16 %v197
  %v1021 = vunpack.c.h.b16 %v197
  %v1022 = vunpack.c.l.b16 %v198
  %v1023 = vunpack.c.h.b16 %v198
  %v1024 = vunpack.c.l.b16 %v199
  %v1025 = vunpack.c.h.b16 %v199
  %v1026 = vunpack.c.l.b16 %v200
  %v1027 = vunpack.c.h.b16 %v200
  %v1028 = vunpack.c.l.b16 %v201
  %v1029 = vunpack.c.h.b16 %v201
  %v1030 = vunpack.c.l.b16 %v202
  %v1031 = vunpack.c.h.b16 %v202
  %v1032 = vunpack.c.l.b16 %v203
  %v1033 = vunpack.c.h.b16 %v203
  %v1034 = vunpack.c.l.b16 %v204
  %v1035 = vunpack.c.h.b16 %v204
  %v1036 = vunpack.c.l.b16 %v205
  %v1037 = vunpack.c.h.b16 %v205
  %v1038 = vunpack.c.l.b16 %v206
  %v1039 = vunpack.c.h.b16 %v206
  %v1040 = vunpack.c.l.b16 %v207
  %v1041 = vunpack.c.h.b16 %v207
  %v1042 = vunpack.c.l.b16 %v208
  %v1043 = vunpack.c.h.b16 %v208
  %v1044 = vunpack.c.l.b16 %v209
  %v1045 = vunpack.c.h.b16 %v209
  %v1046 = vunpack.c.l.b16 %v210
  %v1047 = vunpack.c.h.b16 %v210
  %v1048 = vunpack.c.l.b16 %v211
  %v1049 = vunpack.c.h.b16 %v211
  %v1050 = vunpack.c.l.b16 %v212
  %v1051 = vunpack.c.h.b16 %v212
  %v1052 = vunpack.c.l.b16 %v213
  %v1053 = vunpack.c.h.b16 %v213
  %v1054 = vunpack.c.l.b16 %v214
  %v1055 = vunpack.c.h.b16 %v214
  %v1056 = vunpack.c.l.b16 %v215
  %v1057 = vunpack.c.h.b16 %v215
  %v1058 = vunpack.c.l.b16 %v216
  %v1059 = vunpack.c.h.b16 %v216
  %v1060 = vunpack.c.l.b16 %v217
  %v1061 = vunpack.c.h.b16 %v217
  %v1062 = vunpack.c.l.b16 %v218
  %v1063 = vunpack.c.h.b16 %v218
  %v1064 = vunpack.c.l.b16 %v219
  %v1065 = vunpack.c.h.b16 %v219
  %v1066 = vunpack.c.l.b16 %v220
  %v1067 = vunpack.c.h.b16 %v220
  %v1068 = vunpack.c.l.b16 %v221
  %v1069 = vunpack.c.h.b16 %v221
  %v1070 = vunpack.c.l.b16 %v222
  %v1071 = vunpack.c.h.b16 %v222
  %v1072 = vunpack.c.l.b16 %v223
  %v1073 = vunpack.c.h.b16 %v223
  %v1074 = vunpack.c.l.b16 %v224
  %v1075 = vunpack.c.h.b16 %v224
  %v1076 = vunpack.c.l.b16 %v225
  %v1077 = vunpack.c.h.b16 %v225
  %v1078 = vunpack.c.l.b16 %v226
  %v1079 = vunpack.c.h.b16 %v226
  %v1080 = vunpack.c.l.b16 %v227
  %v1081 = vunpack.c.h.b16 %v227
  %v1082 = vunpack.c.l.b16 %v228
  %v1083 = vunpack.c.h.b16 %v228
  %v1084 = vunpack.c.l.b16 %v229
  %v1085 = vunpack.c.h.b16 %v229
  %v1086 = vunpack.c.l.b16 %v230
  %v1087 = vunpack.c.h.b16 %v230
  %v1088 = vunpack.c.l.b16 %v231
  %v1089 = vunpack.c.h.b16 %v231
  %v1090 = vunpack.c.l.b16 %v232
  %v1091 = vunpack.c.h.b16 %v232
  %v1092 = vunpack.c.l.b16 %v233
  %v1093 = vunpack.c.h.b16 %v233
  %v1094 = vunpack.c.l.b16 %v234
  %v1095 = vunpack.c.h.b16 %v234
  %v1096 = vunpack.c.l.b16 %v235
  %v1097 = vunpack.c.h.b16 %v235
  %v1098 = vunpack.c.l.b16 %v236
  %v1099 = vunpack.c.h.b16 %v236
  %v1100 = vunpack.c.l.b16 %v237
  %v1101 = vunpack.c.h.b16 %v237
  %v1102 = vunpack.c.l.b16 %v238
  %v1103 = vunpack.c.h.b16 %v238
  %v1104 = vunpack.c.l.b16 %v239
  %v1105 = vunpack.c.h.b16 %v239
  %v1106 = vunpack.c.l.b16 %v240
  %v1107 = vunpack.c.h.b16 %v240
  %v1108 = vunpack.c.l.b16 %v241
  %v1109 = vunpack.c.h.b16 %v241
  %v1110 = vunpack.c.l.b16 %v242
  %v1111 = vunpack.c.h.b16 %v242
  %v1112 = vunpack.c.l.b16 %v243
  %v1113 = vunpack.c.h.b16 %v243
  %v1114 = vunpack.c.l.b16 %v244
  %v1115 = vunpack.c.h.b16 %v244
  %v1116 = vunpack.c.l.b16 %v245
  %v1117 = vunpack.c.h.b16 %v245
  %v1118 = vunpack.c.l.b16 %v246
  %v1119 = vunpack.c.h.b16 %v246
  %v1120 = vunpack.c.l.b16 %v247
  %v1121 = vunpack.c.h.b16 %v247
  %v1122 = vunpack.c.l.b16 %v248
  %v1123 = vunpack.c.h.b16 %v248
  %v1124 = vunpack.c.l.b16 %v249
  %v1125 = vunpack.c.h.b16 %v249
  %v1126 = vunpack.c.l.b16 %v250
  %v1127 = vunpack.c.h.b16 %v250
  %v1128 = vunpack.c.l.b16 %v251
  %v1129 = vunpack.c.h.b16 %v251
  %v1130 = vunpack.c.l.b16 %v252
  %v1131 = vunpack.c.h.b16 %v252
  %v1132 = vunpack.c.l.b16 %v253
  %v1133 = vunpack.c.h.b16 %v253
  %v1134 = vunpack.c.l.b16 %v254
  %v1135 = vunpack.c.h.b16 %v254
  %v1136 = vunpack.c.l.b16 %v255
  %v1137 = vunpack.c.h.b16 %v255
  %v1138 = vunpack.c.l.b16 %v256
  %v1139 = vunpack.c.h.b16 %v256
  %v1140 = vunpack.c.l.b16 %v257
  %v1141 = vunpack.c.h.b16 %v257
  %v1142 = vunpack.c.l.b16 %v258
  %v1143 = vunpack.c.h.b16 %v258
  %v1144 = vunpack.c.l.b16 %v259
  %v1145 = vunpack.c.h.b16 %v259
  %v1146 = vunpack.c.l.b16 %v260
  %v1147 = vunpack.c.h.b16 %v260
  %v1148 = vunpack.c.l.b16 %v261
  %v1149 = vunpack.c.h.b16 %v261
  %v1150 = vunpack.c.l.b16 %v262
  %v1151 = vunpack.c.h.b16 %v262
  %v1152 = vunpack.c.l.b16 %v263
  %v1153 = vunpack.c.h.b16 %v263
  %v1154 = vunpack.c.l.b16 %v264
  %v1155 = vunpack.c.h.b16 %v264
  %v1156 = vunpack.c.l.b16 %v265
  %v1157 = vunpack.c.h.b16 %v265
  %v1158 = vunpack.c.l.b16 %v266
  %v1159 = vunpack.c.h.b16 %v266
  %v1160 = vunpack.c.l.b16 %v267
  %v1161 = vunpack.c.h.b16 %v267
  %v1162 = vunpack.c.l.b16 %v268
  %v1163 = vunpack.c.h.b16 %v268
  %v1164 = vunpack.c.l.b16 %v269
  %v1165 = vunpack.c.h.b16 %v269
  %v1166 = vunpack.c.l.b16 %v270
  %v1167 = vunpack.c.h.b16 %v270
  %v1168 = vunpack.c.l.b16 %v271
  %v1169 = vunpack.c.h.b16 %v271
  %v1170 = vunpack.c.l.b16 %v272
  %v1171 = vunpack.c.h.b16 %v272
  %v1172 = vunpack.c.l.b16 %v273
  %v1173 = vunpack.c.h.b16 %v273
  %v1174 = vunpack.c.l.b16 %v274
  %v1175 = vunpack.c.h.b16 %v274
  %v1176 = vunpack.c.l.b16 %v275
  %v1177 = vunpack.c.h.b16 %v275
  %v1178 = vunpack.c.l.b16 %v276
  %v1179 = vunpack.c.h.b16 %v276
  %v1180 = vunpack.c.l.b16 %v277
  %v1181 = vunpack.c.h.b16 %v277
  %v1182 = vunpack.c.l.b16 %v278
  %v1183 = vunpack.c.h.b16 %v278
  %v1184 = vunpack.c.l.b16 %v279
  %v1185 = vunpack.c.h.b16 %v279
  %v1186 = vunpack.c.l.b16 %v280
  %v1187 = vunpack.c.h.b16 %v280
  %v1188 = vunpack.c.l.b16 %v281
  %v1189 = vunpack.c.h.b16 %v281
  %v1190 = vunpack.c.l.b16 %v282
  %v1191 = vunpack.c.h.b16 %v282
  %v1192 = vunpack.c.l.b16 %v283
  %v1193 = vunpack.c.h.b16 %v283
  %v1194 = vunpack.c.l.b16 %v284
  %v1195 = vunpack.c.h.b16 %v284
  %v1196 = vunpack.c.l.b16 %v285
  %v1197 = vunpack.c.h.b16 %v285
  %v1198 = vunpack.c.l.b16 %v286
  %v1199 = vunpack.c.h.b16 %v286
  %v1200 = vunpack.c.l.b16 %v287
  %v1201 = vunpack.c.h.b16 %v287
  %v1202 = vunpack.c.l.b16 %v288
  %v1203 = vunpack.c.h.b16 %v288
  %v1204 = vunpack.c.l.b16 %v289
  %v1205 = vunpack.c.h.b16 %v289
  %v1206 = vunpack.c.l.b16 %v290
  %v1207 = vunpack.c.h.b16 %v290
  %v1208 = vunpack.c.l.b16 %v291
  %v1209 = vunpack.c.h.b16 %v291
  %v1210 = vunpack.c.l.b16 %v292
  %v1211 = vunpack.c.h.b16 %v292
  %v1212 = vunpack.c.l.b16 %v293
  %v1213 = vunpack.c.h.b16 %v293
  %v1214 = vunpack.c.l.b16 %v294
  %v1215 = vunpack.c.h.b16 %v294
  %v1216 = vunpack.c.l.b16 %v295
  %v1217 = vunpack.c.h.b16 %v295
  %v1218 = vunpack.c.l.b16 %v296
  %v1219 = vunpack.c.h.b16 %v296
  %v1220 = vunpack.c.l.b16 %v297
  %v1221 = vunpack.c.h.b16 %v297
  %v1222 = vunpack.c.l.b16 %v298
  %v1223 = vunpack.c.h.b16 %v298
  %v1224 = vunpack.c.l.b16 %v299
  %v1225 = vunpack.c.h.b16 %v299
  %v1226 = vunpack.c.l.b16 %v300
  %v1227 = vunpack.c.h.b16 %v300
  %v1228 = vunpack.c.l.b16 %v301
  %v1229 = vunpack.c.h.b16 %v301
  %v1230 = vunpack.c.l.b16 %v302
  %v1231 = vunpack.c.h.b16 %v302
  %v1232 = vunpack.c.l.b16 %v303
  %v1233 = vunpack.c.h.b16 %v303
  %v1234 = vunpack.c.l.b16 %v304
  %v1235 = vunpack.c.h.b16 %v304
  %v1236 = vunpack.c.l.b16 %v305
  %v1237 = vunpack.c.h.b16 %v305
  %v1238 = vunpack.c.l.b16 %v306
  %v1239 = vunpack.c.h.b16 %v306
  %v1240 = vunpack.c.l.b16 %v307
  %v1241 = vunpack.c.h.b16 %v307
  %v1242 = vpack.c.b16 %v732, %v730
  %v1243 = vpack.c.b16 %v733, %v731
  %v1244 = vpack.c.b16 %v736, %v734
  %v1245 = vpack.c.b16 %v737, %v735
  %v1246 = vpack.c.b16 %v740, %v738
  %v1247 = vpack.c.b16 %v741, %v739
  %v1248 = vpack.c.b16 %v744, %v742
  %v1249 = vpack.c.b16 %v745, %v743
  %v1250 = vpack.c.b16 %v748, %v746
  %v1251 = vpack.c.b16 %v749, %v747
  %v1252 = vpack.c.b16 %v752, %v750
  %v1253 = vpack.c.b16 %v753, %v751
  %v1254 = vpack.c.b16 %v756, %v754
  %v1255 = vpack.c.b16 %v757, %v755
  %v1256 = vpack.c.b16 %v760, %v758
  %v1257 = vpack.c.b16 %v761, %v759
  %v1258 = vpack.c.b16 %v764, %v762
  %v1259 = vpack.c.b16 %v765, %v763
  %v1260 = vpack.c.b16 %v768, %v766
  %v1261 = vpack.c.b16 %v769, %v767
  %v1262 = vpack.c.b16 %v772, %v770
  %v1263 = vpack.c.b16 %v773, %v771
  %v1264 = vpack.c.b16 %v776, %v774
  %v1265 = vpack.c.b16 %v777, %v775
  %v1266 = vpack.c.b16 %v780, %v778
  %v1267 = vpack.c.b16 %v781, %v779
  %v1268 = vpack.c.b16 %v784, %v782
  %v1269 = vpack.c.b16 %v785, %v783
  %v1270 = vpack.c.b16 %v788, %v786
  %v1271 = vpack.c.b16 %v789, %v787
  %v1272 = vpack.c.b16 %v792, %v790
  %v1273 = vpack.c.b16 %v793, %v791
  %v1274 = vpack.c.b16 %v796, %v794
  %v1275 = vpack.c.b16 %v797, %v795
  %v1276 = vpack.c.b16 %v800, %v798
  %v1277 = vpack.c.b16 %v801, %v799
  %v1278 = vpack.c.b16 %v804, %v802
  %v1279 = vpack.c.b16 %v805, %v803
  %v1280 = vpack.c.b16 %v808, %v806
  %v1281 = vpack.c.b16 %v809, %v807
  %v1282 = vpack.c.b16 %v812, %v810
  %v1283 = vpack.c.b16 %v813, %v811
  %v1284 = vpack.c.b16 %v816, %v814
  %v1285 = vpack.c.b16 %v817, %v815
  %v1286 = vpack.c.b16 %v820, %v818
  %v1287 = vpack.c.b16 %v821, %v819
  %v1288 = vpack.c.b16 %v824, %v822
  %v1289 = vpack.c.b16 %v825, %v823
  %v1290 = vpack.c.b16 %v828, %v826
  %v1291 = vpack.c.b16 %v829, %v827
  %v1292 = vpack.c.b16 %v832, %v830
  %v1293 = vpack.c.b16 %v833, %v831
  %v1294 = vpack.c.b16 %v836, %v834
  %v1295 = vpack.c.b16 %v837, %v835
  %v1296 = vpack.c.b16 %v840, %v838
  %v1297 = vpack.c.b16 %v841, %v839
  %v1298 = vpack.c.b16 %v844, %v842
  %v1299 = vpack.c.b16 %v845, %v843
  %v1300 = vpack.c.b16 %v848, %v846
  %v1301 = vpack.c.b16 %v849, %v847
  %v1302 = vpack.c.b16 %v852, %v850
  %v1303 = vpack.c.b16 %v853, %v851
  %v1304 = vpack.c.b16 %v856, %v854
  %v1305 = vpack.c.b16 %v857, %v855
  %v1306 = vpack.c.b16 %v860, %v858
  %v1307 = vpack.c.b16 %v861, %v859
  %v1308 = vpack.c.b16 %v864, %v862
  %v1309 = vpack.c.b16 %v865, %v863
  %v1310 = vpack.c.b16 %v868, %v866
  %v1311 = vpack.c.b16 %v869, %v867
  %v1312 = vpack.c.b16 %v872, %v870
  %v1313 = vpack.c.b16 %v873, %v871
  %v1314 = vpack.c.b16 %v876, %v874
  %v1315 = vpack.c.b16 %v877, %v875
  %v1316 = vpack.c.b16 %v880, %v878
  %v1317 = vpack.c.b16 %v881, %v879
  %v1318 = vpack.c.b16 %v884, %v882
  %v1319 = vpack.c.b16 %v885, %v883
  %v1320 = vpack.c.b16 %v888, %v886
  %v1321 = vpack.c.b16 %v889, %v887
  %v1322 = vpack.c.b16 %v892, %v890
  %v1323 = vpack.c.b16 %v893, %v891
  %v1324 = vpack.c.b16 %v896, %v894
  %v1325 = vpack.c.b16 %v897, %v895
  %v1326 = vpack.c.b16 %v900, %v898
  %v1327 = vpack.c.b16 %v901, %v899
  %v1328 = vpack.c.b16 %v904, %v902
  %v1329 = vpack.c.b16 %v905, %v903
  %v1330 = vpack.c.b16 %v908, %v906
  %v1331 = vpack.c.b16 %v909, %v907
  %v1332 = vpack.c.b16 %v912, %v910
  %v1333 = vpack.c.b16 %v913, %v911
  %v1334 = vpack.c.b16 %v916, %v914
  %v1335 = vpack.c.b16 %v917, %v915
  %v1336 = vpack.c.b16 %v920, %v918
  %v1337 = vpack.c.b16 %v921, %v919
  %v1338 = vpack.c.b16 %v924, %v922
  %v1339 = vpack.c.b16 %v925, %v923
  %v1340 = vpack.c.b16 %v928, %v926
  %v1341 = vpack.c.b16 %v929, %v927
  %v1342 = vpack.c.b16 %v932, %v930
  %v1343 = vpack.c.b16 %v933, %v931
  %v1344 = vpack.c.b16 %v936, %v934
  %v1345 = vpack.c.b16 %v937, %v935
  %v1346 = vpack.c.b16 %v940, %v938
  %v1347 = vpack.c.b16 %v941, %v939
  %v1348 = vpack.c.b16 %v944, %v942
  %v1349 = vpack.c.b16 %v945, %v943
  %v1350 = vpack.c.b16 %v948, %v946
  %v1351 = vpack.c.b16 %v949, %v947
  %v1352 = vpack.c.b16 %v952, %v950
  %v1353 = vpack.c.b16 %v953, %v951
  %v1354 = vpack.c.b16 %v956, %v954
  %v1355 = vpack.c.b16 %v957, %v955
  %v1356 = vpack.c.b16 %v960, %v958
  %v1357 = vpack.c.b16 %v961, %v959
  %v1358 = vpack.c.b16 %v964, %v962
  %v1359 = vpack.c.b16 %v965, %v963
  %v1360 = vpack.c.b16 %v968, %v966
  %v1361 = vpack.c.b16 %v969, %v967
  %v1362 = vpack.c.b16 %v972, %v970
  %v1363 = vpack.c.b16 %v973, %v971
  %v1364 = vpack.c.b16 %v976, %v974
  %v1365 = vpack.c.b16 %v977, %v975
  %v1366 = vpack.c.b16 %v980, %v978
  %v1367 = vpack.c.b16 %v981, %v979
  %v1368 = vpack.c.b16 %v984, %v982
  %v1369 = vpack.c.b16 %v985, %v983
  %v1370 = vpack.c.b16 %v988, %v986
  %v1371 = vpack.c.b16 %v989, %v987
  %v1372 = vpack.c.b16 %v992, %v990
  %v1373 = vpack.c.b16 %v993, %v991
  %v1374 = vpack.c.b16 %v996, %v994
  %v1375 = vpack.c.b16 %v997, %v995
  %v1376 = vpack.c.b16 %v1000, %v998
  %v1377 = vpack.c.b16 %v1001, %v999
  %v1378 = vpack.c.b16 %v1004, %v1002
  %v1379 = vpack.c.b16 %v1005, %v1003
  %v1380 = vpack.c.b16 %v1008, %v1006
  %v1381 = vpack.c.b16 %v1009, %v1007
  %v1382 = vpack.c.b16 %v1012, %v1010
  %v1383 = vpack.c.b16 %v1013, %v1011
  %v1384 = vpack.c.b16 %v1016, %v1014
  %v1385 = vpack.c.b16 %v1017, %v1015
  %v1386 = vpack.c.b16 %v1020, %v1018
  %v1387 = vpack.c.b16 %v1021, %v1019
  %v1388 = vpack.c.b16 %v1024, %v1022
  %v1389 = vpack.c.b16 %v1025, %v1023
  %v1390 = vpack.c.b16 %v1028, %v1026
  %v1391 = vpack.c.b16 %v1029, %v1027
  %v1392 = vpack.c.b16 %v1032, %v1030
  %v1393 = vpack.c.b16 %v1033, %v1031
  %v1394 = vpack.c.b16 %v1036, %v1034
  %v1395 = vpack.c.b16 %v1037, %v1035
  %v1396 = vpack.c.b16 %v1040, %v1038
  %v1397 = vpack.c.b16 %v1041, %v1039
  %v1398 = vpack.c.b16 %v1044, %v1042
  %v1399 = vpack.c.b16 %v1045, %v1043
  %v1400 = vpack.c.b16 %v1048, %v1046
  %v1401 = vpack.c.b16 %v1049, %v1047
  %v1402 = vpack.c.b16 %v1052, %v1050
  %v1403 = vpack.c.b16 %v1053, %v1051
  %v1404 = vpack.c.b16 %v1056, %v1054
  %v1405 = vpack.c.b16 %v1057, %v1055
  %v1406 = vpack.c.b16 %v1060, %v1058
  %v1407 = vpack.c.b16 %v1061, %v1059
  %v1408 = vpack.c.b16 %v1064, %v1062
  %v1409 = vpack.c.b16 %v1065, %v1063
  %v1410 = vpack.c.b16 %v1068, %v1066
  %v1411 = vpack.c.b16 %v1069, %v1067
  %v1412 = vpack.c.b16 %v1072, %v1070
  %v1413 = vpack.c.b16 %v1073, %v1071
  %v1414 = vpack.c.b16 %v1076, %v1074
  %v1415 = vpack.c.b16 %v1077, %v1075
  %v1416 = vpack.c.b16 %v1080, %v1078
  %v1417 = vpack.c.b16 %v1081, %v1079
  %v1418 = vpack.c.b16 %v1084, %v1082
  %v1419 = vpack.c.b16 %v1085, %v1083
  %v1420 = vpack.c.b16 %v1088, %v1086
  %v1421 = vpack.c.b16 %v1089, %v1087
  %v1422 = vpack.c.b16 %v1092, %v1090
  %v1423 = vpack.c.b16 %v1093, %v1091
  %v1424 = vpack.c.b16 %v1096, %v1094
  %v1425 = vpack.c.b16 %v1097, %v1095
  %v1426 = vpack.c.b16 %v1100, %v1098
  %v1427 = vpack.c.b16 %v1101, %v1099
  %v1428 = vpack.c.b16 %v1104, %v1102
  %v1429 = vpack.c.b16 %v1105, %v1103
  %v1430 = vpack.c.b16 %v1108, %v1106
  %v1431 = vpack.c.b16 %v1109, %v1107
  %v1432 = vpack.c.b16 %v1112, %v1110
  %v1433 = vpack.c.b16 %v1113, %v1111
  %v1434 = vpack.c.b16 %v1116, %v1114
  %v1435 = vpack.c.b16 %v1117, %v1115
  %v1436 = vpack.c.b16 %v1120, %v1118
  %v1437 = vpack.c.b16 %v1121, %v1119
  %v1438 = vpack.c.b16 %v1124, %v1122
  %v1439 = vpack.c.b16 %v1125, %v1123
  %v1440 = vpack.c.b16 %v1128, %v1126
  %v1441 = vpack.c.b16 %v1129, %v1127
  %v1442 = vpack.c.b16 %v1132, %v1130
  %v1443 = vpack.c.b16 %v1133, %v1131
  %v1444 = vpack.c.b16 %v1136, %v1134
  %v1445 = vpack.c.b16 %v1137, %v1135
  %v1446 = vpack.c.b16 %v1140, %v1138
  %v1447 = vpack.c.b16 %v1141, %v1139
  %v1448 = vpack.c.b16 %v1144, %v1142
  %v1449 = vpack.c.b16 %v1145, %v1143
  %v1450 = vpack.c.b16 %v1148, %v1146
  %v1451 = vpack.c.b16 %v1149, %v1147
  %v1452 = vpack.c.b16 %v1152, %v1150
  %v1453 = vpack.c.b16 %v1153, %v1151
  %v1454 = vpack.c.b16 %v1156, %v1154
  %v1455 = vpack.c.b16 %v1157, %v1155
  %v1456 = vpack.c.b16 %v1160, %v1158
  %v1457 = vpack.c.b16 %v1161, %v1159
  %v1458 = vpack.c.b16 %v1164, %v1162
  %v1459 = vpack.c.b16 %v1165, %v1163
  %v1460 = vpack.c.b16 %v1168, %v1166
  %v1461 = vpack.c.b16 %v1169, %v1167
  %v1462 = vpack.c.b16 %v1172, %v1170
  %v1463 = vpack.c.b16 %v1173, %v1171
  %v1464 = vpack.c.b16 %v1176, %v1174
  %v1465 = vpack.c.b16 %v1177, %v1175
  %v1466 = vpack.c.b16 %v1180, %v1178
  %v1467 = vpack.c.b16 %v1181, %v1179
  %v1468 = vpack.c.b16 %v1184, %v1182
  %v1469 = vpack.c.b16 %v1185, %v1183
  %v1470 = vpack.c.b16 %v1188, %v1186
  %v1471 = vpack.c.b16 %v1189, %v1187
  %v1472 = vpack.c.b16 %v1192, %v1190
  %v1473 = vpack.c.b16 %v1193, %v1191
  %v1474 = vpack.c.b16 %v1196, %v1194
  %v1475 = vpack.c.b16 %v1197, %v1195
  %v1476 = vpack.c.b16 %v1200, %v1198
  %v1477 = vpack.c.b16 %v1201, %v1199
  %v1478 = vpack.c.b16 %v1204, %v1202
  %v1479 = vpack.c.b16 %v1205, %v1203
  %v1480 = vpack.c.b16 %v1208, %v1206
  %v1481 = vpack.c.b16 %v1209, %v1207
  %v1482 = vpack.c.b16 %v1212, %v1210
  %v1483 = vpack.c.b16 %v1213, %v1211
  %v1484 = vpack.c.b16 %v1216, %v1214
  %v1485 = vpack.c.b16 %v1217, %v1215
  %v1486 = vpack.c.b16 %v1220, %v1218
  %v1487 = vpack.c.b16 %v1221, %v1219
  %v1488 = vpack.c.b16 %v1224, %v1222
  %v1489 = vpack.c.b16 %v1225, %v1223
  %v1490 = vpack.c.b16 %v1228, %v1226
  %v1491 = vpack.c.b16 %v1229, %v1227
  %v1492 = vpack.c.b16 %v1232, %v1230
  %v1493 = vpack.c.b16 %v1233, %v1231
  %v1494 = vpack.c.b16 %v1236, %v1234
  %v1495 = vpack.c.b16 %v1237, %v1235
  %v1496 = vpack.c.b16 %v1240, %v1238
  %v1497 = vpack.c.b16 %v1241, %v1239
  %1754 = vmatpush.bf16.msra.mxu0 %v1256
  %1755 = vmatpush.bf16.msra.mxu0 %v1254
  %1756 = vmatpush.bf16.msra.mxu0 %v1252
  %1757 = vmatpush.bf16.msra.mxu0 %v1250
  %1758 = vmatpush.bf16.msra.mxu0 %v1248
  %1759 = vmatpush.bf16.msra.mxu0 %v1246
  %1760 = vmatpush.bf16.msra.mxu0 %v1244
  %1761 = vmatpush.bf16.msra.mxu0 %v1242
  %1762 = vmatmul.bf16.gmra.mxu0 %v410
  %v1763 = vpop.f32.mrf.mxu0
  %v1764 = vadd.f32 %v310, %v1763
  %v1765 = vpop.f32.mrf.mxu0
  %v1766 = vadd.f32 %v310, %v1765
  %1767 = vmatmul.bf16.gmra.mxu0 %v426
  %v1768 = vpop.f32.mrf.mxu0
  %v1769 = vadd.f32 %v310, %v1768
  %v1770 = vpop.f32.mrf.mxu0
  %v1771 = vadd.f32 %v310, %v1770
  %1772 = vdwg.mxu0
  %1773 = vmatpush.bf16.msra.mxu0 %v1272
  %1774 = vmatpush.bf16.msra.mxu0 %v1270
  %1775 = vmatpush.bf16.msra.mxu0 %v1268
  %1776 = vmatpush.bf16.msra.mxu0 %v1266
  %1777 = vmatpush.bf16.msra.mxu0 %v1264
  %1778 = vmatpush.bf16.msra.mxu0 %v1262
  %1779 = vmatpush.bf16.msra.mxu0 %v1260
  %1780 = vmatpush.bf16.msra.mxu0 %v1258
  %1781 = vmatmul.bf16.gmra.mxu0 %v411
  %v1782 = vpop.f32.mrf.mxu0
  %v1783 = vadd.f32 %v1764, %v1782
  %v1784 = vpop.f32.mrf.mxu0
  %v1785 = vadd.f32 %v1766, %v1784
  %1786 = vmatmul.bf16.gmra.mxu0 %v427
  %v1787 = vpop.f32.mrf.mxu0
  %v1788 = vadd.f32 %v1769, %v1787
  %v1789 = vpop.f32.mrf.mxu0
  %v1790 = vadd.f32 %v1771, %v1789
  %1791 = vdwg.mxu0
  %1792 = vmatpush.bf16.msra.mxu0 %v1288
  %1793 = vmatpush.bf16.msra.mxu0 %v1286
  %1794 = vmatpush.bf16.msra.mxu0 %v1284
  %1795 = vmatpush.bf16.msra.mxu0 %v1282
  %1796 = vmatpush.bf16.msra.mxu0 %v1280
  %1797 = vmatpush.bf16.msra.mxu0 %v1278
  %1798 = vmatpush.bf16.msra.mxu0 %v1276
  %1799 = vmatpush.bf16.msra.mxu0 %v1274
  %1800 = vmatmul.bf16.gmra.mxu0 %v412
  %v1801 = vpop.f32.mrf.mxu0
  %v1802 = vadd.f32 %v1783, %v1801
  %v1803 = vpop.f32.mrf.mxu0
  %v1804 = vadd.f32 %v1785, %v1803
  %1805 = vmatmul.bf16.gmra.mxu0 %v428
  %v1806 = vpop.f32.mrf.mxu0
  %v1807 = vadd.f32 %v1788, %v1806
  %v1808 = vpop.f32.mrf.mxu0
  %v1809 = vadd.f32 %v1790, %v1808
  %1810 = vdwg.mxu0
  %1811 = vmatpush.bf16.msra.mxu0 %v1304
  %1812 = vmatpush.bf16.msra.mxu0 %v1302
  %1813 = vmatpush.bf16.msra.mxu0 %v1300
  %1814 = vmatpush.bf16.msra.mxu0 %v1298
  %1815 = vmatpush.bf16.msra.mxu0 %v1296
  %1816 = vmatpush.bf16.msra.mxu0 %v1294
  %1817 = vmatpush.bf16.msra.mxu0 %v1292
  %1818 = vmatpush.bf16.msra.mxu0 %v1290
  %1819 = vmatmul.bf16.gmra.mxu0 %v413
  %v1820 = vpop.f32.mrf.mxu0
  %v1821 = vadd.f32 %v1802, %v1820
  %v1822 = vpop.f32.mrf.mxu0
  %v1823 = vadd.f32 %v1804, %v1822
  %1824 = vmatmul.bf16.gmra.mxu0 %v429
  %v1825 = vpop.f32.mrf.mxu0
  %v1826 = vadd.f32 %v1807, %v1825
  %v1827 = vpop.f32.mrf.mxu0
  %v1828 = vadd.f32 %v1809, %v1827
  %1829 = vdwg.mxu0
  %1830 = vmatpush.bf16.msra.mxu0 %v1320
  %1831 = vmatpush.bf16.msra.mxu0 %v1318
  %1832 = vmatpush.bf16.msra.mxu0 %v1316
  %1833 = vmatpush.bf16.msra.mxu0 %v1314
  %1834 = vmatpush.bf16.msra.mxu0 %v1312
  %1835 = vmatpush.bf16.msra.mxu0 %v1310
  %1836 = vmatpush.bf16.msra.mxu0 %v1308
  %1837 = vmatpush.bf16.msra.mxu0 %v1306
  %1838 = vmatmul.bf16.gmra.mxu0 %v414
  %v1839 = vpop.f32.mrf.mxu0
  %v1840 = vadd.f32 %v1821, %v1839
  %v1841 = vpop.f32.mrf.mxu0
  %v1842 = vadd.f32 %v1823, %v1841
  %1843 = vmatmul.bf16.gmra.mxu0 %v430
  %v1844 = vpop.f32.mrf.mxu0
  %v1845 = vadd.f32 %v1826, %v1844
  %v1846 = vpop.f32.mrf.mxu0
  %v1847 = vadd.f32 %v1828, %v1846
  %1848 = vdwg.mxu0
  %1849 = vmatpush.bf16.msra.mxu0 %v1336
  %1850 = vmatpush.bf16.msra.mxu0 %v1334
  %1851 = vmatpush.bf16.msra.mxu0 %v1332
  %1852 = vmatpush.bf16.msra.mxu0 %v1330
  %1853 = vmatpush.bf16.msra.mxu0 %v1328
  %1854 = vmatpush.bf16.msra.mxu0 %v1326
  %1855 = vmatpush.bf16.msra.mxu0 %v1324
  %1856 = vmatpush.bf16.msra.mxu0 %v1322
  %1857 = vmatmul.bf16.gmra.mxu0 %v415
  %v1858 = vpop.f32.mrf.mxu0
  %v1859 = vadd.f32 %v1840, %v1858
  %v1860 = vpop.f32.mrf.mxu0
  %v1861 = vadd.f32 %v1842, %v1860
  %1862 = vmatmul.bf16.gmra.mxu0 %v431
  %v1863 = vpop.f32.mrf.mxu0
  %v1864 = vadd.f32 %v1845, %v1863
  %v1865 = vpop.f32.mrf.mxu0
  %v1866 = vadd.f32 %v1847, %v1865
  %1867 = vdwg.mxu0
  %1868 = vmatpush.bf16.msra.mxu0 %v1352
  %1869 = vmatpush.bf16.msra.mxu0 %v1350
  %1870 = vmatpush.bf16.msra.mxu0 %v1348
  %1871 = vmatpush.bf16.msra.mxu0 %v1346
  %1872 = vmatpush.bf16.msra.mxu0 %v1344
  %1873 = vmatpush.bf16.msra.mxu0 %v1342
  %1874 = vmatpush.bf16.msra.mxu0 %v1340
  %1875 = vmatpush.bf16.msra.mxu0 %v1338
  %1876 = vmatmul.bf16.gmra.mxu0 %v416
  %v1877 = vpop.f32.mrf.mxu0
  %v1878 = vadd.f32 %v1859, %v1877
  %v1879 = vpop.f32.mrf.mxu0
  %v1880 = vadd.f32 %v1861, %v1879
  %1881 = vmatmul.bf16.gmra.mxu0 %v432
  %v1882 = vpop.f32.mrf.mxu0
  %v1883 = vadd.f32 %v1864, %v1882
  %v1884 = vpop.f32.mrf.mxu0
  %v1885 = vadd.f32 %v1866, %v1884
  %1886 = vdwg.mxu0
  %1887 = vmatpush.bf16.msra.mxu0 %v1368
  %1888 = vmatpush.bf16.msra.mxu0 %v1366
  %1889 = vmatpush.bf16.msra.mxu0 %v1364
  %1890 = vmatpush.bf16.msra.mxu0 %v1362
  %1891 = vmatpush.bf16.msra.mxu0 %v1360
  %1892 = vmatpush.bf16.msra.mxu0 %v1358
  %1893 = vmatpush.bf16.msra.mxu0 %v1356
  %1894 = vmatpush.bf16.msra.mxu0 %v1354
  %1895 = vmatmul.bf16.gmra.mxu0 %v417
  %v1896 = vpop.f32.mrf.mxu0
  %v1897 = vadd.f32 %v1878, %v1896
  %v1898 = vpop.f32.mrf.mxu0
  %v1899 = vadd.f32 %v1880, %v1898
  %1900 = vmatmul.bf16.gmra.mxu0 %v433
  %v1901 = vpop.f32.mrf.mxu0
  %v1902 = vadd.f32 %v1883, %v1901
  %v1903 = vpop.f32.mrf.mxu0
  %v1904 = vadd.f32 %v1885, %v1903
  %1905 = vdwg.mxu0
  %1906 = vmatpush.bf16.msra.mxu0 %v1384
  %1907 = vmatpush.bf16.msra.mxu0 %v1382
  %1908 = vmatpush.bf16.msra.mxu0 %v1380
  %1909 = vmatpush.bf16.msra.mxu0 %v1378
  %1910 = vmatpush.bf16.msra.mxu0 %v1376
  %1911 = vmatpush.bf16.msra.mxu0 %v1374
  %1912 = vmatpush.bf16.msra.mxu0 %v1372
  %1913 = vmatpush.bf16.msra.mxu0 %v1370
  %1914 = vmatmul.bf16.gmra.mxu0 %v418
  %v1915 = vpop.f32.mrf.mxu0
  %v1916 = vadd.f32 %v1897, %v1915
  %v1917 = vpop.f32.mrf.mxu0
  %v1918 = vadd.f32 %v1899, %v1917
  %1919 = vmatmul.bf16.gmra.mxu0 %v434
  %v1920 = vpop.f32.mrf.mxu0
  %v1921 = vadd.f32 %v1902, %v1920
  %v1922 = vpop.f32.mrf.mxu0
  %v1923 = vadd.f32 %v1904, %v1922
  %1924 = vdwg.mxu0
  %1925 = vmatpush.bf16.msra.mxu0 %v1400
  %1926 = vmatpush.bf16.msra.mxu0 %v1398
  %1927 = vmatpush.bf16.msra.mxu0 %v1396
  %1928 = vmatpush.bf16.msra.mxu0 %v1394
  %1929 = vmatpush.bf16.msra.mxu0 %v1392
  %1930 = vmatpush.bf16.msra.mxu0 %v1390
  %1931 = vmatpush.bf16.msra.mxu0 %v1388
  %1932 = vmatpush.bf16.msra.mxu0 %v1386
  %1933 = vmatmul.bf16.gmra.mxu0 %v419
  %v1934 = vpop.f32.mrf.mxu0
  %v1935 = vadd.f32 %v1916, %v1934
  %v1936 = vpop.f32.mrf.mxu0
  %v1937 = vadd.f32 %v1918, %v1936
  %1938 = vmatmul.bf16.gmra.mxu0 %v435
  %v1939 = vpop.f32.mrf.mxu0
  %v1940 = vadd.f32 %v1921, %v1939
  %v1941 = vpop.f32.mrf.mxu0
  %v1942 = vadd.f32 %v1923, %v1941
  %1943 = vdwg.mxu0
  %1944 = vmatpush.bf16.msra.mxu0 %v1416
  %1945 = vmatpush.bf16.msra.mxu0 %v1414
  %1946 = vmatpush.bf16.msra.mxu0 %v1412
  %1947 = vmatpush.bf16.msra.mxu0 %v1410
  %1948 = vmatpush.bf16.msra.mxu0 %v1408
  %1949 = vmatpush.bf16.msra.mxu0 %v1406
  %1950 = vmatpush.bf16.msra.mxu0 %v1404
  %1951 = vmatpush.bf16.msra.mxu0 %v1402
  %1952 = vmatmul.bf16.gmra.mxu0 %v420
  %v1953 = vpop.f32.mrf.mxu0
  %v1954 = vadd.f32 %v1935, %v1953
  %v1955 = vpop.f32.mrf.mxu0
  %v1956 = vadd.f32 %v1937, %v1955
  %1957 = vmatmul.bf16.gmra.mxu0 %v436
  %v1958 = vpop.f32.mrf.mxu0
  %v1959 = vadd.f32 %v1940, %v1958
  %v1960 = vpop.f32.mrf.mxu0
  %v1961 = vadd.f32 %v1942, %v1960
  %1962 = vdwg.mxu0
  %1963 = vmatpush.bf16.msra.mxu0 %v1432
  %1964 = vmatpush.bf16.msra.mxu0 %v1430
  %1965 = vmatpush.bf16.msra.mxu0 %v1428
  %1966 = vmatpush.bf16.msra.mxu0 %v1426
  %1967 = vmatpush.bf16.msra.mxu0 %v1424
  %1968 = vmatpush.bf16.msra.mxu0 %v1422
  %1969 = vmatpush.bf16.msra.mxu0 %v1420
  %1970 = vmatpush.bf16.msra.mxu0 %v1418
  %1971 = vmatmul.bf16.gmra.mxu0 %v421
  %v1972 = vpop.f32.mrf.mxu0
  %v1973 = vadd.f32 %v1954, %v1972
  %v1974 = vpop.f32.mrf.mxu0
  %v1975 = vadd.f32 %v1956, %v1974
  %1976 = vmatmul.bf16.gmra.mxu0 %v437
  %v1977 = vpop.f32.mrf.mxu0
  %v1978 = vadd.f32 %v1959, %v1977
  %v1979 = vpop.f32.mrf.mxu0
  %v1980 = vadd.f32 %v1961, %v1979
  %1981 = vdwg.mxu0
  %1982 = vmatpush.bf16.msra.mxu0 %v1448
  %1983 = vmatpush.bf16.msra.mxu0 %v1446
  %1984 = vmatpush.bf16.msra.mxu0 %v1444
  %1985 = vmatpush.bf16.msra.mxu0 %v1442
  %1986 = vmatpush.bf16.msra.mxu0 %v1440
  %1987 = vmatpush.bf16.msra.mxu0 %v1438
  %1988 = vmatpush.bf16.msra.mxu0 %v1436
  %1989 = vmatpush.bf16.msra.mxu0 %v1434
  %1990 = vmatmul.bf16.gmra.mxu0 %v422
  %v1991 = vpop.f32.mrf.mxu0
  %v1992 = vadd.f32 %v1973, %v1991
  %v1993 = vpop.f32.mrf.mxu0
  %v1994 = vadd.f32 %v1975, %v1993
  %1995 = vmatmul.bf16.gmra.mxu0 %v438
  %v1996 = vpop.f32.mrf.mxu0
  %v1997 = vadd.f32 %v1978, %v1996
  %v1998 = vpop.f32.mrf.mxu0
  %v1999 = vadd.f32 %v1980, %v1998
  %2000 = vdwg.mxu0
  %2001 = vmatpush.bf16.msra.mxu0 %v1464
  %2002 = vmatpush.bf16.msra.mxu0 %v1462
  %2003 = vmatpush.bf16.msra.mxu0 %v1460
  %2004 = vmatpush.bf16.msra.mxu0 %v1458
  %2005 = vmatpush.bf16.msra.mxu0 %v1456
  %2006 = vmatpush.bf16.msra.mxu0 %v1454
  %2007 = vmatpush.bf16.msra.mxu0 %v1452
  %2008 = vmatpush.bf16.msra.mxu0 %v1450
  %2009 = vmatmul.bf16.gmra.mxu0 %v423
  %v2010 = vpop.f32.mrf.mxu0
  %v2011 = vadd.f32 %v1992, %v2010
  %v2012 = vpop.f32.mrf.mxu0
  %v2013 = vadd.f32 %v1994, %v2012
  %2014 = vmatmul.bf16.gmra.mxu0 %v439
  %v2015 = vpop.f32.mrf.mxu0
  %v2016 = vadd.f32 %v1997, %v2015
  %v2017 = vpop.f32.mrf.mxu0
  %v2018 = vadd.f32 %v1999, %v2017
  %2019 = vdwg.mxu0
  %2020 = vmatpush.bf16.msra.mxu0 %v1480
  %2021 = vmatpush.bf16.msra.mxu0 %v1478
  %2022 = vmatpush.bf16.msra.mxu0 %v1476
  %2023 = vmatpush.bf16.msra.mxu0 %v1474
  %2024 = vmatpush.bf16.msra.mxu0 %v1472
  %2025 = vmatpush.bf16.msra.mxu0 %v1470
  %2026 = vmatpush.bf16.msra.mxu0 %v1468
  %2027 = vmatpush.bf16.msra.mxu0 %v1466
  %2028 = vmatmul.bf16.gmra.mxu0 %v424
  %v2029 = vpop.f32.mrf.mxu0
  %v2030 = vadd.f32 %v2011, %v2029
  %v2031 = vpop.f32.mrf.mxu0
  %v2032 = vadd.f32 %v2013, %v2031
  %2033 = vmatmul.bf16.gmra.mxu0 %v440
  %v2034 = vpop.f32.mrf.mxu0
  %v2035 = vadd.f32 %v2016, %v2034
  %v2036 = vpop.f32.mrf.mxu0
  %v2037 = vadd.f32 %v2018, %v2036
  %2038 = vdwg.mxu0
  %2039 = vmatpush.bf16.msra.mxu0 %v1496
  %2040 = vmatpush.bf16.msra.mxu0 %v1494
  %2041 = vmatpush.bf16.msra.mxu0 %v1492
  %2042 = vmatpush.bf16.msra.mxu0 %v1490
  %2043 = vmatpush.bf16.msra.mxu0 %v1488
  %2044 = vmatpush.bf16.msra.mxu0 %v1486
  %2045 = vmatpush.bf16.msra.mxu0 %v1484
  %2046 = vmatpush.bf16.msra.mxu0 %v1482
  %2047 = vmatmul.bf16.gmra.mxu0 %v425
  %v2048 = vpop.f32.mrf.mxu0
  %v2049 = vadd.f32 %v2030, %v2048
  %v2050 = vpop.f32.mrf.mxu0
  %v2051 = vadd.f32 %v2032, %v2050
  %2052 = vmatmul.bf16.gmra.mxu0 %v441
  %v2053 = vpop.f32.mrf.mxu0
  %v2054 = vadd.f32 %v2035, %v2053
  %v2055 = vpop.f32.mrf.mxu0
  %v2056 = vadd.f32 %v2037, %v2055
  %2057 = vdwg.mxu0
  %2058 = vmatpush.bf16.msra.mxu0 %v1257
  %2059 = vmatpush.bf16.msra.mxu0 %v1255
  %2060 = vmatpush.bf16.msra.mxu0 %v1253
  %2061 = vmatpush.bf16.msra.mxu0 %v1251
  %2062 = vmatpush.bf16.msra.mxu0 %v1249
  %2063 = vmatpush.bf16.msra.mxu0 %v1247
  %2064 = vmatpush.bf16.msra.mxu0 %v1245
  %2065 = vmatpush.bf16.msra.mxu0 %v1243
  %2066 = vmatmul.bf16.gmra.mxu0 %v410
  %v2067 = vpop.f32.mrf.mxu0
  %v2068 = vadd.f32 %v311, %v2067
  %v2069 = vpop.f32.mrf.mxu0
  %v2070 = vadd.f32 %v311, %v2069
  %2071 = vmatmul.bf16.gmra.mxu0 %v426
  %v2072 = vpop.f32.mrf.mxu0
  %v2073 = vadd.f32 %v311, %v2072
  %v2074 = vpop.f32.mrf.mxu0
  %v2075 = vadd.f32 %v311, %v2074
  %2076 = vdwg.mxu0
  %2077 = vmatpush.bf16.msra.mxu0 %v1273
  %2078 = vmatpush.bf16.msra.mxu0 %v1271
  %2079 = vmatpush.bf16.msra.mxu0 %v1269
  %2080 = vmatpush.bf16.msra.mxu0 %v1267
  %2081 = vmatpush.bf16.msra.mxu0 %v1265
  %2082 = vmatpush.bf16.msra.mxu0 %v1263
  %2083 = vmatpush.bf16.msra.mxu0 %v1261
  %2084 = vmatpush.bf16.msra.mxu0 %v1259
  %2085 = vmatmul.bf16.gmra.mxu0 %v411
  %v2086 = vpop.f32.mrf.mxu0
  %v2087 = vadd.f32 %v2068, %v2086
  %v2088 = vpop.f32.mrf.mxu0
  %v2089 = vadd.f32 %v2070, %v2088
  %2090 = vmatmul.bf16.gmra.mxu0 %v427
  %v2091 = vpop.f32.mrf.mxu0
  %v2092 = vadd.f32 %v2073, %v2091
  %v2093 = vpop.f32.mrf.mxu0
  %v2094 = vadd.f32 %v2075, %v2093
  %2095 = vdwg.mxu0
  %2096 = vmatpush.bf16.msra.mxu0 %v1289
  %2097 = vmatpush.bf16.msra.mxu0 %v1287
  %2098 = vmatpush.bf16.msra.mxu0 %v1285
  %2099 = vmatpush.bf16.msra.mxu0 %v1283
  %2100 = vmatpush.bf16.msra.mxu0 %v1281
  %2101 = vmatpush.bf16.msra.mxu0 %v1279
  %2102 = vmatpush.bf16.msra.mxu0 %v1277
  %2103 = vmatpush.bf16.msra.mxu0 %v1275
  %2104 = vmatmul.bf16.gmra.mxu0 %v412
  %v2105 = vpop.f32.mrf.mxu0
  %v2106 = vadd.f32 %v2087, %v2105
  %v2107 = vpop.f32.mrf.mxu0
  %v2108 = vadd.f32 %v2089, %v2107
  %2109 = vmatmul.bf16.gmra.mxu0 %v428
  %v2110 = vpop.f32.mrf.mxu0
  %v2111 = vadd.f32 %v2092, %v2110
  %v2112 = vpop.f32.mrf.mxu0
  %v2113 = vadd.f32 %v2094, %v2112
  %2114 = vdwg.mxu0
  %2115 = vmatpush.bf16.msra.mxu0 %v1305
  %2116 = vmatpush.bf16.msra.mxu0 %v1303
  %2117 = vmatpush.bf16.msra.mxu0 %v1301
  %2118 = vmatpush.bf16.msra.mxu0 %v1299
  %2119 = vmatpush.bf16.msra.mxu0 %v1297
  %2120 = vmatpush.bf16.msra.mxu0 %v1295
  %2121 = vmatpush.bf16.msra.mxu0 %v1293
  %2122 = vmatpush.bf16.msra.mxu0 %v1291
  %2123 = vmatmul.bf16.gmra.mxu0 %v413
  %v2124 = vpop.f32.mrf.mxu0
  %v2125 = vadd.f32 %v2106, %v2124
  %v2126 = vpop.f32.mrf.mxu0
  %v2127 = vadd.f32 %v2108, %v2126
  %2128 = vmatmul.bf16.gmra.mxu0 %v429
  %v2129 = vpop.f32.mrf.mxu0
  %v2130 = vadd.f32 %v2111, %v2129
  %v2131 = vpop.f32.mrf.mxu0
  %v2132 = vadd.f32 %v2113, %v2131
  %2133 = vdwg.mxu0
  %2134 = vmatpush.bf16.msra.mxu0 %v1321
  %2135 = vmatpush.bf16.msra.mxu0 %v1319
  %2136 = vmatpush.bf16.msra.mxu0 %v1317
  %2137 = vmatpush.bf16.msra.mxu0 %v1315
  %2138 = vmatpush.bf16.msra.mxu0 %v1313
  %2139 = vmatpush.bf16.msra.mxu0 %v1311
  %2140 = vmatpush.bf16.msra.mxu0 %v1309
  %2141 = vmatpush.bf16.msra.mxu0 %v1307
  %2142 = vmatmul.bf16.gmra.mxu0 %v414
  %v2143 = vpop.f32.mrf.mxu0
  %v2144 = vadd.f32 %v2125, %v2143
  %v2145 = vpop.f32.mrf.mxu0
  %v2146 = vadd.f32 %v2127, %v2145
  %2147 = vmatmul.bf16.gmra.mxu0 %v430
  %v2148 = vpop.f32.mrf.mxu0
  %v2149 = vadd.f32 %v2130, %v2148
  %v2150 = vpop.f32.mrf.mxu0
  %v2151 = vadd.f32 %v2132, %v2150
  %2152 = vdwg.mxu0
  %2153 = vmatpush.bf16.msra.mxu0 %v1337
  %2154 = vmatpush.bf16.msra.mxu0 %v1335
  %2155 = vmatpush.bf16.msra.mxu0 %v1333
  %2156 = vmatpush.bf16.msra.mxu0 %v1331
  %2157 = vmatpush.bf16.msra.mxu0 %v1329
  %2158 = vmatpush.bf16.msra.mxu0 %v1327
  %2159 = vmatpush.bf16.msra.mxu0 %v1325
  %2160 = vmatpush.bf16.msra.mxu0 %v1323
  %2161 = vmatmul.bf16.gmra.mxu0 %v415
  %v2162 = vpop.f32.mrf.mxu0
  %v2163 = vadd.f32 %v2144, %v2162
  %v2164 = vpop.f32.mrf.mxu0
  %v2165 = vadd.f32 %v2146, %v2164
  %2166 = vmatmul.bf16.gmra.mxu0 %v431
  %v2167 = vpop.f32.mrf.mxu0
  %v2168 = vadd.f32 %v2149, %v2167
  %v2169 = vpop.f32.mrf.mxu0
  %v2170 = vadd.f32 %v2151, %v2169
  %2171 = vdwg.mxu0
  %2172 = vmatpush.bf16.msra.mxu0 %v1353
  %2173 = vmatpush.bf16.msra.mxu0 %v1351
  %2174 = vmatpush.bf16.msra.mxu0 %v1349
  %2175 = vmatpush.bf16.msra.mxu0 %v1347
  %2176 = vmatpush.bf16.msra.mxu0 %v1345
  %2177 = vmatpush.bf16.msra.mxu0 %v1343
  %2178 = vmatpush.bf16.msra.mxu0 %v1341
  %2179 = vmatpush.bf16.msra.mxu0 %v1339
  %2180 = vmatmul.bf16.gmra.mxu0 %v416
  %v2181 = vpop.f32.mrf.mxu0
  %v2182 = vadd.f32 %v2163, %v2181
  %v2183 = vpop.f32.mrf.mxu0
  %v2184 = vadd.f32 %v2165, %v2183
  %2185 = vmatmul.bf16.gmra.mxu0 %v432
  %v2186 = vpop.f32.mrf.mxu0
  %v2187 = vadd.f32 %v2168, %v2186
  %v2188 = vpop.f32.mrf.mxu0
  %v2189 = vadd.f32 %v2170, %v2188
  %2190 = vdwg.mxu0
  %2191 = vmatpush.bf16.msra.mxu0 %v1369
  %2192 = vmatpush.bf16.msra.mxu0 %v1367
  %2193 = vmatpush.bf16.msra.mxu0 %v1365
  %2194 = vmatpush.bf16.msra.mxu0 %v1363
  %2195 = vmatpush.bf16.msra.mxu0 %v1361
  %2196 = vmatpush.bf16.msra.mxu0 %v1359
  %2197 = vmatpush.bf16.msra.mxu0 %v1357
  %2198 = vmatpush.bf16.msra.mxu0 %v1355
  %2199 = vmatmul.bf16.gmra.mxu0 %v417
  %v2200 = vpop.f32.mrf.mxu0
  %v2201 = vadd.f32 %v2182, %v2200
  %v2202 = vpop.f32.mrf.mxu0
  %v2203 = vadd.f32 %v2184, %v2202
  %2204 = vmatmul.bf16.gmra.mxu0 %v433
  %v2205 = vpop.f32.mrf.mxu0
  %v2206 = vadd.f32 %v2187, %v2205
  %v2207 = vpop.f32.mrf.mxu0
  %v2208 = vadd.f32 %v2189, %v2207
  %2209 = vdwg.mxu0
  %2210 = vmatpush.bf16.msra.mxu0 %v1385
  %2211 = vmatpush.bf16.msra.mxu0 %v1383
  %2212 = vmatpush.bf16.msra.mxu0 %v1381
  %2213 = vmatpush.bf16.msra.mxu0 %v1379
  %2214 = vmatpush.bf16.msra.mxu0 %v1377
  %2215 = vmatpush.bf16.msra.mxu0 %v1375
  %2216 = vmatpush.bf16.msra.mxu0 %v1373
  %2217 = vmatpush.bf16.msra.mxu0 %v1371
  %2218 = vmatmul.bf16.gmra.mxu0 %v418
  %v2219 = vpop.f32.mrf.mxu0
  %v2220 = vadd.f32 %v2201, %v2219
  %v2221 = vpop.f32.mrf.mxu0
  %v2222 = vadd.f32 %v2203, %v2221
  %2223 = vmatmul.bf16.gmra.mxu0 %v434
  %v2224 = vpop.f32.mrf.mxu0
  %v2225 = vadd.f32 %v2206, %v2224
  %v2226 = vpop.f32.mrf.mxu0
  %v2227 = vadd.f32 %v2208, %v2226
  %2228 = vdwg.mxu0
  %2229 = vmatpush.bf16.msra.mxu0 %v1401
  %2230 = vmatpush.bf16.msra.mxu0 %v1399
  %2231 = vmatpush.bf16.msra.mxu0 %v1397
  %2232 = vmatpush.bf16.msra.mxu0 %v1395
  %2233 = vmatpush.bf16.msra.mxu0 %v1393
  %2234 = vmatpush.bf16.msra.mxu0 %v1391
  %2235 = vmatpush.bf16.msra.mxu0 %v1389
  %2236 = vmatpush.bf16.msra.mxu0 %v1387
  %2237 = vmatmul.bf16.gmra.mxu0 %v419
  %v2238 = vpop.f32.mrf.mxu0
  %v2239 = vadd.f32 %v2220, %v2238
  %v2240 = vpop.f32.mrf.mxu0
  %v2241 = vadd.f32 %v2222, %v2240
  %2242 = vmatmul.bf16.gmra.mxu0 %v435
  %v2243 = vpop.f32.mrf.mxu0
  %v2244 = vadd.f32 %v2225, %v2243
  %v2245 = vpop.f32.mrf.mxu0
  %v2246 = vadd.f32 %v2227, %v2245
  %2247 = vdwg.mxu0
  %2248 = vmatpush.bf16.msra.mxu0 %v1417
  %2249 = vmatpush.bf16.msra.mxu0 %v1415
  %2250 = vmatpush.bf16.msra.mxu0 %v1413
  %2251 = vmatpush.bf16.msra.mxu0 %v1411
  %2252 = vmatpush.bf16.msra.mxu0 %v1409
  %2253 = vmatpush.bf16.msra.mxu0 %v1407
  %2254 = vmatpush.bf16.msra.mxu0 %v1405
  %2255 = vmatpush.bf16.msra.mxu0 %v1403
  %2256 = vmatmul.bf16.gmra.mxu0 %v420
  %v2257 = vpop.f32.mrf.mxu0
  %v2258 = vadd.f32 %v2239, %v2257
  %v2259 = vpop.f32.mrf.mxu0
  %v2260 = vadd.f32 %v2241, %v2259
  %2261 = vmatmul.bf16.gmra.mxu0 %v436
  %v2262 = vpop.f32.mrf.mxu0
  %v2263 = vadd.f32 %v2244, %v2262
  %v2264 = vpop.f32.mrf.mxu0
  %v2265 = vadd.f32 %v2246, %v2264
  %2266 = vdwg.mxu0
  %2267 = vmatpush.bf16.msra.mxu0 %v1433
  %2268 = vmatpush.bf16.msra.mxu0 %v1431
  %2269 = vmatpush.bf16.msra.mxu0 %v1429
  %2270 = vmatpush.bf16.msra.mxu0 %v1427
  %2271 = vmatpush.bf16.msra.mxu0 %v1425
  %2272 = vmatpush.bf16.msra.mxu0 %v1423
  %2273 = vmatpush.bf16.msra.mxu0 %v1421
  %2274 = vmatpush.bf16.msra.mxu0 %v1419
  %2275 = vmatmul.bf16.gmra.mxu0 %v421
  %v2276 = vpop.f32.mrf.mxu0
  %v2277 = vadd.f32 %v2258, %v2276
  %v2278 = vpop.f32.mrf.mxu0
  %v2279 = vadd.f32 %v2260, %v2278
  %2280 = vmatmul.bf16.gmra.mxu0 %v437
  %v2281 = vpop.f32.mrf.mxu0
  %v2282 = vadd.f32 %v2263, %v2281
  %v2283 = vpop.f32.mrf.mxu0
  %v2284 = vadd.f32 %v2265, %v2283
  %2285 = vdwg.mxu0
  %2286 = vmatpush.bf16.msra.mxu0 %v1449
  %2287 = vmatpush.bf16.msra.mxu0 %v1447
  %2288 = vmatpush.bf16.msra.mxu0 %v1445
  %2289 = vmatpush.bf16.msra.mxu0 %v1443
  %2290 = vmatpush.bf16.msra.mxu0 %v1441
  %2291 = vmatpush.bf16.msra.mxu0 %v1439
  %2292 = vmatpush.bf16.msra.mxu0 %v1437
  %2293 = vmatpush.bf16.msra.mxu0 %v1435
  %2294 = vmatmul.bf16.gmra.mxu0 %v422
  %v2295 = vpop.f32.mrf.mxu0
  %v2296 = vadd.f32 %v2277, %v2295
  %v2297 = vpop.f32.mrf.mxu0
  %v2298 = vadd.f32 %v2279, %v2297
  %2299 = vmatmul.bf16.gmra.mxu0 %v438
  %v2300 = vpop.f32.mrf.mxu0
  %v2301 = vadd.f32 %v2282, %v2300
  %v2302 = vpop.f32.mrf.mxu0
  %v2303 = vadd.f32 %v2284, %v2302
  %2304 = vdwg.mxu0
  %2305 = vmatpush.bf16.msra.mxu0 %v1465
  %2306 = vmatpush.bf16.msra.mxu0 %v1463
  %2307 = vmatpush.bf16.msra.mxu0 %v1461
  %2308 = vmatpush.bf16.msra.mxu0 %v1459
  %2309 = vmatpush.bf16.msra.mxu0 %v1457
  %2310 = vmatpush.bf16.msra.mxu0 %v1455
  %2311 = vmatpush.bf16.msra.mxu0 %v1453
  %2312 = vmatpush.bf16.msra.mxu0 %v1451
  %2313 = vmatmul.bf16.gmra.mxu0 %v423
  %v2314 = vpop.f32.mrf.mxu0
  %v2315 = vadd.f32 %v2296, %v2314
  %v2316 = vpop.f32.mrf.mxu0
  %v2317 = vadd.f32 %v2298, %v2316
  %2318 = vmatmul.bf16.gmra.mxu0 %v439
  %v2319 = vpop.f32.mrf.mxu0
  %v2320 = vadd.f32 %v2301, %v2319
  %v2321 = vpop.f32.mrf.mxu0
  %v2322 = vadd.f32 %v2303, %v2321
  %2323 = vdwg.mxu0
  %2324 = vmatpush.bf16.msra.mxu0 %v1481
  %2325 = vmatpush.bf16.msra.mxu0 %v1479
  %2326 = vmatpush.bf16.msra.mxu0 %v1477
  %2327 = vmatpush.bf16.msra.mxu0 %v1475
  %2328 = vmatpush.bf16.msra.mxu0 %v1473
  %2329 = vmatpush.bf16.msra.mxu0 %v1471
  %2330 = vmatpush.bf16.msra.mxu0 %v1469
  %2331 = vmatpush.bf16.msra.mxu0 %v1467
  %2332 = vmatmul.bf16.gmra.mxu0 %v424
  %v2333 = vpop.f32.mrf.mxu0
  %v2334 = vadd.f32 %v2315, %v2333
  %v2335 = vpop.f32.mrf.mxu0
  %v2336 = vadd.f32 %v2317, %v2335
  %2337 = vmatmul.bf16.gmra.mxu0 %v440
  %v2338 = vpop.f32.mrf.mxu0
  %v2339 = vadd.f32 %v2320, %v2338
  %v2340 = vpop.f32.mrf.mxu0
  %v2341 = vadd.f32 %v2322, %v2340
  %2342 = vdwg.mxu0
  %2343 = vmatpush.bf16.msra.mxu0 %v1497
  %2344 = vmatpush.bf16.msra.mxu0 %v1495
  %2345 = vmatpush.bf16.msra.mxu0 %v1493
  %2346 = vmatpush.bf16.msra.mxu0 %v1491
  %2347 = vmatpush.bf16.msra.mxu0 %v1489
  %2348 = vmatpush.bf16.msra.mxu0 %v1487
  %2349 = vmatpush.bf16.msra.mxu0 %v1485
  %2350 = vmatpush.bf16.msra.mxu0 %v1483
  %2351 = vmatmul.bf16.gmra.mxu0 %v425
  %v2352 = vpop.f32.mrf.mxu0
  %v2353 = vadd.f32 %v2334, %v2352
  %v2354 = vpop.f32.mrf.mxu0
  %v2355 = vadd.f32 %v2336, %v2354
  %2356 = vmatmul.bf16.gmra.mxu0 %v441
  %v2357 = vpop.f32.mrf.mxu0
  %v2358 = vadd.f32 %v2339, %v2357
  %v2359 = vpop.f32.mrf.mxu0
  %v2360 = vadd.f32 %v2341, %v2359
  %2361 = vdwg.mxu0
  %v2362 = vadd.f32 %v2049, %v2051
  %v2363 = vadd.f32 %v2362, %v2054
  %v2364 = vadd.f32 %v2363, %v2056
  %v2365 = vrot.slane %v2364, 4
  %v2366 = vadd.f32 %v2364, %v2365
  %v2367 = vrot.slane %v2366, 2
  %v2368 = vadd.f32 %v2366, %v2367
  %v2369 = vrot.slane %v2368, 1
  %v2370 = vadd.f32 %v2368, %v2369
  %v2371 = vadd.f32 %v2353, %v2355
  %v2372 = vadd.f32 %v2371, %v2358
  %v2373 = vadd.f32 %v2372, %v2360
  %v2374 = vrot.slane %v2373, 4
  %v2375 = vadd.f32 %v2373, %v2374
  %v2376 = vrot.slane %v2375, 2
  %v2377 = vadd.f32 %v2375, %v2376
  %v2378 = vrot.slane %v2377, 1
  %v2379 = vadd.f32 %v2377, %v2378
  %v2380 = vrcp.pop 32.0
  %v2381 = vmul.f32 32.0, %v2380
  %v2382 = vsub.f32 1.0, %v2381
  %v2383 = vmul.f32 %v2380, %v2382
  %v2384 = vadd.f32 %v2380, %v2383
  %vm2385 = vweird.f32 %v2380
  %v2386 = vsel %vm2385, %v2380, %v2384
  %v2387 = vmul.f32 %v2370, %v2386
  %v2388 = vmul.f32 %v2379, %v2386
  %v2389 = vsub.f32 %v2049, %v2387
  %v2390 = vsub.f32 %v2353, %v2388
  %v2391 = vsub.f32 %v2051, %v2387
  %v2392 = vsub.f32 %v2355, %v2388
  %v2393 = vsub.f32 %v2054, %v2387
  %v2394 = vsub.f32 %v2358, %v2388
  %v2395 = vsub.f32 %v2056, %v2387
  %v2396 = vsub.f32 %v2360, %v2388
  %v2397 = vmul.f32 %v2389, %v2389
  %v2398 = vmul.f32 %v2390, %v2390
  %v2399 = vmul.f32 %v2391, %v2391
  %v2400 = vmul.f32 %v2392, %v2392
  %v2401 = vmul.f32 %v2393, %v2393
  %v2402 = vmul.f32 %v2394, %v2394
  %v2403 = vmul.f32 %v2395, %v2395
  %v2404 = vmul.f32 %v2396, %v2396
  %v2405 = vadd.f32 %v2397, %v2399
  %v2406 = vadd.f32 %v2405, %v2401
  %v2407 = vadd.f32 %v2406, %v2403
  %v2408 = vrot.slane %v2407, 4
  %v2409 = vadd.f32 %v2407, %v2408
  %v2410 = vrot.slane %v2409, 2
  %v2411 = vadd.f32 %v2409, %v2410
  %v2412 = vrot.slane %v2411, 1
  %v2413 = vadd.f32 %v2411, %v2412
  %v2414 = vadd.f32 %v2398, %v2400
  %v2415 = vadd.f32 %v2414, %v2402
  %v2416 = vadd.f32 %v2415, %v2404
  %v2417 = vrot.slane %v2416, 4
  %v2418 = vadd.f32 %v2416, %v2417
  %v2419 = vrot.slane %v2418, 2
  %v2420 = vadd.f32 %v2418, %v2419
  %v2421 = vrot.slane %v2420, 1
  %v2422 = vadd.f32 %v2420, %v2421
  %v2423 = vmul.f32 %v2413, %v2386
  %v2424 = vmul.f32 %v2422, %v2386
  %v2425 = vld [vmem:[%s3] sm:$0x3]
  %v2426 = vadd.f32 %v2423, 1e-05
  %v2427 = vadd.f32 %v2424, 1e-05
  %v2428 = vrsqrt.pop %v2426
  %v2429 = vmul.f32 %v2428, %v2426
  %v2430 = vmul.f32 %v2429, %v2428
  %v2431 = vmul.f32 0.5, %v2430
  %v2432 = vsub.f32 1.5, %v2431
  %v2433 = vmul.f32 %v2428, %v2432
  %vm2434 = vweird.f32 %v2426
  %vm2435 = vweird.f32 %v2428
  %vm2436 = vmor %vm2434, %vm2435
  %v2437 = vsel %vm2436, %v2428, %v2433
  %v2438 = vrsqrt.pop %v2427
  %v2439 = vmul.f32 %v2438, %v2427
  %v2440 = vmul.f32 %v2439, %v2438
  %v2441 = vmul.f32 0.5, %v2440
  %v2442 = vsub.f32 1.5, %v2441
  %v2443 = vmul.f32 %v2438, %v2442
  %vm2444 = vweird.f32 %v2427
  %vm2445 = vweird.f32 %v2438
  %vm2446 = vmor %vm2444, %vm2445
  %v2447 = vsel %vm2446, %v2438, %v2443
  %v2450 = vrot.slane %v2447, 7
  %vm2451 = vcmask 1040384
  %v2452 = vsel %vm2451, %v2437, %v2450
  %v2454 = vmul.f32 %v2425, %v2452
  %v2456 = vperm.slane %v2454, 0
  %v2457 = vperm.slane %v2454, 1
  %v2460 = vmul.f32 %v2389, %v2456
  %v2461 = vmul.f32 %v2390, %v2457
  %v2462 = vmul.f32 %v2391, %v2456
  %v2463 = vmul.f32 %v2392, %v2457
  %v2464 = vmul.f32 %v2393, %v2456
  %v2465 = vmul.f32 %v2394, %v2457
  %v2466 = vmul.f32 %v2395, %v2456
  %v2467 = vmul.f32 %v2396, %v2457
  %v2468 = vld [vmem:[%s4] sm:$0x3]
  %v2470 = vperm.slane %v2468, 0
  %v2471 = vperm.slane %v2468, 1
  %v2474 = vadd.f32 %v2460, %v2470
  %v2475 = vadd.f32 %v2461, %v2471
  %v2476 = vadd.f32 %v2462, %v2470
  %v2477 = vadd.f32 %v2463, %v2471
  %v2478 = vadd.f32 %v2464, %v2470
  %v2479 = vadd.f32 %v2465, %v2471
  %v2480 = vadd.f32 %v2466, %v2470
  %v2481 = vadd.f32 %v2467, %v2471
  %vm2482 = vcmp.ge.f32.partialorder %v2474, 0.0
  %vm2483 = vcmp.ge.f32.partialorder %v2475, 0.0
  %vm2484 = vcmp.ge.f32.partialorder %v2476, 0.0
  %vm2485 = vcmp.ge.f32.partialorder %v2477, 0.0
  %vm2486 = vcmp.ge.f32.partialorder %v2478, 0.0
  %vm2487 = vcmp.ge.f32.partialorder %v2479, 0.0
  %vm2488 = vcmp.ge.f32.partialorder %v2480, 0.0
  %vm2489 = vcmp.ge.f32.partialorder %v2481, 0.0
  %v2490 = vmul.f32 %v2474, 0.2
  %v2491 = vmul.f32 %v2475, 0.2
  %v2492 = vmul.f32 %v2476, 0.2
  %v2493 = vmul.f32 %v2477, 0.2
  %v2494 = vmul.f32 %v2478, 0.2
  %v2495 = vmul.f32 %v2479, 0.2
  %v2496 = vmul.f32 %v2480, 0.2
  %v2497 = vmul.f32 %v2481, 0.2
  %v2498 = vsel %vm2482, %v2474, %v2490
  %v2499 = vsel %vm2483, %v2475, %v2491
  %v2500 = vsel %vm2484, %v2476, %v2492
  %v2501 = vsel %vm2485, %v2477, %v2493
  %v2502 = vsel %vm2486, %v2478, %v2494
  %v2503 = vsel %vm2487, %v2479, %v2495
  %v2504 = vsel %vm2488, %v2480, %v2496
  %v2505 = vsel %vm2489, %v2481, %v2497
  %2506 = vst [vmem:[%s5] sm:$0xff] %v2498
  %2507 = vst [vmem:[%s5 + $0x8] sm:$0xff] %v2499
  %2508 = vst [vmem:[%s5 + $0x10] sm:$0xff] %v2500
  %2509 = vst [vmem:[%s5 + $0x18] sm:$0xff] %v2501
  %2510 = vst [vmem:[%s5 + $0x20] sm:$0xff] %v2502
  %2511 = vst [vmem:[%s5 + $0x28] sm:$0xff] %v2503
  %2512 = vst [vmem:[%s5 + $0x30] sm:$0xff] %v2504
  %2513 = vst [vmem:[%s5 + $0x38] sm:$0xff] %v2505
  // Predicated region
  $region22: #{discriminator_forward.7} parent=0 // pred_check
    _
  $region23: #{discriminator_forward.7} parent=0 // pred_check_branch
    %2515 = sbr.rel (0) target = $region25
  $region24: #{discriminator_forward.7} parent=0 // pred_region
    _
  $region25: #{discriminator_forward.7} parent=0 // pred_fallthru
    _
  // Predicated region
  $region26: #{discriminator_forward.7} parent=0 // pred_check
    _
  $region27: #{discriminator_forward.7} parent=0 // pred_check_branch
    %2517 = sbr.rel (0) target = $region29
  $region28: #{discriminator_forward.7} parent=0 // pred_region
    _
  $region29: #{discriminator_forward.7} parent=0 // pred_fallthru
    _

// kernel: discriminator_forward.9
$region0: #{discriminator_forward.9}
  #allocation0 [shape = 'u32[]', space=smem, size = 0x4, offset = 0x4, fixed_abs, tag = 'smem constant byte address 0x4 - core index']
  #allocation1 [shape = 'u32[72,128]{1,0:T(1,128)}', space=vmem, size = 0x9000, scoped, tag = 'internal scratch']
  #allocation2 [shape = 'f32[1,1]{1,0:T(1,128)S(1)}', space=vmem, size = 0x200, scoped, tag = 'scoped memory for discriminator_forward.9']
  %s0 = inlined_call_operand.vmem [shape: bf16[8,8192], index: 0, kind: input, shape index: {}]
  %s1 = inlined_call_operand.vmem [shape: bf16[1,8192], index: 1, kind: input, shape index: {}]
  %s2 = inlined_call_operand.<no memory space> [shape: f32[1,1], index: 2, kind: input, shape index: {}]
  %s3 = inlined_call_operand.vmem [shape: f32[8,1], index: 3, kind: output, shape index: {}]
  %s4 = sld [smem:[#allocation0]]
  $region22: #{discriminator_forward.9} parent=0
    _
  %s6 = ssub.s32 1, %s4
  %s7 = scalar_select 0, %s6, %s4
  %v8 = vstv %s2
  %9 = vst [vmem:[#allocation2] sm:$0x1] %v8
  // Predicated region
  $region2: #{discriminator_forward.9} parent=0 // pred_check
    _
  $region3: #{discriminator_forward.9} parent=0 // pred_check_branch
    %11 = sbr.rel (0) target = $region5
  $region4: #{discriminator_forward.9} parent=0 // pred_region
    _
  $region5: #{discriminator_forward.9} parent=0 // pred_fallthru
    _
  // Predicated region
  $region6: #{discriminator_forward.9} parent=0 // pred_check
    _
  $region7: #{discriminator_forward.9} parent=0 // pred_check_branch
    %13 = sbr.rel (0) target = $region9
  $region8: #{discriminator_forward.9} parent=0 // pred_region
    _
  $region9: #{discriminator_forward.9} parent=0 // pred_fallthru
    _
  // Predicated region
  $region10: #{discriminator_forward.9} parent=0 // pred_check
    _
  $region11: #{discriminator_forward.9} parent=0 // pred_check_branch
    %15 = sbr.rel (0) target = $region13
  $region12: #{discriminator_forward.9} parent=0 // pred_region
    _
  $region13: #{discriminator_forward.9} parent=0 // pred_fallthru
    _
  %v16 = vld [vmem:[%s0] sm:$0xff]
  %v17 = vld [vmem:[%s0 + $0x8] sm:$0xff]
  %v18 = vld [vmem:[%s0 + $0x10] sm:$0xff]
  %v19 = vld [vmem:[%s0 + $0x18] sm:$0xff]
  %v20 = vld [vmem:[%s0 + $0x20] sm:$0xff]
  %v21 = vld [vmem:[%s0 + $0x28] sm:$0xff]
  %v22 = vld [vmem:[%s0 + $0x30] sm:$0xff]
  %v23 = vld [vmem:[%s0 + $0x38] sm:$0xff]
  %v24 = vld [vmem:[%s0 + $0x40] sm:$0xff]
  %v25 = vld [vmem:[%s0 + $0x48] sm:$0xff]
  %v26 = vld [vmem:[%s0 + $0x50] sm:$0xff]
  %v27 = vld [vmem:[%s0 + $0x58] sm:$0xff]
  %v28 = vld [vmem:[%s0 + $0x60] sm:$0xff]
  %v29 = vld [vmem:[%s0 + $0x68] sm:$0xff]
  %v30 = vld [vmem:[%s0 + $0x70] sm:$0xff]
  %v31 = vld [vmem:[%s0 + $0x78] sm:$0xff]
  %v32 = vld [vmem:[%s0 + $0x80] sm:$0xff]
  %v33 = vld [vmem:[%s0 + $0x88] sm:$0xff]
  %v34 = vld [vmem:[%s0 + $0x90] sm:$0xff]
  %v35 = vld [vmem:[%s0 + $0x98] sm:$0xff]
  %v36 = vld [vmem:[%s0 + $0xa0] sm:$0xff]
  %v37 = vld [vmem:[%s0 + $0xa8] sm:$0xff]
  %v38 = vld [vmem:[%s0 + $0xb0] sm:$0xff]
  %v39 = vld [vmem:[%s0 + $0xb8] sm:$0xff]
  %v40 = vld [vmem:[%s0 + $0xc0] sm:$0xff]
  %v41 = vld [vmem:[%s0 + $0xc8] sm:$0xff]
  %v42 = vld [vmem:[%s0 + $0xd0] sm:$0xff]
  %v43 = vld [vmem:[%s0 + $0xd8] sm:$0xff]
  %v44 = vld [vmem:[%s0 + $0xe0] sm:$0xff]
  %v45 = vld [vmem:[%s0 + $0xe8] sm:$0xff]
  %v46 = vld [vmem:[%s0 + $0xf0] sm:$0xff]
  %v47 = vld [vmem:[%s0 + $0xf8] sm:$0xff]
  %v48 = vunpack.c.l.bf16 %v16
  %v49 = vunpack.c.h.bf16 %v16
  %v50 = vunpack.c.l.bf16 %v17
  %v51 = vunpack.c.h.bf16 %v17
  %v52 = vunpack.c.l.bf16 %v18
  %v53 = vunpack.c.h.bf16 %v18
  %v54 = vunpack.c.l.bf16 %v19
  %v55 = vunpack.c.h.bf16 %v19
  %v56 = vunpack.c.l.bf16 %v20
  %v57 = vunpack.c.h.bf16 %v20
  %v58 = vunpack.c.l.bf16 %v21
  %v59 = vunpack.c.h.bf16 %v21
  %v60 = vunpack.c.l.bf16 %v22
  %v61 = vunpack.c.h.bf16 %v22
  %v62 = vunpack.c.l.bf16 %v23
  %v63 = vunpack.c.h.bf16 %v23
  %v64 = vunpack.c.l.bf16 %v24
  %v65 = vunpack.c.h.bf16 %v24
  %v66 = vunpack.c.l.bf16 %v25
  %v67 = vunpack.c.h.bf16 %v25
  %v68 = vunpack.c.l.bf16 %v26
  %v69 = vunpack.c.h.bf16 %v26
  %v70 = vunpack.c.l.bf16 %v27
  %v71 = vunpack.c.h.bf16 %v27
  %v72 = vunpack.c.l.bf16 %v28
  %v73 = vunpack.c.h.bf16 %v28
  %v74 = vunpack.c.l.bf16 %v29
  %v75 = vunpack.c.h.bf16 %v29
  %v76 = vunpack.c.l.bf16 %v30
  %v77 = vunpack.c.h.bf16 %v30
  %v78 = vunpack.c.l.bf16 %v31
  %v79 = vunpack.c.h.bf16 %v31
  %v80 = vunpack.c.l.bf16 %v32
  %v81 = vunpack.c.h.bf16 %v32
  %v82 = vunpack.c.l.bf16 %v33
  %v83 = vunpack.c.h.bf16 %v33
  %v84 = vunpack.c.l.bf16 %v34
  %v85 = vunpack.c.h.bf16 %v34
  %v86 = vunpack.c.l.bf16 %v35
  %v87 = vunpack.c.h.bf16 %v35
  %v88 = vunpack.c.l.bf16 %v36
  %v89 = vunpack.c.h.bf16 %v36
  %v90 = vunpack.c.l.bf16 %v37
  %v91 = vunpack.c.h.bf16 %v37
  %v92 = vunpack.c.l.bf16 %v38
  %v93 = vunpack.c.h.bf16 %v38
  %v94 = vunpack.c.l.bf16 %v39
  %v95 = vunpack.c.h.bf16 %v39
  %v96 = vunpack.c.l.bf16 %v40
  %v97 = vunpack.c.h.bf16 %v40
  %v98 = vunpack.c.l.bf16 %v41
  %v99 = vunpack.c.h.bf16 %v41
  %v100 = vunpack.c.l.bf16 %v42
  %v101 = vunpack.c.h.bf16 %v42
  %v102 = vunpack.c.l.bf16 %v43
  %v103 = vunpack.c.h.bf16 %v43
  %v104 = vunpack.c.l.bf16 %v44
  %v105 = vunpack.c.h.bf16 %v44
  %v106 = vunpack.c.l.bf16 %v45
  %v107 = vunpack.c.h.bf16 %v45
  %v108 = vunpack.c.l.bf16 %v46
  %v109 = vunpack.c.h.bf16 %v46
  %v110 = vunpack.c.l.bf16 %v47
  %v111 = vunpack.c.h.bf16 %v47
  %v112 = vld [vmem:[%s1] sm:$0xff]
  %v113 = vld [vmem:[%s1 + $0x8] sm:$0xff]
  %v114 = vld [vmem:[%s1 + $0x10] sm:$0xff]
  %v115 = vld [vmem:[%s1 + $0x18] sm:$0xff]
  %v116 = vld [vmem:[%s1 + $0x20] sm:$0xff]
  %v117 = vld [vmem:[%s1 + $0x28] sm:$0xff]
  %v118 = vld [vmem:[%s1 + $0x30] sm:$0xff]
  %v119 = vld [vmem:[%s1 + $0x38] sm:$0xff]
  %v120 = vunpack.c.l.bf16 %v112
  %v121 = vunpack.c.h.bf16 %v112
  %v122 = vunpack.c.l.bf16 %v113
  %v123 = vunpack.c.h.bf16 %v113
  %v124 = vunpack.c.l.bf16 %v114
  %v125 = vunpack.c.h.bf16 %v114
  %v126 = vunpack.c.l.bf16 %v115
  %v127 = vunpack.c.h.bf16 %v115
  %v128 = vunpack.c.l.bf16 %v116
  %v129 = vunpack.c.h.bf16 %v116
  %v130 = vunpack.c.l.bf16 %v117
  %v131 = vunpack.c.h.bf16 %v117
  %v132 = vunpack.c.l.bf16 %v118
  %v133 = vunpack.c.h.bf16 %v118
  %v134 = vunpack.c.l.bf16 %v119
  %v135 = vunpack.c.h.bf16 %v119
  %v152 = vperm.slane %v120, 0
  %v153 = vperm.slane %v120, 2
  %v154 = vperm.slane %v120, 4
  %v155 = vperm.slane %v120, 6
  %v156 = vperm.slane %v121, 0
  %v157 = vperm.slane %v121, 2
  %v158 = vperm.slane %v121, 4
  %v159 = vperm.slane %v121, 6
  %v160 = vperm.slane %v122, 0
  %v161 = vperm.slane %v122, 2
  %v162 = vperm.slane %v122, 4
  %v163 = vperm.slane %v122, 6
  %v164 = vperm.slane %v123, 0
  %v165 = vperm.slane %v123, 2
  %v166 = vperm.slane %v123, 4
  %v167 = vperm.slane %v123, 6
  %v168 = vperm.slane %v124, 0
  %v169 = vperm.slane %v124, 2
  %v170 = vperm.slane %v124, 4
  %v171 = vperm.slane %v124, 6
  %v172 = vperm.slane %v125, 0
  %v173 = vperm.slane %v125, 2
  %v174 = vperm.slane %v125, 4
  %v175 = vperm.slane %v125, 6
  %v176 = vperm.slane %v126, 0
  %v177 = vperm.slane %v126, 2
  %v178 = vperm.slane %v126, 4
  %v179 = vperm.slane %v126, 6
  %v180 = vperm.slane %v127, 0
  %v181 = vperm.slane %v127, 2
  %v182 = vperm.slane %v127, 4
  %v183 = vperm.slane %v127, 6
  %v184 = vperm.slane %v128, 0
  %v185 = vperm.slane %v128, 2
  %v186 = vperm.slane %v128, 4
  %v187 = vperm.slane %v128, 6
  %v188 = vperm.slane %v129, 0
  %v189 = vperm.slane %v129, 2
  %v190 = vperm.slane %v129, 4
  %v191 = vperm.slane %v129, 6
  %v192 = vperm.slane %v130, 0
  %v193 = vperm.slane %v130, 2
  %v194 = vperm.slane %v130, 4
  %v195 = vperm.slane %v130, 6
  %v196 = vperm.slane %v131, 0
  %v197 = vperm.slane %v131, 2
  %v198 = vperm.slane %v131, 4
  %v199 = vperm.slane %v131, 6
  %v200 = vperm.slane %v132, 0
  %v201 = vperm.slane %v132, 2
  %v202 = vperm.slane %v132, 4
  %v203 = vperm.slane %v132, 6
  %v204 = vperm.slane %v133, 0
  %v205 = vperm.slane %v133, 2
  %v206 = vperm.slane %v133, 4
  %v207 = vperm.slane %v133, 6
  %v208 = vperm.slane %v134, 0
  %v209 = vperm.slane %v134, 2
  %v210 = vperm.slane %v134, 4
  %v211 = vperm.slane %v134, 6
  %v212 = vperm.slane %v135, 0
  %v213 = vperm.slane %v135, 2
  %v214 = vperm.slane %v135, 4
  %v215 = vperm.slane %v135, 6
  %v280 = vperm.slane %v152, 0
  %v281 = vperm.slane %v153, 0
  %v282 = vperm.slane %v154, 0
  %v283 = vperm.slane %v155, 0
  %v284 = vperm.slane %v156, 0
  %v285 = vperm.slane %v157, 0
  %v286 = vperm.slane %v158, 0
  %v287 = vperm.slane %v159, 0
  %v288 = vperm.slane %v160, 0
  %v289 = vperm.slane %v161, 0
  %v290 = vperm.slane %v162, 0
  %v291 = vperm.slane %v163, 0
  %v292 = vperm.slane %v164, 0
  %v293 = vperm.slane %v165, 0
  %v294 = vperm.slane %v166, 0
  %v295 = vperm.slane %v167, 0
  %v296 = vperm.slane %v168, 0
  %v297 = vperm.slane %v169, 0
  %v298 = vperm.slane %v170, 0
  %v299 = vperm.slane %v171, 0
  %v300 = vperm.slane %v172, 0
  %v301 = vperm.slane %v173, 0
  %v302 = vperm.slane %v174, 0
  %v303 = vperm.slane %v175, 0
  %v304 = vperm.slane %v176, 0
  %v305 = vperm.slane %v177, 0
  %v306 = vperm.slane %v178, 0
  %v307 = vperm.slane %v179, 0
  %v308 = vperm.slane %v180, 0
  %v309 = vperm.slane %v181, 0
  %v310 = vperm.slane %v182, 0
  %v311 = vperm.slane %v183, 0
  %v312 = vperm.slane %v184, 0
  %v313 = vperm.slane %v185, 0
  %v314 = vperm.slane %v186, 0
  %v315 = vperm.slane %v187, 0
  %v316 = vperm.slane %v188, 0
  %v317 = vperm.slane %v189, 0
  %v318 = vperm.slane %v190, 0
  %v319 = vperm.slane %v191, 0
  %v320 = vperm.slane %v192, 0
  %v321 = vperm.slane %v193, 0
  %v322 = vperm.slane %v194, 0
  %v323 = vperm.slane %v195, 0
  %v324 = vperm.slane %v196, 0
  %v325 = vperm.slane %v197, 0
  %v326 = vperm.slane %v198, 0
  %v327 = vperm.slane %v199, 0
  %v328 = vperm.slane %v200, 0
  %v329 = vperm.slane %v201, 0
  %v330 = vperm.slane %v202, 0
  %v331 = vperm.slane %v203, 0
  %v332 = vperm.slane %v204, 0
  %v333 = vperm.slane %v205, 0
  %v334 = vperm.slane %v206, 0
  %v335 = vperm.slane %v207, 0
  %v336 = vperm.slane %v208, 0
  %v337 = vperm.slane %v209, 0
  %v338 = vperm.slane %v210, 0
  %v339 = vperm.slane %v211, 0
  %v340 = vperm.slane %v212, 0
  %v341 = vperm.slane %v213, 0
  %v342 = vperm.slane %v214, 0
  %v343 = vperm.slane %v215, 0
  %v344 = vmul.f32 %v48, %v280
  %v345 = vmul.f32 %v49, %v281
  %v346 = vmul.f32 %v50, %v282
  %v347 = vmul.f32 %v51, %v283
  %v348 = vmul.f32 %v52, %v284
  %v349 = vmul.f32 %v53, %v285
  %v350 = vmul.f32 %v54, %v286
  %v351 = vmul.f32 %v55, %v287
  %v352 = vmul.f32 %v56, %v288
  %v353 = vmul.f32 %v57, %v289
  %v354 = vmul.f32 %v58, %v290
  %v355 = vmul.f32 %v59, %v291
  %v356 = vmul.f32 %v60, %v292
  %v357 = vmul.f32 %v61, %v293
  %v358 = vmul.f32 %v62, %v294
  %v359 = vmul.f32 %v63, %v295
  %v360 = vmul.f32 %v64, %v296
  %v361 = vmul.f32 %v65, %v297
  %v362 = vmul.f32 %v66, %v298
  %v363 = vmul.f32 %v67, %v299
  %v364 = vmul.f32 %v68, %v300
  %v365 = vmul.f32 %v69, %v301
  %v366 = vmul.f32 %v70, %v302
  %v367 = vmul.f32 %v71, %v303
  %v368 = vmul.f32 %v72, %v304
  %v369 = vmul.f32 %v73, %v305
  %v370 = vmul.f32 %v74, %v306
  %v371 = vmul.f32 %v75, %v307
  %v372 = vmul.f32 %v76, %v308
  %v373 = vmul.f32 %v77, %v309
  %v374 = vmul.f32 %v78, %v310
  %v375 = vmul.f32 %v79, %v311
  %v376 = vmul.f32 %v80, %v312
  %v377 = vmul.f32 %v81, %v313
  %v378 = vmul.f32 %v82, %v314
  %v379 = vmul.f32 %v83, %v315
  %v380 = vmul.f32 %v84, %v316
  %v381 = vmul.f32 %v85, %v317
  %v382 = vmul.f32 %v86, %v318
  %v383 = vmul.f32 %v87, %v319
  %v384 = vmul.f32 %v88, %v320
  %v385 = vmul.f32 %v89, %v321
  %v386 = vmul.f32 %v90, %v322
  %v387 = vmul.f32 %v91, %v323
  %v388 = vmul.f32 %v92, %v324
  %v389 = vmul.f32 %v93, %v325
  %v390 = vmul.f32 %v94, %v326
  %v391 = vmul.f32 %v95, %v327
  %v392 = vmul.f32 %v96, %v328
  %v393 = vmul.f32 %v97, %v329
  %v394 = vmul.f32 %v98, %v330
  %v395 = vmul.f32 %v99, %v331
  %v396 = vmul.f32 %v100, %v332
  %v397 = vmul.f32 %v101, %v333
  %v398 = vmul.f32 %v102, %v334
  %v399 = vmul.f32 %v103, %v335
  %v400 = vmul.f32 %v104, %v336
  %v401 = vmul.f32 %v105, %v337
  %v402 = vmul.f32 %v106, %v338
  %v403 = vmul.f32 %v107, %v339
  %v404 = vmul.f32 %v108, %v340
  %v405 = vmul.f32 %v109, %v341
  %v406 = vmul.f32 %v110, %v342
  %v407 = vmul.f32 %v111, %v343
  %v408 = vadd.f32 %v344, %v345
  %v409 = vadd.f32 %v408, %v346
  %v410 = vadd.f32 %v409, %v347
  %v411 = vadd.f32 %v410, %v348
  %v412 = vadd.f32 %v411, %v349
  %v413 = vadd.f32 %v412, %v350
  %v414 = vadd.f32 %v413, %v351
  %v415 = vadd.f32 %v414, %v352
  %v416 = vadd.f32 %v415, %v353
  %v417 = vadd.f32 %v416, %v354
  %v418 = vadd.f32 %v417, %v355
  %v419 = vadd.f32 %v418, %v356
  %v420 = vadd.f32 %v419, %v357
  %v421 = vadd.f32 %v420, %v358
  %v422 = vadd.f32 %v421, %v359
  %v423 = vadd.f32 %v422, %v360
  %v424 = vadd.f32 %v423, %v361
  %v425 = vadd.f32 %v424, %v362
  %v426 = vadd.f32 %v425, %v363
  %v427 = vadd.f32 %v426, %v364
  %v428 = vadd.f32 %v427, %v365
  %v429 = vadd.f32 %v428, %v366
  %v430 = vadd.f32 %v429, %v367
  %v431 = vadd.f32 %v430, %v368
  %v432 = vadd.f32 %v431, %v369
  %v433 = vadd.f32 %v432, %v370
  %v434 = vadd.f32 %v433, %v371
  %v435 = vadd.f32 %v434, %v372
  %v436 = vadd.f32 %v435, %v373
  %v437 = vadd.f32 %v436, %v374
  %v438 = vadd.f32 %v437, %v375
  %v439 = vadd.f32 %v438, %v376
  %v440 = vadd.f32 %v439, %v377
  %v441 = vadd.f32 %v440, %v378
  %v442 = vadd.f32 %v441, %v379
  %v443 = vadd.f32 %v442, %v380
  %v444 = vadd.f32 %v443, %v381
  %v445 = vadd.f32 %v444, %v382
  %v446 = vadd.f32 %v445, %v383
  %v447 = vadd.f32 %v446, %v384
  %v448 = vadd.f32 %v447, %v385
  %v449 = vadd.f32 %v448, %v386
  %v450 = vadd.f32 %v449, %v387
  %v451 = vadd.f32 %v450, %v388
  %v452 = vadd.f32 %v451, %v389
  %v453 = vadd.f32 %v452, %v390
  %v454 = vadd.f32 %v453, %v391
  %v455 = vadd.f32 %v454, %v392
  %v456 = vadd.f32 %v455, %v393
  %v457 = vadd.f32 %v456, %v394
  %v458 = vadd.f32 %v457, %v395
  %v459 = vadd.f32 %v458, %v396
  %v460 = vadd.f32 %v459, %v397
  %v461 = vadd.f32 %v460, %v398
  %v462 = vadd.f32 %v461, %v399
  %v463 = vadd.f32 %v462, %v400
  %v464 = vadd.f32 %v463, %v401
  %v465 = vadd.f32 %v464, %v402
  %v466 = vadd.f32 %v465, %v403
  %v467 = vadd.f32 %v466, %v404
  %v468 = vadd.f32 %v467, %v405
  %v469 = vadd.f32 %v468, %v406
  %v470 = vadd.f32 %v469, %v407
  %471 = vadd.xlane.f32.xlu0 %v470
  %v472 = vpop.xlane.xlu0 %471
  %v473 = vld [vmem:[#allocation2] sm:$0x1]
  %v475 = vperm.slane %v473, 0
  %v477 = vadd.f32 %v472, %v475
  %vm478 = vcmask 7168
  %479 = vst.msk [vmem:[%s3] sm:$0xff] %vm478, %v477
  // Predicated region
  $region14: #{discriminator_forward.9} parent=0 // pred_check
    _
  $region15: #{discriminator_forward.9} parent=0 // pred_check_branch
    %481 = sbr.rel (0) target = $region17
  $region16: #{discriminator_forward.9} parent=0 // pred_region
    _
  $region17: #{discriminator_forward.9} parent=0 // pred_fallthru
    _
  // Predicated region
  $region18: #{discriminator_forward.9} parent=0 // pred_check
    _
  $region19: #{discriminator_forward.9} parent=0 // pred_check_branch
    %483 = sbr.rel (0) target = $region21
  $region20: #{discriminator_forward.9} parent=0 // pred_region
    _
  $region21: #{discriminator_forward.9} parent=0 // pred_fallthru
    _

// kernel: discriminator_forward.8
$region0: #{discriminator_forward.8}
  #allocation0 [shape = 'u32[]', space=smem, size = 0x4, offset = 0x4, fixed_abs, tag = 'smem constant byte address 0x4 - core index']
  #allocation1 [shape = 'u32[72,128]{1,0:T(1,128)}', space=vmem, size = 0x9000, scoped, tag = 'internal scratch']
  %s0 = inlined_call_operand.vmem [shape: bf16[8,4096], index: 0, kind: input, shape index: {}]
  %s1 = inlined_call_operand.vmem [shape: bf16[4096,512], index: 1, kind: input, shape index: {}]
  %s2 = inlined_call_operand.vmem [shape: f32[1,512], index: 2, kind: input, shape index: {}]
  %s3 = inlined_call_operand.vmem [shape: f32[1,512], index: 3, kind: input, shape index: {}]
  %s4 = inlined_call_operand.vmem [shape: f32[1,512], index: 4, kind: input, shape index: {}]
  %s5 = inlined_call_operand.vmem [shape: f32[8,512], index: 5, kind: output, shape index: {}]
  %s6 = sld [smem:[#allocation0]]
  $region30: #{discriminator_forward.8} parent=0
    _
  %s8 = ssub.s32 1, %s6
  %s9 = scalar_select 0, %s8, %s6
  // Predicated region
  $region2: #{discriminator_forward.8} parent=0 // pred_check
    _
  $region3: #{discriminator_forward.8} parent=0 // pred_check_branch
    %11 = sbr.rel (0) target = $region5
  $region4: #{discriminator_forward.8} parent=0 // pred_region
    _
  $region5: #{discriminator_forward.8} parent=0 // pred_fallthru
    _
  // Predicated region
  $region6: #{discriminator_forward.8} parent=0 // pred_check
    _
  $region7: #{discriminator_forward.8} parent=0 // pred_check_branch
    %13 = sbr.rel (0) target = $region9
  $region8: #{discriminator_forward.8} parent=0 // pred_region
    _
  $region9: #{discriminator_forward.8} parent=0 // pred_fallthru
    _
  // Predicated region
  $region10: #{discriminator_forward.8} parent=0 // pred_check
    _
  $region11: #{discriminator_forward.8} parent=0 // pred_check_branch
    %15 = sbr.rel (0) target = $region13
  $region12: #{discriminator_forward.8} parent=0 // pred_region
    _
  $region13: #{discriminator_forward.8} parent=0 // pred_fallthru
    _
  // Predicated region
  $region14: #{discriminator_forward.8} parent=0 // pred_check
    _
  $region15: #{discriminator_forward.8} parent=0 // pred_check_branch
    %17 = sbr.rel (0) target = $region17
  $region16: #{discriminator_forward.8} parent=0 // pred_region
    _
  $region17: #{discriminator_forward.8} parent=0 // pred_fallthru
    _
  // Predicated region
  $region18: #{discriminator_forward.8} parent=0 // pred_check
    _
  $region19: #{discriminator_forward.8} parent=0 // pred_check_branch
    %19 = sbr.rel (0) target = $region21
  $region20: #{discriminator_forward.8} parent=0 // pred_region
    _
  $region21: #{discriminator_forward.8} parent=0 // pred_fallthru
    _
  %v20 = vld [vmem:[%s0] sm:$0xff]
  %v21 = vld [vmem:[%s0 + $0x8] sm:$0xff]
  %v22 = vld [vmem:[%s0 + $0x10] sm:$0xff]
  %v23 = vld [vmem:[%s0 + $0x18] sm:$0xff]
  %v24 = vld [vmem:[%s0 + $0x20] sm:$0xff]
  %v25 = vld [vmem:[%s0 + $0x28] sm:$0xff]
  %v26 = vld [vmem:[%s0 + $0x30] sm:$0xff]
  %v27 = vld [vmem:[%s0 + $0x38] sm:$0xff]
  %v28 = vld [vmem:[%s0 + $0x40] sm:$0xff]
  %v29 = vld [vmem:[%s0 + $0x48] sm:$0xff]
  %v30 = vld [vmem:[%s0 + $0x50] sm:$0xff]
  %v31 = vld [vmem:[%s0 + $0x58] sm:$0xff]
  %v32 = vld [vmem:[%s0 + $0x60] sm:$0xff]
  %v33 = vld [vmem:[%s0 + $0x68] sm:$0xff]
  %v34 = vld [vmem:[%s0 + $0x70] sm:$0xff]
  %v35 = vld [vmem:[%s0 + $0x78] sm:$0xff]
  %v36 = vld [vmem:[%s1] sm:$0xff]
  %v37 = vld [vmem:[%s1 + $0x8] sm:$0xff]
  %v38 = vld [vmem:[%s1 + $0x10] sm:$0xff]
  %v39 = vld [vmem:[%s1 + $0x18] sm:$0xff]
  %v40 = vld [vmem:[%s1 + $0x20] sm:$0xff]
  %v41 = vld [vmem:[%s1 + $0x28] sm:$0xff]
  %v42 = vld [vmem:[%s1 + $0x30] sm:$0xff]
  %v43 = vld [vmem:[%s1 + $0x38] sm:$0xff]
  %v44 = vld [vmem:[%s1 + $0x40] sm:$0xff]
  %v45 = vld [vmem:[%s1 + $0x48] sm:$0xff]
  %v46 = vld [vmem:[%s1 + $0x50] sm:$0xff]
  %v47 = vld [vmem:[%s1 + $0x58] sm:$0xff]
  %v48 = vld [vmem:[%s1 + $0x60] sm:$0xff]
  %v49 = vld [vmem:[%s1 + $0x68] sm:$0xff]
  %v50 = vld [vmem:[%s1 + $0x70] sm:$0xff]
  %v51 = vld [vmem:[%s1 + $0x78] sm:$0xff]
  %v52 = vld [vmem:[%s1 + $0x80] sm:$0xff]
  %v53 = vld [vmem:[%s1 + $0x88] sm:$0xff]
  %v54 = vld [vmem:[%s1 + $0x90] sm:$0xff]
  %v55 = vld [vmem:[%s1 + $0x98] sm:$0xff]
  %v56 = vld [vmem:[%s1 + $0xa0] sm:$0xff]
  %v57 = vld [vmem:[%s1 + $0xa8] sm:$0xff]
  %v58 = vld [vmem:[%s1 + $0xb0] sm:$0xff]
  %v59 = vld [vmem:[%s1 + $0xb8] sm:$0xff]
  %v60 = vld [vmem:[%s1 + $0xc0] sm:$0xff]
  %v61 = vld [vmem:[%s1 + $0xc8] sm:$0xff]
  %v62 = vld [vmem:[%s1 + $0xd0] sm:$0xff]
  %v63 = vld [vmem:[%s1 + $0xd8] sm:$0xff]
  %v64 = vld [vmem:[%s1 + $0xe0] sm:$0xff]
  %v65 = vld [vmem:[%s1 + $0xe8] sm:$0xff]
  %v66 = vld [vmem:[%s1 + $0xf0] sm:$0xff]
  %v67 = vld [vmem:[%s1 + $0xf8] sm:$0xff]
  %v68 = vld [vmem:[%s1 + $0x100] sm:$0xff]
  %v69 = vld [vmem:[%s1 + $0x108] sm:$0xff]
  %v70 = vld [vmem:[%s1 + $0x110] sm:$0xff]
  %v71 = vld [vmem:[%s1 + $0x118] sm:$0xff]
  %v72 = vld [vmem:[%s1 + $0x120] sm:$0xff]
  %v73 = vld [vmem:[%s1 + $0x128] sm:$0xff]
  %v74 = vld [vmem:[%s1 + $0x130] sm:$0xff]
  %v75 = vld [vmem:[%s1 + $0x138] sm:$0xff]
  %v76 = vld [vmem:[%s1 + $0x140] sm:$0xff]
  %v77 = vld [vmem:[%s1 + $0x148] sm:$0xff]
  %v78 = vld [vmem:[%s1 + $0x150] sm:$0xff]
  %v79 = vld [vmem:[%s1 + $0x158] sm:$0xff]
  %v80 = vld [vmem:[%s1 + $0x160] sm:$0xff]
  %v81 = vld [vmem:[%s1 + $0x168] sm:$0xff]
  %v82 = vld [vmem:[%s1 + $0x170] sm:$0xff]
  %v83 = vld [vmem:[%s1 + $0x178] sm:$0xff]
  %v84 = vld [vmem:[%s1 + $0x180] sm:$0xff]
  %v85 = vld [vmem:[%s1 + $0x188] sm:$0xff]
  %v86 = vld [vmem:[%s1 + $0x190] sm:$0xff]
  %v87 = vld [vmem:[%s1 + $0x198] sm:$0xff]
  %v88 = vld [vmem:[%s1 + $0x1a0] sm:$0xff]
  %v89 = vld [vmem:[%s1 + $0x1a8] sm:$0xff]
  %v90 = vld [vmem:[%s1 + $0x1b0] sm:$0xff]
  %v91 = vld [vmem:[%s1 + $0x1b8] sm:$0xff]
  %v92 = vld [vmem:[%s1 + $0x1c0] sm:$0xff]
  %v93 = vld [vmem:[%s1 + $0x1c8] sm:$0xff]
  %v94 = vld [vmem:[%s1 + $0x1d0] sm:$0xff]
  %v95 = vld [vmem:[%s1 + $0x1d8] sm:$0xff]
  %v96 = vld [vmem:[%s1 + $0x1e0] sm:$0xff]
  %v97 = vld [vmem:[%s1 + $0x1e8] sm:$0xff]
  %v98 = vld [vmem:[%s1 + $0x1f0] sm:$0xff]
  %v99 = vld [vmem:[%s1 + $0x1f8] sm:$0xff]
  %v100 = vld [vmem:[%s1 + $0x200] sm:$0xff]
  %v101 = vld [vmem:[%s1 + $0x208] sm:$0xff]
  %v102 = vld [vmem:[%s1 + $0x210] sm:$0xff]
  %v103 = vld [vmem:[%s1 + $0x218] sm:$0xff]
  %v104 = vld [vmem:[%s1 + $0x220] sm:$0xff]
  %v105 = vld [vmem:[%s1 + $0x228] sm:$0xff]
  %v106 = vld [vmem:[%s1 + $0x230] sm:$0xff]
  %v107 = vld [vmem:[%s1 + $0x238] sm:$0xff]
  %v108 = vld [vmem:[%s1 + $0x240] sm:$0xff]
  %v109 = vld [vmem:[%s1 + $0x248] sm:$0xff]
  %v110 = vld [vmem:[%s1 + $0x250] sm:$0xff]
  %v111 = vld [vmem:[%s1 + $0x258] sm:$0xff]
  %v112 = vld [vmem:[%s1 + $0x260] sm:$0xff]
  %v113 = vld [vmem:[%s1 + $0x268] sm:$0xff]
  %v114 = vld [vmem:[%s1 + $0x270] sm:$0xff]
  %v115 = vld [vmem:[%s1 + $0x278] sm:$0xff]
  %v116 = vld [vmem:[%s1 + $0x280] sm:$0xff]
  %v117 = vld [vmem:[%s1 + $0x288] sm:$0xff]
  %v118 = vld [vmem:[%s1 + $0x290] sm:$0xff]
  %v119 = vld [vmem:[%s1 + $0x298] sm:$0xff]
  %v120 = vld [vmem:[%s1 + $0x2a0] sm:$0xff]
  %v121 = vld [vmem:[%s1 + $0x2a8] sm:$0xff]
  %v122 = vld [vmem:[%s1 + $0x2b0] sm:$0xff]
  %v123 = vld [vmem:[%s1 + $0x2b8] sm:$0xff]
  %v124 = vld [vmem:[%s1 + $0x2c0] sm:$0xff]
  %v125 = vld [vmem:[%s1 + $0x2c8] sm:$0xff]
  %v126 = vld [vmem:[%s1 + $0x2d0] sm:$0xff]
  %v127 = vld [vmem:[%s1 + $0x2d8] sm:$0xff]
  %v128 = vld [vmem:[%s1 + $0x2e0] sm:$0xff]
  %v129 = vld [vmem:[%s1 + $0x2e8] sm:$0xff]
  %v130 = vld [vmem:[%s1 + $0x2f0] sm:$0xff]
  %v131 = vld [vmem:[%s1 + $0x2f8] sm:$0xff]
  %v132 = vld [vmem:[%s1 + $0x300] sm:$0xff]
  %v133 = vld [vmem:[%s1 + $0x308] sm:$0xff]
  %v134 = vld [vmem:[%s1 + $0x310] sm:$0xff]
  %v135 = vld [vmem:[%s1 + $0x318] sm:$0xff]
  %v136 = vld [vmem:[%s1 + $0x320] sm:$0xff]
  %v137 = vld [vmem:[%s1 + $0x328] sm:$0xff]
  %v138 = vld [vmem:[%s1 + $0x330] sm:$0xff]
  %v139 = vld [vmem:[%s1 + $0x338] sm:$0xff]
  %v140 = vld [vmem:[%s1 + $0x340] sm:$0xff]
  %v141 = vld [vmem:[%s1 + $0x348] sm:$0xff]
  %v142 = vld [vmem:[%s1 + $0x350] sm:$0xff]
  %v143 = vld [vmem:[%s1 + $0x358] sm:$0xff]
  %v144 = vld [vmem:[%s1 + $0x360] sm:$0xff]
  %v145 = vld [vmem:[%s1 + $0x368] sm:$0xff]
  %v146 = vld [vmem:[%s1 + $0x370] sm:$0xff]
  %v147 = vld [vmem:[%s1 + $0x378] sm:$0xff]
  %v148 = vld [vmem:[%s1 + $0x380] sm:$0xff]
  %v149 = vld [vmem:[%s1 + $0x388] sm:$0xff]
  %v150 = vld [vmem:[%s1 + $0x390] sm:$0xff]
  %v151 = vld [vmem:[%s1 + $0x398] sm:$0xff]
  %v152 = vld [vmem:[%s1 + $0x3a0] sm:$0xff]
  %v153 = vld [vmem:[%s1 + $0x3a8] sm:$0xff]
  %v154 = vld [vmem:[%s1 + $0x3b0] sm:$0xff]
  %v155 = vld [vmem:[%s1 + $0x3b8] sm:$0xff]
  %v156 = vld [vmem:[%s1 + $0x3c0] sm:$0xff]
  %v157 = vld [vmem:[%s1 + $0x3c8] sm:$0xff]
  %v158 = vld [vmem:[%s1 + $0x3d0] sm:$0xff]
  %v159 = vld [vmem:[%s1 + $0x3d8] sm:$0xff]
  %v160 = vld [vmem:[%s1 + $0x3e0] sm:$0xff]
  %v161 = vld [vmem:[%s1 + $0x3e8] sm:$0xff]
  %v162 = vld [vmem:[%s1 + $0x3f0] sm:$0xff]
  %v163 = vld [vmem:[%s1 + $0x3f8] sm:$0xff]
  %v164 = vld [vmem:[%s1 + $0x400] sm:$0xff]
  %v165 = vld [vmem:[%s1 + $0x408] sm:$0xff]
  %v166 = vld [vmem:[%s1 + $0x410] sm:$0xff]
  %v167 = vld [vmem:[%s1 + $0x418] sm:$0xff]
  %v168 = vld [vmem:[%s1 + $0x420] sm:$0xff]
  %v169 = vld [vmem:[%s1 + $0x428] sm:$0xff]
  %v170 = vld [vmem:[%s1 + $0x430] sm:$0xff]
  %v171 = vld [vmem:[%s1 + $0x438] sm:$0xff]
  %v172 = vld [vmem:[%s1 + $0x440] sm:$0xff]
  %v173 = vld [vmem:[%s1 + $0x448] sm:$0xff]
  %v174 = vld [vmem:[%s1 + $0x450] sm:$0xff]
  %v175 = vld [vmem:[%s1 + $0x458] sm:$0xff]
  %v176 = vld [vmem:[%s1 + $0x460] sm:$0xff]
  %v177 = vld [vmem:[%s1 + $0x468] sm:$0xff]
  %v178 = vld [vmem:[%s1 + $0x470] sm:$0xff]
  %v179 = vld [vmem:[%s1 + $0x478] sm:$0xff]
  %v180 = vld [vmem:[%s1 + $0x480] sm:$0xff]
  %v181 = vld [vmem:[%s1 + $0x488] sm:$0xff]
  %v182 = vld [vmem:[%s1 + $0x490] sm:$0xff]
  %v183 = vld [vmem:[%s1 + $0x498] sm:$0xff]
  %v184 = vld [vmem:[%s1 + $0x4a0] sm:$0xff]
  %v185 = vld [vmem:[%s1 + $0x4a8] sm:$0xff]
  %v186 = vld [vmem:[%s1 + $0x4b0] sm:$0xff]
  %v187 = vld [vmem:[%s1 + $0x4b8] sm:$0xff]
  %v188 = vld [vmem:[%s1 + $0x4c0] sm:$0xff]
  %v189 = vld [vmem:[%s1 + $0x4c8] sm:$0xff]
  %v190 = vld [vmem:[%s1 + $0x4d0] sm:$0xff]
  %v191 = vld [vmem:[%s1 + $0x4d8] sm:$0xff]
  %v192 = vld [vmem:[%s1 + $0x4e0] sm:$0xff]
  %v193 = vld [vmem:[%s1 + $0x4e8] sm:$0xff]
  %v194 = vld [vmem:[%s1 + $0x4f0] sm:$0xff]
  %v195 = vld [vmem:[%s1 + $0x4f8] sm:$0xff]
  %v196 = vld [vmem:[%s1 + $0x500] sm:$0xff]
  %v197 = vld [vmem:[%s1 + $0x508] sm:$0xff]
  %v198 = vld [vmem:[%s1 + $0x510] sm:$0xff]
  %v199 = vld [vmem:[%s1 + $0x518] sm:$0xff]
  %v200 = vld [vmem:[%s1 + $0x520] sm:$0xff]
  %v201 = vld [vmem:[%s1 + $0x528] sm:$0xff]
  %v202 = vld [vmem:[%s1 + $0x530] sm:$0xff]
  %v203 = vld [vmem:[%s1 + $0x538] sm:$0xff]
  %v204 = vld [vmem:[%s1 + $0x540] sm:$0xff]
  %v205 = vld [vmem:[%s1 + $0x548] sm:$0xff]
  %v206 = vld [vmem:[%s1 + $0x550] sm:$0xff]
  %v207 = vld [vmem:[%s1 + $0x558] sm:$0xff]
  %v208 = vld [vmem:[%s1 + $0x560] sm:$0xff]
  %v209 = vld [vmem:[%s1 + $0x568] sm:$0xff]
  %v210 = vld [vmem:[%s1 + $0x570] sm:$0xff]
  %v211 = vld [vmem:[%s1 + $0x578] sm:$0xff]
  %v212 = vld [vmem:[%s1 + $0x580] sm:$0xff]
  %v213 = vld [vmem:[%s1 + $0x588] sm:$0xff]
  %v214 = vld [vmem:[%s1 + $0x590] sm:$0xff]
  %v215 = vld [vmem:[%s1 + $0x598] sm:$0xff]
  %v216 = vld [vmem:[%s1 + $0x5a0] sm:$0xff]
  %v217 = vld [vmem:[%s1 + $0x5a8] sm:$0xff]
  %v218 = vld [vmem:[%s1 + $0x5b0] sm:$0xff]
  %v219 = vld [vmem:[%s1 + $0x5b8] sm:$0xff]
  %v220 = vld [vmem:[%s1 + $0x5c0] sm:$0xff]
  %v221 = vld [vmem:[%s1 + $0x5c8] sm:$0xff]
  %v222 = vld [vmem:[%s1 + $0x5d0] sm:$0xff]
  %v223 = vld [vmem:[%s1 + $0x5d8] sm:$0xff]
  %v224 = vld [vmem:[%s1 + $0x5e0] sm:$0xff]
  %v225 = vld [vmem:[%s1 + $0x5e8] sm:$0xff]
  %v226 = vld [vmem:[%s1 + $0x5f0] sm:$0xff]
  %v227 = vld [vmem:[%s1 + $0x5f8] sm:$0xff]
  %v228 = vld [vmem:[%s1 + $0x600] sm:$0xff]
  %v229 = vld [vmem:[%s1 + $0x608] sm:$0xff]
  %v230 = vld [vmem:[%s1 + $0x610] sm:$0xff]
  %v231 = vld [vmem:[%s1 + $0x618] sm:$0xff]
  %v232 = vld [vmem:[%s1 + $0x620] sm:$0xff]
  %v233 = vld [vmem:[%s1 + $0x628] sm:$0xff]
  %v234 = vld [vmem:[%s1 + $0x630] sm:$0xff]
  %v235 = vld [vmem:[%s1 + $0x638] sm:$0xff]
  %v236 = vld [vmem:[%s1 + $0x640] sm:$0xff]
  %v237 = vld [vmem:[%s1 + $0x648] sm:$0xff]
  %v238 = vld [vmem:[%s1 + $0x650] sm:$0xff]
  %v239 = vld [vmem:[%s1 + $0x658] sm:$0xff]
  %v240 = vld [vmem:[%s1 + $0x660] sm:$0xff]
  %v241 = vld [vmem:[%s1 + $0x668] sm:$0xff]
  %v242 = vld [vmem:[%s1 + $0x670] sm:$0xff]
  %v243 = vld [vmem:[%s1 + $0x678] sm:$0xff]
  %v244 = vld [vmem:[%s1 + $0x680] sm:$0xff]
  %v245 = vld [vmem:[%s1 + $0x688] sm:$0xff]
  %v246 = vld [vmem:[%s1 + $0x690] sm:$0xff]
  %v247 = vld [vmem:[%s1 + $0x698] sm:$0xff]
  %v248 = vld [vmem:[%s1 + $0x6a0] sm:$0xff]
  %v249 = vld [vmem:[%s1 + $0x6a8] sm:$0xff]
  %v250 = vld [vmem:[%s1 + $0x6b0] sm:$0xff]
  %v251 = vld [vmem:[%s1 + $0x6b8] sm:$0xff]
  %v252 = vld [vmem:[%s1 + $0x6c0] sm:$0xff]
  %v253 = vld [vmem:[%s1 + $0x6c8] sm:$0xff]
  %v254 = vld [vmem:[%s1 + $0x6d0] sm:$0xff]
  %v255 = vld [vmem:[%s1 + $0x6d8] sm:$0xff]
  %v256 = vld [vmem:[%s1 + $0x6e0] sm:$0xff]
  %v257 = vld [vmem:[%s1 + $0x6e8] sm:$0xff]
  %v258 = vld [vmem:[%s1 + $0x6f0] sm:$0xff]
  %v259 = vld [vmem:[%s1 + $0x6f8] sm:$0xff]
  %v260 = vld [vmem:[%s1 + $0x700] sm:$0xff]
  %v261 = vld [vmem:[%s1 + $0x708] sm:$0xff]
  %v262 = vld [vmem:[%s1 + $0x710] sm:$0xff]
  %v263 = vld [vmem:[%s1 + $0x718] sm:$0xff]
  %v264 = vld [vmem:[%s1 + $0x720] sm:$0xff]
  %v265 = vld [vmem:[%s1 + $0x728] sm:$0xff]
  %v266 = vld [vmem:[%s1 + $0x730] sm:$0xff]
  %v267 = vld [vmem:[%s1 + $0x738] sm:$0xff]
  %v268 = vld [vmem:[%s1 + $0x740] sm:$0xff]
  %v269 = vld [vmem:[%s1 + $0x748] sm:$0xff]
  %v270 = vld [vmem:[%s1 + $0x750] sm:$0xff]
  %v271 = vld [vmem:[%s1 + $0x758] sm:$0xff]
  %v272 = vld [vmem:[%s1 + $0x760] sm:$0xff]
  %v273 = vld [vmem:[%s1 + $0x768] sm:$0xff]
  %v274 = vld [vmem:[%s1 + $0x770] sm:$0xff]
  %v275 = vld [vmem:[%s1 + $0x778] sm:$0xff]
  %v276 = vld [vmem:[%s1 + $0x780] sm:$0xff]
  %v277 = vld [vmem:[%s1 + $0x788] sm:$0xff]
  %v278 = vld [vmem:[%s1 + $0x790] sm:$0xff]
  %v279 = vld [vmem:[%s1 + $0x798] sm:$0xff]
  %v280 = vld [vmem:[%s1 + $0x7a0] sm:$0xff]
  %v281 = vld [vmem:[%s1 + $0x7a8] sm:$0xff]
  %v282 = vld [vmem:[%s1 + $0x7b0] sm:$0xff]
  %v283 = vld [vmem:[%s1 + $0x7b8] sm:$0xff]
  %v284 = vld [vmem:[%s1 + $0x7c0] sm:$0xff]
  %v285 = vld [vmem:[%s1 + $0x7c8] sm:$0xff]
  %v286 = vld [vmem:[%s1 + $0x7d0] sm:$0xff]
  %v287 = vld [vmem:[%s1 + $0x7d8] sm:$0xff]
  %v288 = vld [vmem:[%s1 + $0x7e0] sm:$0xff]
  %v289 = vld [vmem:[%s1 + $0x7e8] sm:$0xff]
  %v290 = vld [vmem:[%s1 + $0x7f0] sm:$0xff]
  %v291 = vld [vmem:[%s1 + $0x7f8] sm:$0xff]
  %v292 = vld [vmem:[%s1 + $0x800] sm:$0xff]
  %v293 = vld [vmem:[%s1 + $0x808] sm:$0xff]
  %v294 = vld [vmem:[%s1 + $0x810] sm:$0xff]
  %v295 = vld [vmem:[%s1 + $0x818] sm:$0xff]
  %v296 = vld [vmem:[%s1 + $0x820] sm:$0xff]
  %v297 = vld [vmem:[%s1 + $0x828] sm:$0xff]
  %v298 = vld [vmem:[%s1 + $0x830] sm:$0xff]
  %v299 = vld [vmem:[%s1 + $0x838] sm:$0xff]
  %v300 = vld [vmem:[%s1 + $0x840] sm:$0xff]
  %v301 = vld [vmem:[%s1 + $0x848] sm:$0xff]
  %v302 = vld [vmem:[%s1 + $0x850] sm:$0xff]
  %v303 = vld [vmem:[%s1 + $0x858] sm:$0xff]
  %v304 = vld [vmem:[%s1 + $0x860] sm:$0xff]
  %v305 = vld [vmem:[%s1 + $0x868] sm:$0xff]
  %v306 = vld [vmem:[%s1 + $0x870] sm:$0xff]
  %v307 = vld [vmem:[%s1 + $0x878] sm:$0xff]
  %v308 = vld [vmem:[%s1 + $0x880] sm:$0xff]
  %v309 = vld [vmem:[%s1 + $0x888] sm:$0xff]
  %v310 = vld [vmem:[%s1 + $0x890] sm:$0xff]
  %v311 = vld [vmem:[%s1 + $0x898] sm:$0xff]
  %v312 = vld [vmem:[%s1 + $0x8a0] sm:$0xff]
  %v313 = vld [vmem:[%s1 + $0x8a8] sm:$0xff]
  %v314 = vld [vmem:[%s1 + $0x8b0] sm:$0xff]
  %v315 = vld [vmem:[%s1 + $0x8b8] sm:$0xff]
  %v316 = vld [vmem:[%s1 + $0x8c0] sm:$0xff]
  %v317 = vld [vmem:[%s1 + $0x8c8] sm:$0xff]
  %v318 = vld [vmem:[%s1 + $0x8d0] sm:$0xff]
  %v319 = vld [vmem:[%s1 + $0x8d8] sm:$0xff]
  %v320 = vld [vmem:[%s1 + $0x8e0] sm:$0xff]
  %v321 = vld [vmem:[%s1 + $0x8e8] sm:$0xff]
  %v322 = vld [vmem:[%s1 + $0x8f0] sm:$0xff]
  %v323 = vld [vmem:[%s1 + $0x8f8] sm:$0xff]
  %v324 = vld [vmem:[%s1 + $0x900] sm:$0xff]
  %v325 = vld [vmem:[%s1 + $0x908] sm:$0xff]
  %v326 = vld [vmem:[%s1 + $0x910] sm:$0xff]
  %v327 = vld [vmem:[%s1 + $0x918] sm:$0xff]
  %v328 = vld [vmem:[%s1 + $0x920] sm:$0xff]
  %v329 = vld [vmem:[%s1 + $0x928] sm:$0xff]
  %v330 = vld [vmem:[%s1 + $0x930] sm:$0xff]
  %v331 = vld [vmem:[%s1 + $0x938] sm:$0xff]
  %v332 = vld [vmem:[%s1 + $0x940] sm:$0xff]
  %v333 = vld [vmem:[%s1 + $0x948] sm:$0xff]
  %v334 = vld [vmem:[%s1 + $0x950] sm:$0xff]
  %v335 = vld [vmem:[%s1 + $0x958] sm:$0xff]
  %v336 = vld [vmem:[%s1 + $0x960] sm:$0xff]
  %v337 = vld [vmem:[%s1 + $0x968] sm:$0xff]
  %v338 = vld [vmem:[%s1 + $0x970] sm:$0xff]
  %v339 = vld [vmem:[%s1 + $0x978] sm:$0xff]
  %v340 = vld [vmem:[%s1 + $0x980] sm:$0xff]
  %v341 = vld [vmem:[%s1 + $0x988] sm:$0xff]
  %v342 = vld [vmem:[%s1 + $0x990] sm:$0xff]
  %v343 = vld [vmem:[%s1 + $0x998] sm:$0xff]
  %v344 = vld [vmem:[%s1 + $0x9a0] sm:$0xff]
  %v345 = vld [vmem:[%s1 + $0x9a8] sm:$0xff]
  %v346 = vld [vmem:[%s1 + $0x9b0] sm:$0xff]
  %v347 = vld [vmem:[%s1 + $0x9b8] sm:$0xff]
  %v348 = vld [vmem:[%s1 + $0x9c0] sm:$0xff]
  %v349 = vld [vmem:[%s1 + $0x9c8] sm:$0xff]
  %v350 = vld [vmem:[%s1 + $0x9d0] sm:$0xff]
  %v351 = vld [vmem:[%s1 + $0x9d8] sm:$0xff]
  %v352 = vld [vmem:[%s1 + $0x9e0] sm:$0xff]
  %v353 = vld [vmem:[%s1 + $0x9e8] sm:$0xff]
  %v354 = vld [vmem:[%s1 + $0x9f0] sm:$0xff]
  %v355 = vld [vmem:[%s1 + $0x9f8] sm:$0xff]
  %v356 = vld [vmem:[%s1 + $0xa00] sm:$0xff]
  %v357 = vld [vmem:[%s1 + $0xa08] sm:$0xff]
  %v358 = vld [vmem:[%s1 + $0xa10] sm:$0xff]
  %v359 = vld [vmem:[%s1 + $0xa18] sm:$0xff]
  %v360 = vld [vmem:[%s1 + $0xa20] sm:$0xff]
  %v361 = vld [vmem:[%s1 + $0xa28] sm:$0xff]
  %v362 = vld [vmem:[%s1 + $0xa30] sm:$0xff]
  %v363 = vld [vmem:[%s1 + $0xa38] sm:$0xff]
  %v364 = vld [vmem:[%s1 + $0xa40] sm:$0xff]
  %v365 = vld [vmem:[%s1 + $0xa48] sm:$0xff]
  %v366 = vld [vmem:[%s1 + $0xa50] sm:$0xff]
  %v367 = vld [vmem:[%s1 + $0xa58] sm:$0xff]
  %v368 = vld [vmem:[%s1 + $0xa60] sm:$0xff]
  %v369 = vld [vmem:[%s1 + $0xa68] sm:$0xff]
  %v370 = vld [vmem:[%s1 + $0xa70] sm:$0xff]
  %v371 = vld [vmem:[%s1 + $0xa78] sm:$0xff]
  %v372 = vld [vmem:[%s1 + $0xa80] sm:$0xff]
  %v373 = vld [vmem:[%s1 + $0xa88] sm:$0xff]
  %v374 = vld [vmem:[%s1 + $0xa90] sm:$0xff]
  %v375 = vld [vmem:[%s1 + $0xa98] sm:$0xff]
  %v376 = vld [vmem:[%s1 + $0xaa0] sm:$0xff]
  %v377 = vld [vmem:[%s1 + $0xaa8] sm:$0xff]
  %v378 = vld [vmem:[%s1 + $0xab0] sm:$0xff]
  %v379 = vld [vmem:[%s1 + $0xab8] sm:$0xff]
  %v380 = vld [vmem:[%s1 + $0xac0] sm:$0xff]
  %v381 = vld [vmem:[%s1 + $0xac8] sm:$0xff]
  %v382 = vld [vmem:[%s1 + $0xad0] sm:$0xff]
  %v383 = vld [vmem:[%s1 + $0xad8] sm:$0xff]
  %v384 = vld [vmem:[%s1 + $0xae0] sm:$0xff]
  %v385 = vld [vmem:[%s1 + $0xae8] sm:$0xff]
  %v386 = vld [vmem:[%s1 + $0xaf0] sm:$0xff]
  %v387 = vld [vmem:[%s1 + $0xaf8] sm:$0xff]
  %v388 = vld [vmem:[%s1 + $0xb00] sm:$0xff]
  %v389 = vld [vmem:[%s1 + $0xb08] sm:$0xff]
  %v390 = vld [vmem:[%s1 + $0xb10] sm:$0xff]
  %v391 = vld [vmem:[%s1 + $0xb18] sm:$0xff]
  %v392 = vld [vmem:[%s1 + $0xb20] sm:$0xff]
  %v393 = vld [vmem:[%s1 + $0xb28] sm:$0xff]
  %v394 = vld [vmem:[%s1 + $0xb30] sm:$0xff]
  %v395 = vld [vmem:[%s1 + $0xb38] sm:$0xff]
  %v396 = vld [vmem:[%s1 + $0xb40] sm:$0xff]
  %v397 = vld [vmem:[%s1 + $0xb48] sm:$0xff]
  %v398 = vld [vmem:[%s1 + $0xb50] sm:$0xff]
  %v399 = vld [vmem:[%s1 + $0xb58] sm:$0xff]
  %v400 = vld [vmem:[%s1 + $0xb60] sm:$0xff]
  %v401 = vld [vmem:[%s1 + $0xb68] sm:$0xff]
  %v402 = vld [vmem:[%s1 + $0xb70] sm:$0xff]
  %v403 = vld [vmem:[%s1 + $0xb78] sm:$0xff]
  %v404 = vld [vmem:[%s1 + $0xb80] sm:$0xff]
  %v405 = vld [vmem:[%s1 + $0xb88] sm:$0xff]
  %v406 = vld [vmem:[%s1 + $0xb90] sm:$0xff]
  %v407 = vld [vmem:[%s1 + $0xb98] sm:$0xff]
  %v408 = vld [vmem:[%s1 + $0xba0] sm:$0xff]
  %v409 = vld [vmem:[%s1 + $0xba8] sm:$0xff]
  %v410 = vld [vmem:[%s1 + $0xbb0] sm:$0xff]
  %v411 = vld [vmem:[%s1 + $0xbb8] sm:$0xff]
  %v412 = vld [vmem:[%s1 + $0xbc0] sm:$0xff]
  %v413 = vld [vmem:[%s1 + $0xbc8] sm:$0xff]
  %v414 = vld [vmem:[%s1 + $0xbd0] sm:$0xff]
  %v415 = vld [vmem:[%s1 + $0xbd8] sm:$0xff]
  %v416 = vld [vmem:[%s1 + $0xbe0] sm:$0xff]
  %v417 = vld [vmem:[%s1 + $0xbe8] sm:$0xff]
  %v418 = vld [vmem:[%s1 + $0xbf0] sm:$0xff]
  %v419 = vld [vmem:[%s1 + $0xbf8] sm:$0xff]
  %v420 = vld [vmem:[%s1 + $0xc00] sm:$0xff]
  %v421 = vld [vmem:[%s1 + $0xc08] sm:$0xff]
  %v422 = vld [vmem:[%s1 + $0xc10] sm:$0xff]
  %v423 = vld [vmem:[%s1 + $0xc18] sm:$0xff]
  %v424 = vld [vmem:[%s1 + $0xc20] sm:$0xff]
  %v425 = vld [vmem:[%s1 + $0xc28] sm:$0xff]
  %v426 = vld [vmem:[%s1 + $0xc30] sm:$0xff]
  %v427 = vld [vmem:[%s1 + $0xc38] sm:$0xff]
  %v428 = vld [vmem:[%s1 + $0xc40] sm:$0xff]
  %v429 = vld [vmem:[%s1 + $0xc48] sm:$0xff]
  %v430 = vld [vmem:[%s1 + $0xc50] sm:$0xff]
  %v431 = vld [vmem:[%s1 + $0xc58] sm:$0xff]
  %v432 = vld [vmem:[%s1 + $0xc60] sm:$0xff]
  %v433 = vld [vmem:[%s1 + $0xc68] sm:$0xff]
  %v434 = vld [vmem:[%s1 + $0xc70] sm:$0xff]
  %v435 = vld [vmem:[%s1 + $0xc78] sm:$0xff]
  %v436 = vld [vmem:[%s1 + $0xc80] sm:$0xff]
  %v437 = vld [vmem:[%s1 + $0xc88] sm:$0xff]
  %v438 = vld [vmem:[%s1 + $0xc90] sm:$0xff]
  %v439 = vld [vmem:[%s1 + $0xc98] sm:$0xff]
  %v440 = vld [vmem:[%s1 + $0xca0] sm:$0xff]
  %v441 = vld [vmem:[%s1 + $0xca8] sm:$0xff]
  %v442 = vld [vmem:[%s1 + $0xcb0] sm:$0xff]
  %v443 = vld [vmem:[%s1 + $0xcb8] sm:$0xff]
  %v444 = vld [vmem:[%s1 + $0xcc0] sm:$0xff]
  %v445 = vld [vmem:[%s1 + $0xcc8] sm:$0xff]
  %v446 = vld [vmem:[%s1 + $0xcd0] sm:$0xff]
  %v447 = vld [vmem:[%s1 + $0xcd8] sm:$0xff]
  %v448 = vld [vmem:[%s1 + $0xce0] sm:$0xff]
  %v449 = vld [vmem:[%s1 + $0xce8] sm:$0xff]
  %v450 = vld [vmem:[%s1 + $0xcf0] sm:$0xff]
  %v451 = vld [vmem:[%s1 + $0xcf8] sm:$0xff]
  %v452 = vld [vmem:[%s1 + $0xd00] sm:$0xff]
  %v453 = vld [vmem:[%s1 + $0xd08] sm:$0xff]
  %v454 = vld [vmem:[%s1 + $0xd10] sm:$0xff]
  %v455 = vld [vmem:[%s1 + $0xd18] sm:$0xff]
  %v456 = vld [vmem:[%s1 + $0xd20] sm:$0xff]
  %v457 = vld [vmem:[%s1 + $0xd28] sm:$0xff]
  %v458 = vld [vmem:[%s1 + $0xd30] sm:$0xff]
  %v459 = vld [vmem:[%s1 + $0xd38] sm:$0xff]
  %v460 = vld [vmem:[%s1 + $0xd40] sm:$0xff]
  %v461 = vld [vmem:[%s1 + $0xd48] sm:$0xff]
  %v462 = vld [vmem:[%s1 + $0xd50] sm:$0xff]
  %v463 = vld [vmem:[%s1 + $0xd58] sm:$0xff]
  %v464 = vld [vmem:[%s1 + $0xd60] sm:$0xff]
  %v465 = vld [vmem:[%s1 + $0xd68] sm:$0xff]
  %v466 = vld [vmem:[%s1 + $0xd70] sm:$0xff]
  %v467 = vld [vmem:[%s1 + $0xd78] sm:$0xff]
  %v468 = vld [vmem:[%s1 + $0xd80] sm:$0xff]
  %v469 = vld [vmem:[%s1 + $0xd88] sm:$0xff]
  %v470 = vld [vmem:[%s1 + $0xd90] sm:$0xff]
  %v471 = vld [vmem:[%s1 + $0xd98] sm:$0xff]
  %v472 = vld [vmem:[%s1 + $0xda0] sm:$0xff]
  %v473 = vld [vmem:[%s1 + $0xda8] sm:$0xff]
  %v474 = vld [vmem:[%s1 + $0xdb0] sm:$0xff]
  %v475 = vld [vmem:[%s1 + $0xdb8] sm:$0xff]
  %v476 = vld [vmem:[%s1 + $0xdc0] sm:$0xff]
  %v477 = vld [vmem:[%s1 + $0xdc8] sm:$0xff]
  %v478 = vld [vmem:[%s1 + $0xdd0] sm:$0xff]
  %v479 = vld [vmem:[%s1 + $0xdd8] sm:$0xff]
  %v480 = vld [vmem:[%s1 + $0xde0] sm:$0xff]
  %v481 = vld [vmem:[%s1 + $0xde8] sm:$0xff]
  %v482 = vld [vmem:[%s1 + $0xdf0] sm:$0xff]
  %v483 = vld [vmem:[%s1 + $0xdf8] sm:$0xff]
  %v484 = vld [vmem:[%s1 + $0xe00] sm:$0xff]
  %v485 = vld [vmem:[%s1 + $0xe08] sm:$0xff]
  %v486 = vld [vmem:[%s1 + $0xe10] sm:$0xff]
  %v487 = vld [vmem:[%s1 + $0xe18] sm:$0xff]
  %v488 = vld [vmem:[%s1 + $0xe20] sm:$0xff]
  %v489 = vld [vmem:[%s1 + $0xe28] sm:$0xff]
  %v490 = vld [vmem:[%s1 + $0xe30] sm:$0xff]
  %v491 = vld [vmem:[%s1 + $0xe38] sm:$0xff]
  %v492 = vld [vmem:[%s1 + $0xe40] sm:$0xff]
  %v493 = vld [vmem:[%s1 + $0xe48] sm:$0xff]
  %v494 = vld [vmem:[%s1 + $0xe50] sm:$0xff]
  %v495 = vld [vmem:[%s1 + $0xe58] sm:$0xff]
  %v496 = vld [vmem:[%s1 + $0xe60] sm:$0xff]
  %v497 = vld [vmem:[%s1 + $0xe68] sm:$0xff]
  %v498 = vld [vmem:[%s1 + $0xe70] sm:$0xff]
  %v499 = vld [vmem:[%s1 + $0xe78] sm:$0xff]
  %v500 = vld [vmem:[%s1 + $0xe80] sm:$0xff]
  %v501 = vld [vmem:[%s1 + $0xe88] sm:$0xff]
  %v502 = vld [vmem:[%s1 + $0xe90] sm:$0xff]
  %v503 = vld [vmem:[%s1 + $0xe98] sm:$0xff]
  %v504 = vld [vmem:[%s1 + $0xea0] sm:$0xff]
  %v505 = vld [vmem:[%s1 + $0xea8] sm:$0xff]
  %v506 = vld [vmem:[%s1 + $0xeb0] sm:$0xff]
  %v507 = vld [vmem:[%s1 + $0xeb8] sm:$0xff]
  %v508 = vld [vmem:[%s1 + $0xec0] sm:$0xff]
  %v509 = vld [vmem:[%s1 + $0xec8] sm:$0xff]
  %v510 = vld [vmem:[%s1 + $0xed0] sm:$0xff]
  %v511 = vld [vmem:[%s1 + $0xed8] sm:$0xff]
  %v512 = vld [vmem:[%s1 + $0xee0] sm:$0xff]
  %v513 = vld [vmem:[%s1 + $0xee8] sm:$0xff]
  %v514 = vld [vmem:[%s1 + $0xef0] sm:$0xff]
  %v515 = vld [vmem:[%s1 + $0xef8] sm:$0xff]
  %v516 = vld [vmem:[%s1 + $0xf00] sm:$0xff]
  %v517 = vld [vmem:[%s1 + $0xf08] sm:$0xff]
  %v518 = vld [vmem:[%s1 + $0xf10] sm:$0xff]
  %v519 = vld [vmem:[%s1 + $0xf18] sm:$0xff]
  %v520 = vld [vmem:[%s1 + $0xf20] sm:$0xff]
  %v521 = vld [vmem:[%s1 + $0xf28] sm:$0xff]
  %v522 = vld [vmem:[%s1 + $0xf30] sm:$0xff]
  %v523 = vld [vmem:[%s1 + $0xf38] sm:$0xff]
  %v524 = vld [vmem:[%s1 + $0xf40] sm:$0xff]
  %v525 = vld [vmem:[%s1 + $0xf48] sm:$0xff]
  %v526 = vld [vmem:[%s1 + $0xf50] sm:$0xff]
  %v527 = vld [vmem:[%s1 + $0xf58] sm:$0xff]
  %v528 = vld [vmem:[%s1 + $0xf60] sm:$0xff]
  %v529 = vld [vmem:[%s1 + $0xf68] sm:$0xff]
  %v530 = vld [vmem:[%s1 + $0xf70] sm:$0xff]
  %v531 = vld [vmem:[%s1 + $0xf78] sm:$0xff]
  %v532 = vld [vmem:[%s1 + $0xf80] sm:$0xff]
  %v533 = vld [vmem:[%s1 + $0xf88] sm:$0xff]
  %v534 = vld [vmem:[%s1 + $0xf90] sm:$0xff]
  %v535 = vld [vmem:[%s1 + $0xf98] sm:$0xff]
  %v536 = vld [vmem:[%s1 + $0xfa0] sm:$0xff]
  %v537 = vld [vmem:[%s1 + $0xfa8] sm:$0xff]
  %v538 = vld [vmem:[%s1 + $0xfb0] sm:$0xff]
  %v539 = vld [vmem:[%s1 + $0xfb8] sm:$0xff]
  %v540 = vld [vmem:[%s1 + $0xfc0] sm:$0xff]
  %v541 = vld [vmem:[%s1 + $0xfc8] sm:$0xff]
  %v542 = vld [vmem:[%s1 + $0xfd0] sm:$0xff]
  %v543 = vld [vmem:[%s1 + $0xfd8] sm:$0xff]
  %v544 = vld [vmem:[%s1 + $0xfe0] sm:$0xff]
  %v545 = vld [vmem:[%s1 + $0xfe8] sm:$0xff]
  %v546 = vld [vmem:[%s1 + $0xff0] sm:$0xff]
  %v547 = vld [vmem:[%s1 + $0xff8] sm:$0xff]
  %v548 = vld [vmem:[%s1 + $0x1000] sm:$0xff]
  %v549 = vld [vmem:[%s1 + $0x1008] sm:$0xff]
  %v550 = vld [vmem:[%s1 + $0x1010] sm:$0xff]
  %v551 = vld [vmem:[%s1 + $0x1018] sm:$0xff]
  %v552 = vld [vmem:[%s1 + $0x1020] sm:$0xff]
  %v553 = vld [vmem:[%s1 + $0x1028] sm:$0xff]
  %v554 = vld [vmem:[%s1 + $0x1030] sm:$0xff]
  %v555 = vld [vmem:[%s1 + $0x1038] sm:$0xff]
  %v556 = vld [vmem:[%s1 + $0x1040] sm:$0xff]
  %v557 = vld [vmem:[%s1 + $0x1048] sm:$0xff]
  %v558 = vld [vmem:[%s1 + $0x1050] sm:$0xff]
  %v559 = vld [vmem:[%s1 + $0x1058] sm:$0xff]
  %v560 = vld [vmem:[%s1 + $0x1060] sm:$0xff]
  %v561 = vld [vmem:[%s1 + $0x1068] sm:$0xff]
  %v562 = vld [vmem:[%s1 + $0x1070] sm:$0xff]
  %v563 = vld [vmem:[%s1 + $0x1078] sm:$0xff]
  %v564 = vld [vmem:[%s1 + $0x1080] sm:$0xff]
  %v565 = vld [vmem:[%s1 + $0x1088] sm:$0xff]
  %v566 = vld [vmem:[%s1 + $0x1090] sm:$0xff]
  %v567 = vld [vmem:[%s1 + $0x1098] sm:$0xff]
  %v568 = vld [vmem:[%s1 + $0x10a0] sm:$0xff]
  %v569 = vld [vmem:[%s1 + $0x10a8] sm:$0xff]
  %v570 = vld [vmem:[%s1 + $0x10b0] sm:$0xff]
  %v571 = vld [vmem:[%s1 + $0x10b8] sm:$0xff]
  %v572 = vld [vmem:[%s1 + $0x10c0] sm:$0xff]
  %v573 = vld [vmem:[%s1 + $0x10c8] sm:$0xff]
  %v574 = vld [vmem:[%s1 + $0x10d0] sm:$0xff]
  %v575 = vld [vmem:[%s1 + $0x10d8] sm:$0xff]
  %v576 = vld [vmem:[%s1 + $0x10e0] sm:$0xff]
  %v577 = vld [vmem:[%s1 + $0x10e8] sm:$0xff]
  %v578 = vld [vmem:[%s1 + $0x10f0] sm:$0xff]
  %v579 = vld [vmem:[%s1 + $0x10f8] sm:$0xff]
  %v580 = vld [vmem:[%s1 + $0x1100] sm:$0xff]
  %v581 = vld [vmem:[%s1 + $0x1108] sm:$0xff]
  %v582 = vld [vmem:[%s1 + $0x1110] sm:$0xff]
  %v583 = vld [vmem:[%s1 + $0x1118] sm:$0xff]
  %v584 = vld [vmem:[%s1 + $0x1120] sm:$0xff]
  %v585 = vld [vmem:[%s1 + $0x1128] sm:$0xff]
  %v586 = vld [vmem:[%s1 + $0x1130] sm:$0xff]
  %v587 = vld [vmem:[%s1 + $0x1138] sm:$0xff]
  %v588 = vld [vmem:[%s1 + $0x1140] sm:$0xff]
  %v589 = vld [vmem:[%s1 + $0x1148] sm:$0xff]
  %v590 = vld [vmem:[%s1 + $0x1150] sm:$0xff]
  %v591 = vld [vmem:[%s1 + $0x1158] sm:$0xff]
  %v592 = vld [vmem:[%s1 + $0x1160] sm:$0xff]
  %v593 = vld [vmem:[%s1 + $0x1168] sm:$0xff]
  %v594 = vld [vmem:[%s1 + $0x1170] sm:$0xff]
  %v595 = vld [vmem:[%s1 + $0x1178] sm:$0xff]
  %v596 = vld [vmem:[%s1 + $0x1180] sm:$0xff]
  %v597 = vld [vmem:[%s1 + $0x1188] sm:$0xff]
  %v598 = vld [vmem:[%s1 + $0x1190] sm:$0xff]
  %v599 = vld [vmem:[%s1 + $0x1198] sm:$0xff]
  %v600 = vld [vmem:[%s1 + $0x11a0] sm:$0xff]
  %v601 = vld [vmem:[%s1 + $0x11a8] sm:$0xff]
  %v602 = vld [vmem:[%s1 + $0x11b0] sm:$0xff]
  %v603 = vld [vmem:[%s1 + $0x11b8] sm:$0xff]
  %v604 = vld [vmem:[%s1 + $0x11c0] sm:$0xff]
  %v605 = vld [vmem:[%s1 + $0x11c8] sm:$0xff]
  %v606 = vld [vmem:[%s1 + $0x11d0] sm:$0xff]
  %v607 = vld [vmem:[%s1 + $0x11d8] sm:$0xff]
  %v608 = vld [vmem:[%s1 + $0x11e0] sm:$0xff]
  %v609 = vld [vmem:[%s1 + $0x11e8] sm:$0xff]
  %v610 = vld [vmem:[%s1 + $0x11f0] sm:$0xff]
  %v611 = vld [vmem:[%s1 + $0x11f8] sm:$0xff]
  %v612 = vld [vmem:[%s1 + $0x1200] sm:$0xff]
  %v613 = vld [vmem:[%s1 + $0x1208] sm:$0xff]
  %v614 = vld [vmem:[%s1 + $0x1210] sm:$0xff]
  %v615 = vld [vmem:[%s1 + $0x1218] sm:$0xff]
  %v616 = vld [vmem:[%s1 + $0x1220] sm:$0xff]
  %v617 = vld [vmem:[%s1 + $0x1228] sm:$0xff]
  %v618 = vld [vmem:[%s1 + $0x1230] sm:$0xff]
  %v619 = vld [vmem:[%s1 + $0x1238] sm:$0xff]
  %v620 = vld [vmem:[%s1 + $0x1240] sm:$0xff]
  %v621 = vld [vmem:[%s1 + $0x1248] sm:$0xff]
  %v622 = vld [vmem:[%s1 + $0x1250] sm:$0xff]
  %v623 = vld [vmem:[%s1 + $0x1258] sm:$0xff]
  %v624 = vld [vmem:[%s1 + $0x1260] sm:$0xff]
  %v625 = vld [vmem:[%s1 + $0x1268] sm:$0xff]
  %v626 = vld [vmem:[%s1 + $0x1270] sm:$0xff]
  %v627 = vld [vmem:[%s1 + $0x1278] sm:$0xff]
  %v628 = vld [vmem:[%s1 + $0x1280] sm:$0xff]
  %v629 = vld [vmem:[%s1 + $0x1288] sm:$0xff]
  %v630 = vld [vmem:[%s1 + $0x1290] sm:$0xff]
  %v631 = vld [vmem:[%s1 + $0x1298] sm:$0xff]
  %v632 = vld [vmem:[%s1 + $0x12a0] sm:$0xff]
  %v633 = vld [vmem:[%s1 + $0x12a8] sm:$0xff]
  %v634 = vld [vmem:[%s1 + $0x12b0] sm:$0xff]
  %v635 = vld [vmem:[%s1 + $0x12b8] sm:$0xff]
  %v636 = vld [vmem:[%s1 + $0x12c0] sm:$0xff]
  %v637 = vld [vmem:[%s1 + $0x12c8] sm:$0xff]
  %v638 = vld [vmem:[%s1 + $0x12d0] sm:$0xff]
  %v639 = vld [vmem:[%s1 + $0x12d8] sm:$0xff]
  %v640 = vld [vmem:[%s1 + $0x12e0] sm:$0xff]
  %v641 = vld [vmem:[%s1 + $0x12e8] sm:$0xff]
  %v642 = vld [vmem:[%s1 + $0x12f0] sm:$0xff]
  %v643 = vld [vmem:[%s1 + $0x12f8] sm:$0xff]
  %v644 = vld [vmem:[%s1 + $0x1300] sm:$0xff]
  %v645 = vld [vmem:[%s1 + $0x1308] sm:$0xff]
  %v646 = vld [vmem:[%s1 + $0x1310] sm:$0xff]
  %v647 = vld [vmem:[%s1 + $0x1318] sm:$0xff]
  %v648 = vld [vmem:[%s1 + $0x1320] sm:$0xff]
  %v649 = vld [vmem:[%s1 + $0x1328] sm:$0xff]
  %v650 = vld [vmem:[%s1 + $0x1330] sm:$0xff]
  %v651 = vld [vmem:[%s1 + $0x1338] sm:$0xff]
  %v652 = vld [vmem:[%s1 + $0x1340] sm:$0xff]
  %v653 = vld [vmem:[%s1 + $0x1348] sm:$0xff]
  %v654 = vld [vmem:[%s1 + $0x1350] sm:$0xff]
  %v655 = vld [vmem:[%s1 + $0x1358] sm:$0xff]
  %v656 = vld [vmem:[%s1 + $0x1360] sm:$0xff]
  %v657 = vld [vmem:[%s1 + $0x1368] sm:$0xff]
  %v658 = vld [vmem:[%s1 + $0x1370] sm:$0xff]
  %v659 = vld [vmem:[%s1 + $0x1378] sm:$0xff]
  %v660 = vld [vmem:[%s1 + $0x1380] sm:$0xff]
  %v661 = vld [vmem:[%s1 + $0x1388] sm:$0xff]
  %v662 = vld [vmem:[%s1 + $0x1390] sm:$0xff]
  %v663 = vld [vmem:[%s1 + $0x1398] sm:$0xff]
  %v664 = vld [vmem:[%s1 + $0x13a0] sm:$0xff]
  %v665 = vld [vmem:[%s1 + $0x13a8] sm:$0xff]
  %v666 = vld [vmem:[%s1 + $0x13b0] sm:$0xff]
  %v667 = vld [vmem:[%s1 + $0x13b8] sm:$0xff]
  %v668 = vld [vmem:[%s1 + $0x13c0] sm:$0xff]
  %v669 = vld [vmem:[%s1 + $0x13c8] sm:$0xff]
  %v670 = vld [vmem:[%s1 + $0x13d0] sm:$0xff]
  %v671 = vld [vmem:[%s1 + $0x13d8] sm:$0xff]
  %v672 = vld [vmem:[%s1 + $0x13e0] sm:$0xff]
  %v673 = vld [vmem:[%s1 + $0x13e8] sm:$0xff]
  %v674 = vld [vmem:[%s1 + $0x13f0] sm:$0xff]
  %v675 = vld [vmem:[%s1 + $0x13f8] sm:$0xff]
  %v676 = vld [vmem:[%s1 + $0x1400] sm:$0xff]
  %v677 = vld [vmem:[%s1 + $0x1408] sm:$0xff]
  %v678 = vld [vmem:[%s1 + $0x1410] sm:$0xff]
  %v679 = vld [vmem:[%s1 + $0x1418] sm:$0xff]
  %v680 = vld [vmem:[%s1 + $0x1420] sm:$0xff]
  %v681 = vld [vmem:[%s1 + $0x1428] sm:$0xff]
  %v682 = vld [vmem:[%s1 + $0x1430] sm:$0xff]
  %v683 = vld [vmem:[%s1 + $0x1438] sm:$0xff]
  %v684 = vld [vmem:[%s1 + $0x1440] sm:$0xff]
  %v685 = vld [vmem:[%s1 + $0x1448] sm:$0xff]
  %v686 = vld [vmem:[%s1 + $0x1450] sm:$0xff]
  %v687 = vld [vmem:[%s1 + $0x1458] sm:$0xff]
  %v688 = vld [vmem:[%s1 + $0x1460] sm:$0xff]
  %v689 = vld [vmem:[%s1 + $0x1468] sm:$0xff]
  %v690 = vld [vmem:[%s1 + $0x1470] sm:$0xff]
  %v691 = vld [vmem:[%s1 + $0x1478] sm:$0xff]
  %v692 = vld [vmem:[%s1 + $0x1480] sm:$0xff]
  %v693 = vld [vmem:[%s1 + $0x1488] sm:$0xff]
  %v694 = vld [vmem:[%s1 + $0x1490] sm:$0xff]
  %v695 = vld [vmem:[%s1 + $0x1498] sm:$0xff]
  %v696 = vld [vmem:[%s1 + $0x14a0] sm:$0xff]
  %v697 = vld [vmem:[%s1 + $0x14a8] sm:$0xff]
  %v698 = vld [vmem:[%s1 + $0x14b0] sm:$0xff]
  %v699 = vld [vmem:[%s1 + $0x14b8] sm:$0xff]
  %v700 = vld [vmem:[%s1 + $0x14c0] sm:$0xff]
  %v701 = vld [vmem:[%s1 + $0x14c8] sm:$0xff]
  %v702 = vld [vmem:[%s1 + $0x14d0] sm:$0xff]
  %v703 = vld [vmem:[%s1 + $0x14d8] sm:$0xff]
  %v704 = vld [vmem:[%s1 + $0x14e0] sm:$0xff]
  %v705 = vld [vmem:[%s1 + $0x14e8] sm:$0xff]
  %v706 = vld [vmem:[%s1 + $0x14f0] sm:$0xff]
  %v707 = vld [vmem:[%s1 + $0x14f8] sm:$0xff]
  %v708 = vld [vmem:[%s1 + $0x1500] sm:$0xff]
  %v709 = vld [vmem:[%s1 + $0x1508] sm:$0xff]
  %v710 = vld [vmem:[%s1 + $0x1510] sm:$0xff]
  %v711 = vld [vmem:[%s1 + $0x1518] sm:$0xff]
  %v712 = vld [vmem:[%s1 + $0x1520] sm:$0xff]
  %v713 = vld [vmem:[%s1 + $0x1528] sm:$0xff]
  %v714 = vld [vmem:[%s1 + $0x1530] sm:$0xff]
  %v715 = vld [vmem:[%s1 + $0x1538] sm:$0xff]
  %v716 = vld [vmem:[%s1 + $0x1540] sm:$0xff]
  %v717 = vld [vmem:[%s1 + $0x1548] sm:$0xff]
  %v718 = vld [vmem:[%s1 + $0x1550] sm:$0xff]
  %v719 = vld [vmem:[%s1 + $0x1558] sm:$0xff]
  %v720 = vld [vmem:[%s1 + $0x1560] sm:$0xff]
  %v721 = vld [vmem:[%s1 + $0x1568] sm:$0xff]
  %v722 = vld [vmem:[%s1 + $0x1570] sm:$0xff]
  %v723 = vld [vmem:[%s1 + $0x1578] sm:$0xff]
  %v724 = vld [vmem:[%s1 + $0x1580] sm:$0xff]
  %v725 = vld [vmem:[%s1 + $0x1588] sm:$0xff]
  %v726 = vld [vmem:[%s1 + $0x1590] sm:$0xff]
  %v727 = vld [vmem:[%s1 + $0x1598] sm:$0xff]
  %v728 = vld [vmem:[%s1 + $0x15a0] sm:$0xff]
  %v729 = vld [vmem:[%s1 + $0x15a8] sm:$0xff]
  %v730 = vld [vmem:[%s1 + $0x15b0] sm:$0xff]
  %v731 = vld [vmem:[%s1 + $0x15b8] sm:$0xff]
  %v732 = vld [vmem:[%s1 + $0x15c0] sm:$0xff]
  %v733 = vld [vmem:[%s1 + $0x15c8] sm:$0xff]
  %v734 = vld [vmem:[%s1 + $0x15d0] sm:$0xff]
  %v735 = vld [vmem:[%s1 + $0x15d8] sm:$0xff]
  %v736 = vld [vmem:[%s1 + $0x15e0] sm:$0xff]
  %v737 = vld [vmem:[%s1 + $0x15e8] sm:$0xff]
  %v738 = vld [vmem:[%s1 + $0x15f0] sm:$0xff]
  %v739 = vld [vmem:[%s1 + $0x15f8] sm:$0xff]
  %v740 = vld [vmem:[%s1 + $0x1600] sm:$0xff]
  %v741 = vld [vmem:[%s1 + $0x1608] sm:$0xff]
  %v742 = vld [vmem:[%s1 + $0x1610] sm:$0xff]
  %v743 = vld [vmem:[%s1 + $0x1618] sm:$0xff]
  %v744 = vld [vmem:[%s1 + $0x1620] sm:$0xff]
  %v745 = vld [vmem:[%s1 + $0x1628] sm:$0xff]
  %v746 = vld [vmem:[%s1 + $0x1630] sm:$0xff]
  %v747 = vld [vmem:[%s1 + $0x1638] sm:$0xff]
  %v748 = vld [vmem:[%s1 + $0x1640] sm:$0xff]
  %v749 = vld [vmem:[%s1 + $0x1648] sm:$0xff]
  %v750 = vld [vmem:[%s1 + $0x1650] sm:$0xff]
  %v751 = vld [vmem:[%s1 + $0x1658] sm:$0xff]
  %v752 = vld [vmem:[%s1 + $0x1660] sm:$0xff]
  %v753 = vld [vmem:[%s1 + $0x1668] sm:$0xff]
  %v754 = vld [vmem:[%s1 + $0x1670] sm:$0xff]
  %v755 = vld [vmem:[%s1 + $0x1678] sm:$0xff]
  %v756 = vld [vmem:[%s1 + $0x1680] sm:$0xff]
  %v757 = vld [vmem:[%s1 + $0x1688] sm:$0xff]
  %v758 = vld [vmem:[%s1 + $0x1690] sm:$0xff]
  %v759 = vld [vmem:[%s1 + $0x1698] sm:$0xff]
  %v760 = vld [vmem:[%s1 + $0x16a0] sm:$0xff]
  %v761 = vld [vmem:[%s1 + $0x16a8] sm:$0xff]
  %v762 = vld [vmem:[%s1 + $0x16b0] sm:$0xff]
  %v763 = vld [vmem:[%s1 + $0x16b8] sm:$0xff]
  %v764 = vld [vmem:[%s1 + $0x16c0] sm:$0xff]
  %v765 = vld [vmem:[%s1 + $0x16c8] sm:$0xff]
  %v766 = vld [vmem:[%s1 + $0x16d0] sm:$0xff]
  %v767 = vld [vmem:[%s1 + $0x16d8] sm:$0xff]
  %v768 = vld [vmem:[%s1 + $0x16e0] sm:$0xff]
  %v769 = vld [vmem:[%s1 + $0x16e8] sm:$0xff]
  %v770 = vld [vmem:[%s1 + $0x16f0] sm:$0xff]
  %v771 = vld [vmem:[%s1 + $0x16f8] sm:$0xff]
  %v772 = vld [vmem:[%s1 + $0x1700] sm:$0xff]
  %v773 = vld [vmem:[%s1 + $0x1708] sm:$0xff]
  %v774 = vld [vmem:[%s1 + $0x1710] sm:$0xff]
  %v775 = vld [vmem:[%s1 + $0x1718] sm:$0xff]
  %v776 = vld [vmem:[%s1 + $0x1720] sm:$0xff]
  %v777 = vld [vmem:[%s1 + $0x1728] sm:$0xff]
  %v778 = vld [vmem:[%s1 + $0x1730] sm:$0xff]
  %v779 = vld [vmem:[%s1 + $0x1738] sm:$0xff]
  %v780 = vld [vmem:[%s1 + $0x1740] sm:$0xff]
  %v781 = vld [vmem:[%s1 + $0x1748] sm:$0xff]
  %v782 = vld [vmem:[%s1 + $0x1750] sm:$0xff]
  %v783 = vld [vmem:[%s1 + $0x1758] sm:$0xff]
  %v784 = vld [vmem:[%s1 + $0x1760] sm:$0xff]
  %v785 = vld [vmem:[%s1 + $0x1768] sm:$0xff]
  %v786 = vld [vmem:[%s1 + $0x1770] sm:$0xff]
  %v787 = vld [vmem:[%s1 + $0x1778] sm:$0xff]
  %v788 = vld [vmem:[%s1 + $0x1780] sm:$0xff]
  %v789 = vld [vmem:[%s1 + $0x1788] sm:$0xff]
  %v790 = vld [vmem:[%s1 + $0x1790] sm:$0xff]
  %v791 = vld [vmem:[%s1 + $0x1798] sm:$0xff]
  %v792 = vld [vmem:[%s1 + $0x17a0] sm:$0xff]
  %v793 = vld [vmem:[%s1 + $0x17a8] sm:$0xff]
  %v794 = vld [vmem:[%s1 + $0x17b0] sm:$0xff]
  %v795 = vld [vmem:[%s1 + $0x17b8] sm:$0xff]
  %v796 = vld [vmem:[%s1 + $0x17c0] sm:$0xff]
  %v797 = vld [vmem:[%s1 + $0x17c8] sm:$0xff]
  %v798 = vld [vmem:[%s1 + $0x17d0] sm:$0xff]
  %v799 = vld [vmem:[%s1 + $0x17d8] sm:$0xff]
  %v800 = vld [vmem:[%s1 + $0x17e0] sm:$0xff]
  %v801 = vld [vmem:[%s1 + $0x17e8] sm:$0xff]
  %v802 = vld [vmem:[%s1 + $0x17f0] sm:$0xff]
  %v803 = vld [vmem:[%s1 + $0x17f8] sm:$0xff]
  %v804 = vld [vmem:[%s1 + $0x1800] sm:$0xff]
  %v805 = vld [vmem:[%s1 + $0x1808] sm:$0xff]
  %v806 = vld [vmem:[%s1 + $0x1810] sm:$0xff]
  %v807 = vld [vmem:[%s1 + $0x1818] sm:$0xff]
  %v808 = vld [vmem:[%s1 + $0x1820] sm:$0xff]
  %v809 = vld [vmem:[%s1 + $0x1828] sm:$0xff]
  %v810 = vld [vmem:[%s1 + $0x1830] sm:$0xff]
  %v811 = vld [vmem:[%s1 + $0x1838] sm:$0xff]
  %v812 = vld [vmem:[%s1 + $0x1840] sm:$0xff]
  %v813 = vld [vmem:[%s1 + $0x1848] sm:$0xff]
  %v814 = vld [vmem:[%s1 + $0x1850] sm:$0xff]
  %v815 = vld [vmem:[%s1 + $0x1858] sm:$0xff]
  %v816 = vld [vmem:[%s1 + $0x1860] sm:$0xff]
  %v817 = vld [vmem:[%s1 + $0x1868] sm:$0xff]
  %v818 = vld [vmem:[%s1 + $0x1870] sm:$0xff]
  %v819 = vld [vmem:[%s1 + $0x1878] sm:$0xff]
  %v820 = vld [vmem:[%s1 + $0x1880] sm:$0xff]
  %v821 = vld [vmem:[%s1 + $0x1888] sm:$0xff]
  %v822 = vld [vmem:[%s1 + $0x1890] sm:$0xff]
  %v823 = vld [vmem:[%s1 + $0x1898] sm:$0xff]
  %v824 = vld [vmem:[%s1 + $0x18a0] sm:$0xff]
  %v825 = vld [vmem:[%s1 + $0x18a8] sm:$0xff]
  %v826 = vld [vmem:[%s1 + $0x18b0] sm:$0xff]
  %v827 = vld [vmem:[%s1 + $0x18b8] sm:$0xff]
  %v828 = vld [vmem:[%s1 + $0x18c0] sm:$0xff]
  %v829 = vld [vmem:[%s1 + $0x18c8] sm:$0xff]
  %v830 = vld [vmem:[%s1 + $0x18d0] sm:$0xff]
  %v831 = vld [vmem:[%s1 + $0x18d8] sm:$0xff]
  %v832 = vld [vmem:[%s1 + $0x18e0] sm:$0xff]
  %v833 = vld [vmem:[%s1 + $0x18e8] sm:$0xff]
  %v834 = vld [vmem:[%s1 + $0x18f0] sm:$0xff]
  %v835 = vld [vmem:[%s1 + $0x18f8] sm:$0xff]
  %v836 = vld [vmem:[%s1 + $0x1900] sm:$0xff]
  %v837 = vld [vmem:[%s1 + $0x1908] sm:$0xff]
  %v838 = vld [vmem:[%s1 + $0x1910] sm:$0xff]
  %v839 = vld [vmem:[%s1 + $0x1918] sm:$0xff]
  %v840 = vld [vmem:[%s1 + $0x1920] sm:$0xff]
  %v841 = vld [vmem:[%s1 + $0x1928] sm:$0xff]
  %v842 = vld [vmem:[%s1 + $0x1930] sm:$0xff]
  %v843 = vld [vmem:[%s1 + $0x1938] sm:$0xff]
  %v844 = vld [vmem:[%s1 + $0x1940] sm:$0xff]
  %v845 = vld [vmem:[%s1 + $0x1948] sm:$0xff]
  %v846 = vld [vmem:[%s1 + $0x1950] sm:$0xff]
  %v847 = vld [vmem:[%s1 + $0x1958] sm:$0xff]
  %v848 = vld [vmem:[%s1 + $0x1960] sm:$0xff]
  %v849 = vld [vmem:[%s1 + $0x1968] sm:$0xff]
  %v850 = vld [vmem:[%s1 + $0x1970] sm:$0xff]
  %v851 = vld [vmem:[%s1 + $0x1978] sm:$0xff]
  %v852 = vld [vmem:[%s1 + $0x1980] sm:$0xff]
  %v853 = vld [vmem:[%s1 + $0x1988] sm:$0xff]
  %v854 = vld [vmem:[%s1 + $0x1990] sm:$0xff]
  %v855 = vld [vmem:[%s1 + $0x1998] sm:$0xff]
  %v856 = vld [vmem:[%s1 + $0x19a0] sm:$0xff]
  %v857 = vld [vmem:[%s1 + $0x19a8] sm:$0xff]
  %v858 = vld [vmem:[%s1 + $0x19b0] sm:$0xff]
  %v859 = vld [vmem:[%s1 + $0x19b8] sm:$0xff]
  %v860 = vld [vmem:[%s1 + $0x19c0] sm:$0xff]
  %v861 = vld [vmem:[%s1 + $0x19c8] sm:$0xff]
  %v862 = vld [vmem:[%s1 + $0x19d0] sm:$0xff]
  %v863 = vld [vmem:[%s1 + $0x19d8] sm:$0xff]
  %v864 = vld [vmem:[%s1 + $0x19e0] sm:$0xff]
  %v865 = vld [vmem:[%s1 + $0x19e8] sm:$0xff]
  %v866 = vld [vmem:[%s1 + $0x19f0] sm:$0xff]
  %v867 = vld [vmem:[%s1 + $0x19f8] sm:$0xff]
  %v868 = vld [vmem:[%s1 + $0x1a00] sm:$0xff]
  %v869 = vld [vmem:[%s1 + $0x1a08] sm:$0xff]
  %v870 = vld [vmem:[%s1 + $0x1a10] sm:$0xff]
  %v871 = vld [vmem:[%s1 + $0x1a18] sm:$0xff]
  %v872 = vld [vmem:[%s1 + $0x1a20] sm:$0xff]
  %v873 = vld [vmem:[%s1 + $0x1a28] sm:$0xff]
  %v874 = vld [vmem:[%s1 + $0x1a30] sm:$0xff]
  %v875 = vld [vmem:[%s1 + $0x1a38] sm:$0xff]
  %v876 = vld [vmem:[%s1 + $0x1a40] sm:$0xff]
  %v877 = vld [vmem:[%s1 + $0x1a48] sm:$0xff]
  %v878 = vld [vmem:[%s1 + $0x1a50] sm:$0xff]
  %v879 = vld [vmem:[%s1 + $0x1a58] sm:$0xff]
  %v880 = vld [vmem:[%s1 + $0x1a60] sm:$0xff]
  %v881 = vld [vmem:[%s1 + $0x1a68] sm:$0xff]
  %v882 = vld [vmem:[%s1 + $0x1a70] sm:$0xff]
  %v883 = vld [vmem:[%s1 + $0x1a78] sm:$0xff]
  %v884 = vld [vmem:[%s1 + $0x1a80] sm:$0xff]
  %v885 = vld [vmem:[%s1 + $0x1a88] sm:$0xff]
  %v886 = vld [vmem:[%s1 + $0x1a90] sm:$0xff]
  %v887 = vld [vmem:[%s1 + $0x1a98] sm:$0xff]
  %v888 = vld [vmem:[%s1 + $0x1aa0] sm:$0xff]
  %v889 = vld [vmem:[%s1 + $0x1aa8] sm:$0xff]
  %v890 = vld [vmem:[%s1 + $0x1ab0] sm:$0xff]
  %v891 = vld [vmem:[%s1 + $0x1ab8] sm:$0xff]
  %v892 = vld [vmem:[%s1 + $0x1ac0] sm:$0xff]
  %v893 = vld [vmem:[%s1 + $0x1ac8] sm:$0xff]
  %v894 = vld [vmem:[%s1 + $0x1ad0] sm:$0xff]
  %v895 = vld [vmem:[%s1 + $0x1ad8] sm:$0xff]
  %v896 = vld [vmem:[%s1 + $0x1ae0] sm:$0xff]
  %v897 = vld [vmem:[%s1 + $0x1ae8] sm:$0xff]
  %v898 = vld [vmem:[%s1 + $0x1af0] sm:$0xff]
  %v899 = vld [vmem:[%s1 + $0x1af8] sm:$0xff]
  %v900 = vld [vmem:[%s1 + $0x1b00] sm:$0xff]
  %v901 = vld [vmem:[%s1 + $0x1b08] sm:$0xff]
  %v902 = vld [vmem:[%s1 + $0x1b10] sm:$0xff]
  %v903 = vld [vmem:[%s1 + $0x1b18] sm:$0xff]
  %v904 = vld [vmem:[%s1 + $0x1b20] sm:$0xff]
  %v905 = vld [vmem:[%s1 + $0x1b28] sm:$0xff]
  %v906 = vld [vmem:[%s1 + $0x1b30] sm:$0xff]
  %v907 = vld [vmem:[%s1 + $0x1b38] sm:$0xff]
  %v908 = vld [vmem:[%s1 + $0x1b40] sm:$0xff]
  %v909 = vld [vmem:[%s1 + $0x1b48] sm:$0xff]
  %v910 = vld [vmem:[%s1 + $0x1b50] sm:$0xff]
  %v911 = vld [vmem:[%s1 + $0x1b58] sm:$0xff]
  %v912 = vld [vmem:[%s1 + $0x1b60] sm:$0xff]
  %v913 = vld [vmem:[%s1 + $0x1b68] sm:$0xff]
  %v914 = vld [vmem:[%s1 + $0x1b70] sm:$0xff]
  %v915 = vld [vmem:[%s1 + $0x1b78] sm:$0xff]
  %v916 = vld [vmem:[%s1 + $0x1b80] sm:$0xff]
  %v917 = vld [vmem:[%s1 + $0x1b88] sm:$0xff]
  %v918 = vld [vmem:[%s1 + $0x1b90] sm:$0xff]
  %v919 = vld [vmem:[%s1 + $0x1b98] sm:$0xff]
  %v920 = vld [vmem:[%s1 + $0x1ba0] sm:$0xff]
  %v921 = vld [vmem:[%s1 + $0x1ba8] sm:$0xff]
  %v922 = vld [vmem:[%s1 + $0x1bb0] sm:$0xff]
  %v923 = vld [vmem:[%s1 + $0x1bb8] sm:$0xff]
  %v924 = vld [vmem:[%s1 + $0x1bc0] sm:$0xff]
  %v925 = vld [vmem:[%s1 + $0x1bc8] sm:$0xff]
  %v926 = vld [vmem:[%s1 + $0x1bd0] sm:$0xff]
  %v927 = vld [vmem:[%s1 + $0x1bd8] sm:$0xff]
  %v928 = vld [vmem:[%s1 + $0x1be0] sm:$0xff]
  %v929 = vld [vmem:[%s1 + $0x1be8] sm:$0xff]
  %v930 = vld [vmem:[%s1 + $0x1bf0] sm:$0xff]
  %v931 = vld [vmem:[%s1 + $0x1bf8] sm:$0xff]
  %v932 = vld [vmem:[%s1 + $0x1c00] sm:$0xff]
  %v933 = vld [vmem:[%s1 + $0x1c08] sm:$0xff]
  %v934 = vld [vmem:[%s1 + $0x1c10] sm:$0xff]
  %v935 = vld [vmem:[%s1 + $0x1c18] sm:$0xff]
  %v936 = vld [vmem:[%s1 + $0x1c20] sm:$0xff]
  %v937 = vld [vmem:[%s1 + $0x1c28] sm:$0xff]
  %v938 = vld [vmem:[%s1 + $0x1c30] sm:$0xff]
  %v939 = vld [vmem:[%s1 + $0x1c38] sm:$0xff]
  %v940 = vld [vmem:[%s1 + $0x1c40] sm:$0xff]
  %v941 = vld [vmem:[%s1 + $0x1c48] sm:$0xff]
  %v942 = vld [vmem:[%s1 + $0x1c50] sm:$0xff]
  %v943 = vld [vmem:[%s1 + $0x1c58] sm:$0xff]
  %v944 = vld [vmem:[%s1 + $0x1c60] sm:$0xff]
  %v945 = vld [vmem:[%s1 + $0x1c68] sm:$0xff]
  %v946 = vld [vmem:[%s1 + $0x1c70] sm:$0xff]
  %v947 = vld [vmem:[%s1 + $0x1c78] sm:$0xff]
  %v948 = vld [vmem:[%s1 + $0x1c80] sm:$0xff]
  %v949 = vld [vmem:[%s1 + $0x1c88] sm:$0xff]
  %v950 = vld [vmem:[%s1 + $0x1c90] sm:$0xff]
  %v951 = vld [vmem:[%s1 + $0x1c98] sm:$0xff]
  %v952 = vld [vmem:[%s1 + $0x1ca0] sm:$0xff]
  %v953 = vld [vmem:[%s1 + $0x1ca8] sm:$0xff]
  %v954 = vld [vmem:[%s1 + $0x1cb0] sm:$0xff]
  %v955 = vld [vmem:[%s1 + $0x1cb8] sm:$0xff]
  %v956 = vld [vmem:[%s1 + $0x1cc0] sm:$0xff]
  %v957 = vld [vmem:[%s1 + $0x1cc8] sm:$0xff]
  %v958 = vld [vmem:[%s1 + $0x1cd0] sm:$0xff]
  %v959 = vld [vmem:[%s1 + $0x1cd8] sm:$0xff]
  %v960 = vld [vmem:[%s1 + $0x1ce0] sm:$0xff]
  %v961 = vld [vmem:[%s1 + $0x1ce8] sm:$0xff]
  %v962 = vld [vmem:[%s1 + $0x1cf0] sm:$0xff]
  %v963 = vld [vmem:[%s1 + $0x1cf8] sm:$0xff]
  %v964 = vld [vmem:[%s1 + $0x1d00] sm:$0xff]
  %v965 = vld [vmem:[%s1 + $0x1d08] sm:$0xff]
  %v966 = vld [vmem:[%s1 + $0x1d10] sm:$0xff]
  %v967 = vld [vmem:[%s1 + $0x1d18] sm:$0xff]
  %v968 = vld [vmem:[%s1 + $0x1d20] sm:$0xff]
  %v969 = vld [vmem:[%s1 + $0x1d28] sm:$0xff]
  %v970 = vld [vmem:[%s1 + $0x1d30] sm:$0xff]
  %v971 = vld [vmem:[%s1 + $0x1d38] sm:$0xff]
  %v972 = vld [vmem:[%s1 + $0x1d40] sm:$0xff]
  %v973 = vld [vmem:[%s1 + $0x1d48] sm:$0xff]
  %v974 = vld [vmem:[%s1 + $0x1d50] sm:$0xff]
  %v975 = vld [vmem:[%s1 + $0x1d58] sm:$0xff]
  %v976 = vld [vmem:[%s1 + $0x1d60] sm:$0xff]
  %v977 = vld [vmem:[%s1 + $0x1d68] sm:$0xff]
  %v978 = vld [vmem:[%s1 + $0x1d70] sm:$0xff]
  %v979 = vld [vmem:[%s1 + $0x1d78] sm:$0xff]
  %v980 = vld [vmem:[%s1 + $0x1d80] sm:$0xff]
  %v981 = vld [vmem:[%s1 + $0x1d88] sm:$0xff]
  %v982 = vld [vmem:[%s1 + $0x1d90] sm:$0xff]
  %v983 = vld [vmem:[%s1 + $0x1d98] sm:$0xff]
  %v984 = vld [vmem:[%s1 + $0x1da0] sm:$0xff]
  %v985 = vld [vmem:[%s1 + $0x1da8] sm:$0xff]
  %v986 = vld [vmem:[%s1 + $0x1db0] sm:$0xff]
  %v987 = vld [vmem:[%s1 + $0x1db8] sm:$0xff]
  %v988 = vld [vmem:[%s1 + $0x1dc0] sm:$0xff]
  %v989 = vld [vmem:[%s1 + $0x1dc8] sm:$0xff]
  %v990 = vld [vmem:[%s1 + $0x1dd0] sm:$0xff]
  %v991 = vld [vmem:[%s1 + $0x1dd8] sm:$0xff]
  %v992 = vld [vmem:[%s1 + $0x1de0] sm:$0xff]
  %v993 = vld [vmem:[%s1 + $0x1de8] sm:$0xff]
  %v994 = vld [vmem:[%s1 + $0x1df0] sm:$0xff]
  %v995 = vld [vmem:[%s1 + $0x1df8] sm:$0xff]
  %v996 = vld [vmem:[%s1 + $0x1e00] sm:$0xff]
  %v997 = vld [vmem:[%s1 + $0x1e08] sm:$0xff]
  %v998 = vld [vmem:[%s1 + $0x1e10] sm:$0xff]
  %v999 = vld [vmem:[%s1 + $0x1e18] sm:$0xff]
  %v1000 = vld [vmem:[%s1 + $0x1e20] sm:$0xff]
  %v1001 = vld [vmem:[%s1 + $0x1e28] sm:$0xff]
  %v1002 = vld [vmem:[%s1 + $0x1e30] sm:$0xff]
  %v1003 = vld [vmem:[%s1 + $0x1e38] sm:$0xff]
  %v1004 = vld [vmem:[%s1 + $0x1e40] sm:$0xff]
  %v1005 = vld [vmem:[%s1 + $0x1e48] sm:$0xff]
  %v1006 = vld [vmem:[%s1 + $0x1e50] sm:$0xff]
  %v1007 = vld [vmem:[%s1 + $0x1e58] sm:$0xff]
  %v1008 = vld [vmem:[%s1 + $0x1e60] sm:$0xff]
  %v1009 = vld [vmem:[%s1 + $0x1e68] sm:$0xff]
  %v1010 = vld [vmem:[%s1 + $0x1e70] sm:$0xff]
  %v1011 = vld [vmem:[%s1 + $0x1e78] sm:$0xff]
  %v1012 = vld [vmem:[%s1 + $0x1e80] sm:$0xff]
  %v1013 = vld [vmem:[%s1 + $0x1e88] sm:$0xff]
  %v1014 = vld [vmem:[%s1 + $0x1e90] sm:$0xff]
  %v1015 = vld [vmem:[%s1 + $0x1e98] sm:$0xff]
  %v1016 = vld [vmem:[%s1 + $0x1ea0] sm:$0xff]
  %v1017 = vld [vmem:[%s1 + $0x1ea8] sm:$0xff]
  %v1018 = vld [vmem:[%s1 + $0x1eb0] sm:$0xff]
  %v1019 = vld [vmem:[%s1 + $0x1eb8] sm:$0xff]
  %v1020 = vld [vmem:[%s1 + $0x1ec0] sm:$0xff]
  %v1021 = vld [vmem:[%s1 + $0x1ec8] sm:$0xff]
  %v1022 = vld [vmem:[%s1 + $0x1ed0] sm:$0xff]
  %v1023 = vld [vmem:[%s1 + $0x1ed8] sm:$0xff]
  %v1024 = vld [vmem:[%s1 + $0x1ee0] sm:$0xff]
  %v1025 = vld [vmem:[%s1 + $0x1ee8] sm:$0xff]
  %v1026 = vld [vmem:[%s1 + $0x1ef0] sm:$0xff]
  %v1027 = vld [vmem:[%s1 + $0x1ef8] sm:$0xff]
  %v1028 = vld [vmem:[%s1 + $0x1f00] sm:$0xff]
  %v1029 = vld [vmem:[%s1 + $0x1f08] sm:$0xff]
  %v1030 = vld [vmem:[%s1 + $0x1f10] sm:$0xff]
  %v1031 = vld [vmem:[%s1 + $0x1f18] sm:$0xff]
  %v1032 = vld [vmem:[%s1 + $0x1f20] sm:$0xff]
  %v1033 = vld [vmem:[%s1 + $0x1f28] sm:$0xff]
  %v1034 = vld [vmem:[%s1 + $0x1f30] sm:$0xff]
  %v1035 = vld [vmem:[%s1 + $0x1f38] sm:$0xff]
  %v1036 = vld [vmem:[%s1 + $0x1f40] sm:$0xff]
  %v1037 = vld [vmem:[%s1 + $0x1f48] sm:$0xff]
  %v1038 = vld [vmem:[%s1 + $0x1f50] sm:$0xff]
  %v1039 = vld [vmem:[%s1 + $0x1f58] sm:$0xff]
  %v1040 = vld [vmem:[%s1 + $0x1f60] sm:$0xff]
  %v1041 = vld [vmem:[%s1 + $0x1f68] sm:$0xff]
  %v1042 = vld [vmem:[%s1 + $0x1f70] sm:$0xff]
  %v1043 = vld [vmem:[%s1 + $0x1f78] sm:$0xff]
  %v1044 = vld [vmem:[%s1 + $0x1f80] sm:$0xff]
  %v1045 = vld [vmem:[%s1 + $0x1f88] sm:$0xff]
  %v1046 = vld [vmem:[%s1 + $0x1f90] sm:$0xff]
  %v1047 = vld [vmem:[%s1 + $0x1f98] sm:$0xff]
  %v1048 = vld [vmem:[%s1 + $0x1fa0] sm:$0xff]
  %v1049 = vld [vmem:[%s1 + $0x1fa8] sm:$0xff]
  %v1050 = vld [vmem:[%s1 + $0x1fb0] sm:$0xff]
  %v1051 = vld [vmem:[%s1 + $0x1fb8] sm:$0xff]
  %v1052 = vld [vmem:[%s1 + $0x1fc0] sm:$0xff]
  %v1053 = vld [vmem:[%s1 + $0x1fc8] sm:$0xff]
  %v1054 = vld [vmem:[%s1 + $0x1fd0] sm:$0xff]
  %v1055 = vld [vmem:[%s1 + $0x1fd8] sm:$0xff]
  %v1056 = vld [vmem:[%s1 + $0x1fe0] sm:$0xff]
  %v1057 = vld [vmem:[%s1 + $0x1fe8] sm:$0xff]
  %v1058 = vld [vmem:[%s1 + $0x1ff0] sm:$0xff]
  %v1059 = vld [vmem:[%s1 + $0x1ff8] sm:$0xff]
  %v1060 = vld [vmem:[%s2] sm:$0xf]
  %v1062 = vperm.slane %v1060, 0
  %v1063 = vperm.slane %v1060, 1
  %v1064 = vperm.slane %v1060, 2
  %v1065 = vperm.slane %v1060, 3
  %v1086 = vunpack.c.l.b16 %v20
  %v1087 = vunpack.c.h.b16 %v20
  %v1088 = vunpack.c.l.b16 %v21
  %v1089 = vunpack.c.h.b16 %v21
  %v1090 = vunpack.c.l.b16 %v22
  %v1091 = vunpack.c.h.b16 %v22
  %v1092 = vunpack.c.l.b16 %v23
  %v1093 = vunpack.c.h.b16 %v23
  %v1094 = vunpack.c.l.b16 %v24
  %v1095 = vunpack.c.h.b16 %v24
  %v1096 = vunpack.c.l.b16 %v25
  %v1097 = vunpack.c.h.b16 %v25
  %v1098 = vunpack.c.l.b16 %v26
  %v1099 = vunpack.c.h.b16 %v26
  %v1100 = vunpack.c.l.b16 %v27
  %v1101 = vunpack.c.h.b16 %v27
  %v1102 = vunpack.c.l.b16 %v28
  %v1103 = vunpack.c.h.b16 %v28
  %v1104 = vunpack.c.l.b16 %v29
  %v1105 = vunpack.c.h.b16 %v29
  %v1106 = vunpack.c.l.b16 %v30
  %v1107 = vunpack.c.h.b16 %v30
  %v1108 = vunpack.c.l.b16 %v31
  %v1109 = vunpack.c.h.b16 %v31
  %v1110 = vunpack.c.l.b16 %v32
  %v1111 = vunpack.c.h.b16 %v32
  %v1112 = vunpack.c.l.b16 %v33
  %v1113 = vunpack.c.h.b16 %v33
  %v1114 = vunpack.c.l.b16 %v34
  %v1115 = vunpack.c.h.b16 %v34
  %v1116 = vunpack.c.l.b16 %v35
  %v1117 = vunpack.c.h.b16 %v35
  %v1118 = vpack.c.b16 %v1086, %v1086
  %v1119 = vpack.c.b16 %v1087, %v1087
  %v1120 = vpack.c.b16 %v1088, %v1088
  %v1121 = vpack.c.b16 %v1089, %v1089
  %v1122 = vpack.c.b16 %v1090, %v1090
  %v1123 = vpack.c.b16 %v1091, %v1091
  %v1124 = vpack.c.b16 %v1092, %v1092
  %v1125 = vpack.c.b16 %v1093, %v1093
  %v1126 = vpack.c.b16 %v1094, %v1094
  %v1127 = vpack.c.b16 %v1095, %v1095
  %v1128 = vpack.c.b16 %v1096, %v1096
  %v1129 = vpack.c.b16 %v1097, %v1097
  %v1130 = vpack.c.b16 %v1098, %v1098
  %v1131 = vpack.c.b16 %v1099, %v1099
  %v1132 = vpack.c.b16 %v1100, %v1100
  %v1133 = vpack.c.b16 %v1101, %v1101
  %v1134 = vpack.c.b16 %v1102, %v1102
  %v1135 = vpack.c.b16 %v1103, %v1103
  %v1136 = vpack.c.b16 %v1104, %v1104
  %v1137 = vpack.c.b16 %v1105, %v1105
  %v1138 = vpack.c.b16 %v1106, %v1106
  %v1139 = vpack.c.b16 %v1107, %v1107
  %v1140 = vpack.c.b16 %v1108, %v1108
  %v1141 = vpack.c.b16 %v1109, %v1109
  %v1142 = vpack.c.b16 %v1110, %v1110
  %v1143 = vpack.c.b16 %v1111, %v1111
  %v1144 = vpack.c.b16 %v1112, %v1112
  %v1145 = vpack.c.b16 %v1113, %v1113
  %v1146 = vpack.c.b16 %v1114, %v1114
  %v1147 = vpack.c.b16 %v1115, %v1115
  %v1148 = vpack.c.b16 %v1116, %v1116
  %v1149 = vpack.c.b16 %v1117, %v1117
  %v2206 = vunpack.c.l.b16 %v36
  %v2207 = vunpack.c.h.b16 %v36
  %v2208 = vunpack.c.l.b16 %v37
  %v2209 = vunpack.c.h.b16 %v37
  %v2210 = vunpack.c.l.b16 %v38
  %v2211 = vunpack.c.h.b16 %v38
  %v2212 = vunpack.c.l.b16 %v39
  %v2213 = vunpack.c.h.b16 %v39
  %v2214 = vunpack.c.l.b16 %v40
  %v2215 = vunpack.c.h.b16 %v40
  %v2216 = vunpack.c.l.b16 %v41
  %v2217 = vunpack.c.h.b16 %v41
  %v2218 = vunpack.c.l.b16 %v42
  %v2219 = vunpack.c.h.b16 %v42
  %v2220 = vunpack.c.l.b16 %v43
  %v2221 = vunpack.c.h.b16 %v43
  %v2222 = vunpack.c.l.b16 %v44
  %v2223 = vunpack.c.h.b16 %v44
  %v2224 = vunpack.c.l.b16 %v45
  %v2225 = vunpack.c.h.b16 %v45
  %v2226 = vunpack.c.l.b16 %v46
  %v2227 = vunpack.c.h.b16 %v46
  %v2228 = vunpack.c.l.b16 %v47
  %v2229 = vunpack.c.h.b16 %v47
  %v2230 = vunpack.c.l.b16 %v48
  %v2231 = vunpack.c.h.b16 %v48
  %v2232 = vunpack.c.l.b16 %v49
  %v2233 = vunpack.c.h.b16 %v49
  %v2234 = vunpack.c.l.b16 %v50
  %v2235 = vunpack.c.h.b16 %v50
  %v2236 = vunpack.c.l.b16 %v51
  %v2237 = vunpack.c.h.b16 %v51
  %v2238 = vunpack.c.l.b16 %v52
  %v2239 = vunpack.c.h.b16 %v52
  %v2240 = vunpack.c.l.b16 %v53
  %v2241 = vunpack.c.h.b16 %v53
  %v2242 = vunpack.c.l.b16 %v54
  %v2243 = vunpack.c.h.b16 %v54
  %v2244 = vunpack.c.l.b16 %v55
  %v2245 = vunpack.c.h.b16 %v55
  %v2246 = vunpack.c.l.b16 %v56
  %v2247 = vunpack.c.h.b16 %v56
  %v2248 = vunpack.c.l.b16 %v57
  %v2249 = vunpack.c.h.b16 %v57
  %v2250 = vunpack.c.l.b16 %v58
  %v2251 = vunpack.c.h.b16 %v58
  %v2252 = vunpack.c.l.b16 %v59
  %v2253 = vunpack.c.h.b16 %v59
  %v2254 = vunpack.c.l.b16 %v60
  %v2255 = vunpack.c.h.b16 %v60
  %v2256 = vunpack.c.l.b16 %v61
  %v2257 = vunpack.c.h.b16 %v61
  %v2258 = vunpack.c.l.b16 %v62
  %v2259 = vunpack.c.h.b16 %v62
  %v2260 = vunpack.c.l.b16 %v63
  %v2261 = vunpack.c.h.b16 %v63
  %v2262 = vunpack.c.l.b16 %v64
  %v2263 = vunpack.c.h.b16 %v64
  %v2264 = vunpack.c.l.b16 %v65
  %v2265 = vunpack.c.h.b16 %v65
  %v2266 = vunpack.c.l.b16 %v66
  %v2267 = vunpack.c.h.b16 %v66
  %v2268 = vunpack.c.l.b16 %v67
  %v2269 = vunpack.c.h.b16 %v67
  %v2270 = vunpack.c.l.b16 %v68
  %v2271 = vunpack.c.h.b16 %v68
  %v2272 = vunpack.c.l.b16 %v69
  %v2273 = vunpack.c.h.b16 %v69
  %v2274 = vunpack.c.l.b16 %v70
  %v2275 = vunpack.c.h.b16 %v70
  %v2276 = vunpack.c.l.b16 %v71
  %v2277 = vunpack.c.h.b16 %v71
  %v2278 = vunpack.c.l.b16 %v72
  %v2279 = vunpack.c.h.b16 %v72
  %v2280 = vunpack.c.l.b16 %v73
  %v2281 = vunpack.c.h.b16 %v73
  %v2282 = vunpack.c.l.b16 %v74
  %v2283 = vunpack.c.h.b16 %v74
  %v2284 = vunpack.c.l.b16 %v75
  %v2285 = vunpack.c.h.b16 %v75
  %v2286 = vunpack.c.l.b16 %v76
  %v2287 = vunpack.c.h.b16 %v76
  %v2288 = vunpack.c.l.b16 %v77
  %v2289 = vunpack.c.h.b16 %v77
  %v2290 = vunpack.c.l.b16 %v78
  %v2291 = vunpack.c.h.b16 %v78
  %v2292 = vunpack.c.l.b16 %v79
  %v2293 = vunpack.c.h.b16 %v79
  %v2294 = vunpack.c.l.b16 %v80
  %v2295 = vunpack.c.h.b16 %v80
  %v2296 = vunpack.c.l.b16 %v81
  %v2297 = vunpack.c.h.b16 %v81
  %v2298 = vunpack.c.l.b16 %v82
  %v2299 = vunpack.c.h.b16 %v82
  %v2300 = vunpack.c.l.b16 %v83
  %v2301 = vunpack.c.h.b16 %v83
  %v2302 = vunpack.c.l.b16 %v84
  %v2303 = vunpack.c.h.b16 %v84
  %v2304 = vunpack.c.l.b16 %v85
  %v2305 = vunpack.c.h.b16 %v85
  %v2306 = vunpack.c.l.b16 %v86
  %v2307 = vunpack.c.h.b16 %v86
  %v2308 = vunpack.c.l.b16 %v87
  %v2309 = vunpack.c.h.b16 %v87
  %v2310 = vunpack.c.l.b16 %v88
  %v2311 = vunpack.c.h.b16 %v88
  %v2312 = vunpack.c.l.b16 %v89
  %v2313 = vunpack.c.h.b16 %v89
  %v2314 = vunpack.c.l.b16 %v90
  %v2315 = vunpack.c.h.b16 %v90
  %v2316 = vunpack.c.l.b16 %v91
  %v2317 = vunpack.c.h.b16 %v91
  %v2318 = vunpack.c.l.b16 %v92
  %v2319 = vunpack.c.h.b16 %v92
  %v2320 = vunpack.c.l.b16 %v93
  %v2321 = vunpack.c.h.b16 %v93
  %v2322 = vunpack.c.l.b16 %v94
  %v2323 = vunpack.c.h.b16 %v94
  %v2324 = vunpack.c.l.b16 %v95
  %v2325 = vunpack.c.h.b16 %v95
  %v2326 = vunpack.c.l.b16 %v96
  %v2327 = vunpack.c.h.b16 %v96
  %v2328 = vunpack.c.l.b16 %v97
  %v2329 = vunpack.c.h.b16 %v97
  %v2330 = vunpack.c.l.b16 %v98
  %v2331 = vunpack.c.h.b16 %v98
  %v2332 = vunpack.c.l.b16 %v99
  %v2333 = vunpack.c.h.b16 %v99
  %v2334 = vunpack.c.l.b16 %v100
  %v2335 = vunpack.c.h.b16 %v100
  %v2336 = vunpack.c.l.b16 %v101
  %v2337 = vunpack.c.h.b16 %v101
  %v2338 = vunpack.c.l.b16 %v102
  %v2339 = vunpack.c.h.b16 %v102
  %v2340 = vunpack.c.l.b16 %v103
  %v2341 = vunpack.c.h.b16 %v103
  %v2342 = vunpack.c.l.b16 %v104
  %v2343 = vunpack.c.h.b16 %v104
  %v2344 = vunpack.c.l.b16 %v105
  %v2345 = vunpack.c.h.b16 %v105
  %v2346 = vunpack.c.l.b16 %v106
  %v2347 = vunpack.c.h.b16 %v106
  %v2348 = vunpack.c.l.b16 %v107
  %v2349 = vunpack.c.h.b16 %v107
  %v2350 = vunpack.c.l.b16 %v108
  %v2351 = vunpack.c.h.b16 %v108
  %v2352 = vunpack.c.l.b16 %v109
  %v2353 = vunpack.c.h.b16 %v109
  %v2354 = vunpack.c.l.b16 %v110
  %v2355 = vunpack.c.h.b16 %v110
  %v2356 = vunpack.c.l.b16 %v111
  %v2357 = vunpack.c.h.b16 %v111
  %v2358 = vunpack.c.l.b16 %v112
  %v2359 = vunpack.c.h.b16 %v112
  %v2360 = vunpack.c.l.b16 %v113
  %v2361 = vunpack.c.h.b16 %v113
  %v2362 = vunpack.c.l.b16 %v114
  %v2363 = vunpack.c.h.b16 %v114
  %v2364 = vunpack.c.l.b16 %v115
  %v2365 = vunpack.c.h.b16 %v115
  %v2366 = vunpack.c.l.b16 %v116
  %v2367 = vunpack.c.h.b16 %v116
  %v2368 = vunpack.c.l.b16 %v117
  %v2369 = vunpack.c.h.b16 %v117
  %v2370 = vunpack.c.l.b16 %v118
  %v2371 = vunpack.c.h.b16 %v118
  %v2372 = vunpack.c.l.b16 %v119
  %v2373 = vunpack.c.h.b16 %v119
  %v2374 = vunpack.c.l.b16 %v120
  %v2375 = vunpack.c.h.b16 %v120
  %v2376 = vunpack.c.l.b16 %v121
  %v2377 = vunpack.c.h.b16 %v121
  %v2378 = vunpack.c.l.b16 %v122
  %v2379 = vunpack.c.h.b16 %v122
  %v2380 = vunpack.c.l.b16 %v123
  %v2381 = vunpack.c.h.b16 %v123
  %v2382 = vunpack.c.l.b16 %v124
  %v2383 = vunpack.c.h.b16 %v124
  %v2384 = vunpack.c.l.b16 %v125
  %v2385 = vunpack.c.h.b16 %v125
  %v2386 = vunpack.c.l.b16 %v126
  %v2387 = vunpack.c.h.b16 %v126
  %v2388 = vunpack.c.l.b16 %v127
  %v2389 = vunpack.c.h.b16 %v127
  %v2390 = vunpack.c.l.b16 %v128
  %v2391 = vunpack.c.h.b16 %v128
  %v2392 = vunpack.c.l.b16 %v129
  %v2393 = vunpack.c.h.b16 %v129
  %v2394 = vunpack.c.l.b16 %v130
  %v2395 = vunpack.c.h.b16 %v130
  %v2396 = vunpack.c.l.b16 %v131
  %v2397 = vunpack.c.h.b16 %v131
  %v2398 = vunpack.c.l.b16 %v132
  %v2399 = vunpack.c.h.b16 %v132
  %v2400 = vunpack.c.l.b16 %v133
  %v2401 = vunpack.c.h.b16 %v133
  %v2402 = vunpack.c.l.b16 %v134
  %v2403 = vunpack.c.h.b16 %v134
  %v2404 = vunpack.c.l.b16 %v135
  %v2405 = vunpack.c.h.b16 %v135
  %v2406 = vunpack.c.l.b16 %v136
  %v2407 = vunpack.c.h.b16 %v136
  %v2408 = vunpack.c.l.b16 %v137
  %v2409 = vunpack.c.h.b16 %v137
  %v2410 = vunpack.c.l.b16 %v138
  %v2411 = vunpack.c.h.b16 %v138
  %v2412 = vunpack.c.l.b16 %v139
  %v2413 = vunpack.c.h.b16 %v139
  %v2414 = vunpack.c.l.b16 %v140
  %v2415 = vunpack.c.h.b16 %v140
  %v2416 = vunpack.c.l.b16 %v141
  %v2417 = vunpack.c.h.b16 %v141
  %v2418 = vunpack.c.l.b16 %v142
  %v2419 = vunpack.c.h.b16 %v142
  %v2420 = vunpack.c.l.b16 %v143
  %v2421 = vunpack.c.h.b16 %v143
  %v2422 = vunpack.c.l.b16 %v144
  %v2423 = vunpack.c.h.b16 %v144
  %v2424 = vunpack.c.l.b16 %v145
  %v2425 = vunpack.c.h.b16 %v145
  %v2426 = vunpack.c.l.b16 %v146
  %v2427 = vunpack.c.h.b16 %v146
  %v2428 = vunpack.c.l.b16 %v147
  %v2429 = vunpack.c.h.b16 %v147
  %v2430 = vunpack.c.l.b16 %v148
  %v2431 = vunpack.c.h.b16 %v148
  %v2432 = vunpack.c.l.b16 %v149
  %v2433 = vunpack.c.h.b16 %v149
  %v2434 = vunpack.c.l.b16 %v150
  %v2435 = vunpack.c.h.b16 %v150
  %v2436 = vunpack.c.l.b16 %v151
  %v2437 = vunpack.c.h.b16 %v151
  %v2438 = vunpack.c.l.b16 %v152
  %v2439 = vunpack.c.h.b16 %v152
  %v2440 = vunpack.c.l.b16 %v153
  %v2441 = vunpack.c.h.b16 %v153
  %v2442 = vunpack.c.l.b16 %v154
  %v2443 = vunpack.c.h.b16 %v154
  %v2444 = vunpack.c.l.b16 %v155
  %v2445 = vunpack.c.h.b16 %v155
  %v2446 = vunpack.c.l.b16 %v156
  %v2447 = vunpack.c.h.b16 %v156
  %v2448 = vunpack.c.l.b16 %v157
  %v2449 = vunpack.c.h.b16 %v157
  %v2450 = vunpack.c.l.b16 %v158
  %v2451 = vunpack.c.h.b16 %v158
  %v2452 = vunpack.c.l.b16 %v159
  %v2453 = vunpack.c.h.b16 %v159
  %v2454 = vunpack.c.l.b16 %v160
  %v2455 = vunpack.c.h.b16 %v160
  %v2456 = vunpack.c.l.b16 %v161
  %v2457 = vunpack.c.h.b16 %v161
  %v2458 = vunpack.c.l.b16 %v162
  %v2459 = vunpack.c.h.b16 %v162
  %v2460 = vunpack.c.l.b16 %v163
  %v2461 = vunpack.c.h.b16 %v163
  %v2462 = vunpack.c.l.b16 %v164
  %v2463 = vunpack.c.h.b16 %v164
  %v2464 = vunpack.c.l.b16 %v165
  %v2465 = vunpack.c.h.b16 %v165
  %v2466 = vunpack.c.l.b16 %v166
  %v2467 = vunpack.c.h.b16 %v166
  %v2468 = vunpack.c.l.b16 %v167
  %v2469 = vunpack.c.h.b16 %v167
  %v2470 = vunpack.c.l.b16 %v168
  %v2471 = vunpack.c.h.b16 %v168
  %v2472 = vunpack.c.l.b16 %v169
  %v2473 = vunpack.c.h.b16 %v169
  %v2474 = vunpack.c.l.b16 %v170
  %v2475 = vunpack.c.h.b16 %v170
  %v2476 = vunpack.c.l.b16 %v171
  %v2477 = vunpack.c.h.b16 %v171
  %v2478 = vunpack.c.l.b16 %v172
  %v2479 = vunpack.c.h.b16 %v172
  %v2480 = vunpack.c.l.b16 %v173
  %v2481 = vunpack.c.h.b16 %v173
  %v2482 = vunpack.c.l.b16 %v174
  %v2483 = vunpack.c.h.b16 %v174
  %v2484 = vunpack.c.l.b16 %v175
  %v2485 = vunpack.c.h.b16 %v175
  %v2486 = vunpack.c.l.b16 %v176
  %v2487 = vunpack.c.h.b16 %v176
  %v2488 = vunpack.c.l.b16 %v177
  %v2489 = vunpack.c.h.b16 %v177
  %v2490 = vunpack.c.l.b16 %v178
  %v2491 = vunpack.c.h.b16 %v178
  %v2492 = vunpack.c.l.b16 %v179
  %v2493 = vunpack.c.h.b16 %v179
  %v2494 = vunpack.c.l.b16 %v180
  %v2495 = vunpack.c.h.b16 %v180
  %v2496 = vunpack.c.l.b16 %v181
  %v2497 = vunpack.c.h.b16 %v181
  %v2498 = vunpack.c.l.b16 %v182
  %v2499 = vunpack.c.h.b16 %v182
  %v2500 = vunpack.c.l.b16 %v183
  %v2501 = vunpack.c.h.b16 %v183
  %v2502 = vunpack.c.l.b16 %v184
  %v2503 = vunpack.c.h.b16 %v184
  %v2504 = vunpack.c.l.b16 %v185
  %v2505 = vunpack.c.h.b16 %v185
  %v2506 = vunpack.c.l.b16 %v186
  %v2507 = vunpack.c.h.b16 %v186
  %v2508 = vunpack.c.l.b16 %v187
  %v2509 = vunpack.c.h.b16 %v187
  %v2510 = vunpack.c.l.b16 %v188
  %v2511 = vunpack.c.h.b16 %v188
  %v2512 = vunpack.c.l.b16 %v189
  %v2513 = vunpack.c.h.b16 %v189
  %v2514 = vunpack.c.l.b16 %v190
  %v2515 = vunpack.c.h.b16 %v190
  %v2516 = vunpack.c.l.b16 %v191
  %v2517 = vunpack.c.h.b16 %v191
  %v2518 = vunpack.c.l.b16 %v192
  %v2519 = vunpack.c.h.b16 %v192
  %v2520 = vunpack.c.l.b16 %v193
  %v2521 = vunpack.c.h.b16 %v193
  %v2522 = vunpack.c.l.b16 %v194
  %v2523 = vunpack.c.h.b16 %v194
  %v2524 = vunpack.c.l.b16 %v195
  %v2525 = vunpack.c.h.b16 %v195
  %v2526 = vunpack.c.l.b16 %v196
  %v2527 = vunpack.c.h.b16 %v196
  %v2528 = vunpack.c.l.b16 %v197
  %v2529 = vunpack.c.h.b16 %v197
  %v2530 = vunpack.c.l.b16 %v198
  %v2531 = vunpack.c.h.b16 %v198
  %v2532 = vunpack.c.l.b16 %v199
  %v2533 = vunpack.c.h.b16 %v199
  %v2534 = vunpack.c.l.b16 %v200
  %v2535 = vunpack.c.h.b16 %v200
  %v2536 = vunpack.c.l.b16 %v201
  %v2537 = vunpack.c.h.b16 %v201
  %v2538 = vunpack.c.l.b16 %v202
  %v2539 = vunpack.c.h.b16 %v202
  %v2540 = vunpack.c.l.b16 %v203
  %v2541 = vunpack.c.h.b16 %v203
  %v2542 = vunpack.c.l.b16 %v204
  %v2543 = vunpack.c.h.b16 %v204
  %v2544 = vunpack.c.l.b16 %v205
  %v2545 = vunpack.c.h.b16 %v205
  %v2546 = vunpack.c.l.b16 %v206
  %v2547 = vunpack.c.h.b16 %v206
  %v2548 = vunpack.c.l.b16 %v207
  %v2549 = vunpack.c.h.b16 %v207
  %v2550 = vunpack.c.l.b16 %v208
  %v2551 = vunpack.c.h.b16 %v208
  %v2552 = vunpack.c.l.b16 %v209
  %v2553 = vunpack.c.h.b16 %v209
  %v2554 = vunpack.c.l.b16 %v210
  %v2555 = vunpack.c.h.b16 %v210
  %v2556 = vunpack.c.l.b16 %v211
  %v2557 = vunpack.c.h.b16 %v211
  %v2558 = vunpack.c.l.b16 %v212
  %v2559 = vunpack.c.h.b16 %v212
  %v2560 = vunpack.c.l.b16 %v213
  %v2561 = vunpack.c.h.b16 %v213
  %v2562 = vunpack.c.l.b16 %v214
  %v2563 = vunpack.c.h.b16 %v214
  %v2564 = vunpack.c.l.b16 %v215
  %v2565 = vunpack.c.h.b16 %v215
  %v2566 = vunpack.c.l.b16 %v216
  %v2567 = vunpack.c.h.b16 %v216
  %v2568 = vunpack.c.l.b16 %v217
  %v2569 = vunpack.c.h.b16 %v217
  %v2570 = vunpack.c.l.b16 %v218
  %v2571 = vunpack.c.h.b16 %v218
  %v2572 = vunpack.c.l.b16 %v219
  %v2573 = vunpack.c.h.b16 %v219
  %v2574 = vunpack.c.l.b16 %v220
  %v2575 = vunpack.c.h.b16 %v220
  %v2576 = vunpack.c.l.b16 %v221
  %v2577 = vunpack.c.h.b16 %v221
  %v2578 = vunpack.c.l.b16 %v222
  %v2579 = vunpack.c.h.b16 %v222
  %v2580 = vunpack.c.l.b16 %v223
  %v2581 = vunpack.c.h.b16 %v223
  %v2582 = vunpack.c.l.b16 %v224
  %v2583 = vunpack.c.h.b16 %v224
  %v2584 = vunpack.c.l.b16 %v225
  %v2585 = vunpack.c.h.b16 %v225
  %v2586 = vunpack.c.l.b16 %v226
  %v2587 = vunpack.c.h.b16 %v226
  %v2588 = vunpack.c.l.b16 %v227
  %v2589 = vunpack.c.h.b16 %v227
  %v2590 = vunpack.c.l.b16 %v228
  %v2591 = vunpack.c.h.b16 %v228
  %v2592 = vunpack.c.l.b16 %v229
  %v2593 = vunpack.c.h.b16 %v229
  %v2594 = vunpack.c.l.b16 %v230
  %v2595 = vunpack.c.h.b16 %v230
  %v2596 = vunpack.c.l.b16 %v231
  %v2597 = vunpack.c.h.b16 %v231
  %v2598 = vunpack.c.l.b16 %v232
  %v2599 = vunpack.c.h.b16 %v232
  %v2600 = vunpack.c.l.b16 %v233
  %v2601 = vunpack.c.h.b16 %v233
  %v2602 = vunpack.c.l.b16 %v234
  %v2603 = vunpack.c.h.b16 %v234
  %v2604 = vunpack.c.l.b16 %v235
  %v2605 = vunpack.c.h.b16 %v235
  %v2606 = vunpack.c.l.b16 %v236
  %v2607 = vunpack.c.h.b16 %v236
  %v2608 = vunpack.c.l.b16 %v237
  %v2609 = vunpack.c.h.b16 %v237
  %v2610 = vunpack.c.l.b16 %v238
  %v2611 = vunpack.c.h.b16 %v238
  %v2612 = vunpack.c.l.b16 %v239
  %v2613 = vunpack.c.h.b16 %v239
  %v2614 = vunpack.c.l.b16 %v240
  %v2615 = vunpack.c.h.b16 %v240
  %v2616 = vunpack.c.l.b16 %v241
  %v2617 = vunpack.c.h.b16 %v241
  %v2618 = vunpack.c.l.b16 %v242
  %v2619 = vunpack.c.h.b16 %v242
  %v2620 = vunpack.c.l.b16 %v243
  %v2621 = vunpack.c.h.b16 %v243
  %v2622 = vunpack.c.l.b16 %v244
  %v2623 = vunpack.c.h.b16 %v244
  %v2624 = vunpack.c.l.b16 %v245
  %v2625 = vunpack.c.h.b16 %v245
  %v2626 = vunpack.c.l.b16 %v246
  %v2627 = vunpack.c.h.b16 %v246
  %v2628 = vunpack.c.l.b16 %v247
  %v2629 = vunpack.c.h.b16 %v247
  %v2630 = vunpack.c.l.b16 %v248
  %v2631 = vunpack.c.h.b16 %v248
  %v2632 = vunpack.c.l.b16 %v249
  %v2633 = vunpack.c.h.b16 %v249
  %v2634 = vunpack.c.l.b16 %v250
  %v2635 = vunpack.c.h.b16 %v250
  %v2636 = vunpack.c.l.b16 %v251
  %v2637 = vunpack.c.h.b16 %v251
  %v2638 = vunpack.c.l.b16 %v252
  %v2639 = vunpack.c.h.b16 %v252
  %v2640 = vunpack.c.l.b16 %v253
  %v2641 = vunpack.c.h.b16 %v253
  %v2642 = vunpack.c.l.b16 %v254
  %v2643 = vunpack.c.h.b16 %v254
  %v2644 = vunpack.c.l.b16 %v255
  %v2645 = vunpack.c.h.b16 %v255
  %v2646 = vunpack.c.l.b16 %v256
  %v2647 = vunpack.c.h.b16 %v256
  %v2648 = vunpack.c.l.b16 %v257
  %v2649 = vunpack.c.h.b16 %v257
  %v2650 = vunpack.c.l.b16 %v258
  %v2651 = vunpack.c.h.b16 %v258
  %v2652 = vunpack.c.l.b16 %v259
  %v2653 = vunpack.c.h.b16 %v259
  %v2654 = vunpack.c.l.b16 %v260
  %v2655 = vunpack.c.h.b16 %v260
  %v2656 = vunpack.c.l.b16 %v261
  %v2657 = vunpack.c.h.b16 %v261
  %v2658 = vunpack.c.l.b16 %v262
  %v2659 = vunpack.c.h.b16 %v262
  %v2660 = vunpack.c.l.b16 %v263
  %v2661 = vunpack.c.h.b16 %v263
  %v2662 = vunpack.c.l.b16 %v264
  %v2663 = vunpack.c.h.b16 %v264
  %v2664 = vunpack.c.l.b16 %v265
  %v2665 = vunpack.c.h.b16 %v265
  %v2666 = vunpack.c.l.b16 %v266
  %v2667 = vunpack.c.h.b16 %v266
  %v2668 = vunpack.c.l.b16 %v267
  %v2669 = vunpack.c.h.b16 %v267
  %v2670 = vunpack.c.l.b16 %v268
  %v2671 = vunpack.c.h.b16 %v268
  %v2672 = vunpack.c.l.b16 %v269
  %v2673 = vunpack.c.h.b16 %v269
  %v2674 = vunpack.c.l.b16 %v270
  %v2675 = vunpack.c.h.b16 %v270
  %v2676 = vunpack.c.l.b16 %v271
  %v2677 = vunpack.c.h.b16 %v271
  %v2678 = vunpack.c.l.b16 %v272
  %v2679 = vunpack.c.h.b16 %v272
  %v2680 = vunpack.c.l.b16 %v273
  %v2681 = vunpack.c.h.b16 %v273
  %v2682 = vunpack.c.l.b16 %v274
  %v2683 = vunpack.c.h.b16 %v274
  %v2684 = vunpack.c.l.b16 %v275
  %v2685 = vunpack.c.h.b16 %v275
  %v2686 = vunpack.c.l.b16 %v276
  %v2687 = vunpack.c.h.b16 %v276
  %v2688 = vunpack.c.l.b16 %v277
  %v2689 = vunpack.c.h.b16 %v277
  %v2690 = vunpack.c.l.b16 %v278
  %v2691 = vunpack.c.h.b16 %v278
  %v2692 = vunpack.c.l.b16 %v279
  %v2693 = vunpack.c.h.b16 %v279
  %v2694 = vunpack.c.l.b16 %v280
  %v2695 = vunpack.c.h.b16 %v280
  %v2696 = vunpack.c.l.b16 %v281
  %v2697 = vunpack.c.h.b16 %v281
  %v2698 = vunpack.c.l.b16 %v282
  %v2699 = vunpack.c.h.b16 %v282
  %v2700 = vunpack.c.l.b16 %v283
  %v2701 = vunpack.c.h.b16 %v283
  %v2702 = vunpack.c.l.b16 %v284
  %v2703 = vunpack.c.h.b16 %v284
  %v2704 = vunpack.c.l.b16 %v285
  %v2705 = vunpack.c.h.b16 %v285
  %v2706 = vunpack.c.l.b16 %v286
  %v2707 = vunpack.c.h.b16 %v286
  %v2708 = vunpack.c.l.b16 %v287
  %v2709 = vunpack.c.h.b16 %v287
  %v2710 = vunpack.c.l.b16 %v288
  %v2711 = vunpack.c.h.b16 %v288
  %v2712 = vunpack.c.l.b16 %v289
  %v2713 = vunpack.c.h.b16 %v289
  %v2714 = vunpack.c.l.b16 %v290
  %v2715 = vunpack.c.h.b16 %v290
  %v2716 = vunpack.c.l.b16 %v291
  %v2717 = vunpack.c.h.b16 %v291
  %v2718 = vunpack.c.l.b16 %v292
  %v2719 = vunpack.c.h.b16 %v292
  %v2720 = vunpack.c.l.b16 %v293
  %v2721 = vunpack.c.h.b16 %v293
  %v2722 = vunpack.c.l.b16 %v294
  %v2723 = vunpack.c.h.b16 %v294
  %v2724 = vunpack.c.l.b16 %v295
  %v2725 = vunpack.c.h.b16 %v295
  %v2726 = vunpack.c.l.b16 %v296
  %v2727 = vunpack.c.h.b16 %v296
  %v2728 = vunpack.c.l.b16 %v297
  %v2729 = vunpack.c.h.b16 %v297
  %v2730 = vunpack.c.l.b16 %v298
  %v2731 = vunpack.c.h.b16 %v298
  %v2732 = vunpack.c.l.b16 %v299
  %v2733 = vunpack.c.h.b16 %v299
  %v2734 = vunpack.c.l.b16 %v300
  %v2735 = vunpack.c.h.b16 %v300
  %v2736 = vunpack.c.l.b16 %v301
  %v2737 = vunpack.c.h.b16 %v301
  %v2738 = vunpack.c.l.b16 %v302
  %v2739 = vunpack.c.h.b16 %v302
  %v2740 = vunpack.c.l.b16 %v303
  %v2741 = vunpack.c.h.b16 %v303
  %v2742 = vunpack.c.l.b16 %v304
  %v2743 = vunpack.c.h.b16 %v304
  %v2744 = vunpack.c.l.b16 %v305
  %v2745 = vunpack.c.h.b16 %v305
  %v2746 = vunpack.c.l.b16 %v306
  %v2747 = vunpack.c.h.b16 %v306
  %v2748 = vunpack.c.l.b16 %v307
  %v2749 = vunpack.c.h.b16 %v307
  %v2750 = vunpack.c.l.b16 %v308
  %v2751 = vunpack.c.h.b16 %v308
  %v2752 = vunpack.c.l.b16 %v309
  %v2753 = vunpack.c.h.b16 %v309
  %v2754 = vunpack.c.l.b16 %v310
  %v2755 = vunpack.c.h.b16 %v310
  %v2756 = vunpack.c.l.b16 %v311
  %v2757 = vunpack.c.h.b16 %v311
  %v2758 = vunpack.c.l.b16 %v312
  %v2759 = vunpack.c.h.b16 %v312
  %v2760 = vunpack.c.l.b16 %v313
  %v2761 = vunpack.c.h.b16 %v313
  %v2762 = vunpack.c.l.b16 %v314
  %v2763 = vunpack.c.h.b16 %v314
  %v2764 = vunpack.c.l.b16 %v315
  %v2765 = vunpack.c.h.b16 %v315
  %v2766 = vunpack.c.l.b16 %v316
  %v2767 = vunpack.c.h.b16 %v316
  %v2768 = vunpack.c.l.b16 %v317
  %v2769 = vunpack.c.h.b16 %v317
  %v2770 = vunpack.c.l.b16 %v318
  %v2771 = vunpack.c.h.b16 %v318
  %v2772 = vunpack.c.l.b16 %v319
  %v2773 = vunpack.c.h.b16 %v319
  %v2774 = vunpack.c.l.b16 %v320
  %v2775 = vunpack.c.h.b16 %v320
  %v2776 = vunpack.c.l.b16 %v321
  %v2777 = vunpack.c.h.b16 %v321
  %v2778 = vunpack.c.l.b16 %v322
  %v2779 = vunpack.c.h.b16 %v322
  %v2780 = vunpack.c.l.b16 %v323
  %v2781 = vunpack.c.h.b16 %v323
  %v2782 = vunpack.c.l.b16 %v324
  %v2783 = vunpack.c.h.b16 %v324
  %v2784 = vunpack.c.l.b16 %v325
  %v2785 = vunpack.c.h.b16 %v325
  %v2786 = vunpack.c.l.b16 %v326
  %v2787 = vunpack.c.h.b16 %v326
  %v2788 = vunpack.c.l.b16 %v327
  %v2789 = vunpack.c.h.b16 %v327
  %v2790 = vunpack.c.l.b16 %v328
  %v2791 = vunpack.c.h.b16 %v328
  %v2792 = vunpack.c.l.b16 %v329
  %v2793 = vunpack.c.h.b16 %v329
  %v2794 = vunpack.c.l.b16 %v330
  %v2795 = vunpack.c.h.b16 %v330
  %v2796 = vunpack.c.l.b16 %v331
  %v2797 = vunpack.c.h.b16 %v331
  %v2798 = vunpack.c.l.b16 %v332
  %v2799 = vunpack.c.h.b16 %v332
  %v2800 = vunpack.c.l.b16 %v333
  %v2801 = vunpack.c.h.b16 %v333
  %v2802 = vunpack.c.l.b16 %v334
  %v2803 = vunpack.c.h.b16 %v334
  %v2804 = vunpack.c.l.b16 %v335
  %v2805 = vunpack.c.h.b16 %v335
  %v2806 = vunpack.c.l.b16 %v336
  %v2807 = vunpack.c.h.b16 %v336
  %v2808 = vunpack.c.l.b16 %v337
  %v2809 = vunpack.c.h.b16 %v337
  %v2810 = vunpack.c.l.b16 %v338
  %v2811 = vunpack.c.h.b16 %v338
  %v2812 = vunpack.c.l.b16 %v339
  %v2813 = vunpack.c.h.b16 %v339
  %v2814 = vunpack.c.l.b16 %v340
  %v2815 = vunpack.c.h.b16 %v340
  %v2816 = vunpack.c.l.b16 %v341
  %v2817 = vunpack.c.h.b16 %v341
  %v2818 = vunpack.c.l.b16 %v342
  %v2819 = vunpack.c.h.b16 %v342
  %v2820 = vunpack.c.l.b16 %v343
  %v2821 = vunpack.c.h.b16 %v343
  %v2822 = vunpack.c.l.b16 %v344
  %v2823 = vunpack.c.h.b16 %v344
  %v2824 = vunpack.c.l.b16 %v345
  %v2825 = vunpack.c.h.b16 %v345
  %v2826 = vunpack.c.l.b16 %v346
  %v2827 = vunpack.c.h.b16 %v346
  %v2828 = vunpack.c.l.b16 %v347
  %v2829 = vunpack.c.h.b16 %v347
  %v2830 = vunpack.c.l.b16 %v348
  %v2831 = vunpack.c.h.b16 %v348
  %v2832 = vunpack.c.l.b16 %v349
  %v2833 = vunpack.c.h.b16 %v349
  %v2834 = vunpack.c.l.b16 %v350
  %v2835 = vunpack.c.h.b16 %v350
  %v2836 = vunpack.c.l.b16 %v351
  %v2837 = vunpack.c.h.b16 %v351
  %v2838 = vunpack.c.l.b16 %v352
  %v2839 = vunpack.c.h.b16 %v352
  %v2840 = vunpack.c.l.b16 %v353
  %v2841 = vunpack.c.h.b16 %v353
  %v2842 = vunpack.c.l.b16 %v354
  %v2843 = vunpack.c.h.b16 %v354
  %v2844 = vunpack.c.l.b16 %v355
  %v2845 = vunpack.c.h.b16 %v355
  %v2846 = vunpack.c.l.b16 %v356
  %v2847 = vunpack.c.h.b16 %v356
  %v2848 = vunpack.c.l.b16 %v357
  %v2849 = vunpack.c.h.b16 %v357
  %v2850 = vunpack.c.l.b16 %v358
  %v2851 = vunpack.c.h.b16 %v358
  %v2852 = vunpack.c.l.b16 %v359
  %v2853 = vunpack.c.h.b16 %v359
  %v2854 = vunpack.c.l.b16 %v360
  %v2855 = vunpack.c.h.b16 %v360
  %v2856 = vunpack.c.l.b16 %v361
  %v2857 = vunpack.c.h.b16 %v361
  %v2858 = vunpack.c.l.b16 %v362
  %v2859 = vunpack.c.h.b16 %v362
  %v2860 = vunpack.c.l.b16 %v363
  %v2861 = vunpack.c.h.b16 %v363
  %v2862 = vunpack.c.l.b16 %v364
  %v2863 = vunpack.c.h.b16 %v364
  %v2864 = vunpack.c.l.b16 %v365
  %v2865 = vunpack.c.h.b16 %v365
  %v2866 = vunpack.c.l.b16 %v366
  %v2867 = vunpack.c.h.b16 %v366
  %v2868 = vunpack.c.l.b16 %v367
  %v2869 = vunpack.c.h.b16 %v367
  %v2870 = vunpack.c.l.b16 %v368
  %v2871 = vunpack.c.h.b16 %v368
  %v2872 = vunpack.c.l.b16 %v369
  %v2873 = vunpack.c.h.b16 %v369
  %v2874 = vunpack.c.l.b16 %v370
  %v2875 = vunpack.c.h.b16 %v370
  %v2876 = vunpack.c.l.b16 %v371
  %v2877 = vunpack.c.h.b16 %v371
  %v2878 = vunpack.c.l.b16 %v372
  %v2879 = vunpack.c.h.b16 %v372
  %v2880 = vunpack.c.l.b16 %v373
  %v2881 = vunpack.c.h.b16 %v373
  %v2882 = vunpack.c.l.b16 %v374
  %v2883 = vunpack.c.h.b16 %v374
  %v2884 = vunpack.c.l.b16 %v375
  %v2885 = vunpack.c.h.b16 %v375
  %v2886 = vunpack.c.l.b16 %v376
  %v2887 = vunpack.c.h.b16 %v376
  %v2888 = vunpack.c.l.b16 %v377
  %v2889 = vunpack.c.h.b16 %v377
  %v2890 = vunpack.c.l.b16 %v378
  %v2891 = vunpack.c.h.b16 %v378
  %v2892 = vunpack.c.l.b16 %v379
  %v2893 = vunpack.c.h.b16 %v379
  %v2894 = vunpack.c.l.b16 %v380
  %v2895 = vunpack.c.h.b16 %v380
  %v2896 = vunpack.c.l.b16 %v381
  %v2897 = vunpack.c.h.b16 %v381
  %v2898 = vunpack.c.l.b16 %v382
  %v2899 = vunpack.c.h.b16 %v382
  %v2900 = vunpack.c.l.b16 %v383
  %v2901 = vunpack.c.h.b16 %v383
  %v2902 = vunpack.c.l.b16 %v384
  %v2903 = vunpack.c.h.b16 %v384
  %v2904 = vunpack.c.l.b16 %v385
  %v2905 = vunpack.c.h.b16 %v385
  %v2906 = vunpack.c.l.b16 %v386
  %v2907 = vunpack.c.h.b16 %v386
  %v2908 = vunpack.c.l.b16 %v387
  %v2909 = vunpack.c.h.b16 %v387
  %v2910 = vunpack.c.l.b16 %v388
  %v2911 = vunpack.c.h.b16 %v388
  %v2912 = vunpack.c.l.b16 %v389
  %v2913 = vunpack.c.h.b16 %v389
  %v2914 = vunpack.c.l.b16 %v390
  %v2915 = vunpack.c.h.b16 %v390
  %v2916 = vunpack.c.l.b16 %v391
  %v2917 = vunpack.c.h.b16 %v391
  %v2918 = vunpack.c.l.b16 %v392
  %v2919 = vunpack.c.h.b16 %v392
  %v2920 = vunpack.c.l.b16 %v393
  %v2921 = vunpack.c.h.b16 %v393
  %v2922 = vunpack.c.l.b16 %v394
  %v2923 = vunpack.c.h.b16 %v394
  %v2924 = vunpack.c.l.b16 %v395
  %v2925 = vunpack.c.h.b16 %v395
  %v2926 = vunpack.c.l.b16 %v396
  %v2927 = vunpack.c.h.b16 %v396
  %v2928 = vunpack.c.l.b16 %v397
  %v2929 = vunpack.c.h.b16 %v397
  %v2930 = vunpack.c.l.b16 %v398
  %v2931 = vunpack.c.h.b16 %v398
  %v2932 = vunpack.c.l.b16 %v399
  %v2933 = vunpack.c.h.b16 %v399
  %v2934 = vunpack.c.l.b16 %v400
  %v2935 = vunpack.c.h.b16 %v400
  %v2936 = vunpack.c.l.b16 %v401
  %v2937 = vunpack.c.h.b16 %v401
  %v2938 = vunpack.c.l.b16 %v402
  %v2939 = vunpack.c.h.b16 %v402
  %v2940 = vunpack.c.l.b16 %v403
  %v2941 = vunpack.c.h.b16 %v403
  %v2942 = vunpack.c.l.b16 %v404
  %v2943 = vunpack.c.h.b16 %v404
  %v2944 = vunpack.c.l.b16 %v405
  %v2945 = vunpack.c.h.b16 %v405
  %v2946 = vunpack.c.l.b16 %v406
  %v2947 = vunpack.c.h.b16 %v406
  %v2948 = vunpack.c.l.b16 %v407
  %v2949 = vunpack.c.h.b16 %v407
  %v2950 = vunpack.c.l.b16 %v408
  %v2951 = vunpack.c.h.b16 %v408
  %v2952 = vunpack.c.l.b16 %v409
  %v2953 = vunpack.c.h.b16 %v409
  %v2954 = vunpack.c.l.b16 %v410
  %v2955 = vunpack.c.h.b16 %v410
  %v2956 = vunpack.c.l.b16 %v411
  %v2957 = vunpack.c.h.b16 %v411
  %v2958 = vunpack.c.l.b16 %v412
  %v2959 = vunpack.c.h.b16 %v412
  %v2960 = vunpack.c.l.b16 %v413
  %v2961 = vunpack.c.h.b16 %v413
  %v2962 = vunpack.c.l.b16 %v414
  %v2963 = vunpack.c.h.b16 %v414
  %v2964 = vunpack.c.l.b16 %v415
  %v2965 = vunpack.c.h.b16 %v415
  %v2966 = vunpack.c.l.b16 %v416
  %v2967 = vunpack.c.h.b16 %v416
  %v2968 = vunpack.c.l.b16 %v417
  %v2969 = vunpack.c.h.b16 %v417
  %v2970 = vunpack.c.l.b16 %v418
  %v2971 = vunpack.c.h.b16 %v418
  %v2972 = vunpack.c.l.b16 %v419
  %v2973 = vunpack.c.h.b16 %v419
  %v2974 = vunpack.c.l.b16 %v420
  %v2975 = vunpack.c.h.b16 %v420
  %v2976 = vunpack.c.l.b16 %v421
  %v2977 = vunpack.c.h.b16 %v421
  %v2978 = vunpack.c.l.b16 %v422
  %v2979 = vunpack.c.h.b16 %v422
  %v2980 = vunpack.c.l.b16 %v423
  %v2981 = vunpack.c.h.b16 %v423
  %v2982 = vunpack.c.l.b16 %v424
  %v2983 = vunpack.c.h.b16 %v424
  %v2984 = vunpack.c.l.b16 %v425
  %v2985 = vunpack.c.h.b16 %v425
  %v2986 = vunpack.c.l.b16 %v426
  %v2987 = vunpack.c.h.b16 %v426
  %v2988 = vunpack.c.l.b16 %v427
  %v2989 = vunpack.c.h.b16 %v427
  %v2990 = vunpack.c.l.b16 %v428
  %v2991 = vunpack.c.h.b16 %v428
  %v2992 = vunpack.c.l.b16 %v429
  %v2993 = vunpack.c.h.b16 %v429
  %v2994 = vunpack.c.l.b16 %v430
  %v2995 = vunpack.c.h.b16 %v430
  %v2996 = vunpack.c.l.b16 %v431
  %v2997 = vunpack.c.h.b16 %v431
  %v2998 = vunpack.c.l.b16 %v432
  %v2999 = vunpack.c.h.b16 %v432
  %v3000 = vunpack.c.l.b16 %v433
  %v3001 = vunpack.c.h.b16 %v433
  %v3002 = vunpack.c.l.b16 %v434
  %v3003 = vunpack.c.h.b16 %v434
  %v3004 = vunpack.c.l.b16 %v435
  %v3005 = vunpack.c.h.b16 %v435
  %v3006 = vunpack.c.l.b16 %v436
  %v3007 = vunpack.c.h.b16 %v436
  %v3008 = vunpack.c.l.b16 %v437
  %v3009 = vunpack.c.h.b16 %v437
  %v3010 = vunpack.c.l.b16 %v438
  %v3011 = vunpack.c.h.b16 %v438
  %v3012 = vunpack.c.l.b16 %v439
  %v3013 = vunpack.c.h.b16 %v439
  %v3014 = vunpack.c.l.b16 %v440
  %v3015 = vunpack.c.h.b16 %v440
  %v3016 = vunpack.c.l.b16 %v441
  %v3017 = vunpack.c.h.b16 %v441
  %v3018 = vunpack.c.l.b16 %v442
  %v3019 = vunpack.c.h.b16 %v442
  %v3020 = vunpack.c.l.b16 %v443
  %v3021 = vunpack.c.h.b16 %v443
  %v3022 = vunpack.c.l.b16 %v444
  %v3023 = vunpack.c.h.b16 %v444
  %v3024 = vunpack.c.l.b16 %v445
  %v3025 = vunpack.c.h.b16 %v445
  %v3026 = vunpack.c.l.b16 %v446
  %v3027 = vunpack.c.h.b16 %v446
  %v3028 = vunpack.c.l.b16 %v447
  %v3029 = vunpack.c.h.b16 %v447
  %v3030 = vunpack.c.l.b16 %v448
  %v3031 = vunpack.c.h.b16 %v448
  %v3032 = vunpack.c.l.b16 %v449
  %v3033 = vunpack.c.h.b16 %v449
  %v3034 = vunpack.c.l.b16 %v450
  %v3035 = vunpack.c.h.b16 %v450
  %v3036 = vunpack.c.l.b16 %v451
  %v3037 = vunpack.c.h.b16 %v451
  %v3038 = vunpack.c.l.b16 %v452
  %v3039 = vunpack.c.h.b16 %v452
  %v3040 = vunpack.c.l.b16 %v453
  %v3041 = vunpack.c.h.b16 %v453
  %v3042 = vunpack.c.l.b16 %v454
  %v3043 = vunpack.c.h.b16 %v454
  %v3044 = vunpack.c.l.b16 %v455
  %v3045 = vunpack.c.h.b16 %v455
  %v3046 = vunpack.c.l.b16 %v456
  %v3047 = vunpack.c.h.b16 %v456
  %v3048 = vunpack.c.l.b16 %v457
  %v3049 = vunpack.c.h.b16 %v457
  %v3050 = vunpack.c.l.b16 %v458
  %v3051 = vunpack.c.h.b16 %v458
  %v3052 = vunpack.c.l.b16 %v459
  %v3053 = vunpack.c.h.b16 %v459
  %v3054 = vunpack.c.l.b16 %v460
  %v3055 = vunpack.c.h.b16 %v460
  %v3056 = vunpack.c.l.b16 %v461
  %v3057 = vunpack.c.h.b16 %v461
  %v3058 = vunpack.c.l.b16 %v462
  %v3059 = vunpack.c.h.b16 %v462
  %v3060 = vunpack.c.l.b16 %v463
  %v3061 = vunpack.c.h.b16 %v463
  %v3062 = vunpack.c.l.b16 %v464
  %v3063 = vunpack.c.h.b16 %v464
  %v3064 = vunpack.c.l.b16 %v465
  %v3065 = vunpack.c.h.b16 %v465
  %v3066 = vunpack.c.l.b16 %v466
  %v3067 = vunpack.c.h.b16 %v466
  %v3068 = vunpack.c.l.b16 %v467
  %v3069 = vunpack.c.h.b16 %v467
  %v3070 = vunpack.c.l.b16 %v468
  %v3071 = vunpack.c.h.b16 %v468
  %v3072 = vunpack.c.l.b16 %v469
  %v3073 = vunpack.c.h.b16 %v469
  %v3074 = vunpack.c.l.b16 %v470
  %v3075 = vunpack.c.h.b16 %v470
  %v3076 = vunpack.c.l.b16 %v471
  %v3077 = vunpack.c.h.b16 %v471
  %v3078 = vunpack.c.l.b16 %v472
  %v3079 = vunpack.c.h.b16 %v472
  %v3080 = vunpack.c.l.b16 %v473
  %v3081 = vunpack.c.h.b16 %v473
  %v3082 = vunpack.c.l.b16 %v474
  %v3083 = vunpack.c.h.b16 %v474
  %v3084 = vunpack.c.l.b16 %v475
  %v3085 = vunpack.c.h.b16 %v475
  %v3086 = vunpack.c.l.b16 %v476
  %v3087 = vunpack.c.h.b16 %v476
  %v3088 = vunpack.c.l.b16 %v477
  %v3089 = vunpack.c.h.b16 %v477
  %v3090 = vunpack.c.l.b16 %v478
  %v3091 = vunpack.c.h.b16 %v478
  %v3092 = vunpack.c.l.b16 %v479
  %v3093 = vunpack.c.h.b16 %v479
  %v3094 = vunpack.c.l.b16 %v480
  %v3095 = vunpack.c.h.b16 %v480
  %v3096 = vunpack.c.l.b16 %v481
  %v3097 = vunpack.c.h.b16 %v481
  %v3098 = vunpack.c.l.b16 %v482
  %v3099 = vunpack.c.h.b16 %v482
  %v3100 = vunpack.c.l.b16 %v483
  %v3101 = vunpack.c.h.b16 %v483
  %v3102 = vunpack.c.l.b16 %v484
  %v3103 = vunpack.c.h.b16 %v484
  %v3104 = vunpack.c.l.b16 %v485
  %v3105 = vunpack.c.h.b16 %v485
  %v3106 = vunpack.c.l.b16 %v486
  %v3107 = vunpack.c.h.b16 %v486
  %v3108 = vunpack.c.l.b16 %v487
  %v3109 = vunpack.c.h.b16 %v487
  %v3110 = vunpack.c.l.b16 %v488
  %v3111 = vunpack.c.h.b16 %v488
  %v3112 = vunpack.c.l.b16 %v489
  %v3113 = vunpack.c.h.b16 %v489
  %v3114 = vunpack.c.l.b16 %v490
  %v3115 = vunpack.c.h.b16 %v490
  %v3116 = vunpack.c.l.b16 %v491
  %v3117 = vunpack.c.h.b16 %v491
  %v3118 = vunpack.c.l.b16 %v492
  %v3119 = vunpack.c.h.b16 %v492
  %v3120 = vunpack.c.l.b16 %v493
  %v3121 = vunpack.c.h.b16 %v493
  %v3122 = vunpack.c.l.b16 %v494
  %v3123 = vunpack.c.h.b16 %v494
  %v3124 = vunpack.c.l.b16 %v495
  %v3125 = vunpack.c.h.b16 %v495
  %v3126 = vunpack.c.l.b16 %v496
  %v3127 = vunpack.c.h.b16 %v496
  %v3128 = vunpack.c.l.b16 %v497
  %v3129 = vunpack.c.h.b16 %v497
  %v3130 = vunpack.c.l.b16 %v498
  %v3131 = vunpack.c.h.b16 %v498
  %v3132 = vunpack.c.l.b16 %v499
  %v3133 = vunpack.c.h.b16 %v499
  %v3134 = vunpack.c.l.b16 %v500
  %v3135 = vunpack.c.h.b16 %v500
  %v3136 = vunpack.c.l.b16 %v501
  %v3137 = vunpack.c.h.b16 %v501
  %v3138 = vunpack.c.l.b16 %v502
  %v3139 = vunpack.c.h.b16 %v502
  %v3140 = vunpack.c.l.b16 %v503
  %v3141 = vunpack.c.h.b16 %v503
  %v3142 = vunpack.c.l.b16 %v504
  %v3143 = vunpack.c.h.b16 %v504
  %v3144 = vunpack.c.l.b16 %v505
  %v3145 = vunpack.c.h.b16 %v505
  %v3146 = vunpack.c.l.b16 %v506
  %v3147 = vunpack.c.h.b16 %v506
  %v3148 = vunpack.c.l.b16 %v507
  %v3149 = vunpack.c.h.b16 %v507
  %v3150 = vunpack.c.l.b16 %v508
  %v3151 = vunpack.c.h.b16 %v508
  %v3152 = vunpack.c.l.b16 %v509
  %v3153 = vunpack.c.h.b16 %v509
  %v3154 = vunpack.c.l.b16 %v510
  %v3155 = vunpack.c.h.b16 %v510
  %v3156 = vunpack.c.l.b16 %v511
  %v3157 = vunpack.c.h.b16 %v511
  %v3158 = vunpack.c.l.b16 %v512
  %v3159 = vunpack.c.h.b16 %v512
  %v3160 = vunpack.c.l.b16 %v513
  %v3161 = vunpack.c.h.b16 %v513
  %v3162 = vunpack.c.l.b16 %v514
  %v3163 = vunpack.c.h.b16 %v514
  %v3164 = vunpack.c.l.b16 %v515
  %v3165 = vunpack.c.h.b16 %v515
  %v3166 = vunpack.c.l.b16 %v516
  %v3167 = vunpack.c.h.b16 %v516
  %v3168 = vunpack.c.l.b16 %v517
  %v3169 = vunpack.c.h.b16 %v517
  %v3170 = vunpack.c.l.b16 %v518
  %v3171 = vunpack.c.h.b16 %v518
  %v3172 = vunpack.c.l.b16 %v519
  %v3173 = vunpack.c.h.b16 %v519
  %v3174 = vunpack.c.l.b16 %v520
  %v3175 = vunpack.c.h.b16 %v520
  %v3176 = vunpack.c.l.b16 %v521
  %v3177 = vunpack.c.h.b16 %v521
  %v3178 = vunpack.c.l.b16 %v522
  %v3179 = vunpack.c.h.b16 %v522
  %v3180 = vunpack.c.l.b16 %v523
  %v3181 = vunpack.c.h.b16 %v523
  %v3182 = vunpack.c.l.b16 %v524
  %v3183 = vunpack.c.h.b16 %v524
  %v3184 = vunpack.c.l.b16 %v525
  %v3185 = vunpack.c.h.b16 %v525
  %v3186 = vunpack.c.l.b16 %v526
  %v3187 = vunpack.c.h.b16 %v526
  %v3188 = vunpack.c.l.b16 %v527
  %v3189 = vunpack.c.h.b16 %v527
  %v3190 = vunpack.c.l.b16 %v528
  %v3191 = vunpack.c.h.b16 %v528
  %v3192 = vunpack.c.l.b16 %v529
  %v3193 = vunpack.c.h.b16 %v529
  %v3194 = vunpack.c.l.b16 %v530
  %v3195 = vunpack.c.h.b16 %v530
  %v3196 = vunpack.c.l.b16 %v531
  %v3197 = vunpack.c.h.b16 %v531
  %v3198 = vunpack.c.l.b16 %v532
  %v3199 = vunpack.c.h.b16 %v532
  %v3200 = vunpack.c.l.b16 %v533
  %v3201 = vunpack.c.h.b16 %v533
  %v3202 = vunpack.c.l.b16 %v534
  %v3203 = vunpack.c.h.b16 %v534
  %v3204 = vunpack.c.l.b16 %v535
  %v3205 = vunpack.c.h.b16 %v535
  %v3206 = vunpack.c.l.b16 %v536
  %v3207 = vunpack.c.h.b16 %v536
  %v3208 = vunpack.c.l.b16 %v537
  %v3209 = vunpack.c.h.b16 %v537
  %v3210 = vunpack.c.l.b16 %v538
  %v3211 = vunpack.c.h.b16 %v538
  %v3212 = vunpack.c.l.b16 %v539
  %v3213 = vunpack.c.h.b16 %v539
  %v3214 = vunpack.c.l.b16 %v540
  %v3215 = vunpack.c.h.b16 %v540
  %v3216 = vunpack.c.l.b16 %v541
  %v3217 = vunpack.c.h.b16 %v541
  %v3218 = vunpack.c.l.b16 %v542
  %v3219 = vunpack.c.h.b16 %v542
  %v3220 = vunpack.c.l.b16 %v543
  %v3221 = vunpack.c.h.b16 %v543
  %v3222 = vunpack.c.l.b16 %v544
  %v3223 = vunpack.c.h.b16 %v544
  %v3224 = vunpack.c.l.b16 %v545
  %v3225 = vunpack.c.h.b16 %v545
  %v3226 = vunpack.c.l.b16 %v546
  %v3227 = vunpack.c.h.b16 %v546
  %v3228 = vunpack.c.l.b16 %v547
  %v3229 = vunpack.c.h.b16 %v547
  %v3230 = vunpack.c.l.b16 %v548
  %v3231 = vunpack.c.h.b16 %v548
  %v3232 = vunpack.c.l.b16 %v549
  %v3233 = vunpack.c.h.b16 %v549
  %v3234 = vunpack.c.l.b16 %v550
  %v3235 = vunpack.c.h.b16 %v550
  %v3236 = vunpack.c.l.b16 %v551
  %v3237 = vunpack.c.h.b16 %v551
  %v3238 = vunpack.c.l.b16 %v552
  %v3239 = vunpack.c.h.b16 %v552
  %v3240 = vunpack.c.l.b16 %v553
  %v3241 = vunpack.c.h.b16 %v553
  %v3242 = vunpack.c.l.b16 %v554
  %v3243 = vunpack.c.h.b16 %v554
  %v3244 = vunpack.c.l.b16 %v555
  %v3245 = vunpack.c.h.b16 %v555
  %v3246 = vunpack.c.l.b16 %v556
  %v3247 = vunpack.c.h.b16 %v556
  %v3248 = vunpack.c.l.b16 %v557
  %v3249 = vunpack.c.h.b16 %v557
  %v3250 = vunpack.c.l.b16 %v558
  %v3251 = vunpack.c.h.b16 %v558
  %v3252 = vunpack.c.l.b16 %v559
  %v3253 = vunpack.c.h.b16 %v559
  %v3254 = vunpack.c.l.b16 %v560
  %v3255 = vunpack.c.h.b16 %v560
  %v3256 = vunpack.c.l.b16 %v561
  %v3257 = vunpack.c.h.b16 %v561
  %v3258 = vunpack.c.l.b16 %v562
  %v3259 = vunpack.c.h.b16 %v562
  %v3260 = vunpack.c.l.b16 %v563
  %v3261 = vunpack.c.h.b16 %v563
  %v3262 = vunpack.c.l.b16 %v564
  %v3263 = vunpack.c.h.b16 %v564
  %v3264 = vunpack.c.l.b16 %v565
  %v3265 = vunpack.c.h.b16 %v565
  %v3266 = vunpack.c.l.b16 %v566
  %v3267 = vunpack.c.h.b16 %v566
  %v3268 = vunpack.c.l.b16 %v567
  %v3269 = vunpack.c.h.b16 %v567
  %v3270 = vunpack.c.l.b16 %v568
  %v3271 = vunpack.c.h.b16 %v568
  %v3272 = vunpack.c.l.b16 %v569
  %v3273 = vunpack.c.h.b16 %v569
  %v3274 = vunpack.c.l.b16 %v570
  %v3275 = vunpack.c.h.b16 %v570
  %v3276 = vunpack.c.l.b16 %v571
  %v3277 = vunpack.c.h.b16 %v571
  %v3278 = vunpack.c.l.b16 %v572
  %v3279 = vunpack.c.h.b16 %v572
  %v3280 = vunpack.c.l.b16 %v573
  %v3281 = vunpack.c.h.b16 %v573
  %v3282 = vunpack.c.l.b16 %v574
  %v3283 = vunpack.c.h.b16 %v574
  %v3284 = vunpack.c.l.b16 %v575
  %v3285 = vunpack.c.h.b16 %v575
  %v3286 = vunpack.c.l.b16 %v576
  %v3287 = vunpack.c.h.b16 %v576
  %v3288 = vunpack.c.l.b16 %v577
  %v3289 = vunpack.c.h.b16 %v577
  %v3290 = vunpack.c.l.b16 %v578
  %v3291 = vunpack.c.h.b16 %v578
  %v3292 = vunpack.c.l.b16 %v579
  %v3293 = vunpack.c.h.b16 %v579
  %v3294 = vunpack.c.l.b16 %v580
  %v3295 = vunpack.c.h.b16 %v580
  %v3296 = vunpack.c.l.b16 %v581
  %v3297 = vunpack.c.h.b16 %v581
  %v3298 = vunpack.c.l.b16 %v582
  %v3299 = vunpack.c.h.b16 %v582
  %v3300 = vunpack.c.l.b16 %v583
  %v3301 = vunpack.c.h.b16 %v583
  %v3302 = vunpack.c.l.b16 %v584
  %v3303 = vunpack.c.h.b16 %v584
  %v3304 = vunpack.c.l.b16 %v585
  %v3305 = vunpack.c.h.b16 %v585
  %v3306 = vunpack.c.l.b16 %v586
  %v3307 = vunpack.c.h.b16 %v586
  %v3308 = vunpack.c.l.b16 %v587
  %v3309 = vunpack.c.h.b16 %v587
  %v3310 = vunpack.c.l.b16 %v588
  %v3311 = vunpack.c.h.b16 %v588
  %v3312 = vunpack.c.l.b16 %v589
  %v3313 = vunpack.c.h.b16 %v589
  %v3314 = vunpack.c.l.b16 %v590
  %v3315 = vunpack.c.h.b16 %v590
  %v3316 = vunpack.c.l.b16 %v591
  %v3317 = vunpack.c.h.b16 %v591
  %v3318 = vunpack.c.l.b16 %v592
  %v3319 = vunpack.c.h.b16 %v592
  %v3320 = vunpack.c.l.b16 %v593
  %v3321 = vunpack.c.h.b16 %v593
  %v3322 = vunpack.c.l.b16 %v594
  %v3323 = vunpack.c.h.b16 %v594
  %v3324 = vunpack.c.l.b16 %v595
  %v3325 = vunpack.c.h.b16 %v595
  %v3326 = vunpack.c.l.b16 %v596
  %v3327 = vunpack.c.h.b16 %v596
  %v3328 = vunpack.c.l.b16 %v597
  %v3329 = vunpack.c.h.b16 %v597
  %v3330 = vunpack.c.l.b16 %v598
  %v3331 = vunpack.c.h.b16 %v598
  %v3332 = vunpack.c.l.b16 %v599
  %v3333 = vunpack.c.h.b16 %v599
  %v3334 = vunpack.c.l.b16 %v600
  %v3335 = vunpack.c.h.b16 %v600
  %v3336 = vunpack.c.l.b16 %v601
  %v3337 = vunpack.c.h.b16 %v601
  %v3338 = vunpack.c.l.b16 %v602
  %v3339 = vunpack.c.h.b16 %v602
  %v3340 = vunpack.c.l.b16 %v603
  %v3341 = vunpack.c.h.b16 %v603
  %v3342 = vunpack.c.l.b16 %v604
  %v3343 = vunpack.c.h.b16 %v604
  %v3344 = vunpack.c.l.b16 %v605
  %v3345 = vunpack.c.h.b16 %v605
  %v3346 = vunpack.c.l.b16 %v606
  %v3347 = vunpack.c.h.b16 %v606
  %v3348 = vunpack.c.l.b16 %v607
  %v3349 = vunpack.c.h.b16 %v607
  %v3350 = vunpack.c.l.b16 %v608
  %v3351 = vunpack.c.h.b16 %v608
  %v3352 = vunpack.c.l.b16 %v609
  %v3353 = vunpack.c.h.b16 %v609
  %v3354 = vunpack.c.l.b16 %v610
  %v3355 = vunpack.c.h.b16 %v610
  %v3356 = vunpack.c.l.b16 %v611
  %v3357 = vunpack.c.h.b16 %v611
  %v3358 = vunpack.c.l.b16 %v612
  %v3359 = vunpack.c.h.b16 %v612
  %v3360 = vunpack.c.l.b16 %v613
  %v3361 = vunpack.c.h.b16 %v613
  %v3362 = vunpack.c.l.b16 %v614
  %v3363 = vunpack.c.h.b16 %v614
  %v3364 = vunpack.c.l.b16 %v615
  %v3365 = vunpack.c.h.b16 %v615
  %v3366 = vunpack.c.l.b16 %v616
  %v3367 = vunpack.c.h.b16 %v616
  %v3368 = vunpack.c.l.b16 %v617
  %v3369 = vunpack.c.h.b16 %v617
  %v3370 = vunpack.c.l.b16 %v618
  %v3371 = vunpack.c.h.b16 %v618
  %v3372 = vunpack.c.l.b16 %v619
  %v3373 = vunpack.c.h.b16 %v619
  %v3374 = vunpack.c.l.b16 %v620
  %v3375 = vunpack.c.h.b16 %v620
  %v3376 = vunpack.c.l.b16 %v621
  %v3377 = vunpack.c.h.b16 %v621
  %v3378 = vunpack.c.l.b16 %v622
  %v3379 = vunpack.c.h.b16 %v622
  %v3380 = vunpack.c.l.b16 %v623
  %v3381 = vunpack.c.h.b16 %v623
  %v3382 = vunpack.c.l.b16 %v624
  %v3383 = vunpack.c.h.b16 %v624
  %v3384 = vunpack.c.l.b16 %v625
  %v3385 = vunpack.c.h.b16 %v625
  %v3386 = vunpack.c.l.b16 %v626
  %v3387 = vunpack.c.h.b16 %v626
  %v3388 = vunpack.c.l.b16 %v627
  %v3389 = vunpack.c.h.b16 %v627
  %v3390 = vunpack.c.l.b16 %v628
  %v3391 = vunpack.c.h.b16 %v628
  %v3392 = vunpack.c.l.b16 %v629
  %v3393 = vunpack.c.h.b16 %v629
  %v3394 = vunpack.c.l.b16 %v630
  %v3395 = vunpack.c.h.b16 %v630
  %v3396 = vunpack.c.l.b16 %v631
  %v3397 = vunpack.c.h.b16 %v631
  %v3398 = vunpack.c.l.b16 %v632
  %v3399 = vunpack.c.h.b16 %v632
  %v3400 = vunpack.c.l.b16 %v633
  %v3401 = vunpack.c.h.b16 %v633
  %v3402 = vunpack.c.l.b16 %v634
  %v3403 = vunpack.c.h.b16 %v634
  %v3404 = vunpack.c.l.b16 %v635
  %v3405 = vunpack.c.h.b16 %v635
  %v3406 = vunpack.c.l.b16 %v636
  %v3407 = vunpack.c.h.b16 %v636
  %v3408 = vunpack.c.l.b16 %v637
  %v3409 = vunpack.c.h.b16 %v637
  %v3410 = vunpack.c.l.b16 %v638
  %v3411 = vunpack.c.h.b16 %v638
  %v3412 = vunpack.c.l.b16 %v639
  %v3413 = vunpack.c.h.b16 %v639
  %v3414 = vunpack.c.l.b16 %v640
  %v3415 = vunpack.c.h.b16 %v640
  %v3416 = vunpack.c.l.b16 %v641
  %v3417 = vunpack.c.h.b16 %v641
  %v3418 = vunpack.c.l.b16 %v642
  %v3419 = vunpack.c.h.b16 %v642
  %v3420 = vunpack.c.l.b16 %v643
  %v3421 = vunpack.c.h.b16 %v643
  %v3422 = vunpack.c.l.b16 %v644
  %v3423 = vunpack.c.h.b16 %v644
  %v3424 = vunpack.c.l.b16 %v645
  %v3425 = vunpack.c.h.b16 %v645
  %v3426 = vunpack.c.l.b16 %v646
  %v3427 = vunpack.c.h.b16 %v646
  %v3428 = vunpack.c.l.b16 %v647
  %v3429 = vunpack.c.h.b16 %v647
  %v3430 = vunpack.c.l.b16 %v648
  %v3431 = vunpack.c.h.b16 %v648
  %v3432 = vunpack.c.l.b16 %v649
  %v3433 = vunpack.c.h.b16 %v649
  %v3434 = vunpack.c.l.b16 %v650
  %v3435 = vunpack.c.h.b16 %v650
  %v3436 = vunpack.c.l.b16 %v651
  %v3437 = vunpack.c.h.b16 %v651
  %v3438 = vunpack.c.l.b16 %v652
  %v3439 = vunpack.c.h.b16 %v652
  %v3440 = vunpack.c.l.b16 %v653
  %v3441 = vunpack.c.h.b16 %v653
  %v3442 = vunpack.c.l.b16 %v654
  %v3443 = vunpack.c.h.b16 %v654
  %v3444 = vunpack.c.l.b16 %v655
  %v3445 = vunpack.c.h.b16 %v655
  %v3446 = vunpack.c.l.b16 %v656
  %v3447 = vunpack.c.h.b16 %v656
  %v3448 = vunpack.c.l.b16 %v657
  %v3449 = vunpack.c.h.b16 %v657
  %v3450 = vunpack.c.l.b16 %v658
  %v3451 = vunpack.c.h.b16 %v658
  %v3452 = vunpack.c.l.b16 %v659
  %v3453 = vunpack.c.h.b16 %v659
  %v3454 = vunpack.c.l.b16 %v660
  %v3455 = vunpack.c.h.b16 %v660
  %v3456 = vunpack.c.l.b16 %v661
  %v3457 = vunpack.c.h.b16 %v661
  %v3458 = vunpack.c.l.b16 %v662
  %v3459 = vunpack.c.h.b16 %v662
  %v3460 = vunpack.c.l.b16 %v663
  %v3461 = vunpack.c.h.b16 %v663
  %v3462 = vunpack.c.l.b16 %v664
  %v3463 = vunpack.c.h.b16 %v664
  %v3464 = vunpack.c.l.b16 %v665
  %v3465 = vunpack.c.h.b16 %v665
  %v3466 = vunpack.c.l.b16 %v666
  %v3467 = vunpack.c.h.b16 %v666
  %v3468 = vunpack.c.l.b16 %v667
  %v3469 = vunpack.c.h.b16 %v667
  %v3470 = vunpack.c.l.b16 %v668
  %v3471 = vunpack.c.h.b16 %v668
  %v3472 = vunpack.c.l.b16 %v669
  %v3473 = vunpack.c.h.b16 %v669
  %v3474 = vunpack.c.l.b16 %v670
  %v3475 = vunpack.c.h.b16 %v670
  %v3476 = vunpack.c.l.b16 %v671
  %v3477 = vunpack.c.h.b16 %v671
  %v3478 = vunpack.c.l.b16 %v672
  %v3479 = vunpack.c.h.b16 %v672
  %v3480 = vunpack.c.l.b16 %v673
  %v3481 = vunpack.c.h.b16 %v673
  %v3482 = vunpack.c.l.b16 %v674
  %v3483 = vunpack.c.h.b16 %v674
  %v3484 = vunpack.c.l.b16 %v675
  %v3485 = vunpack.c.h.b16 %v675
  %v3486 = vunpack.c.l.b16 %v676
  %v3487 = vunpack.c.h.b16 %v676
  %v3488 = vunpack.c.l.b16 %v677
  %v3489 = vunpack.c.h.b16 %v677
  %v3490 = vunpack.c.l.b16 %v678
  %v3491 = vunpack.c.h.b16 %v678
  %v3492 = vunpack.c.l.b16 %v679
  %v3493 = vunpack.c.h.b16 %v679
  %v3494 = vunpack.c.l.b16 %v680
  %v3495 = vunpack.c.h.b16 %v680
  %v3496 = vunpack.c.l.b16 %v681
  %v3497 = vunpack.c.h.b16 %v681
  %v3498 = vunpack.c.l.b16 %v682
  %v3499 = vunpack.c.h.b16 %v682
  %v3500 = vunpack.c.l.b16 %v683
  %v3501 = vunpack.c.h.b16 %v683
  %v3502 = vunpack.c.l.b16 %v684
  %v3503 = vunpack.c.h.b16 %v684
  %v3504 = vunpack.c.l.b16 %v685
  %v3505 = vunpack.c.h.b16 %v685
  %v3506 = vunpack.c.l.b16 %v686
  %v3507 = vunpack.c.h.b16 %v686
  %v3508 = vunpack.c.l.b16 %v687
  %v3509 = vunpack.c.h.b16 %v687
  %v3510 = vunpack.c.l.b16 %v688
  %v3511 = vunpack.c.h.b16 %v688
  %v3512 = vunpack.c.l.b16 %v689
  %v3513 = vunpack.c.h.b16 %v689
  %v3514 = vunpack.c.l.b16 %v690
  %v3515 = vunpack.c.h.b16 %v690
  %v3516 = vunpack.c.l.b16 %v691
  %v3517 = vunpack.c.h.b16 %v691
  %v3518 = vunpack.c.l.b16 %v692
  %v3519 = vunpack.c.h.b16 %v692
  %v3520 = vunpack.c.l.b16 %v693
  %v3521 = vunpack.c.h.b16 %v693
  %v3522 = vunpack.c.l.b16 %v694
  %v3523 = vunpack.c.h.b16 %v694
  %v3524 = vunpack.c.l.b16 %v695
  %v3525 = vunpack.c.h.b16 %v695
  %v3526 = vunpack.c.l.b16 %v696
  %v3527 = vunpack.c.h.b16 %v696
  %v3528 = vunpack.c.l.b16 %v697
  %v3529 = vunpack.c.h.b16 %v697
  %v3530 = vunpack.c.l.b16 %v698
  %v3531 = vunpack.c.h.b16 %v698
  %v3532 = vunpack.c.l.b16 %v699
  %v3533 = vunpack.c.h.b16 %v699
  %v3534 = vunpack.c.l.b16 %v700
  %v3535 = vunpack.c.h.b16 %v700
  %v3536 = vunpack.c.l.b16 %v701
  %v3537 = vunpack.c.h.b16 %v701
  %v3538 = vunpack.c.l.b16 %v702
  %v3539 = vunpack.c.h.b16 %v702
  %v3540 = vunpack.c.l.b16 %v703
  %v3541 = vunpack.c.h.b16 %v703
  %v3542 = vunpack.c.l.b16 %v704
  %v3543 = vunpack.c.h.b16 %v704
  %v3544 = vunpack.c.l.b16 %v705
  %v3545 = vunpack.c.h.b16 %v705
  %v3546 = vunpack.c.l.b16 %v706
  %v3547 = vunpack.c.h.b16 %v706
  %v3548 = vunpack.c.l.b16 %v707
  %v3549 = vunpack.c.h.b16 %v707
  %v3550 = vunpack.c.l.b16 %v708
  %v3551 = vunpack.c.h.b16 %v708
  %v3552 = vunpack.c.l.b16 %v709
  %v3553 = vunpack.c.h.b16 %v709
  %v3554 = vunpack.c.l.b16 %v710
  %v3555 = vunpack.c.h.b16 %v710
  %v3556 = vunpack.c.l.b16 %v711
  %v3557 = vunpack.c.h.b16 %v711
  %v3558 = vunpack.c.l.b16 %v712
  %v3559 = vunpack.c.h.b16 %v712
  %v3560 = vunpack.c.l.b16 %v713
  %v3561 = vunpack.c.h.b16 %v713
  %v3562 = vunpack.c.l.b16 %v714
  %v3563 = vunpack.c.h.b16 %v714
  %v3564 = vunpack.c.l.b16 %v715
  %v3565 = vunpack.c.h.b16 %v715
  %v3566 = vunpack.c.l.b16 %v716
  %v3567 = vunpack.c.h.b16 %v716
  %v3568 = vunpack.c.l.b16 %v717
  %v3569 = vunpack.c.h.b16 %v717
  %v3570 = vunpack.c.l.b16 %v718
  %v3571 = vunpack.c.h.b16 %v718
  %v3572 = vunpack.c.l.b16 %v719
  %v3573 = vunpack.c.h.b16 %v719
  %v3574 = vunpack.c.l.b16 %v720
  %v3575 = vunpack.c.h.b16 %v720
  %v3576 = vunpack.c.l.b16 %v721
  %v3577 = vunpack.c.h.b16 %v721
  %v3578 = vunpack.c.l.b16 %v722
  %v3579 = vunpack.c.h.b16 %v722
  %v3580 = vunpack.c.l.b16 %v723
  %v3581 = vunpack.c.h.b16 %v723
  %v3582 = vunpack.c.l.b16 %v724
  %v3583 = vunpack.c.h.b16 %v724
  %v3584 = vunpack.c.l.b16 %v725
  %v3585 = vunpack.c.h.b16 %v725
  %v3586 = vunpack.c.l.b16 %v726
  %v3587 = vunpack.c.h.b16 %v726
  %v3588 = vunpack.c.l.b16 %v727
  %v3589 = vunpack.c.h.b16 %v727
  %v3590 = vunpack.c.l.b16 %v728
  %v3591 = vunpack.c.h.b16 %v728
  %v3592 = vunpack.c.l.b16 %v729
  %v3593 = vunpack.c.h.b16 %v729
  %v3594 = vunpack.c.l.b16 %v730
  %v3595 = vunpack.c.h.b16 %v730
  %v3596 = vunpack.c.l.b16 %v731
  %v3597 = vunpack.c.h.b16 %v731
  %v3598 = vunpack.c.l.b16 %v732
  %v3599 = vunpack.c.h.b16 %v732
  %v3600 = vunpack.c.l.b16 %v733
  %v3601 = vunpack.c.h.b16 %v733
  %v3602 = vunpack.c.l.b16 %v734
  %v3603 = vunpack.c.h.b16 %v734
  %v3604 = vunpack.c.l.b16 %v735
  %v3605 = vunpack.c.h.b16 %v735
  %v3606 = vunpack.c.l.b16 %v736
  %v3607 = vunpack.c.h.b16 %v736
  %v3608 = vunpack.c.l.b16 %v737
  %v3609 = vunpack.c.h.b16 %v737
  %v3610 = vunpack.c.l.b16 %v738
  %v3611 = vunpack.c.h.b16 %v738
  %v3612 = vunpack.c.l.b16 %v739
  %v3613 = vunpack.c.h.b16 %v739
  %v3614 = vunpack.c.l.b16 %v740
  %v3615 = vunpack.c.h.b16 %v740
  %v3616 = vunpack.c.l.b16 %v741
  %v3617 = vunpack.c.h.b16 %v741
  %v3618 = vunpack.c.l.b16 %v742
  %v3619 = vunpack.c.h.b16 %v742
  %v3620 = vunpack.c.l.b16 %v743
  %v3621 = vunpack.c.h.b16 %v743
  %v3622 = vunpack.c.l.b16 %v744
  %v3623 = vunpack.c.h.b16 %v744
  %v3624 = vunpack.c.l.b16 %v745
  %v3625 = vunpack.c.h.b16 %v745
  %v3626 = vunpack.c.l.b16 %v746
  %v3627 = vunpack.c.h.b16 %v746
  %v3628 = vunpack.c.l.b16 %v747
  %v3629 = vunpack.c.h.b16 %v747
  %v3630 = vunpack.c.l.b16 %v748
  %v3631 = vunpack.c.h.b16 %v748
  %v3632 = vunpack.c.l.b16 %v749
  %v3633 = vunpack.c.h.b16 %v749
  %v3634 = vunpack.c.l.b16 %v750
  %v3635 = vunpack.c.h.b16 %v750
  %v3636 = vunpack.c.l.b16 %v751
  %v3637 = vunpack.c.h.b16 %v751
  %v3638 = vunpack.c.l.b16 %v752
  %v3639 = vunpack.c.h.b16 %v752
  %v3640 = vunpack.c.l.b16 %v753
  %v3641 = vunpack.c.h.b16 %v753
  %v3642 = vunpack.c.l.b16 %v754
  %v3643 = vunpack.c.h.b16 %v754
  %v3644 = vunpack.c.l.b16 %v755
  %v3645 = vunpack.c.h.b16 %v755
  %v3646 = vunpack.c.l.b16 %v756
  %v3647 = vunpack.c.h.b16 %v756
  %v3648 = vunpack.c.l.b16 %v757
  %v3649 = vunpack.c.h.b16 %v757
  %v3650 = vunpack.c.l.b16 %v758
  %v3651 = vunpack.c.h.b16 %v758
  %v3652 = vunpack.c.l.b16 %v759
  %v3653 = vunpack.c.h.b16 %v759
  %v3654 = vunpack.c.l.b16 %v760
  %v3655 = vunpack.c.h.b16 %v760
  %v3656 = vunpack.c.l.b16 %v761
  %v3657 = vunpack.c.h.b16 %v761
  %v3658 = vunpack.c.l.b16 %v762
  %v3659 = vunpack.c.h.b16 %v762
  %v3660 = vunpack.c.l.b16 %v763
  %v3661 = vunpack.c.h.b16 %v763
  %v3662 = vunpack.c.l.b16 %v764
  %v3663 = vunpack.c.h.b16 %v764
  %v3664 = vunpack.c.l.b16 %v765
  %v3665 = vunpack.c.h.b16 %v765
  %v3666 = vunpack.c.l.b16 %v766
  %v3667 = vunpack.c.h.b16 %v766
  %v3668 = vunpack.c.l.b16 %v767
  %v3669 = vunpack.c.h.b16 %v767
  %v3670 = vunpack.c.l.b16 %v768
  %v3671 = vunpack.c.h.b16 %v768
  %v3672 = vunpack.c.l.b16 %v769
  %v3673 = vunpack.c.h.b16 %v769
  %v3674 = vunpack.c.l.b16 %v770
  %v3675 = vunpack.c.h.b16 %v770
  %v3676 = vunpack.c.l.b16 %v771
  %v3677 = vunpack.c.h.b16 %v771
  %v3678 = vunpack.c.l.b16 %v772
  %v3679 = vunpack.c.h.b16 %v772
  %v3680 = vunpack.c.l.b16 %v773
  %v3681 = vunpack.c.h.b16 %v773
  %v3682 = vunpack.c.l.b16 %v774
  %v3683 = vunpack.c.h.b16 %v774
  %v3684 = vunpack.c.l.b16 %v775
  %v3685 = vunpack.c.h.b16 %v775
  %v3686 = vunpack.c.l.b16 %v776
  %v3687 = vunpack.c.h.b16 %v776
  %v3688 = vunpack.c.l.b16 %v777
  %v3689 = vunpack.c.h.b16 %v777
  %v3690 = vunpack.c.l.b16 %v778
  %v3691 = vunpack.c.h.b16 %v778
  %v3692 = vunpack.c.l.b16 %v779
  %v3693 = vunpack.c.h.b16 %v779
  %v3694 = vunpack.c.l.b16 %v780
  %v3695 = vunpack.c.h.b16 %v780
  %v3696 = vunpack.c.l.b16 %v781
  %v3697 = vunpack.c.h.b16 %v781
  %v3698 = vunpack.c.l.b16 %v782
  %v3699 = vunpack.c.h.b16 %v782
  %v3700 = vunpack.c.l.b16 %v783
  %v3701 = vunpack.c.h.b16 %v783
  %v3702 = vunpack.c.l.b16 %v784
  %v3703 = vunpack.c.h.b16 %v784
  %v3704 = vunpack.c.l.b16 %v785
  %v3705 = vunpack.c.h.b16 %v785
  %v3706 = vunpack.c.l.b16 %v786
  %v3707 = vunpack.c.h.b16 %v786
  %v3708 = vunpack.c.l.b16 %v787
  %v3709 = vunpack.c.h.b16 %v787
  %v3710 = vunpack.c.l.b16 %v788
  %v3711 = vunpack.c.h.b16 %v788
  %v3712 = vunpack.c.l.b16 %v789
  %v3713 = vunpack.c.h.b16 %v789
  %v3714 = vunpack.c.l.b16 %v790
  %v3715 = vunpack.c.h.b16 %v790
  %v3716 = vunpack.c.l.b16 %v791
  %v3717 = vunpack.c.h.b16 %v791
  %v3718 = vunpack.c.l.b16 %v792
  %v3719 = vunpack.c.h.b16 %v792
  %v3720 = vunpack.c.l.b16 %v793
  %v3721 = vunpack.c.h.b16 %v793
  %v3722 = vunpack.c.l.b16 %v794
  %v3723 = vunpack.c.h.b16 %v794
  %v3724 = vunpack.c.l.b16 %v795
  %v3725 = vunpack.c.h.b16 %v795
  %v3726 = vunpack.c.l.b16 %v796
  %v3727 = vunpack.c.h.b16 %v796
  %v3728 = vunpack.c.l.b16 %v797
  %v3729 = vunpack.c.h.b16 %v797
  %v3730 = vunpack.c.l.b16 %v798
  %v3731 = vunpack.c.h.b16 %v798
  %v3732 = vunpack.c.l.b16 %v799
  %v3733 = vunpack.c.h.b16 %v799
  %v3734 = vunpack.c.l.b16 %v800
  %v3735 = vunpack.c.h.b16 %v800
  %v3736 = vunpack.c.l.b16 %v801
  %v3737 = vunpack.c.h.b16 %v801
  %v3738 = vunpack.c.l.b16 %v802
  %v3739 = vunpack.c.h.b16 %v802
  %v3740 = vunpack.c.l.b16 %v803
  %v3741 = vunpack.c.h.b16 %v803
  %v3742 = vunpack.c.l.b16 %v804
  %v3743 = vunpack.c.h.b16 %v804
  %v3744 = vunpack.c.l.b16 %v805
  %v3745 = vunpack.c.h.b16 %v805
  %v3746 = vunpack.c.l.b16 %v806
  %v3747 = vunpack.c.h.b16 %v806
  %v3748 = vunpack.c.l.b16 %v807
  %v3749 = vunpack.c.h.b16 %v807
  %v3750 = vunpack.c.l.b16 %v808
  %v3751 = vunpack.c.h.b16 %v808
  %v3752 = vunpack.c.l.b16 %v809
  %v3753 = vunpack.c.h.b16 %v809
  %v3754 = vunpack.c.l.b16 %v810
  %v3755 = vunpack.c.h.b16 %v810
  %v3756 = vunpack.c.l.b16 %v811
  %v3757 = vunpack.c.h.b16 %v811
  %v3758 = vunpack.c.l.b16 %v812
  %v3759 = vunpack.c.h.b16 %v812
  %v3760 = vunpack.c.l.b16 %v813
  %v3761 = vunpack.c.h.b16 %v813
  %v3762 = vunpack.c.l.b16 %v814
  %v3763 = vunpack.c.h.b16 %v814
  %v3764 = vunpack.c.l.b16 %v815
  %v3765 = vunpack.c.h.b16 %v815
  %v3766 = vunpack.c.l.b16 %v816
  %v3767 = vunpack.c.h.b16 %v816
  %v3768 = vunpack.c.l.b16 %v817
  %v3769 = vunpack.c.h.b16 %v817
  %v3770 = vunpack.c.l.b16 %v818
  %v3771 = vunpack.c.h.b16 %v818
  %v3772 = vunpack.c.l.b16 %v819
  %v3773 = vunpack.c.h.b16 %v819
  %v3774 = vunpack.c.l.b16 %v820
  %v3775 = vunpack.c.h.b16 %v820
  %v3776 = vunpack.c.l.b16 %v821
  %v3777 = vunpack.c.h.b16 %v821
  %v3778 = vunpack.c.l.b16 %v822
  %v3779 = vunpack.c.h.b16 %v822
  %v3780 = vunpack.c.l.b16 %v823
  %v3781 = vunpack.c.h.b16 %v823
  %v3782 = vunpack.c.l.b16 %v824
  %v3783 = vunpack.c.h.b16 %v824
  %v3784 = vunpack.c.l.b16 %v825
  %v3785 = vunpack.c.h.b16 %v825
  %v3786 = vunpack.c.l.b16 %v826
  %v3787 = vunpack.c.h.b16 %v826
  %v3788 = vunpack.c.l.b16 %v827
  %v3789 = vunpack.c.h.b16 %v827
  %v3790 = vunpack.c.l.b16 %v828
  %v3791 = vunpack.c.h.b16 %v828
  %v3792 = vunpack.c.l.b16 %v829
  %v3793 = vunpack.c.h.b16 %v829
  %v3794 = vunpack.c.l.b16 %v830
  %v3795 = vunpack.c.h.b16 %v830
  %v3796 = vunpack.c.l.b16 %v831
  %v3797 = vunpack.c.h.b16 %v831
  %v3798 = vunpack.c.l.b16 %v832
  %v3799 = vunpack.c.h.b16 %v832
  %v3800 = vunpack.c.l.b16 %v833
  %v3801 = vunpack.c.h.b16 %v833
  %v3802 = vunpack.c.l.b16 %v834
  %v3803 = vunpack.c.h.b16 %v834
  %v3804 = vunpack.c.l.b16 %v835
  %v3805 = vunpack.c.h.b16 %v835
  %v3806 = vunpack.c.l.b16 %v836
  %v3807 = vunpack.c.h.b16 %v836
  %v3808 = vunpack.c.l.b16 %v837
  %v3809 = vunpack.c.h.b16 %v837
  %v3810 = vunpack.c.l.b16 %v838
  %v3811 = vunpack.c.h.b16 %v838
  %v3812 = vunpack.c.l.b16 %v839
  %v3813 = vunpack.c.h.b16 %v839
  %v3814 = vunpack.c.l.b16 %v840
  %v3815 = vunpack.c.h.b16 %v840
  %v3816 = vunpack.c.l.b16 %v841
  %v3817 = vunpack.c.h.b16 %v841
  %v3818 = vunpack.c.l.b16 %v842
  %v3819 = vunpack.c.h.b16 %v842
  %v3820 = vunpack.c.l.b16 %v843
  %v3821 = vunpack.c.h.b16 %v843
  %v3822 = vunpack.c.l.b16 %v844
  %v3823 = vunpack.c.h.b16 %v844
  %v3824 = vunpack.c.l.b16 %v845
  %v3825 = vunpack.c.h.b16 %v845
  %v3826 = vunpack.c.l.b16 %v846
  %v3827 = vunpack.c.h.b16 %v846
  %v3828 = vunpack.c.l.b16 %v847
  %v3829 = vunpack.c.h.b16 %v847
  %v3830 = vunpack.c.l.b16 %v848
  %v3831 = vunpack.c.h.b16 %v848
  %v3832 = vunpack.c.l.b16 %v849
  %v3833 = vunpack.c.h.b16 %v849
  %v3834 = vunpack.c.l.b16 %v850
  %v3835 = vunpack.c.h.b16 %v850
  %v3836 = vunpack.c.l.b16 %v851
  %v3837 = vunpack.c.h.b16 %v851
  %v3838 = vunpack.c.l.b16 %v852
  %v3839 = vunpack.c.h.b16 %v852
  %v3840 = vunpack.c.l.b16 %v853
  %v3841 = vunpack.c.h.b16 %v853
  %v3842 = vunpack.c.l.b16 %v854
  %v3843 = vunpack.c.h.b16 %v854
  %v3844 = vunpack.c.l.b16 %v855
  %v3845 = vunpack.c.h.b16 %v855
  %v3846 = vunpack.c.l.b16 %v856
  %v3847 = vunpack.c.h.b16 %v856
  %v3848 = vunpack.c.l.b16 %v857
  %v3849 = vunpack.c.h.b16 %v857
  %v3850 = vunpack.c.l.b16 %v858
  %v3851 = vunpack.c.h.b16 %v858
  %v3852 = vunpack.c.l.b16 %v859
  %v3853 = vunpack.c.h.b16 %v859
  %v3854 = vunpack.c.l.b16 %v860
  %v3855 = vunpack.c.h.b16 %v860
  %v3856 = vunpack.c.l.b16 %v861
  %v3857 = vunpack.c.h.b16 %v861
  %v3858 = vunpack.c.l.b16 %v862
  %v3859 = vunpack.c.h.b16 %v862
  %v3860 = vunpack.c.l.b16 %v863
  %v3861 = vunpack.c.h.b16 %v863
  %v3862 = vunpack.c.l.b16 %v864
  %v3863 = vunpack.c.h.b16 %v864
  %v3864 = vunpack.c.l.b16 %v865
  %v3865 = vunpack.c.h.b16 %v865
  %v3866 = vunpack.c.l.b16 %v866
  %v3867 = vunpack.c.h.b16 %v866
  %v3868 = vunpack.c.l.b16 %v867
  %v3869 = vunpack.c.h.b16 %v867
  %v3870 = vunpack.c.l.b16 %v868
  %v3871 = vunpack.c.h.b16 %v868
  %v3872 = vunpack.c.l.b16 %v869
  %v3873 = vunpack.c.h.b16 %v869
  %v3874 = vunpack.c.l.b16 %v870
  %v3875 = vunpack.c.h.b16 %v870
  %v3876 = vunpack.c.l.b16 %v871
  %v3877 = vunpack.c.h.b16 %v871
  %v3878 = vunpack.c.l.b16 %v872
  %v3879 = vunpack.c.h.b16 %v872
  %v3880 = vunpack.c.l.b16 %v873
  %v3881 = vunpack.c.h.b16 %v873
  %v3882 = vunpack.c.l.b16 %v874
  %v3883 = vunpack.c.h.b16 %v874
  %v3884 = vunpack.c.l.b16 %v875
  %v3885 = vunpack.c.h.b16 %v875
  %v3886 = vunpack.c.l.b16 %v876
  %v3887 = vunpack.c.h.b16 %v876
  %v3888 = vunpack.c.l.b16 %v877
  %v3889 = vunpack.c.h.b16 %v877
  %v3890 = vunpack.c.l.b16 %v878
  %v3891 = vunpack.c.h.b16 %v878
  %v3892 = vunpack.c.l.b16 %v879
  %v3893 = vunpack.c.h.b16 %v879
  %v3894 = vunpack.c.l.b16 %v880
  %v3895 = vunpack.c.h.b16 %v880
  %v3896 = vunpack.c.l.b16 %v881
  %v3897 = vunpack.c.h.b16 %v881
  %v3898 = vunpack.c.l.b16 %v882
  %v3899 = vunpack.c.h.b16 %v882
  %v3900 = vunpack.c.l.b16 %v883
  %v3901 = vunpack.c.h.b16 %v883
  %v3902 = vunpack.c.l.b16 %v884
  %v3903 = vunpack.c.h.b16 %v884
  %v3904 = vunpack.c.l.b16 %v885
  %v3905 = vunpack.c.h.b16 %v885
  %v3906 = vunpack.c.l.b16 %v886
  %v3907 = vunpack.c.h.b16 %v886
  %v3908 = vunpack.c.l.b16 %v887
  %v3909 = vunpack.c.h.b16 %v887
  %v3910 = vunpack.c.l.b16 %v888
  %v3911 = vunpack.c.h.b16 %v888
  %v3912 = vunpack.c.l.b16 %v889
  %v3913 = vunpack.c.h.b16 %v889
  %v3914 = vunpack.c.l.b16 %v890
  %v3915 = vunpack.c.h.b16 %v890
  %v3916 = vunpack.c.l.b16 %v891
  %v3917 = vunpack.c.h.b16 %v891
  %v3918 = vunpack.c.l.b16 %v892
  %v3919 = vunpack.c.h.b16 %v892
  %v3920 = vunpack.c.l.b16 %v893
  %v3921 = vunpack.c.h.b16 %v893
  %v3922 = vunpack.c.l.b16 %v894
  %v3923 = vunpack.c.h.b16 %v894
  %v3924 = vunpack.c.l.b16 %v895
  %v3925 = vunpack.c.h.b16 %v895
  %v3926 = vunpack.c.l.b16 %v896
  %v3927 = vunpack.c.h.b16 %v896
  %v3928 = vunpack.c.l.b16 %v897
  %v3929 = vunpack.c.h.b16 %v897
  %v3930 = vunpack.c.l.b16 %v898
  %v3931 = vunpack.c.h.b16 %v898
  %v3932 = vunpack.c.l.b16 %v899
  %v3933 = vunpack.c.h.b16 %v899
  %v3934 = vunpack.c.l.b16 %v900
  %v3935 = vunpack.c.h.b16 %v900
  %v3936 = vunpack.c.l.b16 %v901
  %v3937 = vunpack.c.h.b16 %v901
  %v3938 = vunpack.c.l.b16 %v902
  %v3939 = vunpack.c.h.b16 %v902
  %v3940 = vunpack.c.l.b16 %v903
  %v3941 = vunpack.c.h.b16 %v903
  %v3942 = vunpack.c.l.b16 %v904
  %v3943 = vunpack.c.h.b16 %v904
  %v3944 = vunpack.c.l.b16 %v905
  %v3945 = vunpack.c.h.b16 %v905
  %v3946 = vunpack.c.l.b16 %v906
  %v3947 = vunpack.c.h.b16 %v906
  %v3948 = vunpack.c.l.b16 %v907
  %v3949 = vunpack.c.h.b16 %v907
  %v3950 = vunpack.c.l.b16 %v908
  %v3951 = vunpack.c.h.b16 %v908
  %v3952 = vunpack.c.l.b16 %v909
  %v3953 = vunpack.c.h.b16 %v909
  %v3954 = vunpack.c.l.b16 %v910
  %v3955 = vunpack.c.h.b16 %v910
  %v3956 = vunpack.c.l.b16 %v911
  %v3957 = vunpack.c.h.b16 %v911
  %v3958 = vunpack.c.l.b16 %v912
  %v3959 = vunpack.c.h.b16 %v912
  %v3960 = vunpack.c.l.b16 %v913
  %v3961 = vunpack.c.h.b16 %v913
  %v3962 = vunpack.c.l.b16 %v914
  %v3963 = vunpack.c.h.b16 %v914
  %v3964 = vunpack.c.l.b16 %v915
  %v3965 = vunpack.c.h.b16 %v915
  %v3966 = vunpack.c.l.b16 %v916
  %v3967 = vunpack.c.h.b16 %v916
  %v3968 = vunpack.c.l.b16 %v917
  %v3969 = vunpack.c.h.b16 %v917
  %v3970 = vunpack.c.l.b16 %v918
  %v3971 = vunpack.c.h.b16 %v918
  %v3972 = vunpack.c.l.b16 %v919
  %v3973 = vunpack.c.h.b16 %v919
  %v3974 = vunpack.c.l.b16 %v920
  %v3975 = vunpack.c.h.b16 %v920
  %v3976 = vunpack.c.l.b16 %v921
  %v3977 = vunpack.c.h.b16 %v921
  %v3978 = vunpack.c.l.b16 %v922
  %v3979 = vunpack.c.h.b16 %v922
  %v3980 = vunpack.c.l.b16 %v923
  %v3981 = vunpack.c.h.b16 %v923
  %v3982 = vunpack.c.l.b16 %v924
  %v3983 = vunpack.c.h.b16 %v924
  %v3984 = vunpack.c.l.b16 %v925
  %v3985 = vunpack.c.h.b16 %v925
  %v3986 = vunpack.c.l.b16 %v926
  %v3987 = vunpack.c.h.b16 %v926
  %v3988 = vunpack.c.l.b16 %v927
  %v3989 = vunpack.c.h.b16 %v927
  %v3990 = vunpack.c.l.b16 %v928
  %v3991 = vunpack.c.h.b16 %v928
  %v3992 = vunpack.c.l.b16 %v929
  %v3993 = vunpack.c.h.b16 %v929
  %v3994 = vunpack.c.l.b16 %v930
  %v3995 = vunpack.c.h.b16 %v930
  %v3996 = vunpack.c.l.b16 %v931
  %v3997 = vunpack.c.h.b16 %v931
  %v3998 = vunpack.c.l.b16 %v932
  %v3999 = vunpack.c.h.b16 %v932
  %v4000 = vunpack.c.l.b16 %v933
  %v4001 = vunpack.c.h.b16 %v933
  %v4002 = vunpack.c.l.b16 %v934
  %v4003 = vunpack.c.h.b16 %v934
  %v4004 = vunpack.c.l.b16 %v935
  %v4005 = vunpack.c.h.b16 %v935
  %v4006 = vunpack.c.l.b16 %v936
  %v4007 = vunpack.c.h.b16 %v936
  %v4008 = vunpack.c.l.b16 %v937
  %v4009 = vunpack.c.h.b16 %v937
  %v4010 = vunpack.c.l.b16 %v938
  %v4011 = vunpack.c.h.b16 %v938
  %v4012 = vunpack.c.l.b16 %v939
  %v4013 = vunpack.c.h.b16 %v939
  %v4014 = vunpack.c.l.b16 %v940
  %v4015 = vunpack.c.h.b16 %v940
  %v4016 = vunpack.c.l.b16 %v941
  %v4017 = vunpack.c.h.b16 %v941
  %v4018 = vunpack.c.l.b16 %v942
  %v4019 = vunpack.c.h.b16 %v942
  %v4020 = vunpack.c.l.b16 %v943
  %v4021 = vunpack.c.h.b16 %v943
  %v4022 = vunpack.c.l.b16 %v944
  %v4023 = vunpack.c.h.b16 %v944
  %v4024 = vunpack.c.l.b16 %v945
  %v4025 = vunpack.c.h.b16 %v945
  %v4026 = vunpack.c.l.b16 %v946
  %v4027 = vunpack.c.h.b16 %v946
  %v4028 = vunpack.c.l.b16 %v947
  %v4029 = vunpack.c.h.b16 %v947
  %v4030 = vunpack.c.l.b16 %v948
  %v4031 = vunpack.c.h.b16 %v948
  %v4032 = vunpack.c.l.b16 %v949
  %v4033 = vunpack.c.h.b16 %v949
  %v4034 = vunpack.c.l.b16 %v950
  %v4035 = vunpack.c.h.b16 %v950
  %v4036 = vunpack.c.l.b16 %v951
  %v4037 = vunpack.c.h.b16 %v951
  %v4038 = vunpack.c.l.b16 %v952
  %v4039 = vunpack.c.h.b16 %v952
  %v4040 = vunpack.c.l.b16 %v953
  %v4041 = vunpack.c.h.b16 %v953
  %v4042 = vunpack.c.l.b16 %v954
  %v4043 = vunpack.c.h.b16 %v954
  %v4044 = vunpack.c.l.b16 %v955
  %v4045 = vunpack.c.h.b16 %v955
  %v4046 = vunpack.c.l.b16 %v956
  %v4047 = vunpack.c.h.b16 %v956
  %v4048 = vunpack.c.l.b16 %v957
  %v4049 = vunpack.c.h.b16 %v957
  %v4050 = vunpack.c.l.b16 %v958
  %v4051 = vunpack.c.h.b16 %v958
  %v4052 = vunpack.c.l.b16 %v959
  %v4053 = vunpack.c.h.b16 %v959
  %v4054 = vunpack.c.l.b16 %v960
  %v4055 = vunpack.c.h.b16 %v960
  %v4056 = vunpack.c.l.b16 %v961
  %v4057 = vunpack.c.h.b16 %v961
  %v4058 = vunpack.c.l.b16 %v962
  %v4059 = vunpack.c.h.b16 %v962
  %v4060 = vunpack.c.l.b16 %v963
  %v4061 = vunpack.c.h.b16 %v963
  %v4062 = vunpack.c.l.b16 %v964
  %v4063 = vunpack.c.h.b16 %v964
  %v4064 = vunpack.c.l.b16 %v965
  %v4065 = vunpack.c.h.b16 %v965
  %v4066 = vunpack.c.l.b16 %v966
  %v4067 = vunpack.c.h.b16 %v966
  %v4068 = vunpack.c.l.b16 %v967
  %v4069 = vunpack.c.h.b16 %v967
  %v4070 = vunpack.c.l.b16 %v968
  %v4071 = vunpack.c.h.b16 %v968
  %v4072 = vunpack.c.l.b16 %v969
  %v4073 = vunpack.c.h.b16 %v969
  %v4074 = vunpack.c.l.b16 %v970
  %v4075 = vunpack.c.h.b16 %v970
  %v4076 = vunpack.c.l.b16 %v971
  %v4077 = vunpack.c.h.b16 %v971
  %v4078 = vunpack.c.l.b16 %v972
  %v4079 = vunpack.c.h.b16 %v972
  %v4080 = vunpack.c.l.b16 %v973
  %v4081 = vunpack.c.h.b16 %v973
  %v4082 = vunpack.c.l.b16 %v974
  %v4083 = vunpack.c.h.b16 %v974
  %v4084 = vunpack.c.l.b16 %v975
  %v4085 = vunpack.c.h.b16 %v975
  %v4086 = vunpack.c.l.b16 %v976
  %v4087 = vunpack.c.h.b16 %v976
  %v4088 = vunpack.c.l.b16 %v977
  %v4089 = vunpack.c.h.b16 %v977
  %v4090 = vunpack.c.l.b16 %v978
  %v4091 = vunpack.c.h.b16 %v978
  %v4092 = vunpack.c.l.b16 %v979
  %v4093 = vunpack.c.h.b16 %v979
  %v4094 = vunpack.c.l.b16 %v980
  %v4095 = vunpack.c.h.b16 %v980
  %v4096 = vunpack.c.l.b16 %v981
  %v4097 = vunpack.c.h.b16 %v981
  %v4098 = vunpack.c.l.b16 %v982
  %v4099 = vunpack.c.h.b16 %v982
  %v4100 = vunpack.c.l.b16 %v983
  %v4101 = vunpack.c.h.b16 %v983
  %v4102 = vunpack.c.l.b16 %v984
  %v4103 = vunpack.c.h.b16 %v984
  %v4104 = vunpack.c.l.b16 %v985
  %v4105 = vunpack.c.h.b16 %v985
  %v4106 = vunpack.c.l.b16 %v986
  %v4107 = vunpack.c.h.b16 %v986
  %v4108 = vunpack.c.l.b16 %v987
  %v4109 = vunpack.c.h.b16 %v987
  %v4110 = vunpack.c.l.b16 %v988
  %v4111 = vunpack.c.h.b16 %v988
  %v4112 = vunpack.c.l.b16 %v989
  %v4113 = vunpack.c.h.b16 %v989
  %v4114 = vunpack.c.l.b16 %v990
  %v4115 = vunpack.c.h.b16 %v990
  %v4116 = vunpack.c.l.b16 %v991
  %v4117 = vunpack.c.h.b16 %v991
  %v4118 = vunpack.c.l.b16 %v992
  %v4119 = vunpack.c.h.b16 %v992
  %v4120 = vunpack.c.l.b16 %v993
  %v4121 = vunpack.c.h.b16 %v993
  %v4122 = vunpack.c.l.b16 %v994
  %v4123 = vunpack.c.h.b16 %v994
  %v4124 = vunpack.c.l.b16 %v995
  %v4125 = vunpack.c.h.b16 %v995
  %v4126 = vunpack.c.l.b16 %v996
  %v4127 = vunpack.c.h.b16 %v996
  %v4128 = vunpack.c.l.b16 %v997
  %v4129 = vunpack.c.h.b16 %v997
  %v4130 = vunpack.c.l.b16 %v998
  %v4131 = vunpack.c.h.b16 %v998
  %v4132 = vunpack.c.l.b16 %v999
  %v4133 = vunpack.c.h.b16 %v999
  %v4134 = vunpack.c.l.b16 %v1000
  %v4135 = vunpack.c.h.b16 %v1000
  %v4136 = vunpack.c.l.b16 %v1001
  %v4137 = vunpack.c.h.b16 %v1001
  %v4138 = vunpack.c.l.b16 %v1002
  %v4139 = vunpack.c.h.b16 %v1002
  %v4140 = vunpack.c.l.b16 %v1003
  %v4141 = vunpack.c.h.b16 %v1003
  %v4142 = vunpack.c.l.b16 %v1004
  %v4143 = vunpack.c.h.b16 %v1004
  %v4144 = vunpack.c.l.b16 %v1005
  %v4145 = vunpack.c.h.b16 %v1005
  %v4146 = vunpack.c.l.b16 %v1006
  %v4147 = vunpack.c.h.b16 %v1006
  %v4148 = vunpack.c.l.b16 %v1007
  %v4149 = vunpack.c.h.b16 %v1007
  %v4150 = vunpack.c.l.b16 %v1008
  %v4151 = vunpack.c.h.b16 %v1008
  %v4152 = vunpack.c.l.b16 %v1009
  %v4153 = vunpack.c.h.b16 %v1009
  %v4154 = vunpack.c.l.b16 %v1010
  %v4155 = vunpack.c.h.b16 %v1010
  %v4156 = vunpack.c.l.b16 %v1011
  %v4157 = vunpack.c.h.b16 %v1011
  %v4158 = vunpack.c.l.b16 %v1012
  %v4159 = vunpack.c.h.b16 %v1012
  %v4160 = vunpack.c.l.b16 %v1013
  %v4161 = vunpack.c.h.b16 %v1013
  %v4162 = vunpack.c.l.b16 %v1014
  %v4163 = vunpack.c.h.b16 %v1014
  %v4164 = vunpack.c.l.b16 %v1015
  %v4165 = vunpack.c.h.b16 %v1015
  %v4166 = vunpack.c.l.b16 %v1016
  %v4167 = vunpack.c.h.b16 %v1016
  %v4168 = vunpack.c.l.b16 %v1017
  %v4169 = vunpack.c.h.b16 %v1017
  %v4170 = vunpack.c.l.b16 %v1018
  %v4171 = vunpack.c.h.b16 %v1018
  %v4172 = vunpack.c.l.b16 %v1019
  %v4173 = vunpack.c.h.b16 %v1019
  %v4174 = vunpack.c.l.b16 %v1020
  %v4175 = vunpack.c.h.b16 %v1020
  %v4176 = vunpack.c.l.b16 %v1021
  %v4177 = vunpack.c.h.b16 %v1021
  %v4178 = vunpack.c.l.b16 %v1022
  %v4179 = vunpack.c.h.b16 %v1022
  %v4180 = vunpack.c.l.b16 %v1023
  %v4181 = vunpack.c.h.b16 %v1023
  %v4182 = vunpack.c.l.b16 %v1024
  %v4183 = vunpack.c.h.b16 %v1024
  %v4184 = vunpack.c.l.b16 %v1025
  %v4185 = vunpack.c.h.b16 %v1025
  %v4186 = vunpack.c.l.b16 %v1026
  %v4187 = vunpack.c.h.b16 %v1026
  %v4188 = vunpack.c.l.b16 %v1027
  %v4189 = vunpack.c.h.b16 %v1027
  %v4190 = vunpack.c.l.b16 %v1028
  %v4191 = vunpack.c.h.b16 %v1028
  %v4192 = vunpack.c.l.b16 %v1029
  %v4193 = vunpack.c.h.b16 %v1029
  %v4194 = vunpack.c.l.b16 %v1030
  %v4195 = vunpack.c.h.b16 %v1030
  %v4196 = vunpack.c.l.b16 %v1031
  %v4197 = vunpack.c.h.b16 %v1031
  %v4198 = vunpack.c.l.b16 %v1032
  %v4199 = vunpack.c.h.b16 %v1032
  %v4200 = vunpack.c.l.b16 %v1033
  %v4201 = vunpack.c.h.b16 %v1033
  %v4202 = vunpack.c.l.b16 %v1034
  %v4203 = vunpack.c.h.b16 %v1034
  %v4204 = vunpack.c.l.b16 %v1035
  %v4205 = vunpack.c.h.b16 %v1035
  %v4206 = vunpack.c.l.b16 %v1036
  %v4207 = vunpack.c.h.b16 %v1036
  %v4208 = vunpack.c.l.b16 %v1037
  %v4209 = vunpack.c.h.b16 %v1037
  %v4210 = vunpack.c.l.b16 %v1038
  %v4211 = vunpack.c.h.b16 %v1038
  %v4212 = vunpack.c.l.b16 %v1039
  %v4213 = vunpack.c.h.b16 %v1039
  %v4214 = vunpack.c.l.b16 %v1040
  %v4215 = vunpack.c.h.b16 %v1040
  %v4216 = vunpack.c.l.b16 %v1041
  %v4217 = vunpack.c.h.b16 %v1041
  %v4218 = vunpack.c.l.b16 %v1042
  %v4219 = vunpack.c.h.b16 %v1042
  %v4220 = vunpack.c.l.b16 %v1043
  %v4221 = vunpack.c.h.b16 %v1043
  %v4222 = vunpack.c.l.b16 %v1044
  %v4223 = vunpack.c.h.b16 %v1044
  %v4224 = vunpack.c.l.b16 %v1045
  %v4225 = vunpack.c.h.b16 %v1045
  %v4226 = vunpack.c.l.b16 %v1046
  %v4227 = vunpack.c.h.b16 %v1046
  %v4228 = vunpack.c.l.b16 %v1047
  %v4229 = vunpack.c.h.b16 %v1047
  %v4230 = vunpack.c.l.b16 %v1048
  %v4231 = vunpack.c.h.b16 %v1048
  %v4232 = vunpack.c.l.b16 %v1049
  %v4233 = vunpack.c.h.b16 %v1049
  %v4234 = vunpack.c.l.b16 %v1050
  %v4235 = vunpack.c.h.b16 %v1050
  %v4236 = vunpack.c.l.b16 %v1051
  %v4237 = vunpack.c.h.b16 %v1051
  %v4238 = vunpack.c.l.b16 %v1052
  %v4239 = vunpack.c.h.b16 %v1052
  %v4240 = vunpack.c.l.b16 %v1053
  %v4241 = vunpack.c.h.b16 %v1053
  %v4242 = vunpack.c.l.b16 %v1054
  %v4243 = vunpack.c.h.b16 %v1054
  %v4244 = vunpack.c.l.b16 %v1055
  %v4245 = vunpack.c.h.b16 %v1055
  %v4246 = vunpack.c.l.b16 %v1056
  %v4247 = vunpack.c.h.b16 %v1056
  %v4248 = vunpack.c.l.b16 %v1057
  %v4249 = vunpack.c.h.b16 %v1057
  %v4250 = vunpack.c.l.b16 %v1058
  %v4251 = vunpack.c.h.b16 %v1058
  %v4252 = vunpack.c.l.b16 %v1059
  %v4253 = vunpack.c.h.b16 %v1059
  %v4254 = vpack.c.b16 %v2210, %v2206
  %v4255 = vpack.c.b16 %v2211, %v2207
  %v4256 = vpack.c.b16 %v2212, %v2208
  %v4257 = vpack.c.b16 %v2213, %v2209
  %v4258 = vpack.c.b16 %v2218, %v2214
  %v4259 = vpack.c.b16 %v2219, %v2215
  %v4260 = vpack.c.b16 %v2220, %v2216
  %v4261 = vpack.c.b16 %v2221, %v2217
  %v4262 = vpack.c.b16 %v2226, %v2222
  %v4263 = vpack.c.b16 %v2227, %v2223
  %v4264 = vpack.c.b16 %v2228, %v2224
  %v4265 = vpack.c.b16 %v2229, %v2225
  %v4266 = vpack.c.b16 %v2234, %v2230
  %v4267 = vpack.c.b16 %v2235, %v2231
  %v4268 = vpack.c.b16 %v2236, %v2232
  %v4269 = vpack.c.b16 %v2237, %v2233
  %v4270 = vpack.c.b16 %v2242, %v2238
  %v4271 = vpack.c.b16 %v2243, %v2239
  %v4272 = vpack.c.b16 %v2244, %v2240
  %v4273 = vpack.c.b16 %v2245, %v2241
  %v4274 = vpack.c.b16 %v2250, %v2246
  %v4275 = vpack.c.b16 %v2251, %v2247
  %v4276 = vpack.c.b16 %v2252, %v2248
  %v4277 = vpack.c.b16 %v2253, %v2249
  %v4278 = vpack.c.b16 %v2258, %v2254
  %v4279 = vpack.c.b16 %v2259, %v2255
  %v4280 = vpack.c.b16 %v2260, %v2256
  %v4281 = vpack.c.b16 %v2261, %v2257
  %v4282 = vpack.c.b16 %v2266, %v2262
  %v4283 = vpack.c.b16 %v2267, %v2263
  %v4284 = vpack.c.b16 %v2268, %v2264
  %v4285 = vpack.c.b16 %v2269, %v2265
  %v4286 = vpack.c.b16 %v2274, %v2270
  %v4287 = vpack.c.b16 %v2275, %v2271
  %v4288 = vpack.c.b16 %v2276, %v2272
  %v4289 = vpack.c.b16 %v2277, %v2273
  %v4290 = vpack.c.b16 %v2282, %v2278
  %v4291 = vpack.c.b16 %v2283, %v2279
  %v4292 = vpack.c.b16 %v2284, %v2280
  %v4293 = vpack.c.b16 %v2285, %v2281
  %v4294 = vpack.c.b16 %v2290, %v2286
  %v4295 = vpack.c.b16 %v2291, %v2287
  %v4296 = vpack.c.b16 %v2292, %v2288
  %v4297 = vpack.c.b16 %v2293, %v2289
  %v4298 = vpack.c.b16 %v2298, %v2294
  %v4299 = vpack.c.b16 %v2299, %v2295
  %v4300 = vpack.c.b16 %v2300, %v2296
  %v4301 = vpack.c.b16 %v2301, %v2297
  %v4302 = vpack.c.b16 %v2306, %v2302
  %v4303 = vpack.c.b16 %v2307, %v2303
  %v4304 = vpack.c.b16 %v2308, %v2304
  %v4305 = vpack.c.b16 %v2309, %v2305
  %v4306 = vpack.c.b16 %v2314, %v2310
  %v4307 = vpack.c.b16 %v2315, %v2311
  %v4308 = vpack.c.b16 %v2316, %v2312
  %v4309 = vpack.c.b16 %v2317, %v2313
  %v4310 = vpack.c.b16 %v2322, %v2318
  %v4311 = vpack.c.b16 %v2323, %v2319
  %v4312 = vpack.c.b16 %v2324, %v2320
  %v4313 = vpack.c.b16 %v2325, %v2321
  %v4314 = vpack.c.b16 %v2330, %v2326
  %v4315 = vpack.c.b16 %v2331, %v2327
  %v4316 = vpack.c.b16 %v2332, %v2328
  %v4317 = vpack.c.b16 %v2333, %v2329
  %v4318 = vpack.c.b16 %v2338, %v2334
  %v4319 = vpack.c.b16 %v2339, %v2335
  %v4320 = vpack.c.b16 %v2340, %v2336
  %v4321 = vpack.c.b16 %v2341, %v2337
  %v4322 = vpack.c.b16 %v2346, %v2342
  %v4323 = vpack.c.b16 %v2347, %v2343
  %v4324 = vpack.c.b16 %v2348, %v2344
  %v4325 = vpack.c.b16 %v2349, %v2345
  %v4326 = vpack.c.b16 %v2354, %v2350
  %v4327 = vpack.c.b16 %v2355, %v2351
  %v4328 = vpack.c.b16 %v2356, %v2352
  %v4329 = vpack.c.b16 %v2357, %v2353
  %v4330 = vpack.c.b16 %v2362, %v2358
  %v4331 = vpack.c.b16 %v2363, %v2359
  %v4332 = vpack.c.b16 %v2364, %v2360
  %v4333 = vpack.c.b16 %v2365, %v2361
  %v4334 = vpack.c.b16 %v2370, %v2366
  %v4335 = vpack.c.b16 %v2371, %v2367
  %v4336 = vpack.c.b16 %v2372, %v2368
  %v4337 = vpack.c.b16 %v2373, %v2369
  %v4338 = vpack.c.b16 %v2378, %v2374
  %v4339 = vpack.c.b16 %v2379, %v2375
  %v4340 = vpack.c.b16 %v2380, %v2376
  %v4341 = vpack.c.b16 %v2381, %v2377
  %v4342 = vpack.c.b16 %v2386, %v2382
  %v4343 = vpack.c.b16 %v2387, %v2383
  %v4344 = vpack.c.b16 %v2388, %v2384
  %v4345 = vpack.c.b16 %v2389, %v2385
  %v4346 = vpack.c.b16 %v2394, %v2390
  %v4347 = vpack.c.b16 %v2395, %v2391
  %v4348 = vpack.c.b16 %v2396, %v2392
  %v4349 = vpack.c.b16 %v2397, %v2393
  %v4350 = vpack.c.b16 %v2402, %v2398
  %v4351 = vpack.c.b16 %v2403, %v2399
  %v4352 = vpack.c.b16 %v2404, %v2400
  %v4353 = vpack.c.b16 %v2405, %v2401
  %v4354 = vpack.c.b16 %v2410, %v2406
  %v4355 = vpack.c.b16 %v2411, %v2407
  %v4356 = vpack.c.b16 %v2412, %v2408
  %v4357 = vpack.c.b16 %v2413, %v2409
  %v4358 = vpack.c.b16 %v2418, %v2414
  %v4359 = vpack.c.b16 %v2419, %v2415
  %v4360 = vpack.c.b16 %v2420, %v2416
  %v4361 = vpack.c.b16 %v2421, %v2417
  %v4362 = vpack.c.b16 %v2426, %v2422
  %v4363 = vpack.c.b16 %v2427, %v2423
  %v4364 = vpack.c.b16 %v2428, %v2424
  %v4365 = vpack.c.b16 %v2429, %v2425
  %v4366 = vpack.c.b16 %v2434, %v2430
  %v4367 = vpack.c.b16 %v2435, %v2431
  %v4368 = vpack.c.b16 %v2436, %v2432
  %v4369 = vpack.c.b16 %v2437, %v2433
  %v4370 = vpack.c.b16 %v2442, %v2438
  %v4371 = vpack.c.b16 %v2443, %v2439
  %v4372 = vpack.c.b16 %v2444, %v2440
  %v4373 = vpack.c.b16 %v2445, %v2441
  %v4374 = vpack.c.b16 %v2450, %v2446
  %v4375 = vpack.c.b16 %v2451, %v2447
  %v4376 = vpack.c.b16 %v2452, %v2448
  %v4377 = vpack.c.b16 %v2453, %v2449
  %v4378 = vpack.c.b16 %v2458, %v2454
  %v4379 = vpack.c.b16 %v2459, %v2455
  %v4380 = vpack.c.b16 %v2460, %v2456
  %v4381 = vpack.c.b16 %v2461, %v2457
  %v4382 = vpack.c.b16 %v2466, %v2462
  %v4383 = vpack.c.b16 %v2467, %v2463
  %v4384 = vpack.c.b16 %v2468, %v2464
  %v4385 = vpack.c.b16 %v2469, %v2465
  %v4386 = vpack.c.b16 %v2474, %v2470
  %v4387 = vpack.c.b16 %v2475, %v2471
  %v4388 = vpack.c.b16 %v2476, %v2472
  %v4389 = vpack.c.b16 %v2477, %v2473
  %v4390 = vpack.c.b16 %v2482, %v2478
  %v4391 = vpack.c.b16 %v2483, %v2479
  %v4392 = vpack.c.b16 %v2484, %v2480
  %v4393 = vpack.c.b16 %v2485, %v2481
  %v4394 = vpack.c.b16 %v2490, %v2486
  %v4395 = vpack.c.b16 %v2491, %v2487
  %v4396 = vpack.c.b16 %v2492, %v2488
  %v4397 = vpack.c.b16 %v2493, %v2489
  %v4398 = vpack.c.b16 %v2498, %v2494
  %v4399 = vpack.c.b16 %v2499, %v2495
  %v4400 = vpack.c.b16 %v2500, %v2496
  %v4401 = vpack.c.b16 %v2501, %v2497
  %v4402 = vpack.c.b16 %v2506, %v2502
  %v4403 = vpack.c.b16 %v2507, %v2503
  %v4404 = vpack.c.b16 %v2508, %v2504
  %v4405 = vpack.c.b16 %v2509, %v2505
  %v4406 = vpack.c.b16 %v2514, %v2510
  %v4407 = vpack.c.b16 %v2515, %v2511
  %v4408 = vpack.c.b16 %v2516, %v2512
  %v4409 = vpack.c.b16 %v2517, %v2513
  %v4410 = vpack.c.b16 %v2522, %v2518
  %v4411 = vpack.c.b16 %v2523, %v2519
  %v4412 = vpack.c.b16 %v2524, %v2520
  %v4413 = vpack.c.b16 %v2525, %v2521
  %v4414 = vpack.c.b16 %v2530, %v2526
  %v4415 = vpack.c.b16 %v2531, %v2527
  %v4416 = vpack.c.b16 %v2532, %v2528
  %v4417 = vpack.c.b16 %v2533, %v2529
  %v4418 = vpack.c.b16 %v2538, %v2534
  %v4419 = vpack.c.b16 %v2539, %v2535
  %v4420 = vpack.c.b16 %v2540, %v2536
  %v4421 = vpack.c.b16 %v2541, %v2537
  %v4422 = vpack.c.b16 %v2546, %v2542
  %v4423 = vpack.c.b16 %v2547, %v2543
  %v4424 = vpack.c.b16 %v2548, %v2544
  %v4425 = vpack.c.b16 %v2549, %v2545
  %v4426 = vpack.c.b16 %v2554, %v2550
  %v4427 = vpack.c.b16 %v2555, %v2551
  %v4428 = vpack.c.b16 %v2556, %v2552
  %v4429 = vpack.c.b16 %v2557, %v2553
  %v4430 = vpack.c.b16 %v2562, %v2558
  %v4431 = vpack.c.b16 %v2563, %v2559
  %v4432 = vpack.c.b16 %v2564, %v2560
  %v4433 = vpack.c.b16 %v2565, %v2561
  %v4434 = vpack.c.b16 %v2570, %v2566
  %v4435 = vpack.c.b16 %v2571, %v2567
  %v4436 = vpack.c.b16 %v2572, %v2568
  %v4437 = vpack.c.b16 %v2573, %v2569
  %v4438 = vpack.c.b16 %v2578, %v2574
  %v4439 = vpack.c.b16 %v2579, %v2575
  %v4440 = vpack.c.b16 %v2580, %v2576
  %v4441 = vpack.c.b16 %v2581, %v2577
  %v4442 = vpack.c.b16 %v2586, %v2582
  %v4443 = vpack.c.b16 %v2587, %v2583
  %v4444 = vpack.c.b16 %v2588, %v2584
  %v4445 = vpack.c.b16 %v2589, %v2585
  %v4446 = vpack.c.b16 %v2594, %v2590
  %v4447 = vpack.c.b16 %v2595, %v2591
  %v4448 = vpack.c.b16 %v2596, %v2592
  %v4449 = vpack.c.b16 %v2597, %v2593
  %v4450 = vpack.c.b16 %v2602, %v2598
  %v4451 = vpack.c.b16 %v2603, %v2599
  %v4452 = vpack.c.b16 %v2604, %v2600
  %v4453 = vpack.c.b16 %v2605, %v2601
  %v4454 = vpack.c.b16 %v2610, %v2606
  %v4455 = vpack.c.b16 %v2611, %v2607
  %v4456 = vpack.c.b16 %v2612, %v2608
  %v4457 = vpack.c.b16 %v2613, %v2609
  %v4458 = vpack.c.b16 %v2618, %v2614
  %v4459 = vpack.c.b16 %v2619, %v2615
  %v4460 = vpack.c.b16 %v2620, %v2616
  %v4461 = vpack.c.b16 %v2621, %v2617
  %v4462 = vpack.c.b16 %v2626, %v2622
  %v4463 = vpack.c.b16 %v2627, %v2623
  %v4464 = vpack.c.b16 %v2628, %v2624
  %v4465 = vpack.c.b16 %v2629, %v2625
  %v4466 = vpack.c.b16 %v2634, %v2630
  %v4467 = vpack.c.b16 %v2635, %v2631
  %v4468 = vpack.c.b16 %v2636, %v2632
  %v4469 = vpack.c.b16 %v2637, %v2633
  %v4470 = vpack.c.b16 %v2642, %v2638
  %v4471 = vpack.c.b16 %v2643, %v2639
  %v4472 = vpack.c.b16 %v2644, %v2640
  %v4473 = vpack.c.b16 %v2645, %v2641
  %v4474 = vpack.c.b16 %v2650, %v2646
  %v4475 = vpack.c.b16 %v2651, %v2647
  %v4476 = vpack.c.b16 %v2652, %v2648
  %v4477 = vpack.c.b16 %v2653, %v2649
  %v4478 = vpack.c.b16 %v2658, %v2654
  %v4479 = vpack.c.b16 %v2659, %v2655
  %v4480 = vpack.c.b16 %v2660, %v2656
  %v4481 = vpack.c.b16 %v2661, %v2657
  %v4482 = vpack.c.b16 %v2666, %v2662
  %v4483 = vpack.c.b16 %v2667, %v2663
  %v4484 = vpack.c.b16 %v2668, %v2664
  %v4485 = vpack.c.b16 %v2669, %v2665
  %v4486 = vpack.c.b16 %v2674, %v2670
  %v4487 = vpack.c.b16 %v2675, %v2671
  %v4488 = vpack.c.b16 %v2676, %v2672
  %v4489 = vpack.c.b16 %v2677, %v2673
  %v4490 = vpack.c.b16 %v2682, %v2678
  %v4491 = vpack.c.b16 %v2683, %v2679
  %v4492 = vpack.c.b16 %v2684, %v2680
  %v4493 = vpack.c.b16 %v2685, %v2681
  %v4494 = vpack.c.b16 %v2690, %v2686
  %v4495 = vpack.c.b16 %v2691, %v2687
  %v4496 = vpack.c.b16 %v2692, %v2688
  %v4497 = vpack.c.b16 %v2693, %v2689
  %v4498 = vpack.c.b16 %v2698, %v2694
  %v4499 = vpack.c.b16 %v2699, %v2695
  %v4500 = vpack.c.b16 %v2700, %v2696
  %v4501 = vpack.c.b16 %v2701, %v2697
  %v4502 = vpack.c.b16 %v2706, %v2702
  %v4503 = vpack.c.b16 %v2707, %v2703
  %v4504 = vpack.c.b16 %v2708, %v2704
  %v4505 = vpack.c.b16 %v2709, %v2705
  %v4506 = vpack.c.b16 %v2714, %v2710
  %v4507 = vpack.c.b16 %v2715, %v2711
  %v4508 = vpack.c.b16 %v2716, %v2712
  %v4509 = vpack.c.b16 %v2717, %v2713
  %v4510 = vpack.c.b16 %v2722, %v2718
  %v4511 = vpack.c.b16 %v2723, %v2719
  %v4512 = vpack.c.b16 %v2724, %v2720
  %v4513 = vpack.c.b16 %v2725, %v2721
  %v4514 = vpack.c.b16 %v2730, %v2726
  %v4515 = vpack.c.b16 %v2731, %v2727
  %v4516 = vpack.c.b16 %v2732, %v2728
  %v4517 = vpack.c.b16 %v2733, %v2729
  %v4518 = vpack.c.b16 %v2738, %v2734
  %v4519 = vpack.c.b16 %v2739, %v2735
  %v4520 = vpack.c.b16 %v2740, %v2736
  %v4521 = vpack.c.b16 %v2741, %v2737
  %v4522 = vpack.c.b16 %v2746, %v2742
  %v4523 = vpack.c.b16 %v2747, %v2743
  %v4524 = vpack.c.b16 %v2748, %v2744
  %v4525 = vpack.c.b16 %v2749, %v2745
  %v4526 = vpack.c.b16 %v2754, %v2750
  %v4527 = vpack.c.b16 %v2755, %v2751
  %v4528 = vpack.c.b16 %v2756, %v2752
  %v4529 = vpack.c.b16 %v2757, %v2753
  %v4530 = vpack.c.b16 %v2762, %v2758
  %v4531 = vpack.c.b16 %v2763, %v2759
  %v4532 = vpack.c.b16 %v2764, %v2760
  %v4533 = vpack.c.b16 %v2765, %v2761
  %v4534 = vpack.c.b16 %v2770, %v2766
  %v4535 = vpack.c.b16 %v2771, %v2767
  %v4536 = vpack.c.b16 %v2772, %v2768
  %v4537 = vpack.c.b16 %v2773, %v2769
  %v4538 = vpack.c.b16 %v2778, %v2774
  %v4539 = vpack.c.b16 %v2779, %v2775
  %v4540 = vpack.c.b16 %v2780, %v2776
  %v4541 = vpack.c.b16 %v2781, %v2777
  %v4542 = vpack.c.b16 %v2786, %v2782
  %v4543 = vpack.c.b16 %v2787, %v2783
  %v4544 = vpack.c.b16 %v2788, %v2784
  %v4545 = vpack.c.b16 %v2789, %v2785
  %v4546 = vpack.c.b16 %v2794, %v2790
  %v4547 = vpack.c.b16 %v2795, %v2791
  %v4548 = vpack.c.b16 %v2796, %v2792
  %v4549 = vpack.c.b16 %v2797, %v2793
  %v4550 = vpack.c.b16 %v2802, %v2798
  %v4551 = vpack.c.b16 %v2803, %v2799
  %v4552 = vpack.c.b16 %v2804, %v2800
  %v4553 = vpack.c.b16 %v2805, %v2801
  %v4554 = vpack.c.b16 %v2810, %v2806
  %v4555 = vpack.c.b16 %v2811, %v2807
  %v4556 = vpack.c.b16 %v2812, %v2808
  %v4557 = vpack.c.b16 %v2813, %v2809
  %v4558 = vpack.c.b16 %v2818, %v2814
  %v4559 = vpack.c.b16 %v2819, %v2815
  %v4560 = vpack.c.b16 %v2820, %v2816
  %v4561 = vpack.c.b16 %v2821, %v2817
  %v4562 = vpack.c.b16 %v2826, %v2822
  %v4563 = vpack.c.b16 %v2827, %v2823
  %v4564 = vpack.c.b16 %v2828, %v2824
  %v4565 = vpack.c.b16 %v2829, %v2825
  %v4566 = vpack.c.b16 %v2834, %v2830
  %v4567 = vpack.c.b16 %v2835, %v2831
  %v4568 = vpack.c.b16 %v2836, %v2832
  %v4569 = vpack.c.b16 %v2837, %v2833
  %v4570 = vpack.c.b16 %v2842, %v2838
  %v4571 = vpack.c.b16 %v2843, %v2839
  %v4572 = vpack.c.b16 %v2844, %v2840
  %v4573 = vpack.c.b16 %v2845, %v2841
  %v4574 = vpack.c.b16 %v2850, %v2846
  %v4575 = vpack.c.b16 %v2851, %v2847
  %v4576 = vpack.c.b16 %v2852, %v2848
  %v4577 = vpack.c.b16 %v2853, %v2849
  %v4578 = vpack.c.b16 %v2858, %v2854
  %v4579 = vpack.c.b16 %v2859, %v2855
  %v4580 = vpack.c.b16 %v2860, %v2856
  %v4581 = vpack.c.b16 %v2861, %v2857
  %v4582 = vpack.c.b16 %v2866, %v2862
  %v4583 = vpack.c.b16 %v2867, %v2863
  %v4584 = vpack.c.b16 %v2868, %v2864
  %v4585 = vpack.c.b16 %v2869, %v2865
  %v4586 = vpack.c.b16 %v2874, %v2870
  %v4587 = vpack.c.b16 %v2875, %v2871
  %v4588 = vpack.c.b16 %v2876, %v2872
  %v4589 = vpack.c.b16 %v2877, %v2873
  %v4590 = vpack.c.b16 %v2882, %v2878
  %v4591 = vpack.c.b16 %v2883, %v2879
  %v4592 = vpack.c.b16 %v2884, %v2880
  %v4593 = vpack.c.b16 %v2885, %v2881
  %v4594 = vpack.c.b16 %v2890, %v2886
  %v4595 = vpack.c.b16 %v2891, %v2887
  %v4596 = vpack.c.b16 %v2892, %v2888
  %v4597 = vpack.c.b16 %v2893, %v2889
  %v4598 = vpack.c.b16 %v2898, %v2894
  %v4599 = vpack.c.b16 %v2899, %v2895
  %v4600 = vpack.c.b16 %v2900, %v2896
  %v4601 = vpack.c.b16 %v2901, %v2897
  %v4602 = vpack.c.b16 %v2906, %v2902
  %v4603 = vpack.c.b16 %v2907, %v2903
  %v4604 = vpack.c.b16 %v2908, %v2904
  %v4605 = vpack.c.b16 %v2909, %v2905
  %v4606 = vpack.c.b16 %v2914, %v2910
  %v4607 = vpack.c.b16 %v2915, %v2911
  %v4608 = vpack.c.b16 %v2916, %v2912
  %v4609 = vpack.c.b16 %v2917, %v2913
  %v4610 = vpack.c.b16 %v2922, %v2918
  %v4611 = vpack.c.b16 %v2923, %v2919
  %v4612 = vpack.c.b16 %v2924, %v2920
  %v4613 = vpack.c.b16 %v2925, %v2921
  %v4614 = vpack.c.b16 %v2930, %v2926
  %v4615 = vpack.c.b16 %v2931, %v2927
  %v4616 = vpack.c.b16 %v2932, %v2928
  %v4617 = vpack.c.b16 %v2933, %v2929
  %v4618 = vpack.c.b16 %v2938, %v2934
  %v4619 = vpack.c.b16 %v2939, %v2935
  %v4620 = vpack.c.b16 %v2940, %v2936
  %v4621 = vpack.c.b16 %v2941, %v2937
  %v4622 = vpack.c.b16 %v2946, %v2942
  %v4623 = vpack.c.b16 %v2947, %v2943
  %v4624 = vpack.c.b16 %v2948, %v2944
  %v4625 = vpack.c.b16 %v2949, %v2945
  %v4626 = vpack.c.b16 %v2954, %v2950
  %v4627 = vpack.c.b16 %v2955, %v2951
  %v4628 = vpack.c.b16 %v2956, %v2952
  %v4629 = vpack.c.b16 %v2957, %v2953
  %v4630 = vpack.c.b16 %v2962, %v2958
  %v4631 = vpack.c.b16 %v2963, %v2959
  %v4632 = vpack.c.b16 %v2964, %v2960
  %v4633 = vpack.c.b16 %v2965, %v2961
  %v4634 = vpack.c.b16 %v2970, %v2966
  %v4635 = vpack.c.b16 %v2971, %v2967
  %v4636 = vpack.c.b16 %v2972, %v2968
  %v4637 = vpack.c.b16 %v2973, %v2969
  %v4638 = vpack.c.b16 %v2978, %v2974
  %v4639 = vpack.c.b16 %v2979, %v2975
  %v4640 = vpack.c.b16 %v2980, %v2976
  %v4641 = vpack.c.b16 %v2981, %v2977
  %v4642 = vpack.c.b16 %v2986, %v2982
  %v4643 = vpack.c.b16 %v2987, %v2983
  %v4644 = vpack.c.b16 %v2988, %v2984
  %v4645 = vpack.c.b16 %v2989, %v2985
  %v4646 = vpack.c.b16 %v2994, %v2990
  %v4647 = vpack.c.b16 %v2995, %v2991
  %v4648 = vpack.c.b16 %v2996, %v2992
  %v4649 = vpack.c.b16 %v2997, %v2993
  %v4650 = vpack.c.b16 %v3002, %v2998
  %v4651 = vpack.c.b16 %v3003, %v2999
  %v4652 = vpack.c.b16 %v3004, %v3000
  %v4653 = vpack.c.b16 %v3005, %v3001
  %v4654 = vpack.c.b16 %v3010, %v3006
  %v4655 = vpack.c.b16 %v3011, %v3007
  %v4656 = vpack.c.b16 %v3012, %v3008
  %v4657 = vpack.c.b16 %v3013, %v3009
  %v4658 = vpack.c.b16 %v3018, %v3014
  %v4659 = vpack.c.b16 %v3019, %v3015
  %v4660 = vpack.c.b16 %v3020, %v3016
  %v4661 = vpack.c.b16 %v3021, %v3017
  %v4662 = vpack.c.b16 %v3026, %v3022
  %v4663 = vpack.c.b16 %v3027, %v3023
  %v4664 = vpack.c.b16 %v3028, %v3024
  %v4665 = vpack.c.b16 %v3029, %v3025
  %v4666 = vpack.c.b16 %v3034, %v3030
  %v4667 = vpack.c.b16 %v3035, %v3031
  %v4668 = vpack.c.b16 %v3036, %v3032
  %v4669 = vpack.c.b16 %v3037, %v3033
  %v4670 = vpack.c.b16 %v3042, %v3038
  %v4671 = vpack.c.b16 %v3043, %v3039
  %v4672 = vpack.c.b16 %v3044, %v3040
  %v4673 = vpack.c.b16 %v3045, %v3041
  %v4674 = vpack.c.b16 %v3050, %v3046
  %v4675 = vpack.c.b16 %v3051, %v3047
  %v4676 = vpack.c.b16 %v3052, %v3048
  %v4677 = vpack.c.b16 %v3053, %v3049
  %v4678 = vpack.c.b16 %v3058, %v3054
  %v4679 = vpack.c.b16 %v3059, %v3055
  %v4680 = vpack.c.b16 %v3060, %v3056
  %v4681 = vpack.c.b16 %v3061, %v3057
  %v4682 = vpack.c.b16 %v3066, %v3062
  %v4683 = vpack.c.b16 %v3067, %v3063
  %v4684 = vpack.c.b16 %v3068, %v3064
  %v4685 = vpack.c.b16 %v3069, %v3065
  %v4686 = vpack.c.b16 %v3074, %v3070
  %v4687 = vpack.c.b16 %v3075, %v3071
  %v4688 = vpack.c.b16 %v3076, %v3072
  %v4689 = vpack.c.b16 %v3077, %v3073
  %v4690 = vpack.c.b16 %v3082, %v3078
  %v4691 = vpack.c.b16 %v3083, %v3079
  %v4692 = vpack.c.b16 %v3084, %v3080
  %v4693 = vpack.c.b16 %v3085, %v3081
  %v4694 = vpack.c.b16 %v3090, %v3086
  %v4695 = vpack.c.b16 %v3091, %v3087
  %v4696 = vpack.c.b16 %v3092, %v3088
  %v4697 = vpack.c.b16 %v3093, %v3089
  %v4698 = vpack.c.b16 %v3098, %v3094
  %v4699 = vpack.c.b16 %v3099, %v3095
  %v4700 = vpack.c.b16 %v3100, %v3096
  %v4701 = vpack.c.b16 %v3101, %v3097
  %v4702 = vpack.c.b16 %v3106, %v3102
  %v4703 = vpack.c.b16 %v3107, %v3103
  %v4704 = vpack.c.b16 %v3108, %v3104
  %v4705 = vpack.c.b16 %v3109, %v3105
  %v4706 = vpack.c.b16 %v3114, %v3110
  %v4707 = vpack.c.b16 %v3115, %v3111
  %v4708 = vpack.c.b16 %v3116, %v3112
  %v4709 = vpack.c.b16 %v3117, %v3113
  %v4710 = vpack.c.b16 %v3122, %v3118
  %v4711 = vpack.c.b16 %v3123, %v3119
  %v4712 = vpack.c.b16 %v3124, %v3120
  %v4713 = vpack.c.b16 %v3125, %v3121
  %v4714 = vpack.c.b16 %v3130, %v3126
  %v4715 = vpack.c.b16 %v3131, %v3127
  %v4716 = vpack.c.b16 %v3132, %v3128
  %v4717 = vpack.c.b16 %v3133, %v3129
  %v4718 = vpack.c.b16 %v3138, %v3134
  %v4719 = vpack.c.b16 %v3139, %v3135
  %v4720 = vpack.c.b16 %v3140, %v3136
  %v4721 = vpack.c.b16 %v3141, %v3137
  %v4722 = vpack.c.b16 %v3146, %v3142
  %v4723 = vpack.c.b16 %v3147, %v3143
  %v4724 = vpack.c.b16 %v3148, %v3144
  %v4725 = vpack.c.b16 %v3149, %v3145
  %v4726 = vpack.c.b16 %v3154, %v3150
  %v4727 = vpack.c.b16 %v3155, %v3151
  %v4728 = vpack.c.b16 %v3156, %v3152
  %v4729 = vpack.c.b16 %v3157, %v3153
  %v4730 = vpack.c.b16 %v3162, %v3158
  %v4731 = vpack.c.b16 %v3163, %v3159
  %v4732 = vpack.c.b16 %v3164, %v3160
  %v4733 = vpack.c.b16 %v3165, %v3161
  %v4734 = vpack.c.b16 %v3170, %v3166
  %v4735 = vpack.c.b16 %v3171, %v3167
  %v4736 = vpack.c.b16 %v3172, %v3168
  %v4737 = vpack.c.b16 %v3173, %v3169
  %v4738 = vpack.c.b16 %v3178, %v3174
  %v4739 = vpack.c.b16 %v3179, %v3175
  %v4740 = vpack.c.b16 %v3180, %v3176
  %v4741 = vpack.c.b16 %v3181, %v3177
  %v4742 = vpack.c.b16 %v3186, %v3182
  %v4743 = vpack.c.b16 %v3187, %v3183
  %v4744 = vpack.c.b16 %v3188, %v3184
  %v4745 = vpack.c.b16 %v3189, %v3185
  %v4746 = vpack.c.b16 %v3194, %v3190
  %v4747 = vpack.c.b16 %v3195, %v3191
  %v4748 = vpack.c.b16 %v3196, %v3192
  %v4749 = vpack.c.b16 %v3197, %v3193
  %v4750 = vpack.c.b16 %v3202, %v3198
  %v4751 = vpack.c.b16 %v3203, %v3199
  %v4752 = vpack.c.b16 %v3204, %v3200
  %v4753 = vpack.c.b16 %v3205, %v3201
  %v4754 = vpack.c.b16 %v3210, %v3206
  %v4755 = vpack.c.b16 %v3211, %v3207
  %v4756 = vpack.c.b16 %v3212, %v3208
  %v4757 = vpack.c.b16 %v3213, %v3209
  %v4758 = vpack.c.b16 %v3218, %v3214
  %v4759 = vpack.c.b16 %v3219, %v3215
  %v4760 = vpack.c.b16 %v3220, %v3216
  %v4761 = vpack.c.b16 %v3221, %v3217
  %v4762 = vpack.c.b16 %v3226, %v3222
  %v4763 = vpack.c.b16 %v3227, %v3223
  %v4764 = vpack.c.b16 %v3228, %v3224
  %v4765 = vpack.c.b16 %v3229, %v3225
  %v4766 = vpack.c.b16 %v3234, %v3230
  %v4767 = vpack.c.b16 %v3235, %v3231
  %v4768 = vpack.c.b16 %v3236, %v3232
  %v4769 = vpack.c.b16 %v3237, %v3233
  %v4770 = vpack.c.b16 %v3242, %v3238
  %v4771 = vpack.c.b16 %v3243, %v3239
  %v4772 = vpack.c.b16 %v3244, %v3240
  %v4773 = vpack.c.b16 %v3245, %v3241
  %v4774 = vpack.c.b16 %v3250, %v3246
  %v4775 = vpack.c.b16 %v3251, %v3247
  %v4776 = vpack.c.b16 %v3252, %v3248
  %v4777 = vpack.c.b16 %v3253, %v3249
  %v4778 = vpack.c.b16 %v3258, %v3254
  %v4779 = vpack.c.b16 %v3259, %v3255
  %v4780 = vpack.c.b16 %v3260, %v3256
  %v4781 = vpack.c.b16 %v3261, %v3257
  %v4782 = vpack.c.b16 %v3266, %v3262
  %v4783 = vpack.c.b16 %v3267, %v3263
  %v4784 = vpack.c.b16 %v3268, %v3264
  %v4785 = vpack.c.b16 %v3269, %v3265
  %v4786 = vpack.c.b16 %v3274, %v3270
  %v4787 = vpack.c.b16 %v3275, %v3271
  %v4788 = vpack.c.b16 %v3276, %v3272
  %v4789 = vpack.c.b16 %v3277, %v3273
  %v4790 = vpack.c.b16 %v3282, %v3278
  %v4791 = vpack.c.b16 %v3283, %v3279
  %v4792 = vpack.c.b16 %v3284, %v3280
  %v4793 = vpack.c.b16 %v3285, %v3281
  %v4794 = vpack.c.b16 %v3290, %v3286
  %v4795 = vpack.c.b16 %v3291, %v3287
  %v4796 = vpack.c.b16 %v3292, %v3288
  %v4797 = vpack.c.b16 %v3293, %v3289
  %v4798 = vpack.c.b16 %v3298, %v3294
  %v4799 = vpack.c.b16 %v3299, %v3295
  %v4800 = vpack.c.b16 %v3300, %v3296
  %v4801 = vpack.c.b16 %v3301, %v3297
  %v4802 = vpack.c.b16 %v3306, %v3302
  %v4803 = vpack.c.b16 %v3307, %v3303
  %v4804 = vpack.c.b16 %v3308, %v3304
  %v4805 = vpack.c.b16 %v3309, %v3305
  %v4806 = vpack.c.b16 %v3314, %v3310
  %v4807 = vpack.c.b16 %v3315, %v3311
  %v4808 = vpack.c.b16 %v3316, %v3312
  %v4809 = vpack.c.b16 %v3317, %v3313
  %v4810 = vpack.c.b16 %v3322, %v3318
  %v4811 = vpack.c.b16 %v3323, %v3319
  %v4812 = vpack.c.b16 %v3324, %v3320
  %v4813 = vpack.c.b16 %v3325, %v3321
  %v4814 = vpack.c.b16 %v3330, %v3326
  %v4815 = vpack.c.b16 %v3331, %v3327
  %v4816 = vpack.c.b16 %v3332, %v3328
  %v4817 = vpack.c.b16 %v3333, %v3329
  %v4818 = vpack.c.b16 %v3338, %v3334
  %v4819 = vpack.c.b16 %v3339, %v3335
  %v4820 = vpack.c.b16 %v3340, %v3336
  %v4821 = vpack.c.b16 %v3341, %v3337
  %v4822 = vpack.c.b16 %v3346, %v3342
  %v4823 = vpack.c.b16 %v3347, %v3343
  %v4824 = vpack.c.b16 %v3348, %v3344
  %v4825 = vpack.c.b16 %v3349, %v3345
  %v4826 = vpack.c.b16 %v3354, %v3350
  %v4827 = vpack.c.b16 %v3355, %v3351
  %v4828 = vpack.c.b16 %v3356, %v3352
  %v4829 = vpack.c.b16 %v3357, %v3353
  %v4830 = vpack.c.b16 %v3362, %v3358
  %v4831 = vpack.c.b16 %v3363, %v3359
  %v4832 = vpack.c.b16 %v3364, %v3360
  %v4833 = vpack.c.b16 %v3365, %v3361
  %v4834 = vpack.c.b16 %v3370, %v3366
  %v4835 = vpack.c.b16 %v3371, %v3367
  %v4836 = vpack.c.b16 %v3372, %v3368
  %v4837 = vpack.c.b16 %v3373, %v3369
  %v4838 = vpack.c.b16 %v3378, %v3374
  %v4839 = vpack.c.b16 %v3379, %v3375
  %v4840 = vpack.c.b16 %v3380, %v3376
  %v4841 = vpack.c.b16 %v3381, %v3377
  %v4842 = vpack.c.b16 %v3386, %v3382
  %v4843 = vpack.c.b16 %v3387, %v3383
  %v4844 = vpack.c.b16 %v3388, %v3384
  %v4845 = vpack.c.b16 %v3389, %v3385
  %v4846 = vpack.c.b16 %v3394, %v3390
  %v4847 = vpack.c.b16 %v3395, %v3391
  %v4848 = vpack.c.b16 %v3396, %v3392
  %v4849 = vpack.c.b16 %v3397, %v3393
  %v4850 = vpack.c.b16 %v3402, %v3398
  %v4851 = vpack.c.b16 %v3403, %v3399
  %v4852 = vpack.c.b16 %v3404, %v3400
  %v4853 = vpack.c.b16 %v3405, %v3401
  %v4854 = vpack.c.b16 %v3410, %v3406
  %v4855 = vpack.c.b16 %v3411, %v3407
  %v4856 = vpack.c.b16 %v3412, %v3408
  %v4857 = vpack.c.b16 %v3413, %v3409
  %v4858 = vpack.c.b16 %v3418, %v3414
  %v4859 = vpack.c.b16 %v3419, %v3415
  %v4860 = vpack.c.b16 %v3420, %v3416
  %v4861 = vpack.c.b16 %v3421, %v3417
  %v4862 = vpack.c.b16 %v3426, %v3422
  %v4863 = vpack.c.b16 %v3427, %v3423
  %v4864 = vpack.c.b16 %v3428, %v3424
  %v4865 = vpack.c.b16 %v3429, %v3425
  %v4866 = vpack.c.b16 %v3434, %v3430
  %v4867 = vpack.c.b16 %v3435, %v3431
  %v4868 = vpack.c.b16 %v3436, %v3432
  %v4869 = vpack.c.b16 %v3437, %v3433
  %v4870 = vpack.c.b16 %v3442, %v3438
  %v4871 = vpack.c.b16 %v3443, %v3439
  %v4872 = vpack.c.b16 %v3444, %v3440
  %v4873 = vpack.c.b16 %v3445, %v3441
  %v4874 = vpack.c.b16 %v3450, %v3446
  %v4875 = vpack.c.b16 %v3451, %v3447
  %v4876 = vpack.c.b16 %v3452, %v3448
  %v4877 = vpack.c.b16 %v3453, %v3449
  %v4878 = vpack.c.b16 %v3458, %v3454
  %v4879 = vpack.c.b16 %v3459, %v3455
  %v4880 = vpack.c.b16 %v3460, %v3456
  %v4881 = vpack.c.b16 %v3461, %v3457
  %v4882 = vpack.c.b16 %v3466, %v3462
  %v4883 = vpack.c.b16 %v3467, %v3463
  %v4884 = vpack.c.b16 %v3468, %v3464
  %v4885 = vpack.c.b16 %v3469, %v3465
  %v4886 = vpack.c.b16 %v3474, %v3470
  %v4887 = vpack.c.b16 %v3475, %v3471
  %v4888 = vpack.c.b16 %v3476, %v3472
  %v4889 = vpack.c.b16 %v3477, %v3473
  %v4890 = vpack.c.b16 %v3482, %v3478
  %v4891 = vpack.c.b16 %v3483, %v3479
  %v4892 = vpack.c.b16 %v3484, %v3480
  %v4893 = vpack.c.b16 %v3485, %v3481
  %v4894 = vpack.c.b16 %v3490, %v3486
  %v4895 = vpack.c.b16 %v3491, %v3487
  %v4896 = vpack.c.b16 %v3492, %v3488
  %v4897 = vpack.c.b16 %v3493, %v3489
  %v4898 = vpack.c.b16 %v3498, %v3494
  %v4899 = vpack.c.b16 %v3499, %v3495
  %v4900 = vpack.c.b16 %v3500, %v3496
  %v4901 = vpack.c.b16 %v3501, %v3497
  %v4902 = vpack.c.b16 %v3506, %v3502
  %v4903 = vpack.c.b16 %v3507, %v3503
  %v4904 = vpack.c.b16 %v3508, %v3504
  %v4905 = vpack.c.b16 %v3509, %v3505
  %v4906 = vpack.c.b16 %v3514, %v3510
  %v4907 = vpack.c.b16 %v3515, %v3511
  %v4908 = vpack.c.b16 %v3516, %v3512
  %v4909 = vpack.c.b16 %v3517, %v3513
  %v4910 = vpack.c.b16 %v3522, %v3518
  %v4911 = vpack.c.b16 %v3523, %v3519
  %v4912 = vpack.c.b16 %v3524, %v3520
  %v4913 = vpack.c.b16 %v3525, %v3521
  %v4914 = vpack.c.b16 %v3530, %v3526
  %v4915 = vpack.c.b16 %v3531, %v3527
  %v4916 = vpack.c.b16 %v3532, %v3528
  %v4917 = vpack.c.b16 %v3533, %v3529
  %v4918 = vpack.c.b16 %v3538, %v3534
  %v4919 = vpack.c.b16 %v3539, %v3535
  %v4920 = vpack.c.b16 %v3540, %v3536
  %v4921 = vpack.c.b16 %v3541, %v3537
  %v4922 = vpack.c.b16 %v3546, %v3542
  %v4923 = vpack.c.b16 %v3547, %v3543
  %v4924 = vpack.c.b16 %v3548, %v3544
  %v4925 = vpack.c.b16 %v3549, %v3545
  %v4926 = vpack.c.b16 %v3554, %v3550
  %v4927 = vpack.c.b16 %v3555, %v3551
  %v4928 = vpack.c.b16 %v3556, %v3552
  %v4929 = vpack.c.b16 %v3557, %v3553
  %v4930 = vpack.c.b16 %v3562, %v3558
  %v4931 = vpack.c.b16 %v3563, %v3559
  %v4932 = vpack.c.b16 %v3564, %v3560
  %v4933 = vpack.c.b16 %v3565, %v3561
  %v4934 = vpack.c.b16 %v3570, %v3566
  %v4935 = vpack.c.b16 %v3571, %v3567
  %v4936 = vpack.c.b16 %v3572, %v3568
  %v4937 = vpack.c.b16 %v3573, %v3569
  %v4938 = vpack.c.b16 %v3578, %v3574
  %v4939 = vpack.c.b16 %v3579, %v3575
  %v4940 = vpack.c.b16 %v3580, %v3576
  %v4941 = vpack.c.b16 %v3581, %v3577
  %v4942 = vpack.c.b16 %v3586, %v3582
  %v4943 = vpack.c.b16 %v3587, %v3583
  %v4944 = vpack.c.b16 %v3588, %v3584
  %v4945 = vpack.c.b16 %v3589, %v3585
  %v4946 = vpack.c.b16 %v3594, %v3590
  %v4947 = vpack.c.b16 %v3595, %v3591
  %v4948 = vpack.c.b16 %v3596, %v3592
  %v4949 = vpack.c.b16 %v3597, %v3593
  %v4950 = vpack.c.b16 %v3602, %v3598
  %v4951 = vpack.c.b16 %v3603, %v3599
  %v4952 = vpack.c.b16 %v3604, %v3600
  %v4953 = vpack.c.b16 %v3605, %v3601
  %v4954 = vpack.c.b16 %v3610, %v3606
  %v4955 = vpack.c.b16 %v3611, %v3607
  %v4956 = vpack.c.b16 %v3612, %v3608
  %v4957 = vpack.c.b16 %v3613, %v3609
  %v4958 = vpack.c.b16 %v3618, %v3614
  %v4959 = vpack.c.b16 %v3619, %v3615
  %v4960 = vpack.c.b16 %v3620, %v3616
  %v4961 = vpack.c.b16 %v3621, %v3617
  %v4962 = vpack.c.b16 %v3626, %v3622
  %v4963 = vpack.c.b16 %v3627, %v3623
  %v4964 = vpack.c.b16 %v3628, %v3624
  %v4965 = vpack.c.b16 %v3629, %v3625
  %v4966 = vpack.c.b16 %v3634, %v3630
  %v4967 = vpack.c.b16 %v3635, %v3631
  %v4968 = vpack.c.b16 %v3636, %v3632
  %v4969 = vpack.c.b16 %v3637, %v3633
  %v4970 = vpack.c.b16 %v3642, %v3638
  %v4971 = vpack.c.b16 %v3643, %v3639
  %v4972 = vpack.c.b16 %v3644, %v3640
  %v4973 = vpack.c.b16 %v3645, %v3641
  %v4974 = vpack.c.b16 %v3650, %v3646
  %v4975 = vpack.c.b16 %v3651, %v3647
  %v4976 = vpack.c.b16 %v3652, %v3648
  %v4977 = vpack.c.b16 %v3653, %v3649
  %v4978 = vpack.c.b16 %v3658, %v3654
  %v4979 = vpack.c.b16 %v3659, %v3655
  %v4980 = vpack.c.b16 %v3660, %v3656
  %v4981 = vpack.c.b16 %v3661, %v3657
  %v4982 = vpack.c.b16 %v3666, %v3662
  %v4983 = vpack.c.b16 %v3667, %v3663
  %v4984 = vpack.c.b16 %v3668, %v3664
  %v4985 = vpack.c.b16 %v3669, %v3665
  %v4986 = vpack.c.b16 %v3674, %v3670
  %v4987 = vpack.c.b16 %v3675, %v3671
  %v4988 = vpack.c.b16 %v3676, %v3672
  %v4989 = vpack.c.b16 %v3677, %v3673
  %v4990 = vpack.c.b16 %v3682, %v3678
  %v4991 = vpack.c.b16 %v3683, %v3679
  %v4992 = vpack.c.b16 %v3684, %v3680
  %v4993 = vpack.c.b16 %v3685, %v3681
  %v4994 = vpack.c.b16 %v3690, %v3686
  %v4995 = vpack.c.b16 %v3691, %v3687
  %v4996 = vpack.c.b16 %v3692, %v3688
  %v4997 = vpack.c.b16 %v3693, %v3689
  %v4998 = vpack.c.b16 %v3698, %v3694
  %v4999 = vpack.c.b16 %v3699, %v3695
  %v5000 = vpack.c.b16 %v3700, %v3696
  %v5001 = vpack.c.b16 %v3701, %v3697
  %v5002 = vpack.c.b16 %v3706, %v3702
  %v5003 = vpack.c.b16 %v3707, %v3703
  %v5004 = vpack.c.b16 %v3708, %v3704
  %v5005 = vpack.c.b16 %v3709, %v3705
  %v5006 = vpack.c.b16 %v3714, %v3710
  %v5007 = vpack.c.b16 %v3715, %v3711
  %v5008 = vpack.c.b16 %v3716, %v3712
  %v5009 = vpack.c.b16 %v3717, %v3713
  %v5010 = vpack.c.b16 %v3722, %v3718
  %v5011 = vpack.c.b16 %v3723, %v3719
  %v5012 = vpack.c.b16 %v3724, %v3720
  %v5013 = vpack.c.b16 %v3725, %v3721
  %v5014 = vpack.c.b16 %v3730, %v3726
  %v5015 = vpack.c.b16 %v3731, %v3727
  %v5016 = vpack.c.b16 %v3732, %v3728
  %v5017 = vpack.c.b16 %v3733, %v3729
  %v5018 = vpack.c.b16 %v3738, %v3734
  %v5019 = vpack.c.b16 %v3739, %v3735
  %v5020 = vpack.c.b16 %v3740, %v3736
  %v5021 = vpack.c.b16 %v3741, %v3737
  %v5022 = vpack.c.b16 %v3746, %v3742
  %v5023 = vpack.c.b16 %v3747, %v3743
  %v5024 = vpack.c.b16 %v3748, %v3744
  %v5025 = vpack.c.b16 %v3749, %v3745
  %v5026 = vpack.c.b16 %v3754, %v3750
  %v5027 = vpack.c.b16 %v3755, %v3751
  %v5028 = vpack.c.b16 %v3756, %v3752
  %v5029 = vpack.c.b16 %v3757, %v3753
  %v5030 = vpack.c.b16 %v3762, %v3758
  %v5031 = vpack.c.b16 %v3763, %v3759
  %v5032 = vpack.c.b16 %v3764, %v3760
  %v5033 = vpack.c.b16 %v3765, %v3761
  %v5034 = vpack.c.b16 %v3770, %v3766
  %v5035 = vpack.c.b16 %v3771, %v3767
  %v5036 = vpack.c.b16 %v3772, %v3768
  %v5037 = vpack.c.b16 %v3773, %v3769
  %v5038 = vpack.c.b16 %v3778, %v3774
  %v5039 = vpack.c.b16 %v3779, %v3775
  %v5040 = vpack.c.b16 %v3780, %v3776
  %v5041 = vpack.c.b16 %v3781, %v3777
  %v5042 = vpack.c.b16 %v3786, %v3782
  %v5043 = vpack.c.b16 %v3787, %v3783
  %v5044 = vpack.c.b16 %v3788, %v3784
  %v5045 = vpack.c.b16 %v3789, %v3785
  %v5046 = vpack.c.b16 %v3794, %v3790
  %v5047 = vpack.c.b16 %v3795, %v3791
  %v5048 = vpack.c.b16 %v3796, %v3792
  %v5049 = vpack.c.b16 %v3797, %v3793
  %v5050 = vpack.c.b16 %v3802, %v3798
  %v5051 = vpack.c.b16 %v3803, %v3799
  %v5052 = vpack.c.b16 %v3804, %v3800
  %v5053 = vpack.c.b16 %v3805, %v3801
  %v5054 = vpack.c.b16 %v3810, %v3806
  %v5055 = vpack.c.b16 %v3811, %v3807
  %v5056 = vpack.c.b16 %v3812, %v3808
  %v5057 = vpack.c.b16 %v3813, %v3809
  %v5058 = vpack.c.b16 %v3818, %v3814
  %v5059 = vpack.c.b16 %v3819, %v3815
  %v5060 = vpack.c.b16 %v3820, %v3816
  %v5061 = vpack.c.b16 %v3821, %v3817
  %v5062 = vpack.c.b16 %v3826, %v3822
  %v5063 = vpack.c.b16 %v3827, %v3823
  %v5064 = vpack.c.b16 %v3828, %v3824
  %v5065 = vpack.c.b16 %v3829, %v3825
  %v5066 = vpack.c.b16 %v3834, %v3830
  %v5067 = vpack.c.b16 %v3835, %v3831
  %v5068 = vpack.c.b16 %v3836, %v3832
  %v5069 = vpack.c.b16 %v3837, %v3833
  %v5070 = vpack.c.b16 %v3842, %v3838
  %v5071 = vpack.c.b16 %v3843, %v3839
  %v5072 = vpack.c.b16 %v3844, %v3840
  %v5073 = vpack.c.b16 %v3845, %v3841
  %v5074 = vpack.c.b16 %v3850, %v3846
  %v5075 = vpack.c.b16 %v3851, %v3847
  %v5076 = vpack.c.b16 %v3852, %v3848
  %v5077 = vpack.c.b16 %v3853, %v3849
  %v5078 = vpack.c.b16 %v3858, %v3854
  %v5079 = vpack.c.b16 %v3859, %v3855
  %v5080 = vpack.c.b16 %v3860, %v3856
  %v5081 = vpack.c.b16 %v3861, %v3857
  %v5082 = vpack.c.b16 %v3866, %v3862
  %v5083 = vpack.c.b16 %v3867, %v3863
  %v5084 = vpack.c.b16 %v3868, %v3864
  %v5085 = vpack.c.b16 %v3869, %v3865
  %v5086 = vpack.c.b16 %v3874, %v3870
  %v5087 = vpack.c.b16 %v3875, %v3871
  %v5088 = vpack.c.b16 %v3876, %v3872
  %v5089 = vpack.c.b16 %v3877, %v3873
  %v5090 = vpack.c.b16 %v3882, %v3878
  %v5091 = vpack.c.b16 %v3883, %v3879
  %v5092 = vpack.c.b16 %v3884, %v3880
  %v5093 = vpack.c.b16 %v3885, %v3881
  %v5094 = vpack.c.b16 %v3890, %v3886
  %v5095 = vpack.c.b16 %v3891, %v3887
  %v5096 = vpack.c.b16 %v3892, %v3888
  %v5097 = vpack.c.b16 %v3893, %v3889
  %v5098 = vpack.c.b16 %v3898, %v3894
  %v5099 = vpack.c.b16 %v3899, %v3895
  %v5100 = vpack.c.b16 %v3900, %v3896
  %v5101 = vpack.c.b16 %v3901, %v3897
  %v5102 = vpack.c.b16 %v3906, %v3902
  %v5103 = vpack.c.b16 %v3907, %v3903
  %v5104 = vpack.c.b16 %v3908, %v3904
  %v5105 = vpack.c.b16 %v3909, %v3905
  %v5106 = vpack.c.b16 %v3914, %v3910
  %v5107 = vpack.c.b16 %v3915, %v3911
  %v5108 = vpack.c.b16 %v3916, %v3912
  %v5109 = vpack.c.b16 %v3917, %v3913
  %v5110 = vpack.c.b16 %v3922, %v3918
  %v5111 = vpack.c.b16 %v3923, %v3919
  %v5112 = vpack.c.b16 %v3924, %v3920
  %v5113 = vpack.c.b16 %v3925, %v3921
  %v5114 = vpack.c.b16 %v3930, %v3926
  %v5115 = vpack.c.b16 %v3931, %v3927
  %v5116 = vpack.c.b16 %v3932, %v3928
  %v5117 = vpack.c.b16 %v3933, %v3929
  %v5118 = vpack.c.b16 %v3938, %v3934
  %v5119 = vpack.c.b16 %v3939, %v3935
  %v5120 = vpack.c.b16 %v3940, %v3936
  %v5121 = vpack.c.b16 %v3941, %v3937
  %v5122 = vpack.c.b16 %v3946, %v3942
  %v5123 = vpack.c.b16 %v3947, %v3943
  %v5124 = vpack.c.b16 %v3948, %v3944
  %v5125 = vpack.c.b16 %v3949, %v3945
  %v5126 = vpack.c.b16 %v3954, %v3950
  %v5127 = vpack.c.b16 %v3955, %v3951
  %v5128 = vpack.c.b16 %v3956, %v3952
  %v5129 = vpack.c.b16 %v3957, %v3953
  %v5130 = vpack.c.b16 %v3962, %v3958
  %v5131 = vpack.c.b16 %v3963, %v3959
  %v5132 = vpack.c.b16 %v3964, %v3960
  %v5133 = vpack.c.b16 %v3965, %v3961
  %v5134 = vpack.c.b16 %v3970, %v3966
  %v5135 = vpack.c.b16 %v3971, %v3967
  %v5136 = vpack.c.b16 %v3972, %v3968
  %v5137 = vpack.c.b16 %v3973, %v3969
  %v5138 = vpack.c.b16 %v3978, %v3974
  %v5139 = vpack.c.b16 %v3979, %v3975
  %v5140 = vpack.c.b16 %v3980, %v3976
  %v5141 = vpack.c.b16 %v3981, %v3977
  %v5142 = vpack.c.b16 %v3986, %v3982
  %v5143 = vpack.c.b16 %v3987, %v3983
  %v5144 = vpack.c.b16 %v3988, %v3984
  %v5145 = vpack.c.b16 %v3989, %v3985
  %v5146 = vpack.c.b16 %v3994, %v3990
  %v5147 = vpack.c.b16 %v3995, %v3991
  %v5148 = vpack.c.b16 %v3996, %v3992
  %v5149 = vpack.c.b16 %v3997, %v3993
  %v5150 = vpack.c.b16 %v4002, %v3998
  %v5151 = vpack.c.b16 %v4003, %v3999
  %v5152 = vpack.c.b16 %v4004, %v4000
  %v5153 = vpack.c.b16 %v4005, %v4001
  %v5154 = vpack.c.b16 %v4010, %v4006
  %v5155 = vpack.c.b16 %v4011, %v4007
  %v5156 = vpack.c.b16 %v4012, %v4008
  %v5157 = vpack.c.b16 %v4013, %v4009
  %v5158 = vpack.c.b16 %v4018, %v4014
  %v5159 = vpack.c.b16 %v4019, %v4015
  %v5160 = vpack.c.b16 %v4020, %v4016
  %v5161 = vpack.c.b16 %v4021, %v4017
  %v5162 = vpack.c.b16 %v4026, %v4022
  %v5163 = vpack.c.b16 %v4027, %v4023
  %v5164 = vpack.c.b16 %v4028, %v4024
  %v5165 = vpack.c.b16 %v4029, %v4025
  %v5166 = vpack.c.b16 %v4034, %v4030
  %v5167 = vpack.c.b16 %v4035, %v4031
  %v5168 = vpack.c.b16 %v4036, %v4032
  %v5169 = vpack.c.b16 %v4037, %v4033
  %v5170 = vpack.c.b16 %v4042, %v4038
  %v5171 = vpack.c.b16 %v4043, %v4039
  %v5172 = vpack.c.b16 %v4044, %v4040
  %v5173 = vpack.c.b16 %v4045, %v4041
  %v5174 = vpack.c.b16 %v4050, %v4046
  %v5175 = vpack.c.b16 %v4051, %v4047
  %v5176 = vpack.c.b16 %v4052, %v4048
  %v5177 = vpack.c.b16 %v4053, %v4049
  %v5178 = vpack.c.b16 %v4058, %v4054
  %v5179 = vpack.c.b16 %v4059, %v4055
  %v5180 = vpack.c.b16 %v4060, %v4056
  %v5181 = vpack.c.b16 %v4061, %v4057
  %v5182 = vpack.c.b16 %v4066, %v4062
  %v5183 = vpack.c.b16 %v4067, %v4063
  %v5184 = vpack.c.b16 %v4068, %v4064
  %v5185 = vpack.c.b16 %v4069, %v4065
  %v5186 = vpack.c.b16 %v4074, %v4070
  %v5187 = vpack.c.b16 %v4075, %v4071
  %v5188 = vpack.c.b16 %v4076, %v4072
  %v5189 = vpack.c.b16 %v4077, %v4073
  %v5190 = vpack.c.b16 %v4082, %v4078
  %v5191 = vpack.c.b16 %v4083, %v4079
  %v5192 = vpack.c.b16 %v4084, %v4080
  %v5193 = vpack.c.b16 %v4085, %v4081
  %v5194 = vpack.c.b16 %v4090, %v4086
  %v5195 = vpack.c.b16 %v4091, %v4087
  %v5196 = vpack.c.b16 %v4092, %v4088
  %v5197 = vpack.c.b16 %v4093, %v4089
  %v5198 = vpack.c.b16 %v4098, %v4094
  %v5199 = vpack.c.b16 %v4099, %v4095
  %v5200 = vpack.c.b16 %v4100, %v4096
  %v5201 = vpack.c.b16 %v4101, %v4097
  %v5202 = vpack.c.b16 %v4106, %v4102
  %v5203 = vpack.c.b16 %v4107, %v4103
  %v5204 = vpack.c.b16 %v4108, %v4104
  %v5205 = vpack.c.b16 %v4109, %v4105
  %v5206 = vpack.c.b16 %v4114, %v4110
  %v5207 = vpack.c.b16 %v4115, %v4111
  %v5208 = vpack.c.b16 %v4116, %v4112
  %v5209 = vpack.c.b16 %v4117, %v4113
  %v5210 = vpack.c.b16 %v4122, %v4118
  %v5211 = vpack.c.b16 %v4123, %v4119
  %v5212 = vpack.c.b16 %v4124, %v4120
  %v5213 = vpack.c.b16 %v4125, %v4121
  %v5214 = vpack.c.b16 %v4130, %v4126
  %v5215 = vpack.c.b16 %v4131, %v4127
  %v5216 = vpack.c.b16 %v4132, %v4128
  %v5217 = vpack.c.b16 %v4133, %v4129
  %v5218 = vpack.c.b16 %v4138, %v4134
  %v5219 = vpack.c.b16 %v4139, %v4135
  %v5220 = vpack.c.b16 %v4140, %v4136
  %v5221 = vpack.c.b16 %v4141, %v4137
  %v5222 = vpack.c.b16 %v4146, %v4142
  %v5223 = vpack.c.b16 %v4147, %v4143
  %v5224 = vpack.c.b16 %v4148, %v4144
  %v5225 = vpack.c.b16 %v4149, %v4145
  %v5226 = vpack.c.b16 %v4154, %v4150
  %v5227 = vpack.c.b16 %v4155, %v4151
  %v5228 = vpack.c.b16 %v4156, %v4152
  %v5229 = vpack.c.b16 %v4157, %v4153
  %v5230 = vpack.c.b16 %v4162, %v4158
  %v5231 = vpack.c.b16 %v4163, %v4159
  %v5232 = vpack.c.b16 %v4164, %v4160
  %v5233 = vpack.c.b16 %v4165, %v4161
  %v5234 = vpack.c.b16 %v4170, %v4166
  %v5235 = vpack.c.b16 %v4171, %v4167
  %v5236 = vpack.c.b16 %v4172, %v4168
  %v5237 = vpack.c.b16 %v4173, %v4169
  %v5238 = vpack.c.b16 %v4178, %v4174
  %v5239 = vpack.c.b16 %v4179, %v4175
  %v5240 = vpack.c.b16 %v4180, %v4176
  %v5241 = vpack.c.b16 %v4181, %v4177
  %v5242 = vpack.c.b16 %v4186, %v4182
  %v5243 = vpack.c.b16 %v4187, %v4183
  %v5244 = vpack.c.b16 %v4188, %v4184
  %v5245 = vpack.c.b16 %v4189, %v4185
  %v5246 = vpack.c.b16 %v4194, %v4190
  %v5247 = vpack.c.b16 %v4195, %v4191
  %v5248 = vpack.c.b16 %v4196, %v4192
  %v5249 = vpack.c.b16 %v4197, %v4193
  %v5250 = vpack.c.b16 %v4202, %v4198
  %v5251 = vpack.c.b16 %v4203, %v4199
  %v5252 = vpack.c.b16 %v4204, %v4200
  %v5253 = vpack.c.b16 %v4205, %v4201
  %v5254 = vpack.c.b16 %v4210, %v4206
  %v5255 = vpack.c.b16 %v4211, %v4207
  %v5256 = vpack.c.b16 %v4212, %v4208
  %v5257 = vpack.c.b16 %v4213, %v4209
  %v5258 = vpack.c.b16 %v4218, %v4214
  %v5259 = vpack.c.b16 %v4219, %v4215
  %v5260 = vpack.c.b16 %v4220, %v4216
  %v5261 = vpack.c.b16 %v4221, %v4217
  %v5262 = vpack.c.b16 %v4226, %v4222
  %v5263 = vpack.c.b16 %v4227, %v4223
  %v5264 = vpack.c.b16 %v4228, %v4224
  %v5265 = vpack.c.b16 %v4229, %v4225
  %v5266 = vpack.c.b16 %v4234, %v4230
  %v5267 = vpack.c.b16 %v4235, %v4231
  %v5268 = vpack.c.b16 %v4236, %v4232
  %v5269 = vpack.c.b16 %v4237, %v4233
  %v5270 = vpack.c.b16 %v4242, %v4238
  %v5271 = vpack.c.b16 %v4243, %v4239
  %v5272 = vpack.c.b16 %v4244, %v4240
  %v5273 = vpack.c.b16 %v4245, %v4241
  %v5274 = vpack.c.b16 %v4250, %v4246
  %v5275 = vpack.c.b16 %v4251, %v4247
  %v5276 = vpack.c.b16 %v4252, %v4248
  %v5277 = vpack.c.b16 %v4253, %v4249
  %6302 = vmatpush.bf16.msra.mxu0 %v4282
  %6303 = vmatpush.bf16.msra.mxu0 %v4278
  %6304 = vmatpush.bf16.msra.mxu0 %v4274
  %6305 = vmatpush.bf16.msra.mxu0 %v4270
  %6306 = vmatpush.bf16.msra.mxu0 %v4266
  %6307 = vmatpush.bf16.msra.mxu0 %v4262
  %6308 = vmatpush.bf16.msra.mxu0 %v4258
  %6309 = vmatpush.bf16.msra.mxu0 %v4254
  %6310 = vmatmul.bf16.gmra.mxu0 %v1118
  %v6311 = vpop.f32.mrf.mxu0
  %v6312 = vadd.f32 %v1062, %v6311
  %v6313 = vpop.f32.mrf.mxu0
  %6314 = vdwg.mxu0
  %6315 = vmatpush.bf16.msra.mxu0 %v4314
  %6316 = vmatpush.bf16.msra.mxu0 %v4310
  %6317 = vmatpush.bf16.msra.mxu0 %v4306
  %6318 = vmatpush.bf16.msra.mxu0 %v4302
  %6319 = vmatpush.bf16.msra.mxu0 %v4298
  %6320 = vmatpush.bf16.msra.mxu0 %v4294
  %6321 = vmatpush.bf16.msra.mxu0 %v4290
  %6322 = vmatpush.bf16.msra.mxu0 %v4286
  %6323 = vmatmul.bf16.gmra.mxu0 %v1119
  %v6324 = vpop.f32.mrf.mxu0
  %v6325 = vadd.f32 %v6312, %v6324
  %v6326 = vpop.f32.mrf.mxu0
  %6327 = vdwg.mxu0
  %6328 = vmatpush.bf16.msra.mxu0 %v4346
  %6329 = vmatpush.bf16.msra.mxu0 %v4342
  %6330 = vmatpush.bf16.msra.mxu0 %v4338
  %6331 = vmatpush.bf16.msra.mxu0 %v4334
  %6332 = vmatpush.bf16.msra.mxu0 %v4330
  %6333 = vmatpush.bf16.msra.mxu0 %v4326
  %6334 = vmatpush.bf16.msra.mxu0 %v4322
  %6335 = vmatpush.bf16.msra.mxu0 %v4318
  %6336 = vmatmul.bf16.gmra.mxu0 %v1120
  %v6337 = vpop.f32.mrf.mxu0
  %v6338 = vadd.f32 %v6325, %v6337
  %v6339 = vpop.f32.mrf.mxu0
  %6340 = vdwg.mxu0
  %6341 = vmatpush.bf16.msra.mxu0 %v4378
  %6342 = vmatpush.bf16.msra.mxu0 %v4374
  %6343 = vmatpush.bf16.msra.mxu0 %v4370
  %6344 = vmatpush.bf16.msra.mxu0 %v4366
  %6345 = vmatpush.bf16.msra.mxu0 %v4362
  %6346 = vmatpush.bf16.msra.mxu0 %v4358
  %6347 = vmatpush.bf16.msra.mxu0 %v4354
  %6348 = vmatpush.bf16.msra.mxu0 %v4350
  %6349 = vmatmul.bf16.gmra.mxu0 %v1121
  %v6350 = vpop.f32.mrf.mxu0
  %v6351 = vadd.f32 %v6338, %v6350
  %v6352 = vpop.f32.mrf.mxu0
  %6353 = vdwg.mxu0
  %6354 = vmatpush.bf16.msra.mxu0 %v4410
  %6355 = vmatpush.bf16.msra.mxu0 %v4406
  %6356 = vmatpush.bf16.msra.mxu0 %v4402
  %6357 = vmatpush.bf16.msra.mxu0 %v4398
  %6358 = vmatpush.bf16.msra.mxu0 %v4394
  %6359 = vmatpush.bf16.msra.mxu0 %v4390
  %6360 = vmatpush.bf16.msra.mxu0 %v4386
  %6361 = vmatpush.bf16.msra.mxu0 %v4382
  %6362 = vmatmul.bf16.gmra.mxu0 %v1122
  %v6363 = vpop.f32.mrf.mxu0
  %v6364 = vadd.f32 %v6351, %v6363
  %v6365 = vpop.f32.mrf.mxu0
  %6366 = vdwg.mxu0
  %6367 = vmatpush.bf16.msra.mxu0 %v4442
  %6368 = vmatpush.bf16.msra.mxu0 %v4438
  %6369 = vmatpush.bf16.msra.mxu0 %v4434
  %6370 = vmatpush.bf16.msra.mxu0 %v4430
  %6371 = vmatpush.bf16.msra.mxu0 %v4426
  %6372 = vmatpush.bf16.msra.mxu0 %v4422
  %6373 = vmatpush.bf16.msra.mxu0 %v4418
  %6374 = vmatpush.bf16.msra.mxu0 %v4414
  %6375 = vmatmul.bf16.gmra.mxu0 %v1123
  %v6376 = vpop.f32.mrf.mxu0
  %v6377 = vadd.f32 %v6364, %v6376
  %v6378 = vpop.f32.mrf.mxu0
  %6379 = vdwg.mxu0
  %6380 = vmatpush.bf16.msra.mxu0 %v4474
  %6381 = vmatpush.bf16.msra.mxu0 %v4470
  %6382 = vmatpush.bf16.msra.mxu0 %v4466
  %6383 = vmatpush.bf16.msra.mxu0 %v4462
  %6384 = vmatpush.bf16.msra.mxu0 %v4458
  %6385 = vmatpush.bf16.msra.mxu0 %v4454
  %6386 = vmatpush.bf16.msra.mxu0 %v4450
  %6387 = vmatpush.bf16.msra.mxu0 %v4446
  %6388 = vmatmul.bf16.gmra.mxu0 %v1124
  %v6389 = vpop.f32.mrf.mxu0
  %v6390 = vadd.f32 %v6377, %v6389
  %v6391 = vpop.f32.mrf.mxu0
  %6392 = vdwg.mxu0
  %6393 = vmatpush.bf16.msra.mxu0 %v4506
  %6394 = vmatpush.bf16.msra.mxu0 %v4502
  %6395 = vmatpush.bf16.msra.mxu0 %v4498
  %6396 = vmatpush.bf16.msra.mxu0 %v4494
  %6397 = vmatpush.bf16.msra.mxu0 %v4490
  %6398 = vmatpush.bf16.msra.mxu0 %v4486
  %6399 = vmatpush.bf16.msra.mxu0 %v4482
  %6400 = vmatpush.bf16.msra.mxu0 %v4478
  %6401 = vmatmul.bf16.gmra.mxu0 %v1125
  %v6402 = vpop.f32.mrf.mxu0
  %v6403 = vadd.f32 %v6390, %v6402
  %v6404 = vpop.f32.mrf.mxu0
  %6405 = vdwg.mxu0
  %6406 = vmatpush.bf16.msra.mxu0 %v4538
  %6407 = vmatpush.bf16.msra.mxu0 %v4534
  %6408 = vmatpush.bf16.msra.mxu0 %v4530
  %6409 = vmatpush.bf16.msra.mxu0 %v4526
  %6410 = vmatpush.bf16.msra.mxu0 %v4522
  %6411 = vmatpush.bf16.msra.mxu0 %v4518
  %6412 = vmatpush.bf16.msra.mxu0 %v4514
  %6413 = vmatpush.bf16.msra.mxu0 %v4510
  %6414 = vmatmul.bf16.gmra.mxu0 %v1126
  %v6415 = vpop.f32.mrf.mxu0
  %v6416 = vadd.f32 %v6403, %v6415
  %v6417 = vpop.f32.mrf.mxu0
  %6418 = vdwg.mxu0
  %6419 = vmatpush.bf16.msra.mxu0 %v4570
  %6420 = vmatpush.bf16.msra.mxu0 %v4566
  %6421 = vmatpush.bf16.msra.mxu0 %v4562
  %6422 = vmatpush.bf16.msra.mxu0 %v4558
  %6423 = vmatpush.bf16.msra.mxu0 %v4554
  %6424 = vmatpush.bf16.msra.mxu0 %v4550
  %6425 = vmatpush.bf16.msra.mxu0 %v4546
  %6426 = vmatpush.bf16.msra.mxu0 %v4542
  %6427 = vmatmul.bf16.gmra.mxu0 %v1127
  %v6428 = vpop.f32.mrf.mxu0
  %v6429 = vadd.f32 %v6416, %v6428
  %v6430 = vpop.f32.mrf.mxu0
  %6431 = vdwg.mxu0
  %6432 = vmatpush.bf16.msra.mxu0 %v4602
  %6433 = vmatpush.bf16.msra.mxu0 %v4598
  %6434 = vmatpush.bf16.msra.mxu0 %v4594
  %6435 = vmatpush.bf16.msra.mxu0 %v4590
  %6436 = vmatpush.bf16.msra.mxu0 %v4586
  %6437 = vmatpush.bf16.msra.mxu0 %v4582
  %6438 = vmatpush.bf16.msra.mxu0 %v4578
  %6439 = vmatpush.bf16.msra.mxu0 %v4574
  %6440 = vmatmul.bf16.gmra.mxu0 %v1128
  %v6441 = vpop.f32.mrf.mxu0
  %v6442 = vadd.f32 %v6429, %v6441
  %v6443 = vpop.f32.mrf.mxu0
  %6444 = vdwg.mxu0
  %6445 = vmatpush.bf16.msra.mxu0 %v4634
  %6446 = vmatpush.bf16.msra.mxu0 %v4630
  %6447 = vmatpush.bf16.msra.mxu0 %v4626
  %6448 = vmatpush.bf16.msra.mxu0 %v4622
  %6449 = vmatpush.bf16.msra.mxu0 %v4618
  %6450 = vmatpush.bf16.msra.mxu0 %v4614
  %6451 = vmatpush.bf16.msra.mxu0 %v4610
  %6452 = vmatpush.bf16.msra.mxu0 %v4606
  %6453 = vmatmul.bf16.gmra.mxu0 %v1129
  %v6454 = vpop.f32.mrf.mxu0
  %v6455 = vadd.f32 %v6442, %v6454
  %v6456 = vpop.f32.mrf.mxu0
  %6457 = vdwg.mxu0
  %6458 = vmatpush.bf16.msra.mxu0 %v4666
  %6459 = vmatpush.bf16.msra.mxu0 %v4662
  %6460 = vmatpush.bf16.msra.mxu0 %v4658
  %6461 = vmatpush.bf16.msra.mxu0 %v4654
  %6462 = vmatpush.bf16.msra.mxu0 %v4650
  %6463 = vmatpush.bf16.msra.mxu0 %v4646
  %6464 = vmatpush.bf16.msra.mxu0 %v4642
  %6465 = vmatpush.bf16.msra.mxu0 %v4638
  %6466 = vmatmul.bf16.gmra.mxu0 %v1130
  %v6467 = vpop.f32.mrf.mxu0
  %v6468 = vadd.f32 %v6455, %v6467
  %v6469 = vpop.f32.mrf.mxu0
  %6470 = vdwg.mxu0
  %6471 = vmatpush.bf16.msra.mxu0 %v4698
  %6472 = vmatpush.bf16.msra.mxu0 %v4694
  %6473 = vmatpush.bf16.msra.mxu0 %v4690
  %6474 = vmatpush.bf16.msra.mxu0 %v4686
  %6475 = vmatpush.bf16.msra.mxu0 %v4682
  %6476 = vmatpush.bf16.msra.mxu0 %v4678
  %6477 = vmatpush.bf16.msra.mxu0 %v4674
  %6478 = vmatpush.bf16.msra.mxu0 %v4670
  %6479 = vmatmul.bf16.gmra.mxu0 %v1131
  %v6480 = vpop.f32.mrf.mxu0
  %v6481 = vadd.f32 %v6468, %v6480
  %v6482 = vpop.f32.mrf.mxu0
  %6483 = vdwg.mxu0
  %6484 = vmatpush.bf16.msra.mxu0 %v4730
  %6485 = vmatpush.bf16.msra.mxu0 %v4726
  %6486 = vmatpush.bf16.msra.mxu0 %v4722
  %6487 = vmatpush.bf16.msra.mxu0 %v4718
  %6488 = vmatpush.bf16.msra.mxu0 %v4714
  %6489 = vmatpush.bf16.msra.mxu0 %v4710
  %6490 = vmatpush.bf16.msra.mxu0 %v4706
  %6491 = vmatpush.bf16.msra.mxu0 %v4702
  %6492 = vmatmul.bf16.gmra.mxu0 %v1132
  %v6493 = vpop.f32.mrf.mxu0
  %v6494 = vadd.f32 %v6481, %v6493
  %v6495 = vpop.f32.mrf.mxu0
  %6496 = vdwg.mxu0
  %6497 = vmatpush.bf16.msra.mxu0 %v4762
  %6498 = vmatpush.bf16.msra.mxu0 %v4758
  %6499 = vmatpush.bf16.msra.mxu0 %v4754
  %6500 = vmatpush.bf16.msra.mxu0 %v4750
  %6501 = vmatpush.bf16.msra.mxu0 %v4746
  %6502 = vmatpush.bf16.msra.mxu0 %v4742
  %6503 = vmatpush.bf16.msra.mxu0 %v4738
  %6504 = vmatpush.bf16.msra.mxu0 %v4734
  %6505 = vmatmul.bf16.gmra.mxu0 %v1133
  %v6506 = vpop.f32.mrf.mxu0
  %v6507 = vadd.f32 %v6494, %v6506
  %v6508 = vpop.f32.mrf.mxu0
  %6509 = vdwg.mxu0
  %6510 = vmatpush.bf16.msra.mxu0 %v4794
  %6511 = vmatpush.bf16.msra.mxu0 %v4790
  %6512 = vmatpush.bf16.msra.mxu0 %v4786
  %6513 = vmatpush.bf16.msra.mxu0 %v4782
  %6514 = vmatpush.bf16.msra.mxu0 %v4778
  %6515 = vmatpush.bf16.msra.mxu0 %v4774
  %6516 = vmatpush.bf16.msra.mxu0 %v4770
  %6517 = vmatpush.bf16.msra.mxu0 %v4766
  %6518 = vmatmul.bf16.gmra.mxu0 %v1134
  %v6519 = vpop.f32.mrf.mxu0
  %v6520 = vadd.f32 %v6507, %v6519
  %v6521 = vpop.f32.mrf.mxu0
  %6522 = vdwg.mxu0
  %6523 = vmatpush.bf16.msra.mxu0 %v4826
  %6524 = vmatpush.bf16.msra.mxu0 %v4822
  %6525 = vmatpush.bf16.msra.mxu0 %v4818
  %6526 = vmatpush.bf16.msra.mxu0 %v4814
  %6527 = vmatpush.bf16.msra.mxu0 %v4810
  %6528 = vmatpush.bf16.msra.mxu0 %v4806
  %6529 = vmatpush.bf16.msra.mxu0 %v4802
  %6530 = vmatpush.bf16.msra.mxu0 %v4798
  %6531 = vmatmul.bf16.gmra.mxu0 %v1135
  %v6532 = vpop.f32.mrf.mxu0
  %v6533 = vadd.f32 %v6520, %v6532
  %v6534 = vpop.f32.mrf.mxu0
  %6535 = vdwg.mxu0
  %6536 = vmatpush.bf16.msra.mxu0 %v4858
  %6537 = vmatpush.bf16.msra.mxu0 %v4854
  %6538 = vmatpush.bf16.msra.mxu0 %v4850
  %6539 = vmatpush.bf16.msra.mxu0 %v4846
  %6540 = vmatpush.bf16.msra.mxu0 %v4842
  %6541 = vmatpush.bf16.msra.mxu0 %v4838
  %6542 = vmatpush.bf16.msra.mxu0 %v4834
  %6543 = vmatpush.bf16.msra.mxu0 %v4830
  %6544 = vmatmul.bf16.gmra.mxu0 %v1136
  %v6545 = vpop.f32.mrf.mxu0
  %v6546 = vadd.f32 %v6533, %v6545
  %v6547 = vpop.f32.mrf.mxu0
  %6548 = vdwg.mxu0
  %6549 = vmatpush.bf16.msra.mxu0 %v4890
  %6550 = vmatpush.bf16.msra.mxu0 %v4886
  %6551 = vmatpush.bf16.msra.mxu0 %v4882
  %6552 = vmatpush.bf16.msra.mxu0 %v4878
  %6553 = vmatpush.bf16.msra.mxu0 %v4874
  %6554 = vmatpush.bf16.msra.mxu0 %v4870
  %6555 = vmatpush.bf16.msra.mxu0 %v4866
  %6556 = vmatpush.bf16.msra.mxu0 %v4862
  %6557 = vmatmul.bf16.gmra.mxu0 %v1137
  %v6558 = vpop.f32.mrf.mxu0
  %v6559 = vadd.f32 %v6546, %v6558
  %v6560 = vpop.f32.mrf.mxu0
  %6561 = vdwg.mxu0
  %6562 = vmatpush.bf16.msra.mxu0 %v4922
  %6563 = vmatpush.bf16.msra.mxu0 %v4918
  %6564 = vmatpush.bf16.msra.mxu0 %v4914
  %6565 = vmatpush.bf16.msra.mxu0 %v4910
  %6566 = vmatpush.bf16.msra.mxu0 %v4906
  %6567 = vmatpush.bf16.msra.mxu0 %v4902
  %6568 = vmatpush.bf16.msra.mxu0 %v4898
  %6569 = vmatpush.bf16.msra.mxu0 %v4894
  %6570 = vmatmul.bf16.gmra.mxu0 %v1138
  %v6571 = vpop.f32.mrf.mxu0
  %v6572 = vadd.f32 %v6559, %v6571
  %v6573 = vpop.f32.mrf.mxu0
  %6574 = vdwg.mxu0
  %6575 = vmatpush.bf16.msra.mxu0 %v4954
  %6576 = vmatpush.bf16.msra.mxu0 %v4950
  %6577 = vmatpush.bf16.msra.mxu0 %v4946
  %6578 = vmatpush.bf16.msra.mxu0 %v4942
  %6579 = vmatpush.bf16.msra.mxu0 %v4938
  %6580 = vmatpush.bf16.msra.mxu0 %v4934
  %6581 = vmatpush.bf16.msra.mxu0 %v4930
  %6582 = vmatpush.bf16.msra.mxu0 %v4926
  %6583 = vmatmul.bf16.gmra.mxu0 %v1139
  %v6584 = vpop.f32.mrf.mxu0
  %v6585 = vadd.f32 %v6572, %v6584
  %v6586 = vpop.f32.mrf.mxu0
  %6587 = vdwg.mxu0
  %6588 = vmatpush.bf16.msra.mxu0 %v4986
  %6589 = vmatpush.bf16.msra.mxu0 %v4982
  %6590 = vmatpush.bf16.msra.mxu0 %v4978
  %6591 = vmatpush.bf16.msra.mxu0 %v4974
  %6592 = vmatpush.bf16.msra.mxu0 %v4970
  %6593 = vmatpush.bf16.msra.mxu0 %v4966
  %6594 = vmatpush.bf16.msra.mxu0 %v4962
  %6595 = vmatpush.bf16.msra.mxu0 %v4958
  %6596 = vmatmul.bf16.gmra.mxu0 %v1140
  %v6597 = vpop.f32.mrf.mxu0
  %v6598 = vadd.f32 %v6585, %v6597
  %v6599 = vpop.f32.mrf.mxu0
  %6600 = vdwg.mxu0
  %6601 = vmatpush.bf16.msra.mxu0 %v5018
  %6602 = vmatpush.bf16.msra.mxu0 %v5014
  %6603 = vmatpush.bf16.msra.mxu0 %v5010
  %6604 = vmatpush.bf16.msra.mxu0 %v5006
  %6605 = vmatpush.bf16.msra.mxu0 %v5002
  %6606 = vmatpush.bf16.msra.mxu0 %v4998
  %6607 = vmatpush.bf16.msra.mxu0 %v4994
  %6608 = vmatpush.bf16.msra.mxu0 %v4990
  %6609 = vmatmul.bf16.gmra.mxu0 %v1141
  %v6610 = vpop.f32.mrf.mxu0
  %v6611 = vadd.f32 %v6598, %v6610
  %v6612 = vpop.f32.mrf.mxu0
  %6613 = vdwg.mxu0
  %6614 = vmatpush.bf16.msra.mxu0 %v5050
  %6615 = vmatpush.bf16.msra.mxu0 %v5046
  %6616 = vmatpush.bf16.msra.mxu0 %v5042
  %6617 = vmatpush.bf16.msra.mxu0 %v5038
  %6618 = vmatpush.bf16.msra.mxu0 %v5034
  %6619 = vmatpush.bf16.msra.mxu0 %v5030
  %6620 = vmatpush.bf16.msra.mxu0 %v5026
  %6621 = vmatpush.bf16.msra.mxu0 %v5022
  %6622 = vmatmul.bf16.gmra.mxu0 %v1142
  %v6623 = vpop.f32.mrf.mxu0
  %v6624 = vadd.f32 %v6611, %v6623
  %v6625 = vpop.f32.mrf.mxu0
  %6626 = vdwg.mxu0
  %6627 = vmatpush.bf16.msra.mxu0 %v5082
  %6628 = vmatpush.bf16.msra.mxu0 %v5078
  %6629 = vmatpush.bf16.msra.mxu0 %v5074
  %6630 = vmatpush.bf16.msra.mxu0 %v5070
  %6631 = vmatpush.bf16.msra.mxu0 %v5066
  %6632 = vmatpush.bf16.msra.mxu0 %v5062
  %6633 = vmatpush.bf16.msra.mxu0 %v5058
  %6634 = vmatpush.bf16.msra.mxu0 %v5054
  %6635 = vmatmul.bf16.gmra.mxu0 %v1143
  %v6636 = vpop.f32.mrf.mxu0
  %v6637 = vadd.f32 %v6624, %v6636
  %v6638 = vpop.f32.mrf.mxu0
  %6639 = vdwg.mxu0
  %6640 = vmatpush.bf16.msra.mxu0 %v5114
  %6641 = vmatpush.bf16.msra.mxu0 %v5110
  %6642 = vmatpush.bf16.msra.mxu0 %v5106
  %6643 = vmatpush.bf16.msra.mxu0 %v5102
  %6644 = vmatpush.bf16.msra.mxu0 %v5098
  %6645 = vmatpush.bf16.msra.mxu0 %v5094
  %6646 = vmatpush.bf16.msra.mxu0 %v5090
  %6647 = vmatpush.bf16.msra.mxu0 %v5086
  %6648 = vmatmul.bf16.gmra.mxu0 %v1144
  %v6649 = vpop.f32.mrf.mxu0
  %v6650 = vadd.f32 %v6637, %v6649
  %v6651 = vpop.f32.mrf.mxu0
  %6652 = vdwg.mxu0
  %6653 = vmatpush.bf16.msra.mxu0 %v5146
  %6654 = vmatpush.bf16.msra.mxu0 %v5142
  %6655 = vmatpush.bf16.msra.mxu0 %v5138
  %6656 = vmatpush.bf16.msra.mxu0 %v5134
  %6657 = vmatpush.bf16.msra.mxu0 %v5130
  %6658 = vmatpush.bf16.msra.mxu0 %v5126
  %6659 = vmatpush.bf16.msra.mxu0 %v5122
  %6660 = vmatpush.bf16.msra.mxu0 %v5118
  %6661 = vmatmul.bf16.gmra.mxu0 %v1145
  %v6662 = vpop.f32.mrf.mxu0
  %v6663 = vadd.f32 %v6650, %v6662
  %v6664 = vpop.f32.mrf.mxu0
  %6665 = vdwg.mxu0
  %6666 = vmatpush.bf16.msra.mxu0 %v5178
  %6667 = vmatpush.bf16.msra.mxu0 %v5174
  %6668 = vmatpush.bf16.msra.mxu0 %v5170
  %6669 = vmatpush.bf16.msra.mxu0 %v5166
  %6670 = vmatpush.bf16.msra.mxu0 %v5162
  %6671 = vmatpush.bf16.msra.mxu0 %v5158
  %6672 = vmatpush.bf16.msra.mxu0 %v5154
  %6673 = vmatpush.bf16.msra.mxu0 %v5150
  %6674 = vmatmul.bf16.gmra.mxu0 %v1146
  %v6675 = vpop.f32.mrf.mxu0
  %v6676 = vadd.f32 %v6663, %v6675
  %v6677 = vpop.f32.mrf.mxu0
  %6678 = vdwg.mxu0
  %6679 = vmatpush.bf16.msra.mxu0 %v5210
  %6680 = vmatpush.bf16.msra.mxu0 %v5206
  %6681 = vmatpush.bf16.msra.mxu0 %v5202
  %6682 = vmatpush.bf16.msra.mxu0 %v5198
  %6683 = vmatpush.bf16.msra.mxu0 %v5194
  %6684 = vmatpush.bf16.msra.mxu0 %v5190
  %6685 = vmatpush.bf16.msra.mxu0 %v5186
  %6686 = vmatpush.bf16.msra.mxu0 %v5182
  %6687 = vmatmul.bf16.gmra.mxu0 %v1147
  %v6688 = vpop.f32.mrf.mxu0
  %v6689 = vadd.f32 %v6676, %v6688
  %v6690 = vpop.f32.mrf.mxu0
  %6691 = vdwg.mxu0
  %6692 = vmatpush.bf16.msra.mxu0 %v5242
  %6693 = vmatpush.bf16.msra.mxu0 %v5238
  %6694 = vmatpush.bf16.msra.mxu0 %v5234
  %6695 = vmatpush.bf16.msra.mxu0 %v5230
  %6696 = vmatpush.bf16.msra.mxu0 %v5226
  %6697 = vmatpush.bf16.msra.mxu0 %v5222
  %6698 = vmatpush.bf16.msra.mxu0 %v5218
  %6699 = vmatpush.bf16.msra.mxu0 %v5214
  %6700 = vmatmul.bf16.gmra.mxu0 %v1148
  %v6701 = vpop.f32.mrf.mxu0
  %v6702 = vadd.f32 %v6689, %v6701
  %v6703 = vpop.f32.mrf.mxu0
  %6704 = vdwg.mxu0
  %6705 = vmatpush.bf16.msra.mxu0 %v5274
  %6706 = vmatpush.bf16.msra.mxu0 %v5270
  %6707 = vmatpush.bf16.msra.mxu0 %v5266
  %6708 = vmatpush.bf16.msra.mxu0 %v5262
  %6709 = vmatpush.bf16.msra.mxu0 %v5258
  %6710 = vmatpush.bf16.msra.mxu0 %v5254
  %6711 = vmatpush.bf16.msra.mxu0 %v5250
  %6712 = vmatpush.bf16.msra.mxu0 %v5246
  %6713 = vmatmul.bf16.gmra.mxu0 %v1149
  %v6714 = vpop.f32.mrf.mxu0
  %v6715 = vadd.f32 %v6702, %v6714
  %v6716 = vpop.f32.mrf.mxu0
  %6717 = vdwg.mxu0
  %6718 = vmatpush.bf16.msra.mxu0 %v4283
  %6719 = vmatpush.bf16.msra.mxu0 %v4279
  %6720 = vmatpush.bf16.msra.mxu0 %v4275
  %6721 = vmatpush.bf16.msra.mxu0 %v4271
  %6722 = vmatpush.bf16.msra.mxu0 %v4267
  %6723 = vmatpush.bf16.msra.mxu0 %v4263
  %6724 = vmatpush.bf16.msra.mxu0 %v4259
  %6725 = vmatpush.bf16.msra.mxu0 %v4255
  %6726 = vmatmul.bf16.gmra.mxu0 %v1118
  %v6727 = vpop.f32.mrf.mxu0
  %v6728 = vadd.f32 %v1063, %v6727
  %v6729 = vpop.f32.mrf.mxu0
  %6730 = vdwg.mxu0
  %6731 = vmatpush.bf16.msra.mxu0 %v4315
  %6732 = vmatpush.bf16.msra.mxu0 %v4311
  %6733 = vmatpush.bf16.msra.mxu0 %v4307
  %6734 = vmatpush.bf16.msra.mxu0 %v4303
  %6735 = vmatpush.bf16.msra.mxu0 %v4299
  %6736 = vmatpush.bf16.msra.mxu0 %v4295
  %6737 = vmatpush.bf16.msra.mxu0 %v4291
  %6738 = vmatpush.bf16.msra.mxu0 %v4287
  %6739 = vmatmul.bf16.gmra.mxu0 %v1119
  %v6740 = vpop.f32.mrf.mxu0
  %v6741 = vadd.f32 %v6728, %v6740
  %v6742 = vpop.f32.mrf.mxu0
  %6743 = vdwg.mxu0
  %6744 = vmatpush.bf16.msra.mxu0 %v4347
  %6745 = vmatpush.bf16.msra.mxu0 %v4343
  %6746 = vmatpush.bf16.msra.mxu0 %v4339
  %6747 = vmatpush.bf16.msra.mxu0 %v4335
  %6748 = vmatpush.bf16.msra.mxu0 %v4331
  %6749 = vmatpush.bf16.msra.mxu0 %v4327
  %6750 = vmatpush.bf16.msra.mxu0 %v4323
  %6751 = vmatpush.bf16.msra.mxu0 %v4319
  %6752 = vmatmul.bf16.gmra.mxu0 %v1120
  %v6753 = vpop.f32.mrf.mxu0
  %v6754 = vadd.f32 %v6741, %v6753
  %v6755 = vpop.f32.mrf.mxu0
  %6756 = vdwg.mxu0
  %6757 = vmatpush.bf16.msra.mxu0 %v4379
  %6758 = vmatpush.bf16.msra.mxu0 %v4375
  %6759 = vmatpush.bf16.msra.mxu0 %v4371
  %6760 = vmatpush.bf16.msra.mxu0 %v4367
  %6761 = vmatpush.bf16.msra.mxu0 %v4363
  %6762 = vmatpush.bf16.msra.mxu0 %v4359
  %6763 = vmatpush.bf16.msra.mxu0 %v4355
  %6764 = vmatpush.bf16.msra.mxu0 %v4351
  %6765 = vmatmul.bf16.gmra.mxu0 %v1121
  %v6766 = vpop.f32.mrf.mxu0
  %v6767 = vadd.f32 %v6754, %v6766
  %v6768 = vpop.f32.mrf.mxu0
  %6769 = vdwg.mxu0
  %6770 = vmatpush.bf16.msra.mxu0 %v4411
  %6771 = vmatpush.bf16.msra.mxu0 %v4407
  %6772 = vmatpush.bf16.msra.mxu0 %v4403
  %6773 = vmatpush.bf16.msra.mxu0 %v4399
  %6774 = vmatpush.bf16.msra.mxu0 %v4395
  %6775 = vmatpush.bf16.msra.mxu0 %v4391
  %6776 = vmatpush.bf16.msra.mxu0 %v4387
  %6777 = vmatpush.bf16.msra.mxu0 %v4383
  %6778 = vmatmul.bf16.gmra.mxu0 %v1122
  %v6779 = vpop.f32.mrf.mxu0
  %v6780 = vadd.f32 %v6767, %v6779
  %v6781 = vpop.f32.mrf.mxu0
  %6782 = vdwg.mxu0
  %6783 = vmatpush.bf16.msra.mxu0 %v4443
  %6784 = vmatpush.bf16.msra.mxu0 %v4439
  %6785 = vmatpush.bf16.msra.mxu0 %v4435
  %6786 = vmatpush.bf16.msra.mxu0 %v4431
  %6787 = vmatpush.bf16.msra.mxu0 %v4427
  %6788 = vmatpush.bf16.msra.mxu0 %v4423
  %6789 = vmatpush.bf16.msra.mxu0 %v4419
  %6790 = vmatpush.bf16.msra.mxu0 %v4415
  %6791 = vmatmul.bf16.gmra.mxu0 %v1123
  %v6792 = vpop.f32.mrf.mxu0
  %v6793 = vadd.f32 %v6780, %v6792
  %v6794 = vpop.f32.mrf.mxu0
  %6795 = vdwg.mxu0
  %6796 = vmatpush.bf16.msra.mxu0 %v4475
  %6797 = vmatpush.bf16.msra.mxu0 %v4471
  %6798 = vmatpush.bf16.msra.mxu0 %v4467
  %6799 = vmatpush.bf16.msra.mxu0 %v4463
  %6800 = vmatpush.bf16.msra.mxu0 %v4459
  %6801 = vmatpush.bf16.msra.mxu0 %v4455
  %6802 = vmatpush.bf16.msra.mxu0 %v4451
  %6803 = vmatpush.bf16.msra.mxu0 %v4447
  %6804 = vmatmul.bf16.gmra.mxu0 %v1124
  %v6805 = vpop.f32.mrf.mxu0
  %v6806 = vadd.f32 %v6793, %v6805
  %v6807 = vpop.f32.mrf.mxu0
  %6808 = vdwg.mxu0
  %6809 = vmatpush.bf16.msra.mxu0 %v4507
  %6810 = vmatpush.bf16.msra.mxu0 %v4503
  %6811 = vmatpush.bf16.msra.mxu0 %v4499
  %6812 = vmatpush.bf16.msra.mxu0 %v4495
  %6813 = vmatpush.bf16.msra.mxu0 %v4491
  %6814 = vmatpush.bf16.msra.mxu0 %v4487
  %6815 = vmatpush.bf16.msra.mxu0 %v4483
  %6816 = vmatpush.bf16.msra.mxu0 %v4479
  %6817 = vmatmul.bf16.gmra.mxu0 %v1125
  %v6818 = vpop.f32.mrf.mxu0
  %v6819 = vadd.f32 %v6806, %v6818
  %v6820 = vpop.f32.mrf.mxu0
  %6821 = vdwg.mxu0
  %6822 = vmatpush.bf16.msra.mxu0 %v4539
  %6823 = vmatpush.bf16.msra.mxu0 %v4535
  %6824 = vmatpush.bf16.msra.mxu0 %v4531
  %6825 = vmatpush.bf16.msra.mxu0 %v4527
  %6826 = vmatpush.bf16.msra.mxu0 %v4523
  %6827 = vmatpush.bf16.msra.mxu0 %v4519
  %6828 = vmatpush.bf16.msra.mxu0 %v4515
  %6829 = vmatpush.bf16.msra.mxu0 %v4511
  %6830 = vmatmul.bf16.gmra.mxu0 %v1126
  %v6831 = vpop.f32.mrf.mxu0
  %v6832 = vadd.f32 %v6819, %v6831
  %v6833 = vpop.f32.mrf.mxu0
  %6834 = vdwg.mxu0
  %6835 = vmatpush.bf16.msra.mxu0 %v4571
  %6836 = vmatpush.bf16.msra.mxu0 %v4567
  %6837 = vmatpush.bf16.msra.mxu0 %v4563
  %6838 = vmatpush.bf16.msra.mxu0 %v4559
  %6839 = vmatpush.bf16.msra.mxu0 %v4555
  %6840 = vmatpush.bf16.msra.mxu0 %v4551
  %6841 = vmatpush.bf16.msra.mxu0 %v4547
  %6842 = vmatpush.bf16.msra.mxu0 %v4543
  %6843 = vmatmul.bf16.gmra.mxu0 %v1127
  %v6844 = vpop.f32.mrf.mxu0
  %v6845 = vadd.f32 %v6832, %v6844
  %v6846 = vpop.f32.mrf.mxu0
  %6847 = vdwg.mxu0
  %6848 = vmatpush.bf16.msra.mxu0 %v4603
  %6849 = vmatpush.bf16.msra.mxu0 %v4599
  %6850 = vmatpush.bf16.msra.mxu0 %v4595
  %6851 = vmatpush.bf16.msra.mxu0 %v4591
  %6852 = vmatpush.bf16.msra.mxu0 %v4587
  %6853 = vmatpush.bf16.msra.mxu0 %v4583
  %6854 = vmatpush.bf16.msra.mxu0 %v4579
  %6855 = vmatpush.bf16.msra.mxu0 %v4575
  %6856 = vmatmul.bf16.gmra.mxu0 %v1128
  %v6857 = vpop.f32.mrf.mxu0
  %v6858 = vadd.f32 %v6845, %v6857
  %v6859 = vpop.f32.mrf.mxu0
  %6860 = vdwg.mxu0
  %6861 = vmatpush.bf16.msra.mxu0 %v4635
  %6862 = vmatpush.bf16.msra.mxu0 %v4631
  %6863 = vmatpush.bf16.msra.mxu0 %v4627
  %6864 = vmatpush.bf16.msra.mxu0 %v4623
  %6865 = vmatpush.bf16.msra.mxu0 %v4619
  %6866 = vmatpush.bf16.msra.mxu0 %v4615
  %6867 = vmatpush.bf16.msra.mxu0 %v4611
  %6868 = vmatpush.bf16.msra.mxu0 %v4607
  %6869 = vmatmul.bf16.gmra.mxu0 %v1129
  %v6870 = vpop.f32.mrf.mxu0
  %v6871 = vadd.f32 %v6858, %v6870
  %v6872 = vpop.f32.mrf.mxu0
  %6873 = vdwg.mxu0
  %6874 = vmatpush.bf16.msra.mxu0 %v4667
  %6875 = vmatpush.bf16.msra.mxu0 %v4663
  %6876 = vmatpush.bf16.msra.mxu0 %v4659
  %6877 = vmatpush.bf16.msra.mxu0 %v4655
  %6878 = vmatpush.bf16.msra.mxu0 %v4651
  %6879 = vmatpush.bf16.msra.mxu0 %v4647
  %6880 = vmatpush.bf16.msra.mxu0 %v4643
  %6881 = vmatpush.bf16.msra.mxu0 %v4639
  %6882 = vmatmul.bf16.gmra.mxu0 %v1130
  %v6883 = vpop.f32.mrf.mxu0
  %v6884 = vadd.f32 %v6871, %v6883
  %v6885 = vpop.f32.mrf.mxu0
  %6886 = vdwg.mxu0
  %6887 = vmatpush.bf16.msra.mxu0 %v4699
  %6888 = vmatpush.bf16.msra.mxu0 %v4695
  %6889 = vmatpush.bf16.msra.mxu0 %v4691
  %6890 = vmatpush.bf16.msra.mxu0 %v4687
  %6891 = vmatpush.bf16.msra.mxu0 %v4683
  %6892 = vmatpush.bf16.msra.mxu0 %v4679
  %6893 = vmatpush.bf16.msra.mxu0 %v4675
  %6894 = vmatpush.bf16.msra.mxu0 %v4671
  %6895 = vmatmul.bf16.gmra.mxu0 %v1131
  %v6896 = vpop.f32.mrf.mxu0
  %v6897 = vadd.f32 %v6884, %v6896
  %v6898 = vpop.f32.mrf.mxu0
  %6899 = vdwg.mxu0
  %6900 = vmatpush.bf16.msra.mxu0 %v4731
  %6901 = vmatpush.bf16.msra.mxu0 %v4727
  %6902 = vmatpush.bf16.msra.mxu0 %v4723
  %6903 = vmatpush.bf16.msra.mxu0 %v4719
  %6904 = vmatpush.bf16.msra.mxu0 %v4715
  %6905 = vmatpush.bf16.msra.mxu0 %v4711
  %6906 = vmatpush.bf16.msra.mxu0 %v4707
  %6907 = vmatpush.bf16.msra.mxu0 %v4703
  %6908 = vmatmul.bf16.gmra.mxu0 %v1132
  %v6909 = vpop.f32.mrf.mxu0
  %v6910 = vadd.f32 %v6897, %v6909
  %v6911 = vpop.f32.mrf.mxu0
  %6912 = vdwg.mxu0
  %6913 = vmatpush.bf16.msra.mxu0 %v4763
  %6914 = vmatpush.bf16.msra.mxu0 %v4759
  %6915 = vmatpush.bf16.msra.mxu0 %v4755
  %6916 = vmatpush.bf16.msra.mxu0 %v4751
  %6917 = vmatpush.bf16.msra.mxu0 %v4747
  %6918 = vmatpush.bf16.msra.mxu0 %v4743
  %6919 = vmatpush.bf16.msra.mxu0 %v4739
  %6920 = vmatpush.bf16.msra.mxu0 %v4735
  %6921 = vmatmul.bf16.gmra.mxu0 %v1133
  %v6922 = vpop.f32.mrf.mxu0
  %v6923 = vadd.f32 %v6910, %v6922
  %v6924 = vpop.f32.mrf.mxu0
  %6925 = vdwg.mxu0
  %6926 = vmatpush.bf16.msra.mxu0 %v4795
  %6927 = vmatpush.bf16.msra.mxu0 %v4791
  %6928 = vmatpush.bf16.msra.mxu0 %v4787
  %6929 = vmatpush.bf16.msra.mxu0 %v4783
  %6930 = vmatpush.bf16.msra.mxu0 %v4779
  %6931 = vmatpush.bf16.msra.mxu0 %v4775
  %6932 = vmatpush.bf16.msra.mxu0 %v4771
  %6933 = vmatpush.bf16.msra.mxu0 %v4767
  %6934 = vmatmul.bf16.gmra.mxu0 %v1134
  %v6935 = vpop.f32.mrf.mxu0
  %v6936 = vadd.f32 %v6923, %v6935
  %v6937 = vpop.f32.mrf.mxu0
  %6938 = vdwg.mxu0
  %6939 = vmatpush.bf16.msra.mxu0 %v4827
  %6940 = vmatpush.bf16.msra.mxu0 %v4823
  %6941 = vmatpush.bf16.msra.mxu0 %v4819
  %6942 = vmatpush.bf16.msra.mxu0 %v4815
  %6943 = vmatpush.bf16.msra.mxu0 %v4811
  %6944 = vmatpush.bf16.msra.mxu0 %v4807
  %6945 = vmatpush.bf16.msra.mxu0 %v4803
  %6946 = vmatpush.bf16.msra.mxu0 %v4799
  %6947 = vmatmul.bf16.gmra.mxu0 %v1135
  %v6948 = vpop.f32.mrf.mxu0
  %v6949 = vadd.f32 %v6936, %v6948
  %v6950 = vpop.f32.mrf.mxu0
  %6951 = vdwg.mxu0
  %6952 = vmatpush.bf16.msra.mxu0 %v4859
  %6953 = vmatpush.bf16.msra.mxu0 %v4855
  %6954 = vmatpush.bf16.msra.mxu0 %v4851
  %6955 = vmatpush.bf16.msra.mxu0 %v4847
  %6956 = vmatpush.bf16.msra.mxu0 %v4843
  %6957 = vmatpush.bf16.msra.mxu0 %v4839
  %6958 = vmatpush.bf16.msra.mxu0 %v4835
  %6959 = vmatpush.bf16.msra.mxu0 %v4831
  %6960 = vmatmul.bf16.gmra.mxu0 %v1136
  %v6961 = vpop.f32.mrf.mxu0
  %v6962 = vadd.f32 %v6949, %v6961
  %v6963 = vpop.f32.mrf.mxu0
  %6964 = vdwg.mxu0
  %6965 = vmatpush.bf16.msra.mxu0 %v4891
  %6966 = vmatpush.bf16.msra.mxu0 %v4887
  %6967 = vmatpush.bf16.msra.mxu0 %v4883
  %6968 = vmatpush.bf16.msra.mxu0 %v4879
  %6969 = vmatpush.bf16.msra.mxu0 %v4875
  %6970 = vmatpush.bf16.msra.mxu0 %v4871
  %6971 = vmatpush.bf16.msra.mxu0 %v4867
  %6972 = vmatpush.bf16.msra.mxu0 %v4863
  %6973 = vmatmul.bf16.gmra.mxu0 %v1137
  %v6974 = vpop.f32.mrf.mxu0
  %v6975 = vadd.f32 %v6962, %v6974
  %v6976 = vpop.f32.mrf.mxu0
  %6977 = vdwg.mxu0
  %6978 = vmatpush.bf16.msra.mxu0 %v4923
  %6979 = vmatpush.bf16.msra.mxu0 %v4919
  %6980 = vmatpush.bf16.msra.mxu0 %v4915
  %6981 = vmatpush.bf16.msra.mxu0 %v4911
  %6982 = vmatpush.bf16.msra.mxu0 %v4907
  %6983 = vmatpush.bf16.msra.mxu0 %v4903
  %6984 = vmatpush.bf16.msra.mxu0 %v4899
  %6985 = vmatpush.bf16.msra.mxu0 %v4895
  %6986 = vmatmul.bf16.gmra.mxu0 %v1138
  %v6987 = vpop.f32.mrf.mxu0
  %v6988 = vadd.f32 %v6975, %v6987
  %v6989 = vpop.f32.mrf.mxu0
  %6990 = vdwg.mxu0
  %6991 = vmatpush.bf16.msra.mxu0 %v4955
  %6992 = vmatpush.bf16.msra.mxu0 %v4951
  %6993 = vmatpush.bf16.msra.mxu0 %v4947
  %6994 = vmatpush.bf16.msra.mxu0 %v4943
  %6995 = vmatpush.bf16.msra.mxu0 %v4939
  %6996 = vmatpush.bf16.msra.mxu0 %v4935
  %6997 = vmatpush.bf16.msra.mxu0 %v4931
  %6998 = vmatpush.bf16.msra.mxu0 %v4927
  %6999 = vmatmul.bf16.gmra.mxu0 %v1139
  %v7000 = vpop.f32.mrf.mxu0
  %v7001 = vadd.f32 %v6988, %v7000
  %v7002 = vpop.f32.mrf.mxu0
  %7003 = vdwg.mxu0
  %7004 = vmatpush.bf16.msra.mxu0 %v4987
  %7005 = vmatpush.bf16.msra.mxu0 %v4983
  %7006 = vmatpush.bf16.msra.mxu0 %v4979
  %7007 = vmatpush.bf16.msra.mxu0 %v4975
  %7008 = vmatpush.bf16.msra.mxu0 %v4971
  %7009 = vmatpush.bf16.msra.mxu0 %v4967
  %7010 = vmatpush.bf16.msra.mxu0 %v4963
  %7011 = vmatpush.bf16.msra.mxu0 %v4959
  %7012 = vmatmul.bf16.gmra.mxu0 %v1140
  %v7013 = vpop.f32.mrf.mxu0
  %v7014 = vadd.f32 %v7001, %v7013
  %v7015 = vpop.f32.mrf.mxu0
  %7016 = vdwg.mxu0
  %7017 = vmatpush.bf16.msra.mxu0 %v5019
  %7018 = vmatpush.bf16.msra.mxu0 %v5015
  %7019 = vmatpush.bf16.msra.mxu0 %v5011
  %7020 = vmatpush.bf16.msra.mxu0 %v5007
  %7021 = vmatpush.bf16.msra.mxu0 %v5003
  %7022 = vmatpush.bf16.msra.mxu0 %v4999
  %7023 = vmatpush.bf16.msra.mxu0 %v4995
  %7024 = vmatpush.bf16.msra.mxu0 %v4991
  %7025 = vmatmul.bf16.gmra.mxu0 %v1141
  %v7026 = vpop.f32.mrf.mxu0
  %v7027 = vadd.f32 %v7014, %v7026
  %v7028 = vpop.f32.mrf.mxu0
  %7029 = vdwg.mxu0
  %7030 = vmatpush.bf16.msra.mxu0 %v5051
  %7031 = vmatpush.bf16.msra.mxu0 %v5047
  %7032 = vmatpush.bf16.msra.mxu0 %v5043
  %7033 = vmatpush.bf16.msra.mxu0 %v5039
  %7034 = vmatpush.bf16.msra.mxu0 %v5035
  %7035 = vmatpush.bf16.msra.mxu0 %v5031
  %7036 = vmatpush.bf16.msra.mxu0 %v5027
  %7037 = vmatpush.bf16.msra.mxu0 %v5023
  %7038 = vmatmul.bf16.gmra.mxu0 %v1142
  %v7039 = vpop.f32.mrf.mxu0
  %v7040 = vadd.f32 %v7027, %v7039
  %v7041 = vpop.f32.mrf.mxu0
  %7042 = vdwg.mxu0
  %7043 = vmatpush.bf16.msra.mxu0 %v5083
  %7044 = vmatpush.bf16.msra.mxu0 %v5079
  %7045 = vmatpush.bf16.msra.mxu0 %v5075
  %7046 = vmatpush.bf16.msra.mxu0 %v5071
  %7047 = vmatpush.bf16.msra.mxu0 %v5067
  %7048 = vmatpush.bf16.msra.mxu0 %v5063
  %7049 = vmatpush.bf16.msra.mxu0 %v5059
  %7050 = vmatpush.bf16.msra.mxu0 %v5055
  %7051 = vmatmul.bf16.gmra.mxu0 %v1143
  %v7052 = vpop.f32.mrf.mxu0
  %v7053 = vadd.f32 %v7040, %v7052
  %v7054 = vpop.f32.mrf.mxu0
  %7055 = vdwg.mxu0
  %7056 = vmatpush.bf16.msra.mxu0 %v5115
  %7057 = vmatpush.bf16.msra.mxu0 %v5111
  %7058 = vmatpush.bf16.msra.mxu0 %v5107
  %7059 = vmatpush.bf16.msra.mxu0 %v5103
  %7060 = vmatpush.bf16.msra.mxu0 %v5099
  %7061 = vmatpush.bf16.msra.mxu0 %v5095
  %7062 = vmatpush.bf16.msra.mxu0 %v5091
  %7063 = vmatpush.bf16.msra.mxu0 %v5087
  %7064 = vmatmul.bf16.gmra.mxu0 %v1144
  %v7065 = vpop.f32.mrf.mxu0
  %v7066 = vadd.f32 %v7053, %v7065
  %v7067 = vpop.f32.mrf.mxu0
  %7068 = vdwg.mxu0
  %7069 = vmatpush.bf16.msra.mxu0 %v5147
  %7070 = vmatpush.bf16.msra.mxu0 %v5143
  %7071 = vmatpush.bf16.msra.mxu0 %v5139
  %7072 = vmatpush.bf16.msra.mxu0 %v5135
  %7073 = vmatpush.bf16.msra.mxu0 %v5131
  %7074 = vmatpush.bf16.msra.mxu0 %v5127
  %7075 = vmatpush.bf16.msra.mxu0 %v5123
  %7076 = vmatpush.bf16.msra.mxu0 %v5119
  %7077 = vmatmul.bf16.gmra.mxu0 %v1145
  %v7078 = vpop.f32.mrf.mxu0
  %v7079 = vadd.f32 %v7066, %v7078
  %v7080 = vpop.f32.mrf.mxu0
  %7081 = vdwg.mxu0
  %7082 = vmatpush.bf16.msra.mxu0 %v5179
  %7083 = vmatpush.bf16.msra.mxu0 %v5175
  %7084 = vmatpush.bf16.msra.mxu0 %v5171
  %7085 = vmatpush.bf16.msra.mxu0 %v5167
  %7086 = vmatpush.bf16.msra.mxu0 %v5163
  %7087 = vmatpush.bf16.msra.mxu0 %v5159
  %7088 = vmatpush.bf16.msra.mxu0 %v5155
  %7089 = vmatpush.bf16.msra.mxu0 %v5151
  %7090 = vmatmul.bf16.gmra.mxu0 %v1146
  %v7091 = vpop.f32.mrf.mxu0
  %v7092 = vadd.f32 %v7079, %v7091
  %v7093 = vpop.f32.mrf.mxu0
  %7094 = vdwg.mxu0
  %7095 = vmatpush.bf16.msra.mxu0 %v5211
  %7096 = vmatpush.bf16.msra.mxu0 %v5207
  %7097 = vmatpush.bf16.msra.mxu0 %v5203
  %7098 = vmatpush.bf16.msra.mxu0 %v5199
  %7099 = vmatpush.bf16.msra.mxu0 %v5195
  %7100 = vmatpush.bf16.msra.mxu0 %v5191
  %7101 = vmatpush.bf16.msra.mxu0 %v5187
  %7102 = vmatpush.bf16.msra.mxu0 %v5183
  %7103 = vmatmul.bf16.gmra.mxu0 %v1147
  %v7104 = vpop.f32.mrf.mxu0
  %v7105 = vadd.f32 %v7092, %v7104
  %v7106 = vpop.f32.mrf.mxu0
  %7107 = vdwg.mxu0
  %7108 = vmatpush.bf16.msra.mxu0 %v5243
  %7109 = vmatpush.bf16.msra.mxu0 %v5239
  %7110 = vmatpush.bf16.msra.mxu0 %v5235
  %7111 = vmatpush.bf16.msra.mxu0 %v5231
  %7112 = vmatpush.bf16.msra.mxu0 %v5227
  %7113 = vmatpush.bf16.msra.mxu0 %v5223
  %7114 = vmatpush.bf16.msra.mxu0 %v5219
  %7115 = vmatpush.bf16.msra.mxu0 %v5215
  %7116 = vmatmul.bf16.gmra.mxu0 %v1148
  %v7117 = vpop.f32.mrf.mxu0
  %v7118 = vadd.f32 %v7105, %v7117
  %v7119 = vpop.f32.mrf.mxu0
  %7120 = vdwg.mxu0
  %7121 = vmatpush.bf16.msra.mxu0 %v5275
  %7122 = vmatpush.bf16.msra.mxu0 %v5271
  %7123 = vmatpush.bf16.msra.mxu0 %v5267
  %7124 = vmatpush.bf16.msra.mxu0 %v5263
  %7125 = vmatpush.bf16.msra.mxu0 %v5259
  %7126 = vmatpush.bf16.msra.mxu0 %v5255
  %7127 = vmatpush.bf16.msra.mxu0 %v5251
  %7128 = vmatpush.bf16.msra.mxu0 %v5247
  %7129 = vmatmul.bf16.gmra.mxu0 %v1149
  %v7130 = vpop.f32.mrf.mxu0
  %v7131 = vadd.f32 %v7118, %v7130
  %v7132 = vpop.f32.mrf.mxu0
  %7133 = vdwg.mxu0
  %7134 = vmatpush.bf16.msra.mxu0 %v4284
  %7135 = vmatpush.bf16.msra.mxu0 %v4280
  %7136 = vmatpush.bf16.msra.mxu0 %v4276
  %7137 = vmatpush.bf16.msra.mxu0 %v4272
  %7138 = vmatpush.bf16.msra.mxu0 %v4268
  %7139 = vmatpush.bf16.msra.mxu0 %v4264
  %7140 = vmatpush.bf16.msra.mxu0 %v4260
  %7141 = vmatpush.bf16.msra.mxu0 %v4256
  %7142 = vmatmul.bf16.gmra.mxu0 %v1118
  %v7143 = vpop.f32.mrf.mxu0
  %v7144 = vadd.f32 %v1064, %v7143
  %v7145 = vpop.f32.mrf.mxu0
  %7146 = vdwg.mxu0
  %7147 = vmatpush.bf16.msra.mxu0 %v4316
  %7148 = vmatpush.bf16.msra.mxu0 %v4312
  %7149 = vmatpush.bf16.msra.mxu0 %v4308
  %7150 = vmatpush.bf16.msra.mxu0 %v4304
  %7151 = vmatpush.bf16.msra.mxu0 %v4300
  %7152 = vmatpush.bf16.msra.mxu0 %v4296
  %7153 = vmatpush.bf16.msra.mxu0 %v4292
  %7154 = vmatpush.bf16.msra.mxu0 %v4288
  %7155 = vmatmul.bf16.gmra.mxu0 %v1119
  %v7156 = vpop.f32.mrf.mxu0
  %v7157 = vadd.f32 %v7144, %v7156
  %v7158 = vpop.f32.mrf.mxu0
  %7159 = vdwg.mxu0
  %7160 = vmatpush.bf16.msra.mxu0 %v4348
  %7161 = vmatpush.bf16.msra.mxu0 %v4344
  %7162 = vmatpush.bf16.msra.mxu0 %v4340
  %7163 = vmatpush.bf16.msra.mxu0 %v4336
  %7164 = vmatpush.bf16.msra.mxu0 %v4332
  %7165 = vmatpush.bf16.msra.mxu0 %v4328
  %7166 = vmatpush.bf16.msra.mxu0 %v4324
  %7167 = vmatpush.bf16.msra.mxu0 %v4320
  %7168 = vmatmul.bf16.gmra.mxu0 %v1120
  %v7169 = vpop.f32.mrf.mxu0
  %v7170 = vadd.f32 %v7157, %v7169
  %v7171 = vpop.f32.mrf.mxu0
  %7172 = vdwg.mxu0
  %7173 = vmatpush.bf16.msra.mxu0 %v4380
  %7174 = vmatpush.bf16.msra.mxu0 %v4376
  %7175 = vmatpush.bf16.msra.mxu0 %v4372
  %7176 = vmatpush.bf16.msra.mxu0 %v4368
  %7177 = vmatpush.bf16.msra.mxu0 %v4364
  %7178 = vmatpush.bf16.msra.mxu0 %v4360
  %7179 = vmatpush.bf16.msra.mxu0 %v4356
  %7180 = vmatpush.bf16.msra.mxu0 %v4352
  %7181 = vmatmul.bf16.gmra.mxu0 %v1121
  %v7182 = vpop.f32.mrf.mxu0
  %v7183 = vadd.f32 %v7170, %v7182
  %v7184 = vpop.f32.mrf.mxu0
  %7185 = vdwg.mxu0
  %7186 = vmatpush.bf16.msra.mxu0 %v4412
  %7187 = vmatpush.bf16.msra.mxu0 %v4408
  %7188 = vmatpush.bf16.msra.mxu0 %v4404
  %7189 = vmatpush.bf16.msra.mxu0 %v4400
  %7190 = vmatpush.bf16.msra.mxu0 %v4396
  %7191 = vmatpush.bf16.msra.mxu0 %v4392
  %7192 = vmatpush.bf16.msra.mxu0 %v4388
  %7193 = vmatpush.bf16.msra.mxu0 %v4384
  %7194 = vmatmul.bf16.gmra.mxu0 %v1122
  %v7195 = vpop.f32.mrf.mxu0
  %v7196 = vadd.f32 %v7183, %v7195
  %v7197 = vpop.f32.mrf.mxu0
  %7198 = vdwg.mxu0
  %7199 = vmatpush.bf16.msra.mxu0 %v4444
  %7200 = vmatpush.bf16.msra.mxu0 %v4440
  %7201 = vmatpush.bf16.msra.mxu0 %v4436
  %7202 = vmatpush.bf16.msra.mxu0 %v4432
  %7203 = vmatpush.bf16.msra.mxu0 %v4428
  %7204 = vmatpush.bf16.msra.mxu0 %v4424
  %7205 = vmatpush.bf16.msra.mxu0 %v4420
  %7206 = vmatpush.bf16.msra.mxu0 %v4416
  %7207 = vmatmul.bf16.gmra.mxu0 %v1123
  %v7208 = vpop.f32.mrf.mxu0
  %v7209 = vadd.f32 %v7196, %v7208
  %v7210 = vpop.f32.mrf.mxu0
  %7211 = vdwg.mxu0
  %7212 = vmatpush.bf16.msra.mxu0 %v4476
  %7213 = vmatpush.bf16.msra.mxu0 %v4472
  %7214 = vmatpush.bf16.msra.mxu0 %v4468
  %7215 = vmatpush.bf16.msra.mxu0 %v4464
  %7216 = vmatpush.bf16.msra.mxu0 %v4460
  %7217 = vmatpush.bf16.msra.mxu0 %v4456
  %7218 = vmatpush.bf16.msra.mxu0 %v4452
  %7219 = vmatpush.bf16.msra.mxu0 %v4448
  %7220 = vmatmul.bf16.gmra.mxu0 %v1124
  %v7221 = vpop.f32.mrf.mxu0
  %v7222 = vadd.f32 %v7209, %v7221
  %v7223 = vpop.f32.mrf.mxu0
  %7224 = vdwg.mxu0
  %7225 = vmatpush.bf16.msra.mxu0 %v4508
  %7226 = vmatpush.bf16.msra.mxu0 %v4504
  %7227 = vmatpush.bf16.msra.mxu0 %v4500
  %7228 = vmatpush.bf16.msra.mxu0 %v4496
  %7229 = vmatpush.bf16.msra.mxu0 %v4492
  %7230 = vmatpush.bf16.msra.mxu0 %v4488
  %7231 = vmatpush.bf16.msra.mxu0 %v4484
  %7232 = vmatpush.bf16.msra.mxu0 %v4480
  %7233 = vmatmul.bf16.gmra.mxu0 %v1125
  %v7234 = vpop.f32.mrf.mxu0
  %v7235 = vadd.f32 %v7222, %v7234
  %v7236 = vpop.f32.mrf.mxu0
  %7237 = vdwg.mxu0
  %7238 = vmatpush.bf16.msra.mxu0 %v4540
  %7239 = vmatpush.bf16.msra.mxu0 %v4536
  %7240 = vmatpush.bf16.msra.mxu0 %v4532
  %7241 = vmatpush.bf16.msra.mxu0 %v4528
  %7242 = vmatpush.bf16.msra.mxu0 %v4524
  %7243 = vmatpush.bf16.msra.mxu0 %v4520
  %7244 = vmatpush.bf16.msra.mxu0 %v4516
  %7245 = vmatpush.bf16.msra.mxu0 %v4512
  %7246 = vmatmul.bf16.gmra.mxu0 %v1126
  %v7247 = vpop.f32.mrf.mxu0
  %v7248 = vadd.f32 %v7235, %v7247
  %v7249 = vpop.f32.mrf.mxu0
  %7250 = vdwg.mxu0
  %7251 = vmatpush.bf16.msra.mxu0 %v4572
  %7252 = vmatpush.bf16.msra.mxu0 %v4568
  %7253 = vmatpush.bf16.msra.mxu0 %v4564
  %7254 = vmatpush.bf16.msra.mxu0 %v4560
  %7255 = vmatpush.bf16.msra.mxu0 %v4556
  %7256 = vmatpush.bf16.msra.mxu0 %v4552
  %7257 = vmatpush.bf16.msra.mxu0 %v4548
  %7258 = vmatpush.bf16.msra.mxu0 %v4544
  %7259 = vmatmul.bf16.gmra.mxu0 %v1127
  %v7260 = vpop.f32.mrf.mxu0
  %v7261 = vadd.f32 %v7248, %v7260
  %v7262 = vpop.f32.mrf.mxu0
  %7263 = vdwg.mxu0
  %7264 = vmatpush.bf16.msra.mxu0 %v4604
  %7265 = vmatpush.bf16.msra.mxu0 %v4600
  %7266 = vmatpush.bf16.msra.mxu0 %v4596
  %7267 = vmatpush.bf16.msra.mxu0 %v4592
  %7268 = vmatpush.bf16.msra.mxu0 %v4588
  %7269 = vmatpush.bf16.msra.mxu0 %v4584
  %7270 = vmatpush.bf16.msra.mxu0 %v4580
  %7271 = vmatpush.bf16.msra.mxu0 %v4576
  %7272 = vmatmul.bf16.gmra.mxu0 %v1128
  %v7273 = vpop.f32.mrf.mxu0
  %v7274 = vadd.f32 %v7261, %v7273
  %v7275 = vpop.f32.mrf.mxu0
  %7276 = vdwg.mxu0
  %7277 = vmatpush.bf16.msra.mxu0 %v4636
  %7278 = vmatpush.bf16.msra.mxu0 %v4632
  %7279 = vmatpush.bf16.msra.mxu0 %v4628
  %7280 = vmatpush.bf16.msra.mxu0 %v4624
  %7281 = vmatpush.bf16.msra.mxu0 %v4620
  %7282 = vmatpush.bf16.msra.mxu0 %v4616
  %7283 = vmatpush.bf16.msra.mxu0 %v4612
  %7284 = vmatpush.bf16.msra.mxu0 %v4608
  %7285 = vmatmul.bf16.gmra.mxu0 %v1129
  %v7286 = vpop.f32.mrf.mxu0
  %v7287 = vadd.f32 %v7274, %v7286
  %v7288 = vpop.f32.mrf.mxu0
  %7289 = vdwg.mxu0
  %7290 = vmatpush.bf16.msra.mxu0 %v4668
  %7291 = vmatpush.bf16.msra.mxu0 %v4664
  %7292 = vmatpush.bf16.msra.mxu0 %v4660
  %7293 = vmatpush.bf16.msra.mxu0 %v4656
  %7294 = vmatpush.bf16.msra.mxu0 %v4652
  %7295 = vmatpush.bf16.msra.mxu0 %v4648
  %7296 = vmatpush.bf16.msra.mxu0 %v4644
  %7297 = vmatpush.bf16.msra.mxu0 %v4640
  %7298 = vmatmul.bf16.gmra.mxu0 %v1130
  %v7299 = vpop.f32.mrf.mxu0
  %v7300 = vadd.f32 %v7287, %v7299
  %v7301 = vpop.f32.mrf.mxu0
  %7302 = vdwg.mxu0
  %7303 = vmatpush.bf16.msra.mxu0 %v4700
  %7304 = vmatpush.bf16.msra.mxu0 %v4696
  %7305 = vmatpush.bf16.msra.mxu0 %v4692
  %7306 = vmatpush.bf16.msra.mxu0 %v4688
  %7307 = vmatpush.bf16.msra.mxu0 %v4684
  %7308 = vmatpush.bf16.msra.mxu0 %v4680
  %7309 = vmatpush.bf16.msra.mxu0 %v4676
  %7310 = vmatpush.bf16.msra.mxu0 %v4672
  %7311 = vmatmul.bf16.gmra.mxu0 %v1131
  %v7312 = vpop.f32.mrf.mxu0
  %v7313 = vadd.f32 %v7300, %v7312
  %v7314 = vpop.f32.mrf.mxu0
  %7315 = vdwg.mxu0
  %7316 = vmatpush.bf16.msra.mxu0 %v4732
  %7317 = vmatpush.bf16.msra.mxu0 %v4728
  %7318 = vmatpush.bf16.msra.mxu0 %v4724
  %7319 = vmatpush.bf16.msra.mxu0 %v4720
  %7320 = vmatpush.bf16.msra.mxu0 %v4716
  %7321 = vmatpush.bf16.msra.mxu0 %v4712
  %7322 = vmatpush.bf16.msra.mxu0 %v4708
  %7323 = vmatpush.bf16.msra.mxu0 %v4704
  %7324 = vmatmul.bf16.gmra.mxu0 %v1132
  %v7325 = vpop.f32.mrf.mxu0
  %v7326 = vadd.f32 %v7313, %v7325
  %v7327 = vpop.f32.mrf.mxu0
  %7328 = vdwg.mxu0
  %7329 = vmatpush.bf16.msra.mxu0 %v4764
  %7330 = vmatpush.bf16.msra.mxu0 %v4760
  %7331 = vmatpush.bf16.msra.mxu0 %v4756
  %7332 = vmatpush.bf16.msra.mxu0 %v4752
  %7333 = vmatpush.bf16.msra.mxu0 %v4748
  %7334 = vmatpush.bf16.msra.mxu0 %v4744
  %7335 = vmatpush.bf16.msra.mxu0 %v4740
  %7336 = vmatpush.bf16.msra.mxu0 %v4736
  %7337 = vmatmul.bf16.gmra.mxu0 %v1133
  %v7338 = vpop.f32.mrf.mxu0
  %v7339 = vadd.f32 %v7326, %v7338
  %v7340 = vpop.f32.mrf.mxu0
  %7341 = vdwg.mxu0
  %7342 = vmatpush.bf16.msra.mxu0 %v4796
  %7343 = vmatpush.bf16.msra.mxu0 %v4792
  %7344 = vmatpush.bf16.msra.mxu0 %v4788
  %7345 = vmatpush.bf16.msra.mxu0 %v4784
  %7346 = vmatpush.bf16.msra.mxu0 %v4780
  %7347 = vmatpush.bf16.msra.mxu0 %v4776
  %7348 = vmatpush.bf16.msra.mxu0 %v4772
  %7349 = vmatpush.bf16.msra.mxu0 %v4768
  %7350 = vmatmul.bf16.gmra.mxu0 %v1134
  %v7351 = vpop.f32.mrf.mxu0
  %v7352 = vadd.f32 %v7339, %v7351
  %v7353 = vpop.f32.mrf.mxu0
  %7354 = vdwg.mxu0
  %7355 = vmatpush.bf16.msra.mxu0 %v4828
  %7356 = vmatpush.bf16.msra.mxu0 %v4824
  %7357 = vmatpush.bf16.msra.mxu0 %v4820
  %7358 = vmatpush.bf16.msra.mxu0 %v4816
  %7359 = vmatpush.bf16.msra.mxu0 %v4812
  %7360 = vmatpush.bf16.msra.mxu0 %v4808
  %7361 = vmatpush.bf16.msra.mxu0 %v4804
  %7362 = vmatpush.bf16.msra.mxu0 %v4800
  %7363 = vmatmul.bf16.gmra.mxu0 %v1135
  %v7364 = vpop.f32.mrf.mxu0
  %v7365 = vadd.f32 %v7352, %v7364
  %v7366 = vpop.f32.mrf.mxu0
  %7367 = vdwg.mxu0
  %7368 = vmatpush.bf16.msra.mxu0 %v4860
  %7369 = vmatpush.bf16.msra.mxu0 %v4856
  %7370 = vmatpush.bf16.msra.mxu0 %v4852
  %7371 = vmatpush.bf16.msra.mxu0 %v4848
  %7372 = vmatpush.bf16.msra.mxu0 %v4844
  %7373 = vmatpush.bf16.msra.mxu0 %v4840
  %7374 = vmatpush.bf16.msra.mxu0 %v4836
  %7375 = vmatpush.bf16.msra.mxu0 %v4832
  %7376 = vmatmul.bf16.gmra.mxu0 %v1136
  %v7377 = vpop.f32.mrf.mxu0
  %v7378 = vadd.f32 %v7365, %v7377
  %v7379 = vpop.f32.mrf.mxu0
  %7380 = vdwg.mxu0
  %7381 = vmatpush.bf16.msra.mxu0 %v4892
  %7382 = vmatpush.bf16.msra.mxu0 %v4888
  %7383 = vmatpush.bf16.msra.mxu0 %v4884
  %7384 = vmatpush.bf16.msra.mxu0 %v4880
  %7385 = vmatpush.bf16.msra.mxu0 %v4876
  %7386 = vmatpush.bf16.msra.mxu0 %v4872
  %7387 = vmatpush.bf16.msra.mxu0 %v4868
  %7388 = vmatpush.bf16.msra.mxu0 %v4864
  %7389 = vmatmul.bf16.gmra.mxu0 %v1137
  %v7390 = vpop.f32.mrf.mxu0
  %v7391 = vadd.f32 %v7378, %v7390
  %v7392 = vpop.f32.mrf.mxu0
  %7393 = vdwg.mxu0
  %7394 = vmatpush.bf16.msra.mxu0 %v4924
  %7395 = vmatpush.bf16.msra.mxu0 %v4920
  %7396 = vmatpush.bf16.msra.mxu0 %v4916
  %7397 = vmatpush.bf16.msra.mxu0 %v4912
  %7398 = vmatpush.bf16.msra.mxu0 %v4908
  %7399 = vmatpush.bf16.msra.mxu0 %v4904
  %7400 = vmatpush.bf16.msra.mxu0 %v4900
  %7401 = vmatpush.bf16.msra.mxu0 %v4896
  %7402 = vmatmul.bf16.gmra.mxu0 %v1138
  %v7403 = vpop.f32.mrf.mxu0
  %v7404 = vadd.f32 %v7391, %v7403
  %v7405 = vpop.f32.mrf.mxu0
  %7406 = vdwg.mxu0
  %7407 = vmatpush.bf16.msra.mxu0 %v4956
  %7408 = vmatpush.bf16.msra.mxu0 %v4952
  %7409 = vmatpush.bf16.msra.mxu0 %v4948
  %7410 = vmatpush.bf16.msra.mxu0 %v4944
  %7411 = vmatpush.bf16.msra.mxu0 %v4940
  %7412 = vmatpush.bf16.msra.mxu0 %v4936
  %7413 = vmatpush.bf16.msra.mxu0 %v4932
  %7414 = vmatpush.bf16.msra.mxu0 %v4928
  %7415 = vmatmul.bf16.gmra.mxu0 %v1139
  %v7416 = vpop.f32.mrf.mxu0
  %v7417 = vadd.f32 %v7404, %v7416
  %v7418 = vpop.f32.mrf.mxu0
  %7419 = vdwg.mxu0
  %7420 = vmatpush.bf16.msra.mxu0 %v4988
  %7421 = vmatpush.bf16.msra.mxu0 %v4984
  %7422 = vmatpush.bf16.msra.mxu0 %v4980
  %7423 = vmatpush.bf16.msra.mxu0 %v4976
  %7424 = vmatpush.bf16.msra.mxu0 %v4972
  %7425 = vmatpush.bf16.msra.mxu0 %v4968
  %7426 = vmatpush.bf16.msra.mxu0 %v4964
  %7427 = vmatpush.bf16.msra.mxu0 %v4960
  %7428 = vmatmul.bf16.gmra.mxu0 %v1140
  %v7429 = vpop.f32.mrf.mxu0
  %v7430 = vadd.f32 %v7417, %v7429
  %v7431 = vpop.f32.mrf.mxu0
  %7432 = vdwg.mxu0
  %7433 = vmatpush.bf16.msra.mxu0 %v5020
  %7434 = vmatpush.bf16.msra.mxu0 %v5016
  %7435 = vmatpush.bf16.msra.mxu0 %v5012
  %7436 = vmatpush.bf16.msra.mxu0 %v5008
  %7437 = vmatpush.bf16.msra.mxu0 %v5004
  %7438 = vmatpush.bf16.msra.mxu0 %v5000
  %7439 = vmatpush.bf16.msra.mxu0 %v4996
  %7440 = vmatpush.bf16.msra.mxu0 %v4992
  %7441 = vmatmul.bf16.gmra.mxu0 %v1141
  %v7442 = vpop.f32.mrf.mxu0
  %v7443 = vadd.f32 %v7430, %v7442
  %v7444 = vpop.f32.mrf.mxu0
  %7445 = vdwg.mxu0
  %7446 = vmatpush.bf16.msra.mxu0 %v5052
  %7447 = vmatpush.bf16.msra.mxu0 %v5048
  %7448 = vmatpush.bf16.msra.mxu0 %v5044
  %7449 = vmatpush.bf16.msra.mxu0 %v5040
  %7450 = vmatpush.bf16.msra.mxu0 %v5036
  %7451 = vmatpush.bf16.msra.mxu0 %v5032
  %7452 = vmatpush.bf16.msra.mxu0 %v5028
  %7453 = vmatpush.bf16.msra.mxu0 %v5024
  %7454 = vmatmul.bf16.gmra.mxu0 %v1142
  %v7455 = vpop.f32.mrf.mxu0
  %v7456 = vadd.f32 %v7443, %v7455
  %v7457 = vpop.f32.mrf.mxu0
  %7458 = vdwg.mxu0
  %7459 = vmatpush.bf16.msra.mxu0 %v5084
  %7460 = vmatpush.bf16.msra.mxu0 %v5080
  %7461 = vmatpush.bf16.msra.mxu0 %v5076
  %7462 = vmatpush.bf16.msra.mxu0 %v5072
  %7463 = vmatpush.bf16.msra.mxu0 %v5068
  %7464 = vmatpush.bf16.msra.mxu0 %v5064
  %7465 = vmatpush.bf16.msra.mxu0 %v5060
  %7466 = vmatpush.bf16.msra.mxu0 %v5056
  %7467 = vmatmul.bf16.gmra.mxu0 %v1143
  %v7468 = vpop.f32.mrf.mxu0
  %v7469 = vadd.f32 %v7456, %v7468
  %v7470 = vpop.f32.mrf.mxu0
  %7471 = vdwg.mxu0
  %7472 = vmatpush.bf16.msra.mxu0 %v5116
  %7473 = vmatpush.bf16.msra.mxu0 %v5112
  %7474 = vmatpush.bf16.msra.mxu0 %v5108
  %7475 = vmatpush.bf16.msra.mxu0 %v5104
  %7476 = vmatpush.bf16.msra.mxu0 %v5100
  %7477 = vmatpush.bf16.msra.mxu0 %v5096
  %7478 = vmatpush.bf16.msra.mxu0 %v5092
  %7479 = vmatpush.bf16.msra.mxu0 %v5088
  %7480 = vmatmul.bf16.gmra.mxu0 %v1144
  %v7481 = vpop.f32.mrf.mxu0
  %v7482 = vadd.f32 %v7469, %v7481
  %v7483 = vpop.f32.mrf.mxu0
  %7484 = vdwg.mxu0
  %7485 = vmatpush.bf16.msra.mxu0 %v5148
  %7486 = vmatpush.bf16.msra.mxu0 %v5144
  %7487 = vmatpush.bf16.msra.mxu0 %v5140
  %7488 = vmatpush.bf16.msra.mxu0 %v5136
  %7489 = vmatpush.bf16.msra.mxu0 %v5132
  %7490 = vmatpush.bf16.msra.mxu0 %v5128
  %7491 = vmatpush.bf16.msra.mxu0 %v5124
  %7492 = vmatpush.bf16.msra.mxu0 %v5120
  %7493 = vmatmul.bf16.gmra.mxu0 %v1145
  %v7494 = vpop.f32.mrf.mxu0
  %v7495 = vadd.f32 %v7482, %v7494
  %v7496 = vpop.f32.mrf.mxu0
  %7497 = vdwg.mxu0
  %7498 = vmatpush.bf16.msra.mxu0 %v5180
  %7499 = vmatpush.bf16.msra.mxu0 %v5176
  %7500 = vmatpush.bf16.msra.mxu0 %v5172
  %7501 = vmatpush.bf16.msra.mxu0 %v5168
  %7502 = vmatpush.bf16.msra.mxu0 %v5164
  %7503 = vmatpush.bf16.msra.mxu0 %v5160
  %7504 = vmatpush.bf16.msra.mxu0 %v5156
  %7505 = vmatpush.bf16.msra.mxu0 %v5152
  %7506 = vmatmul.bf16.gmra.mxu0 %v1146
  %v7507 = vpop.f32.mrf.mxu0
  %v7508 = vadd.f32 %v7495, %v7507
  %v7509 = vpop.f32.mrf.mxu0
  %7510 = vdwg.mxu0
  %7511 = vmatpush.bf16.msra.mxu0 %v5212
  %7512 = vmatpush.bf16.msra.mxu0 %v5208
  %7513 = vmatpush.bf16.msra.mxu0 %v5204
  %7514 = vmatpush.bf16.msra.mxu0 %v5200
  %7515 = vmatpush.bf16.msra.mxu0 %v5196
  %7516 = vmatpush.bf16.msra.mxu0 %v5192
  %7517 = vmatpush.bf16.msra.mxu0 %v5188
  %7518 = vmatpush.bf16.msra.mxu0 %v5184
  %7519 = vmatmul.bf16.gmra.mxu0 %v1147
  %v7520 = vpop.f32.mrf.mxu0
  %v7521 = vadd.f32 %v7508, %v7520
  %v7522 = vpop.f32.mrf.mxu0
  %7523 = vdwg.mxu0
  %7524 = vmatpush.bf16.msra.mxu0 %v5244
  %7525 = vmatpush.bf16.msra.mxu0 %v5240
  %7526 = vmatpush.bf16.msra.mxu0 %v5236
  %7527 = vmatpush.bf16.msra.mxu0 %v5232
  %7528 = vmatpush.bf16.msra.mxu0 %v5228
  %7529 = vmatpush.bf16.msra.mxu0 %v5224
  %7530 = vmatpush.bf16.msra.mxu0 %v5220
  %7531 = vmatpush.bf16.msra.mxu0 %v5216
  %7532 = vmatmul.bf16.gmra.mxu0 %v1148
  %v7533 = vpop.f32.mrf.mxu0
  %v7534 = vadd.f32 %v7521, %v7533
  %v7535 = vpop.f32.mrf.mxu0
  %7536 = vdwg.mxu0
  %7537 = vmatpush.bf16.msra.mxu0 %v5276
  %7538 = vmatpush.bf16.msra.mxu0 %v5272
  %7539 = vmatpush.bf16.msra.mxu0 %v5268
  %7540 = vmatpush.bf16.msra.mxu0 %v5264
  %7541 = vmatpush.bf16.msra.mxu0 %v5260
  %7542 = vmatpush.bf16.msra.mxu0 %v5256
  %7543 = vmatpush.bf16.msra.mxu0 %v5252
  %7544 = vmatpush.bf16.msra.mxu0 %v5248
  %7545 = vmatmul.bf16.gmra.mxu0 %v1149
  %v7546 = vpop.f32.mrf.mxu0
  %v7547 = vadd.f32 %v7534, %v7546
  %v7548 = vpop.f32.mrf.mxu0
  %7549 = vdwg.mxu0
  %7550 = vmatpush.bf16.msra.mxu0 %v4285
  %7551 = vmatpush.bf16.msra.mxu0 %v4281
  %7552 = vmatpush.bf16.msra.mxu0 %v4277
  %7553 = vmatpush.bf16.msra.mxu0 %v4273
  %7554 = vmatpush.bf16.msra.mxu0 %v4269
  %7555 = vmatpush.bf16.msra.mxu0 %v4265
  %7556 = vmatpush.bf16.msra.mxu0 %v4261
  %7557 = vmatpush.bf16.msra.mxu0 %v4257
  %7558 = vmatmul.bf16.gmra.mxu0 %v1118
  %v7559 = vpop.f32.mrf.mxu0
  %v7560 = vadd.f32 %v1065, %v7559
  %v7561 = vpop.f32.mrf.mxu0
  %7562 = vdwg.mxu0
  %7563 = vmatpush.bf16.msra.mxu0 %v4317
  %7564 = vmatpush.bf16.msra.mxu0 %v4313
  %7565 = vmatpush.bf16.msra.mxu0 %v4309
  %7566 = vmatpush.bf16.msra.mxu0 %v4305
  %7567 = vmatpush.bf16.msra.mxu0 %v4301
  %7568 = vmatpush.bf16.msra.mxu0 %v4297
  %7569 = vmatpush.bf16.msra.mxu0 %v4293
  %7570 = vmatpush.bf16.msra.mxu0 %v4289
  %7571 = vmatmul.bf16.gmra.mxu0 %v1119
  %v7572 = vpop.f32.mrf.mxu0
  %v7573 = vadd.f32 %v7560, %v7572
  %v7574 = vpop.f32.mrf.mxu0
  %7575 = vdwg.mxu0
  %7576 = vmatpush.bf16.msra.mxu0 %v4349
  %7577 = vmatpush.bf16.msra.mxu0 %v4345
  %7578 = vmatpush.bf16.msra.mxu0 %v4341
  %7579 = vmatpush.bf16.msra.mxu0 %v4337
  %7580 = vmatpush.bf16.msra.mxu0 %v4333
  %7581 = vmatpush.bf16.msra.mxu0 %v4329
  %7582 = vmatpush.bf16.msra.mxu0 %v4325
  %7583 = vmatpush.bf16.msra.mxu0 %v4321
  %7584 = vmatmul.bf16.gmra.mxu0 %v1120
  %v7585 = vpop.f32.mrf.mxu0
  %v7586 = vadd.f32 %v7573, %v7585
  %v7587 = vpop.f32.mrf.mxu0
  %7588 = vdwg.mxu0
  %7589 = vmatpush.bf16.msra.mxu0 %v4381
  %7590 = vmatpush.bf16.msra.mxu0 %v4377
  %7591 = vmatpush.bf16.msra.mxu0 %v4373
  %7592 = vmatpush.bf16.msra.mxu0 %v4369
  %7593 = vmatpush.bf16.msra.mxu0 %v4365
  %7594 = vmatpush.bf16.msra.mxu0 %v4361
  %7595 = vmatpush.bf16.msra.mxu0 %v4357
  %7596 = vmatpush.bf16.msra.mxu0 %v4353
  %7597 = vmatmul.bf16.gmra.mxu0 %v1121
  %v7598 = vpop.f32.mrf.mxu0
  %v7599 = vadd.f32 %v7586, %v7598
  %v7600 = vpop.f32.mrf.mxu0
  %7601 = vdwg.mxu0
  %7602 = vmatpush.bf16.msra.mxu0 %v4413
  %7603 = vmatpush.bf16.msra.mxu0 %v4409
  %7604 = vmatpush.bf16.msra.mxu0 %v4405
  %7605 = vmatpush.bf16.msra.mxu0 %v4401
  %7606 = vmatpush.bf16.msra.mxu0 %v4397
  %7607 = vmatpush.bf16.msra.mxu0 %v4393
  %7608 = vmatpush.bf16.msra.mxu0 %v4389
  %7609 = vmatpush.bf16.msra.mxu0 %v4385
  %7610 = vmatmul.bf16.gmra.mxu0 %v1122
  %v7611 = vpop.f32.mrf.mxu0
  %v7612 = vadd.f32 %v7599, %v7611
  %v7613 = vpop.f32.mrf.mxu0
  %7614 = vdwg.mxu0
  %7615 = vmatpush.bf16.msra.mxu0 %v4445
  %7616 = vmatpush.bf16.msra.mxu0 %v4441
  %7617 = vmatpush.bf16.msra.mxu0 %v4437
  %7618 = vmatpush.bf16.msra.mxu0 %v4433
  %7619 = vmatpush.bf16.msra.mxu0 %v4429
  %7620 = vmatpush.bf16.msra.mxu0 %v4425
  %7621 = vmatpush.bf16.msra.mxu0 %v4421
  %7622 = vmatpush.bf16.msra.mxu0 %v4417
  %7623 = vmatmul.bf16.gmra.mxu0 %v1123
  %v7624 = vpop.f32.mrf.mxu0
  %v7625 = vadd.f32 %v7612, %v7624
  %v7626 = vpop.f32.mrf.mxu0
  %7627 = vdwg.mxu0
  %7628 = vmatpush.bf16.msra.mxu0 %v4477
  %7629 = vmatpush.bf16.msra.mxu0 %v4473
  %7630 = vmatpush.bf16.msra.mxu0 %v4469
  %7631 = vmatpush.bf16.msra.mxu0 %v4465
  %7632 = vmatpush.bf16.msra.mxu0 %v4461
  %7633 = vmatpush.bf16.msra.mxu0 %v4457
  %7634 = vmatpush.bf16.msra.mxu0 %v4453
  %7635 = vmatpush.bf16.msra.mxu0 %v4449
  %7636 = vmatmul.bf16.gmra.mxu0 %v1124
  %v7637 = vpop.f32.mrf.mxu0
  %v7638 = vadd.f32 %v7625, %v7637
  %v7639 = vpop.f32.mrf.mxu0
  %7640 = vdwg.mxu0
  %7641 = vmatpush.bf16.msra.mxu0 %v4509
  %7642 = vmatpush.bf16.msra.mxu0 %v4505
  %7643 = vmatpush.bf16.msra.mxu0 %v4501
  %7644 = vmatpush.bf16.msra.mxu0 %v4497
  %7645 = vmatpush.bf16.msra.mxu0 %v4493
  %7646 = vmatpush.bf16.msra.mxu0 %v4489
  %7647 = vmatpush.bf16.msra.mxu0 %v4485
  %7648 = vmatpush.bf16.msra.mxu0 %v4481
  %7649 = vmatmul.bf16.gmra.mxu0 %v1125
  %v7650 = vpop.f32.mrf.mxu0
  %v7651 = vadd.f32 %v7638, %v7650
  %v7652 = vpop.f32.mrf.mxu0
  %7653 = vdwg.mxu0
  %7654 = vmatpush.bf16.msra.mxu0 %v4541
  %7655 = vmatpush.bf16.msra.mxu0 %v4537
  %7656 = vmatpush.bf16.msra.mxu0 %v4533
  %7657 = vmatpush.bf16.msra.mxu0 %v4529
  %7658 = vmatpush.bf16.msra.mxu0 %v4525
  %7659 = vmatpush.bf16.msra.mxu0 %v4521
  %7660 = vmatpush.bf16.msra.mxu0 %v4517
  %7661 = vmatpush.bf16.msra.mxu0 %v4513
  %7662 = vmatmul.bf16.gmra.mxu0 %v1126
  %v7663 = vpop.f32.mrf.mxu0
  %v7664 = vadd.f32 %v7651, %v7663
  %v7665 = vpop.f32.mrf.mxu0
  %7666 = vdwg.mxu0
  %7667 = vmatpush.bf16.msra.mxu0 %v4573
  %7668 = vmatpush.bf16.msra.mxu0 %v4569
  %7669 = vmatpush.bf16.msra.mxu0 %v4565
  %7670 = vmatpush.bf16.msra.mxu0 %v4561
  %7671 = vmatpush.bf16.msra.mxu0 %v4557
  %7672 = vmatpush.bf16.msra.mxu0 %v4553
  %7673 = vmatpush.bf16.msra.mxu0 %v4549
  %7674 = vmatpush.bf16.msra.mxu0 %v4545
  %7675 = vmatmul.bf16.gmra.mxu0 %v1127
  %v7676 = vpop.f32.mrf.mxu0
  %v7677 = vadd.f32 %v7664, %v7676
  %v7678 = vpop.f32.mrf.mxu0
  %7679 = vdwg.mxu0
  %7680 = vmatpush.bf16.msra.mxu0 %v4605
  %7681 = vmatpush.bf16.msra.mxu0 %v4601
  %7682 = vmatpush.bf16.msra.mxu0 %v4597
  %7683 = vmatpush.bf16.msra.mxu0 %v4593
  %7684 = vmatpush.bf16.msra.mxu0 %v4589
  %7685 = vmatpush.bf16.msra.mxu0 %v4585
  %7686 = vmatpush.bf16.msra.mxu0 %v4581
  %7687 = vmatpush.bf16.msra.mxu0 %v4577
  %7688 = vmatmul.bf16.gmra.mxu0 %v1128
  %v7689 = vpop.f32.mrf.mxu0
  %v7690 = vadd.f32 %v7677, %v7689
  %v7691 = vpop.f32.mrf.mxu0
  %7692 = vdwg.mxu0
  %7693 = vmatpush.bf16.msra.mxu0 %v4637
  %7694 = vmatpush.bf16.msra.mxu0 %v4633
  %7695 = vmatpush.bf16.msra.mxu0 %v4629
  %7696 = vmatpush.bf16.msra.mxu0 %v4625
  %7697 = vmatpush.bf16.msra.mxu0 %v4621
  %7698 = vmatpush.bf16.msra.mxu0 %v4617
  %7699 = vmatpush.bf16.msra.mxu0 %v4613
  %7700 = vmatpush.bf16.msra.mxu0 %v4609
  %7701 = vmatmul.bf16.gmra.mxu0 %v1129
  %v7702 = vpop.f32.mrf.mxu0
  %v7703 = vadd.f32 %v7690, %v7702
  %v7704 = vpop.f32.mrf.mxu0
  %7705 = vdwg.mxu0
  %7706 = vmatpush.bf16.msra.mxu0 %v4669
  %7707 = vmatpush.bf16.msra.mxu0 %v4665
  %7708 = vmatpush.bf16.msra.mxu0 %v4661
  %7709 = vmatpush.bf16.msra.mxu0 %v4657
  %7710 = vmatpush.bf16.msra.mxu0 %v4653
  %7711 = vmatpush.bf16.msra.mxu0 %v4649
  %7712 = vmatpush.bf16.msra.mxu0 %v4645
  %7713 = vmatpush.bf16.msra.mxu0 %v4641
  %7714 = vmatmul.bf16.gmra.mxu0 %v1130
  %v7715 = vpop.f32.mrf.mxu0
  %v7716 = vadd.f32 %v7703, %v7715
  %v7717 = vpop.f32.mrf.mxu0
  %7718 = vdwg.mxu0
  %7719 = vmatpush.bf16.msra.mxu0 %v4701
  %7720 = vmatpush.bf16.msra.mxu0 %v4697
  %7721 = vmatpush.bf16.msra.mxu0 %v4693
  %7722 = vmatpush.bf16.msra.mxu0 %v4689
  %7723 = vmatpush.bf16.msra.mxu0 %v4685
  %7724 = vmatpush.bf16.msra.mxu0 %v4681
  %7725 = vmatpush.bf16.msra.mxu0 %v4677
  %7726 = vmatpush.bf16.msra.mxu0 %v4673
  %7727 = vmatmul.bf16.gmra.mxu0 %v1131
  %v7728 = vpop.f32.mrf.mxu0
  %v7729 = vadd.f32 %v7716, %v7728
  %v7730 = vpop.f32.mrf.mxu0
  %7731 = vdwg.mxu0
  %7732 = vmatpush.bf16.msra.mxu0 %v4733
  %7733 = vmatpush.bf16.msra.mxu0 %v4729
  %7734 = vmatpush.bf16.msra.mxu0 %v4725
  %7735 = vmatpush.bf16.msra.mxu0 %v4721
  %7736 = vmatpush.bf16.msra.mxu0 %v4717
  %7737 = vmatpush.bf16.msra.mxu0 %v4713
  %7738 = vmatpush.bf16.msra.mxu0 %v4709
  %7739 = vmatpush.bf16.msra.mxu0 %v4705
  %7740 = vmatmul.bf16.gmra.mxu0 %v1132
  %v7741 = vpop.f32.mrf.mxu0
  %v7742 = vadd.f32 %v7729, %v7741
  %v7743 = vpop.f32.mrf.mxu0
  %7744 = vdwg.mxu0
  %7745 = vmatpush.bf16.msra.mxu0 %v4765
  %7746 = vmatpush.bf16.msra.mxu0 %v4761
  %7747 = vmatpush.bf16.msra.mxu0 %v4757
  %7748 = vmatpush.bf16.msra.mxu0 %v4753
  %7749 = vmatpush.bf16.msra.mxu0 %v4749
  %7750 = vmatpush.bf16.msra.mxu0 %v4745
  %7751 = vmatpush.bf16.msra.mxu0 %v4741
  %7752 = vmatpush.bf16.msra.mxu0 %v4737
  %7753 = vmatmul.bf16.gmra.mxu0 %v1133
  %v7754 = vpop.f32.mrf.mxu0
  %v7755 = vadd.f32 %v7742, %v7754
  %v7756 = vpop.f32.mrf.mxu0
  %7757 = vdwg.mxu0
  %7758 = vmatpush.bf16.msra.mxu0 %v4797
  %7759 = vmatpush.bf16.msra.mxu0 %v4793
  %7760 = vmatpush.bf16.msra.mxu0 %v4789
  %7761 = vmatpush.bf16.msra.mxu0 %v4785
  %7762 = vmatpush.bf16.msra.mxu0 %v4781
  %7763 = vmatpush.bf16.msra.mxu0 %v4777
  %7764 = vmatpush.bf16.msra.mxu0 %v4773
  %7765 = vmatpush.bf16.msra.mxu0 %v4769
  %7766 = vmatmul.bf16.gmra.mxu0 %v1134
  %v7767 = vpop.f32.mrf.mxu0
  %v7768 = vadd.f32 %v7755, %v7767
  %v7769 = vpop.f32.mrf.mxu0
  %7770 = vdwg.mxu0
  %7771 = vmatpush.bf16.msra.mxu0 %v4829
  %7772 = vmatpush.bf16.msra.mxu0 %v4825
  %7773 = vmatpush.bf16.msra.mxu0 %v4821
  %7774 = vmatpush.bf16.msra.mxu0 %v4817
  %7775 = vmatpush.bf16.msra.mxu0 %v4813
  %7776 = vmatpush.bf16.msra.mxu0 %v4809
  %7777 = vmatpush.bf16.msra.mxu0 %v4805
  %7778 = vmatpush.bf16.msra.mxu0 %v4801
  %7779 = vmatmul.bf16.gmra.mxu0 %v1135
  %v7780 = vpop.f32.mrf.mxu0
  %v7781 = vadd.f32 %v7768, %v7780
  %v7782 = vpop.f32.mrf.mxu0
  %7783 = vdwg.mxu0
  %7784 = vmatpush.bf16.msra.mxu0 %v4861
  %7785 = vmatpush.bf16.msra.mxu0 %v4857
  %7786 = vmatpush.bf16.msra.mxu0 %v4853
  %7787 = vmatpush.bf16.msra.mxu0 %v4849
  %7788 = vmatpush.bf16.msra.mxu0 %v4845
  %7789 = vmatpush.bf16.msra.mxu0 %v4841
  %7790 = vmatpush.bf16.msra.mxu0 %v4837
  %7791 = vmatpush.bf16.msra.mxu0 %v4833
  %7792 = vmatmul.bf16.gmra.mxu0 %v1136
  %v7793 = vpop.f32.mrf.mxu0
  %v7794 = vadd.f32 %v7781, %v7793
  %v7795 = vpop.f32.mrf.mxu0
  %7796 = vdwg.mxu0
  %7797 = vmatpush.bf16.msra.mxu0 %v4893
  %7798 = vmatpush.bf16.msra.mxu0 %v4889
  %7799 = vmatpush.bf16.msra.mxu0 %v4885
  %7800 = vmatpush.bf16.msra.mxu0 %v4881
  %7801 = vmatpush.bf16.msra.mxu0 %v4877
  %7802 = vmatpush.bf16.msra.mxu0 %v4873
  %7803 = vmatpush.bf16.msra.mxu0 %v4869
  %7804 = vmatpush.bf16.msra.mxu0 %v4865
  %7805 = vmatmul.bf16.gmra.mxu0 %v1137
  %v7806 = vpop.f32.mrf.mxu0
  %v7807 = vadd.f32 %v7794, %v7806
  %v7808 = vpop.f32.mrf.mxu0
  %7809 = vdwg.mxu0
  %7810 = vmatpush.bf16.msra.mxu0 %v4925
  %7811 = vmatpush.bf16.msra.mxu0 %v4921
  %7812 = vmatpush.bf16.msra.mxu0 %v4917
  %7813 = vmatpush.bf16.msra.mxu0 %v4913
  %7814 = vmatpush.bf16.msra.mxu0 %v4909
  %7815 = vmatpush.bf16.msra.mxu0 %v4905
  %7816 = vmatpush.bf16.msra.mxu0 %v4901
  %7817 = vmatpush.bf16.msra.mxu0 %v4897
  %7818 = vmatmul.bf16.gmra.mxu0 %v1138
  %v7819 = vpop.f32.mrf.mxu0
  %v7820 = vadd.f32 %v7807, %v7819
  %v7821 = vpop.f32.mrf.mxu0
  %7822 = vdwg.mxu0
  %7823 = vmatpush.bf16.msra.mxu0 %v4957
  %7824 = vmatpush.bf16.msra.mxu0 %v4953
  %7825 = vmatpush.bf16.msra.mxu0 %v4949
  %7826 = vmatpush.bf16.msra.mxu0 %v4945
  %7827 = vmatpush.bf16.msra.mxu0 %v4941
  %7828 = vmatpush.bf16.msra.mxu0 %v4937
  %7829 = vmatpush.bf16.msra.mxu0 %v4933
  %7830 = vmatpush.bf16.msra.mxu0 %v4929
  %7831 = vmatmul.bf16.gmra.mxu0 %v1139
  %v7832 = vpop.f32.mrf.mxu0
  %v7833 = vadd.f32 %v7820, %v7832
  %v7834 = vpop.f32.mrf.mxu0
  %7835 = vdwg.mxu0
  %7836 = vmatpush.bf16.msra.mxu0 %v4989
  %7837 = vmatpush.bf16.msra.mxu0 %v4985
  %7838 = vmatpush.bf16.msra.mxu0 %v4981
  %7839 = vmatpush.bf16.msra.mxu0 %v4977
  %7840 = vmatpush.bf16.msra.mxu0 %v4973
  %7841 = vmatpush.bf16.msra.mxu0 %v4969
  %7842 = vmatpush.bf16.msra.mxu0 %v4965
  %7843 = vmatpush.bf16.msra.mxu0 %v4961
  %7844 = vmatmul.bf16.gmra.mxu0 %v1140
  %v7845 = vpop.f32.mrf.mxu0
  %v7846 = vadd.f32 %v7833, %v7845
  %v7847 = vpop.f32.mrf.mxu0
  %7848 = vdwg.mxu0
  %7849 = vmatpush.bf16.msra.mxu0 %v5021
  %7850 = vmatpush.bf16.msra.mxu0 %v5017
  %7851 = vmatpush.bf16.msra.mxu0 %v5013
  %7852 = vmatpush.bf16.msra.mxu0 %v5009
  %7853 = vmatpush.bf16.msra.mxu0 %v5005
  %7854 = vmatpush.bf16.msra.mxu0 %v5001
  %7855 = vmatpush.bf16.msra.mxu0 %v4997
  %7856 = vmatpush.bf16.msra.mxu0 %v4993
  %7857 = vmatmul.bf16.gmra.mxu0 %v1141
  %v7858 = vpop.f32.mrf.mxu0
  %v7859 = vadd.f32 %v7846, %v7858
  %v7860 = vpop.f32.mrf.mxu0
  %7861 = vdwg.mxu0
  %7862 = vmatpush.bf16.msra.mxu0 %v5053
  %7863 = vmatpush.bf16.msra.mxu0 %v5049
  %7864 = vmatpush.bf16.msra.mxu0 %v5045
  %7865 = vmatpush.bf16.msra.mxu0 %v5041
  %7866 = vmatpush.bf16.msra.mxu0 %v5037
  %7867 = vmatpush.bf16.msra.mxu0 %v5033
  %7868 = vmatpush.bf16.msra.mxu0 %v5029
  %7869 = vmatpush.bf16.msra.mxu0 %v5025
  %7870 = vmatmul.bf16.gmra.mxu0 %v1142
  %v7871 = vpop.f32.mrf.mxu0
  %v7872 = vadd.f32 %v7859, %v7871
  %v7873 = vpop.f32.mrf.mxu0
  %7874 = vdwg.mxu0
  %7875 = vmatpush.bf16.msra.mxu0 %v5085
  %7876 = vmatpush.bf16.msra.mxu0 %v5081
  %7877 = vmatpush.bf16.msra.mxu0 %v5077
  %7878 = vmatpush.bf16.msra.mxu0 %v5073
  %7879 = vmatpush.bf16.msra.mxu0 %v5069
  %7880 = vmatpush.bf16.msra.mxu0 %v5065
  %7881 = vmatpush.bf16.msra.mxu0 %v5061
  %7882 = vmatpush.bf16.msra.mxu0 %v5057
  %7883 = vmatmul.bf16.gmra.mxu0 %v1143
  %v7884 = vpop.f32.mrf.mxu0
  %v7885 = vadd.f32 %v7872, %v7884
  %v7886 = vpop.f32.mrf.mxu0
  %7887 = vdwg.mxu0
  %7888 = vmatpush.bf16.msra.mxu0 %v5117
  %7889 = vmatpush.bf16.msra.mxu0 %v5113
  %7890 = vmatpush.bf16.msra.mxu0 %v5109
  %7891 = vmatpush.bf16.msra.mxu0 %v5105
  %7892 = vmatpush.bf16.msra.mxu0 %v5101
  %7893 = vmatpush.bf16.msra.mxu0 %v5097
  %7894 = vmatpush.bf16.msra.mxu0 %v5093
  %7895 = vmatpush.bf16.msra.mxu0 %v5089
  %7896 = vmatmul.bf16.gmra.mxu0 %v1144
  %v7897 = vpop.f32.mrf.mxu0
  %v7898 = vadd.f32 %v7885, %v7897
  %v7899 = vpop.f32.mrf.mxu0
  %7900 = vdwg.mxu0
  %7901 = vmatpush.bf16.msra.mxu0 %v5149
  %7902 = vmatpush.bf16.msra.mxu0 %v5145
  %7903 = vmatpush.bf16.msra.mxu0 %v5141
  %7904 = vmatpush.bf16.msra.mxu0 %v5137
  %7905 = vmatpush.bf16.msra.mxu0 %v5133
  %7906 = vmatpush.bf16.msra.mxu0 %v5129
  %7907 = vmatpush.bf16.msra.mxu0 %v5125
  %7908 = vmatpush.bf16.msra.mxu0 %v5121
  %7909 = vmatmul.bf16.gmra.mxu0 %v1145
  %v7910 = vpop.f32.mrf.mxu0
  %v7911 = vadd.f32 %v7898, %v7910
  %v7912 = vpop.f32.mrf.mxu0
  %7913 = vdwg.mxu0
  %7914 = vmatpush.bf16.msra.mxu0 %v5181
  %7915 = vmatpush.bf16.msra.mxu0 %v5177
  %7916 = vmatpush.bf16.msra.mxu0 %v5173
  %7917 = vmatpush.bf16.msra.mxu0 %v5169
  %7918 = vmatpush.bf16.msra.mxu0 %v5165
  %7919 = vmatpush.bf16.msra.mxu0 %v5161
  %7920 = vmatpush.bf16.msra.mxu0 %v5157
  %7921 = vmatpush.bf16.msra.mxu0 %v5153
  %7922 = vmatmul.bf16.gmra.mxu0 %v1146
  %v7923 = vpop.f32.mrf.mxu0
  %v7924 = vadd.f32 %v7911, %v7923
  %v7925 = vpop.f32.mrf.mxu0
  %7926 = vdwg.mxu0
  %7927 = vmatpush.bf16.msra.mxu0 %v5213
  %7928 = vmatpush.bf16.msra.mxu0 %v5209
  %7929 = vmatpush.bf16.msra.mxu0 %v5205
  %7930 = vmatpush.bf16.msra.mxu0 %v5201
  %7931 = vmatpush.bf16.msra.mxu0 %v5197
  %7932 = vmatpush.bf16.msra.mxu0 %v5193
  %7933 = vmatpush.bf16.msra.mxu0 %v5189
  %7934 = vmatpush.bf16.msra.mxu0 %v5185
  %7935 = vmatmul.bf16.gmra.mxu0 %v1147
  %v7936 = vpop.f32.mrf.mxu0
  %v7937 = vadd.f32 %v7924, %v7936
  %v7938 = vpop.f32.mrf.mxu0
  %7939 = vdwg.mxu0
  %7940 = vmatpush.bf16.msra.mxu0 %v5245
  %7941 = vmatpush.bf16.msra.mxu0 %v5241
  %7942 = vmatpush.bf16.msra.mxu0 %v5237
  %7943 = vmatpush.bf16.msra.mxu0 %v5233
  %7944 = vmatpush.bf16.msra.mxu0 %v5229
  %7945 = vmatpush.bf16.msra.mxu0 %v5225
  %7946 = vmatpush.bf16.msra.mxu0 %v5221
  %7947 = vmatpush.bf16.msra.mxu0 %v5217
  %7948 = vmatmul.bf16.gmra.mxu0 %v1148
  %v7949 = vpop.f32.mrf.mxu0
  %v7950 = vadd.f32 %v7937, %v7949
  %v7951 = vpop.f32.mrf.mxu0
  %7952 = vdwg.mxu0
  %7953 = vmatpush.bf16.msra.mxu0 %v5277
  %7954 = vmatpush.bf16.msra.mxu0 %v5273
  %7955 = vmatpush.bf16.msra.mxu0 %v5269
  %7956 = vmatpush.bf16.msra.mxu0 %v5265
  %7957 = vmatpush.bf16.msra.mxu0 %v5261
  %7958 = vmatpush.bf16.msra.mxu0 %v5257
  %7959 = vmatpush.bf16.msra.mxu0 %v5253
  %7960 = vmatpush.bf16.msra.mxu0 %v5249
  %7961 = vmatmul.bf16.gmra.mxu0 %v1149
  %v7962 = vpop.f32.mrf.mxu0
  %v7963 = vadd.f32 %v7950, %v7962
  %v7964 = vpop.f32.mrf.mxu0
  %7965 = vdwg.mxu0
  %v7966 = vrot.slane %v6715, 4
  %v7967 = vadd.f32 %v6715, %v7966
  %v7968 = vrot.slane %v7967, 2
  %v7969 = vadd.f32 %v7967, %v7968
  %v7970 = vrot.slane %v7969, 1
  %v7971 = vadd.f32 %v7969, %v7970
  %v7972 = vrot.slane %v7131, 4
  %v7973 = vadd.f32 %v7131, %v7972
  %v7974 = vrot.slane %v7973, 2
  %v7975 = vadd.f32 %v7973, %v7974
  %v7976 = vrot.slane %v7975, 1
  %v7977 = vadd.f32 %v7975, %v7976
  %v7978 = vrot.slane %v7547, 4
  %v7979 = vadd.f32 %v7547, %v7978
  %v7980 = vrot.slane %v7979, 2
  %v7981 = vadd.f32 %v7979, %v7980
  %v7982 = vrot.slane %v7981, 1
  %v7983 = vadd.f32 %v7981, %v7982
  %v7984 = vrot.slane %v7963, 4
  %v7985 = vadd.f32 %v7963, %v7984
  %v7986 = vrot.slane %v7985, 2
  %v7987 = vadd.f32 %v7985, %v7986
  %v7988 = vrot.slane %v7987, 1
  %v7989 = vadd.f32 %v7987, %v7988
  %v7990 = vrcp.pop 8.0
  %v7991 = vmul.f32 8.0, %v7990
  %v7992 = vsub.f32 1.0, %v7991
  %v7993 = vmul.f32 %v7990, %v7992
  %v7994 = vadd.f32 %v7990, %v7993
  %vm7995 = vweird.f32 %v7990
  %v7996 = vsel %vm7995, %v7990, %v7994
  %v7997 = vmul.f32 %v7971, %v7996
  %v7998 = vmul.f32 %v7977, %v7996
  %v7999 = vmul.f32 %v7983, %v7996
  %v8000 = vmul.f32 %v7989, %v7996
  %v8001 = vsub.f32 %v6715, %v7997
  %v8002 = vsub.f32 %v7131, %v7998
  %v8003 = vsub.f32 %v7547, %v7999
  %v8004 = vsub.f32 %v7963, %v8000
  %v8005 = vmul.f32 %v8001, %v8001
  %v8006 = vmul.f32 %v8002, %v8002
  %v8007 = vmul.f32 %v8003, %v8003
  %v8008 = vmul.f32 %v8004, %v8004
  %v8009 = vrot.slane %v8005, 4
  %v8010 = vadd.f32 %v8005, %v8009
  %v8011 = vrot.slane %v8010, 2
  %v8012 = vadd.f32 %v8010, %v8011
  %v8013 = vrot.slane %v8012, 1
  %v8014 = vadd.f32 %v8012, %v8013
  %v8015 = vrot.slane %v8006, 4
  %v8016 = vadd.f32 %v8006, %v8015
  %v8017 = vrot.slane %v8016, 2
  %v8018 = vadd.f32 %v8016, %v8017
  %v8019 = vrot.slane %v8018, 1
  %v8020 = vadd.f32 %v8018, %v8019
  %v8021 = vrot.slane %v8007, 4
  %v8022 = vadd.f32 %v8007, %v8021
  %v8023 = vrot.slane %v8022, 2
  %v8024 = vadd.f32 %v8022, %v8023
  %v8025 = vrot.slane %v8024, 1
  %v8026 = vadd.f32 %v8024, %v8025
  %v8027 = vrot.slane %v8008, 4
  %v8028 = vadd.f32 %v8008, %v8027
  %v8029 = vrot.slane %v8028, 2
  %v8030 = vadd.f32 %v8028, %v8029
  %v8031 = vrot.slane %v8030, 1
  %v8032 = vadd.f32 %v8030, %v8031
  %v8033 = vmul.f32 %v8014, %v7996
  %v8034 = vmul.f32 %v8020, %v7996
  %v8035 = vmul.f32 %v8026, %v7996
  %v8036 = vmul.f32 %v8032, %v7996
  %v8037 = vld [vmem:[%s3] sm:$0xf]
  %v8038 = vadd.f32 %v8033, 1e-05
  %v8039 = vadd.f32 %v8034, 1e-05
  %v8040 = vadd.f32 %v8035, 1e-05
  %v8041 = vadd.f32 %v8036, 1e-05
  %v8042 = vrsqrt.pop %v8038
  %v8043 = vmul.f32 %v8042, %v8038
  %v8044 = vmul.f32 %v8043, %v8042
  %v8045 = vmul.f32 0.5, %v8044
  %v8046 = vsub.f32 1.5, %v8045
  %v8047 = vmul.f32 %v8042, %v8046
  %vm8048 = vweird.f32 %v8038
  %vm8049 = vweird.f32 %v8042
  %vm8050 = vmor %vm8048, %vm8049
  %v8051 = vsel %vm8050, %v8042, %v8047
  %v8052 = vrsqrt.pop %v8039
  %v8053 = vmul.f32 %v8052, %v8039
  %v8054 = vmul.f32 %v8053, %v8052
  %v8055 = vmul.f32 0.5, %v8054
  %v8056 = vsub.f32 1.5, %v8055
  %v8057 = vmul.f32 %v8052, %v8056
  %vm8058 = vweird.f32 %v8039
  %vm8059 = vweird.f32 %v8052
  %vm8060 = vmor %vm8058, %vm8059
  %v8061 = vsel %vm8060, %v8052, %v8057
  %v8062 = vrsqrt.pop %v8040
  %v8063 = vmul.f32 %v8062, %v8040
  %v8064 = vmul.f32 %v8063, %v8062
  %v8065 = vmul.f32 0.5, %v8064
  %v8066 = vsub.f32 1.5, %v8065
  %v8067 = vmul.f32 %v8062, %v8066
  %vm8068 = vweird.f32 %v8040
  %vm8069 = vweird.f32 %v8062
  %vm8070 = vmor %vm8068, %vm8069
  %v8071 = vsel %vm8070, %v8062, %v8067
  %v8072 = vrsqrt.pop %v8041
  %v8073 = vmul.f32 %v8072, %v8041
  %v8074 = vmul.f32 %v8073, %v8072
  %v8075 = vmul.f32 0.5, %v8074
  %v8076 = vsub.f32 1.5, %v8075
  %v8077 = vmul.f32 %v8072, %v8076
  %vm8078 = vweird.f32 %v8041
  %vm8079 = vweird.f32 %v8072
  %vm8080 = vmor %vm8078, %vm8079
  %v8081 = vsel %vm8080, %v8072, %v8077
  %v8086 = vrot.slane %v8061, 7
  %v8087 = vrot.slane %v8071, 6
  %v8088 = vrot.slane %v8081, 5
  %vm8089 = vcmask 1040384
  %v8090 = vsel %vm8089, %v8051, %v8086
  %vm8091 = vcmask 1042434
  %v8092 = vsel %vm8091, %v8087, %v8088
  %vm8093 = vcmask 1041408
  %v8094 = vsel %vm8093, %v8090, %v8092
  %v8096 = vmul.f32 %v8037, %v8094
  %v8098 = vperm.slane %v8096, 0
  %v8099 = vperm.slane %v8096, 1
  %v8100 = vperm.slane %v8096, 2
  %v8101 = vperm.slane %v8096, 3
  %v8106 = vmul.f32 %v8001, %v8098
  %v8107 = vmul.f32 %v8002, %v8099
  %v8108 = vmul.f32 %v8003, %v8100
  %v8109 = vmul.f32 %v8004, %v8101
  %v8110 = vld [vmem:[%s4] sm:$0xf]
  %v8112 = vperm.slane %v8110, 0
  %v8113 = vperm.slane %v8110, 1
  %v8114 = vperm.slane %v8110, 2
  %v8115 = vperm.slane %v8110, 3
  %v8120 = vadd.f32 %v8106, %v8112
  %v8121 = vadd.f32 %v8107, %v8113
  %v8122 = vadd.f32 %v8108, %v8114
  %v8123 = vadd.f32 %v8109, %v8115
  %vm8124 = vcmp.ge.f32.partialorder %v8120, 0.0
  %vm8125 = vcmp.ge.f32.partialorder %v8121, 0.0
  %vm8126 = vcmp.ge.f32.partialorder %v8122, 0.0
  %vm8127 = vcmp.ge.f32.partialorder %v8123, 0.0
  %v8128 = vmul.f32 %v8120, 0.2
  %v8129 = vmul.f32 %v8121, 0.2
  %v8130 = vmul.f32 %v8122, 0.2
  %v8131 = vmul.f32 %v8123, 0.2
  %v8132 = vsel %vm8124, %v8120, %v8128
  %v8133 = vsel %vm8125, %v8121, %v8129
  %v8134 = vsel %vm8126, %v8122, %v8130
  %v8135 = vsel %vm8127, %v8123, %v8131
  %8136 = vst [vmem:[%s5] sm:$0xff] %v8132
  %8137 = vst [vmem:[%s5 + $0x8] sm:$0xff] %v8133
  %8138 = vst [vmem:[%s5 + $0x10] sm:$0xff] %v8134
  %8139 = vst [vmem:[%s5 + $0x18] sm:$0xff] %v8135
  // Predicated region
  $region22: #{discriminator_forward.8} parent=0 // pred_check
    _
  $region23: #{discriminator_forward.8} parent=0 // pred_check_branch
    %8141 = sbr.rel (0) target = $region25
  $region24: #{discriminator_forward.8} parent=0 // pred_region
    _
  $region25: #{discriminator_forward.8} parent=0 // pred_fallthru
    _
  // Predicated region
  $region26: #{discriminator_forward.8} parent=0 // pred_check
    _
  $region27: #{discriminator_forward.8} parent=0 // pred_check_branch
    %8143 = sbr.rel (0) target = $region29
  $region28: #{discriminator_forward.8} parent=0 // pred_region
    _
  $region29: #{discriminator_forward.8} parent=0 // pred_fallthru
    _

</llo_original>
